<compile_context>
chip_gen: v7x
topology: tpu7x:2x2x1
jax: 0.10.0
libtpu: 0.0.40
codegen_flags: <defaults>
</compile_context>

<pallas_src>
import jax
import jax.numpy as jnp
from jax.experimental import pallas as pl
from jax.experimental.pallas import tpu as pltpu

BOARD = 9                        # shogi board is 9x9
PADB = BOARD + 2                 # 11: zero-padded board side
IMG_ROWS = PADB * PADB           # 121 real rows per board (row = yp*11 + xp)
ROWS = 128                       # per-board row tile, padded to a multiple of 8 (fills MXU M)
GUARD = 16                       # sublane-aligned guard >= PADB+1=12 so every tap stays in-bounds
SRC_ROWS = 160                   # >= GUARD + ROWS + (PADB+1) = 156, padded to a multiple of 8


# ----------------------------- in-kernel helpers -----------------------------

def _sigmoid(y):
    # 1/(1+exp(-y)) with the divide pushed onto the EUP reciprocal slot.
    # NOTE: approx=True (~2^-12 rel err) compounds slightly over blocks; use approx=False when
    # validating numerics against the PyTorch reference.
    return pl.reciprocal(1.0 + jnp.exp(-y), approx=True)


def _silu(y):
    return y * _sigmoid(y)


# ------------------------------ fused trunk kernel ---------------------------

def _trunk_kernel(x_ref, mask_ref,
                  stem_w_ref, stem_s_ref, stem_b_ref,
                  w1_ref, s1_ref, b1_ref,
                  w2_ref, s2_ref, b2_ref,
                  w3_ref, s3_ref, b3_ref,
                  sw1_ref, sb1_ref, sw2_ref, sb2_ref,
                  head_w_ref, pol_b_ref, val_s_ref, val_b_ref,
                  p_out_ref, v_out_ref,
                  cbuf_ref):
    """One grid step = NB boards. Stem, all residual SE blocks and the fused head 1x1 convs
    run back-to-back with every activation resident in VMEM."""
    f32, bf16 = jnp.float32, jnp.bfloat16
    n_blocks = w1_ref.shape[0]
    channels = stem_s_ref.shape[-1]
    hidden = w1_ref.shape[-1]
    cp = val_s_ref.shape[-1]
    NB = x_ref.shape[0]
    M = NB * ROWS

    def conv3x3(src_ref, w):
        # im2col: 9 constant-row-shift views of the zero-guarded source, concatenated on lanes,
        # then ONE K=9*cin MXU dot (instead of 9 tiny K=cin dots).
        cols = []
        for t in range(9):
            shift = PADB * (t // 3 - 1) + (t % 3 - 1)       # row offset of tap (dy, dx)
            lo = GUARD + shift
            cols.append(src_ref[:, lo:lo + ROWS, :])        # (NB, ROWS, cin) f32
        im2col = jnp.concatenate(cols, axis=-1).reshape(M, -1).astype(bf16)   # (M, 9*cin)
        return jnp.dot(im2col, w, preferred_element_type=f32)                 # (M, cout) f32

    # hoisted mask broadcasts (JAX does not CSE broadcast_in_dim across the unrolled loop)
    m = mask_ref[...]                                        # (M, 1): 1 on the 81 real board cells
    m_h = jnp.broadcast_to(m, (M, hidden))
    m_c = jnp.broadcast_to(m, (M, channels))

    # zero only the conv-scratch guard rows, once per grid step (masked t1 keeps them zero later)
    cbuf_ref[:, :GUARD, :] = jnp.zeros((NB, GUARD, hidden), f32)
    cbuf_ref[:, GUARD + ROWS:, :] = jnp.zeros((NB, SRC_ROWS - GUARD - ROWS, hidden), f32)

    # ---- NetworkBase stem: 3x3 conv + folded BN + SiLU (reads the guarded input directly) ----
    h = _silu(conv3x3(x_ref, stem_w_ref[...]) * stem_s_ref[...] + stem_b_ref[...]) * m_c   # (M, C)

    # ---- bottleneck residual blocks with squeeze-excitation ----
    for i in range(n_blocks):
        # 1x1 reduce + BN + SiLU; the mask keeps pad/guard rows at zero for the conv staging
        t1 = _silu(jnp.dot(h.astype(bf16), w1_ref[i], preferred_element_type=f32)
                   * s1_ref[i] + b1_ref[i]) * m_h                              # (M, hidden)

        # 3x3 conv: stage t1 at a sublane-aligned offset in the guarded scratch, then one dot
        cbuf_ref[:, GUARD:GUARD + ROWS, :] = t1.reshape(NB, ROWS, hidden)
        t2 = _silu(conv3x3(cbuf_ref, w2_ref[i]) * s2_ref[i] + b2_ref[i])       # (M, hidden)

        # 1x1 expand + BN (no activation yet)
        t3 = (jnp.dot(t2.astype(bf16), w3_ref[i], preferred_element_type=f32)
              * s3_ref[i] + b3_ref[i])                                         # (M, C)

        # squeeze-excitation: masked global average pool over the 81 board cells + 2-layer MLP
        pooled = jnp.sum((t3 * m_c).reshape(NB, ROWS, channels), axis=1) * (1.0 / (BOARD * BOARD))
        g = _silu(jnp.dot(pooled.astype(bf16), sw1_ref[i], preferred_element_type=f32)
                  + sb1_ref[i])
        g = _sigmoid(jnp.dot(g.astype(bf16), sw2_ref[i], preferred_element_type=f32)
                     + sb2_ref[i])                                             # (NB, C) gate

        # gate (per-board broadcast) + residual + SiLU
        h3 = _silu(t3.reshape(NB, ROWS, channels) * g[:, None, :]
                   + h.reshape(NB, ROWS, channels))
        h = h3.reshape(M, channels)

    # ---- heads: one fused (C, 2*cp) dot, then split lanes into policy / value-conv epilogues ----
    hd = jnp.dot(h.astype(bf16), head_w_ref[...], preferred_element_type=f32)  # (M, 2*cp)
    p_out_ref[...] = (hd[:, :cp] + pol_b_ref[...]).reshape(NB, ROWS, cp).astype(p_out_ref.dtype)
    v_out_ref[...] = _silu(hd[:, cp:] * val_s_ref[...]
                           + val_b_ref[...]).reshape(NB, ROWS, cp).astype(v_out_ref.dtype)


def trunk_forward(xpad, p, *, nb):
    """Run stem + all blocks + fused head 1x1 convs in a single pallas_call, NB boards/step."""
    B, src_rows, cin = xpad.shape
    assert B % nb == 0
    hidden = p["w1"].shape[-1]
    cp = p["head_w"].shape[-1] // 2

    # per-step constants tiled to the NB-board row layout
    mask_t = jnp.tile(p["mask"], (nb, 1))                  # (nb*ROWS, 1)
    polb_t = jnp.tile(p["policy_bias_rows"], (nb, 1))      # (nb*ROWS, cp)

    inputs = [xpad, mask_t, p["stem_w"], p["stem_s"], p["stem_b"],
              p["w1"], p["s1"], p["b1"], p["w2"], p["s2"], p["b2"],
              p["w3"], p["s3"], p["b3"],
              p["se_w1"], p["se_b1"], p["se_w2"], p["se_b2"],
              p["head_w"], polb_t, p["value_s"], p["value_b"]]

    def resident(a):
        # whole array resident in VMEM, same block every grid step
        return pl.BlockSpec(a.shape, lambda b, _nd=a.ndim: (0,) * _nd)

    in_specs = ([pl.BlockSpec((nb, src_rows, cin), lambda b: (b, 0, 0))]
                + [resident(a) for a in inputs[1:]])
    out_specs = [pl.BlockSpec((nb, ROWS, cp), lambda b: (b, 0, 0)),
                 pl.BlockSpec((nb, ROWS, cp), lambda b: (b, 0, 0))]
    out_shape = [jax.ShapeDtypeStruct((B, ROWS, cp), jnp.float32),
                 jax.ShapeDtypeStruct((B, ROWS, cp), jnp.float32)]

    # TODO(synk): for production dlshogi configs (channels~256, 10-20 blocks) on v7x (64 MiB VMEM)
    # stream the block weights over a second "arbitrary" grid axis with pl.Buffered(2) BlockSpecs
    # instead of keeping all of them resident, and re-budget NB per generation.
    p_rows, v_rows = pl.pallas_call(
        _trunk_kernel,
        grid=(B // nb,),
        in_specs=in_specs,
        out_specs=out_specs,
        out_shape=out_shape,
        scratch_shapes=[pltpu.VMEM((nb, SRC_ROWS, hidden), jnp.float32)],
        compiler_params=pltpu.CompilerParams(
            dimension_semantics=("parallel",),
            vmem_limit_bytes=64 * 1024 * 1024),
    )(*inputs)
    return p_rows, v_rows


# ------------------------------ value-head MLP kernel -------------------------

_VMEM = pl.BlockSpec(memory_space=pltpu.MemorySpace.VMEM)


def _value_mlp_kernel(v_ref, w1_ref, b1_ref, w2_ref, b2_ref, o_ref):
    z = _silu(jnp.dot(v_ref[...].astype(jnp.bfloat16), w1_ref[...],
                      preferred_element_type=jnp.float32) + b1_ref[...])
    o_ref[...] = (jnp.dot(z.astype(jnp.bfloat16), w2_ref[...],
                          preferred_element_type=jnp.float32)
                  + b2_ref[...]).astype(o_ref.dtype)


def value_mlp(vflat, w1, b1, w2, b2):
    return pl.pallas_call(
        _value_mlp_kernel,
        out_shape=jax.ShapeDtypeStruct((vflat.shape[0], 1), jnp.float32),
        in_specs=[_VMEM] * 5,
        out_specs=_VMEM,
    )(vflat, w1, b1, w2, b2)


# --------------------------------- parameters --------------------------------

def init_params(key, *, in_channels, channels, blocks, features, policy_channels,
                bottleneck_expansion=4, se_reduction=4, bn_eps=1e-5):
    hidden = max(channels // bottleneck_expansion, 1)
    se_hidden = max(channels // se_reduction, 1)
    counter = [0]

    def nk():
        counter[0] += 1
        return jax.random.fold_in(key, counter[0])

    def conv3x3(cin, cout):
        return jax.random.normal(nk(), (3, 3, cin, cout), jnp.float32) * 0.1

    def conv1x1(cin, cout):
        return jax.random.normal(nk(), (cin, cout), jnp.float32) * 0.1

    def bn(c):
        gamma = 1.0 + jax.random.normal(nk(), (c,), jnp.float32) * 0.05
        beta = jax.random.normal(nk(), (c,), jnp.float32) * 0.05
        scale = gamma / jnp.sqrt(1.0 + bn_eps)   # eval-mode fold, running_mean=0 / var=1
        return scale, beta

    def vec(c):
        return jax.random.normal(nk(), (c,), jnp.float32) * 0.05

    stem_s, stem_b = bn(channels)
    params = {"stem_w": conv3x3(in_channels, channels),
              "stem_scale": stem_s, "stem_bias": stem_b, "blocks": []}
    for _ in range(blocks):
        s1, b1 = bn(hidden)
        s2, b2 = bn(hidden)
        s3, b3 = bn(channels)
        params["blocks"].append({
            "w1": conv1x1(channels, hidden), "s1": s1, "b1": b1,
            "w2": conv3x3(hidden, hidden), "s2": s2, "b2": b2,
            "w3": conv1x1(hidden, channels), "s3": s3, "b3": b3,
            "se_w1": conv1x1(channels, se_hidden), "se_b1": vec(se_hidden),
            "se_w2": conv1x1(se_hidden, channels), "se_b2": vec(channels),
        })
    vs, vb = bn(policy_channels)
    params.update({
        "policy_w": conv1x1(channels, policy_channels),
        "policy_bias": vec(policy_channels * BOARD * BOARD),     # flat bias in (c, h, w) order
        "value_conv_w": conv1x1(channels, policy_channels),
        "value_conv_s": vs, "value_conv_b": vb,
        "value_fc1_w": conv1x1(policy_channels * BOARD * BOARD, features),
        "value_fc1_b": vec(features),
        "value_fc2_w": conv1x1(features, 1),
        "value_fc2_b": vec(1),
    })
    return params


def pack_params(params):
    """Repack to the kernel layout: stacked block weights, (9*cin, cout) conv weights, bf16 MXU
    operands, f32 epilogue scale/bias rows, policy flat bias + value fc1 rows pre-scattered to
    the padded-row layout, fused head weight."""
    bf, f32 = jnp.bfloat16, jnp.float32
    blocks = params["blocks"]
    cp = params["policy_w"].shape[-1]
    features = params["value_fc1_w"].shape[-1]

    def taps(w):                 # (3,3,cin,cout) -> (9*cin, cout); row = ((dy+1)*3+(dx+1))*cin+ci
        return w.reshape(-1, w.shape[-1]).astype(bf)

    def vec_row(v):
        return v[None, :].astype(f32)

    def stack(fn, k):
        return jnp.stack([fn(blk[k]) for blk in blocks])

    # interior-cell mask over the padded-row layout, padded to ROWS rows
    pos = jnp.arange(PADB)
    inside = (pos >= 1) & (pos <= BOARD)
    mask = (inside[:, None] & inside[None, :]).astype(f32).reshape(IMG_ROWS, 1)
    mask = jnp.pad(mask, ((0, ROWS - IMG_ROWS), (0, 0)))

    # policy flat bias ((c,h,w) order) scattered to the padded-row layout, added in-kernel
    pb = params["policy_bias"].reshape(cp, BOARD, BOARD).transpose(1, 2, 0)          # (9,9,cp)
    pb_rows = jnp.pad(pb, ((1, 1), (1, 1), (0, 0))).reshape(IMG_ROWS, cp)
    pb_rows = jnp.pad(pb_rows, ((0, ROWS - IMG_ROWS), (0, 0))).astype(f32)

    # value fc1 rows permuted from the PyTorch (c,h,w) flatten order to the kernel row layout
    # (zero rows for pad/guard cells -> no XLA transpose needed on the value path)
    fc1 = params["value_fc1_w"].reshape(cp, BOARD, BOARD, features).transpose(1, 2, 0, 3)
    fc1 = jnp.pad(fc1, ((1, 1), (1, 1), (0, 0), (0, 0)))                 # (11,11,cp,features)
    fc1 = fc1.reshape(IMG_ROWS, cp, features)
    fc1 = jnp.pad(fc1, ((0, ROWS - IMG_ROWS), (0, 0), (0, 0)))
    fc1_rows = fc1.reshape(ROWS * cp, features).astype(bf)

    # TODO(synk): when importing real PyTorch weights, apply the full BN fold
    # (scale=gamma/sqrt(var+eps), bias=beta-mean*scale) and permute conv weights to (dy,dx,cin,cout).
    return {
        "mask": mask,
        "stem_w": taps(params["stem_w"]),
        "stem_s": vec_row(params["stem_scale"]), "stem_b": vec_row(params["stem_bias"]),
        "w1": stack(lambda w: w.astype(bf), "w1"),
        "s1": stack(vec_row, "s1"), "b1": stack(vec_row, "b1"),
        "w2": stack(taps, "w2"),
        "s2": stack(vec_row, "s2"), "b2": stack(vec_row, "b2"),
        "w3": stack(lambda w: w.astype(bf), "w3"),
        "s3": stack(vec_row, "s3"), "b3": stack(vec_row, "b3"),
        "se_w1": stack(lambda w: w.astype(bf), "se_w1"), "se_b1": stack(vec_row, "se_b1"),
        "se_w2": stack(lambda w: w.astype(bf), "se_w2"), "se_b2": stack(vec_row, "se_b2"),
        "head_w": jnp.concatenate([params["policy_w"], params["value_conv_w"]],
                                  axis=1).astype(bf),
        "policy_bias_rows": pb_rows,
        "value_s": vec_row(params["value_conv_s"]), "value_b": vec_row(params["value_conv_b"]),
        "value_fc1_rows": fc1_rows,
        "value_fc1_b": vec_row(params["value_fc1_b"]),
        "value_fc2_w": params["value_fc2_w"].astype(bf),
        "value_fc2_b": params["value_fc2_b"][None, :].astype(f32),
    }


# --------------------------------- forward -----------------------------------

def policy_value_forward(packed, x_nchw, *, nb=2):
    B, cin, H, W = x_nchw.shape
    assert H == BOARD and W == BOARD
    cp = packed["head_w"].shape[-1] // 2
    nb = nb if B % nb == 0 else 1          # boards per grid step (M = nb*128 per MXU dot)

    # NCHW -> zero-guarded padded-row layout (B, SRC_ROWS, Cin)
    x = jnp.transpose(x_nchw, (0, 2, 3, 1)).astype(jnp.float32)        # NHWC
    xp = jnp.pad(x, ((0, 0), (1, 1), (1, 1), (0, 0))).reshape(B, IMG_ROWS, cin)
    xp = jnp.pad(xp, ((0, 0), (GUARD, SRC_ROWS - GUARD - IMG_ROWS), (0, 0)))

    p_rows, v_rows = trunk_forward(xp, packed, nb=nb)                  # (B, 128, cp) each

    # TODO(synk): the policy interior-row extraction + (c,h,w) flatten stays in XLA on a tiny
    # (B,648) tensor; there is no clean in-kernel reshape across the unaligned 11x11 row grouping.
    pr = p_rows[:, :IMG_ROWS, :].reshape(B, PADB, PADB, cp)[:, 1:-1, 1:-1, :]
    policy = pr.transpose(0, 3, 1, 2).reshape(B, cp * BOARD * BOARD)   # PyTorch (c,h,w) flatten

    # value: fc1 rows are pre-permuted to the kernel row layout -> plain contiguous reshape only
    vflat = v_rows.reshape(B, ROWS * cp)
    value = value_mlp(vflat, packed["value_fc1_rows"], packed["value_fc1_b"],
                      packed["value_fc2_w"], packed["value_fc2_b"])
    return policy, value


if __name__ == "__main__":
    key = jax.random.PRNGKey(0)

    # Small, shogi-shaped configuration: blocks=2, channels=32 (hidden=8), features=32,
    # 8 input feature planes, 8 policy move-label planes, batch=2, board 9x9.
    B, in_channels = 2, 8
    channels, blocks, features, policy_channels = 32, 2, 32, 8

    params = init_params(jax.random.fold_in(key, 1),
                         in_channels=in_channels, channels=channels, blocks=blocks,
                         features=features, policy_channels=policy_channels)
    packed = pack_params(params)

    x = jax.random.normal(jax.random.fold_in(key, 2), (B, in_channels, BOARD, BOARD), jnp.float32)

    fwd = jax.jit(policy_value_forward)
    policy, value = fwd(packed, x)
    jax.block_until_ready((policy, value))

    assert policy.shape == (B, policy_channels * BOARD * BOARD), policy.shape
    assert value.shape == (B, 1), value.shape
    assert policy.dtype == jnp.float32 and value.dtype == jnp.float32
    assert bool(jnp.all(jnp.isfinite(policy))) and bool(jnp.all(jnp.isfinite(value)))

    print("KERNEL_OK")
</pallas_src>

<mosaic_0001>
module attributes {stable_mosaic.version = 11 : i64} {
  func.func @_trunk_kernel(%arg0: i32, %arg1: memref<2x160x8xf32, #tpu.memory_space<vmem>>, %arg2: memref<256x1xf32, #tpu.memory_space<vmem>>, %arg3: memref<72x32xbf16, #tpu.memory_space<vmem>>, %arg4: memref<1x32xf32, #tpu.memory_space<vmem>>, %arg5: memref<1x32xf32, #tpu.memory_space<vmem>>, %arg6: memref<2x32x8xbf16, #tpu.memory_space<vmem>>, %arg7: memref<2x1x8xf32, #tpu.memory_space<vmem>>, %arg8: memref<2x1x8xf32, #tpu.memory_space<vmem>>, %arg9: memref<2x72x8xbf16, #tpu.memory_space<vmem>>, %arg10: memref<2x1x8xf32, #tpu.memory_space<vmem>>, %arg11: memref<2x1x8xf32, #tpu.memory_space<vmem>>, %arg12: memref<2x8x32xbf16, #tpu.memory_space<vmem>>, %arg13: memref<2x1x32xf32, #tpu.memory_space<vmem>>, %arg14: memref<2x1x32xf32, #tpu.memory_space<vmem>>, %arg15: memref<2x32x8xbf16, #tpu.memory_space<vmem>>, %arg16: memref<2x1x8xf32, #tpu.memory_space<vmem>>, %arg17: memref<2x8x32xbf16, #tpu.memory_space<vmem>>, %arg18: memref<2x1x32xf32, #tpu.memory_space<vmem>>, %arg19: memref<32x16xbf16, #tpu.memory_space<vmem>>, %arg20: memref<256x8xf32, #tpu.memory_space<vmem>>, %arg21: memref<1x8xf32, #tpu.memory_space<vmem>>, %arg22: memref<1x8xf32, #tpu.memory_space<vmem>>, %arg23: memref<2x128x8xf32, #tpu.memory_space<vmem>>, %arg24: memref<2x128x8xf32, #tpu.memory_space<vmem>>, %arg25: memref<2x160x8xf32, #tpu.memory_space<vmem>>) attributes {dimension_semantics = [#tpu.dimension_semantics<parallel>], iteration_bounds = array<i64: 1>, scalar_prefetch = 0 : i64, scratch_operands = 1 : i64, tpu.core_type = #tpu.core_type<tc>, window_params = [{transform_indices = @transform_0, window_bounds = array<i64: 2, 160, 8>}, {pipeline_mode = #tpu.pipeline_mode<synchronous>, transform_indices = @transform_1, window_bounds = array<i64: 256, 1>}, {pipeline_mode = #tpu.pipeline_mode<synchronous>, transform_indices = @transform_2, window_bounds = array<i64: 72, 32>}, {pipeline_mode = #tpu.pipeline_mode<synchronous>, transform_indices = @transform_3, window_bounds = array<i64: 1, 32>}, {pipeline_mode = #tpu.pipeline_mode<synchronous>, transform_indices = @transform_4, window_bounds = array<i64: 1, 32>}, {pipeline_mode = #tpu.pipeline_mode<synchronous>, transform_indices = @transform_5, window_bounds = array<i64: 2, 32, 8>}, {pipeline_mode = #tpu.pipeline_mode<synchronous>, transform_indices = @transform_6, window_bounds = array<i64: 2, 1, 8>}, {pipeline_mode = #tpu.pipeline_mode<synchronous>, transform_indices = @transform_7, window_bounds = array<i64: 2, 1, 8>}, {pipeline_mode = #tpu.pipeline_mode<synchronous>, transform_indices = @transform_8, window_bounds = array<i64: 2, 72, 8>}, {pipeline_mode = #tpu.pipeline_mode<synchronous>, transform_indices = @transform_9, window_bounds = array<i64: 2, 1, 8>}, {pipeline_mode = #tpu.pipeline_mode<synchronous>, transform_indices = @transform_10, window_bounds = array<i64: 2, 1, 8>}, {pipeline_mode = #tpu.pipeline_mode<synchronous>, transform_indices = @transform_11, window_bounds = array<i64: 2, 8, 32>}, {pipeline_mode = #tpu.pipeline_mode<synchronous>, transform_indices = @transform_12, window_bounds = array<i64: 2, 1, 32>}, {pipeline_mode = #tpu.pipeline_mode<synchronous>, transform_indices = @transform_13, window_bounds = array<i64: 2, 1, 32>}, {pipeline_mode = #tpu.pipeline_mode<synchronous>, transform_indices = @transform_14, window_bounds = array<i64: 2, 32, 8>}, {pipeline_mode = #tpu.pipeline_mode<synchronous>, transform_indices = @transform_15, window_bounds = array<i64: 2, 1, 8>}, {pipeline_mode = #tpu.pipeline_mode<synchronous>, transform_indices = @transform_16, window_bounds = array<i64: 2, 8, 32>}, {pipeline_mode = #tpu.pipeline_mode<synchronous>, transform_indices = @transform_17, window_bounds = array<i64: 2, 1, 32>}, {pipeline_mode = #tpu.pipeline_mode<synchronous>, transform_indices = @transform_18, window_bounds = array<i64: 32, 16>}, {pipeline_mode = #tpu.pipeline_mode<synchronous>, transform_indices = @transform_19, window_bounds = array<i64: 256, 8>}, {pipeline_mode = #tpu.pipeline_mode<synchronous>, transform_indices = @transform_20, window_bounds = array<i64: 1, 8>}, {pipeline_mode = #tpu.pipeline_mode<synchronous>, transform_indices = @transform_21, window_bounds = array<i64: 1, 8>}, {transform_indices = @transform_22, window_bounds = array<i64: 2, 128, 8>}, {transform_indices = @transform_23, window_bounds = array<i64: 2, 128, 8>}]} {
    %c0 = arith.constant 0 : index
    %c0_0 = arith.constant 0 : index
    %0 = vector.load %arg2[%c0, %c0_0] : memref<256x1xf32, #tpu.memory_space<vmem>>, vector<256x1xf32>
    %1 = vector.shape_cast %0 : vector<256x1xf32> to vector<256x1xf32>
    %2 = vector.broadcast %1 : vector<256x1xf32> to vector<256x8xf32>
    %3 = vector.shape_cast %0 : vector<256x1xf32> to vector<256x1xf32>
    %4 = vector.broadcast %3 : vector<256x1xf32> to vector<256x32xf32>
    %cst = arith.constant 0.000000e+00 : f32
    %5 = vector.broadcast %cst : f32 to vector<2x16x8xf32>
    %c0_1 = arith.constant 0 : index
    %c0_2 = arith.constant 0 : index
    %c0_3 = arith.constant 0 : index
    %6 = vector.load %arg25[%c0_1, %c0_2, %c0_3] : memref<2x160x8xf32, #tpu.memory_space<vmem>>, vector<2x16x8xf32>
    tpu.vector_store %arg25[%c0_1, %c0_2, %c0_3], %5 {strides = array<i32>} : memref<2x160x8xf32, #tpu.memory_space<vmem>>, vector<2x16x8xf32>,
    %cst_4 = arith.constant 0.000000e+00 : f32
    %7 = vector.broadcast %cst_4 : f32 to vector<2x16x8xf32>
    %c0_5 = arith.constant 0 : index
    %c144 = arith.constant 144 : index
    %c0_6 = arith.constant 0 : index
    %8 = vector.load %arg25[%c0_5, %c144, %c0_6] : memref<2x160x8xf32, #tpu.memory_space<vmem>>, vector<2x16x8xf32>
    tpu.vector_store %arg25[%c0_5, %c144, %c0_6], %7 {strides = array<i32>} : memref<2x160x8xf32, #tpu.memory_space<vmem>>, vector<2x16x8xf32>,
    %c0_7 = arith.constant 0 : index
    %c0_8 = arith.constant 0 : index
    %9 = vector.load %arg3[%c0_7, %c0_8] : memref<72x32xbf16, #tpu.memory_space<vmem>>, vector<72x32xbf16>
    %c0_9 = arith.constant 0 : index
    %c4 = arith.constant 4 : index
    %c0_10 = arith.constant 0 : index
    %10 = vector.load %arg1[%c0_9, %c4, %c0_10] : memref<2x160x8xf32, #tpu.memory_space<vmem>>, vector<2x128x8xf32>
    %c0_11 = arith.constant 0 : index
    %c5 = arith.constant 5 : index
    %c0_12 = arith.constant 0 : index
    %11 = vector.load %arg1[%c0_11, %c5, %c0_12] : memref<2x160x8xf32, #tpu.memory_space<vmem>>, vector<2x128x8xf32>
    %c0_13 = arith.constant 0 : index
    %c6 = arith.constant 6 : index
    %c0_14 = arith.constant 0 : index
    %12 = vector.load %arg1[%c0_13, %c6, %c0_14] : memref<2x160x8xf32, #tpu.memory_space<vmem>>, vector<2x128x8xf32>
    %c0_15 = arith.constant 0 : index
    %c15 = arith.constant 15 : index
    %c0_16 = arith.constant 0 : index
    %13 = vector.load %arg1[%c0_15, %c15, %c0_16] : memref<2x160x8xf32, #tpu.memory_space<vmem>>, vector<2x128x8xf32>
    %c0_17 = arith.constant 0 : index
    %c16 = arith.constant 16 : index
    %c0_18 = arith.constant 0 : index
    %14 = vector.load %arg1[%c0_17, %c16, %c0_18] : memref<2x160x8xf32, #tpu.memory_space<vmem>>, vector<2x128x8xf32>
    %c0_19 = arith.constant 0 : index
    %c17 = arith.constant 17 : index
    %c0_20 = arith.constant 0 : index
    %15 = vector.load %arg1[%c0_19, %c17, %c0_20] : memref<2x160x8xf32, #tpu.memory_space<vmem>>, vector<2x128x8xf32>
    %c0_21 = arith.constant 0 : index
    %c26 = arith.constant 26 : index
    %c0_22 = arith.constant 0 : index
    %16 = vector.load %arg1[%c0_21, %c26, %c0_22] : memref<2x160x8xf32, #tpu.memory_space<vmem>>, vector<2x128x8xf32>
    %c0_23 = arith.constant 0 : index
    %c27 = arith.constant 27 : index
    %c0_24 = arith.constant 0 : index
    %17 = vector.load %arg1[%c0_23, %c27, %c0_24] : memref<2x160x8xf32, #tpu.memory_space<vmem>>, vector<2x128x8xf32>
    %c0_25 = arith.constant 0 : index
    %c28 = arith.constant 28 : index
    %c0_26 = arith.constant 0 : index
    %18 = vector.load %arg1[%c0_25, %c28, %c0_26] : memref<2x160x8xf32, #tpu.memory_space<vmem>>, vector<2x128x8xf32>
    %19 = tpu.concatenate %10, %11, %12, %13, %14, %15, %16, %17, %18 in 2 : vector<2x128x8xf32>, vector<2x128x8xf32>, vector<2x128x8xf32>, vector<2x128x8xf32>, vector<2x128x8xf32>, vector<2x128x8xf32>, vector<2x128x8xf32>, vector<2x128x8xf32>, vector<2x128x8xf32> -> vector<2x128x72xf32>
    %20 = vector.shape_cast %19 : vector<2x128x72xf32> to vector<256x72xf32>
    %21 = arith.truncf %20 : vector<256x72xf32> to vector<256x72xbf16>
    %cst_27 = arith.constant dense<0.000000e+00> : vector<256x32xf32>
    %22 = tpu.matmul %21, %9, %cst_27 {dimension_numbers = #tpu.dot_dimension_numbers<[1], [0], [0], [1], [0, 0, 1, 1], [], []>} : vector<256x72xbf16>, vector<72x32xbf16>, vector<256x32xf32> -> vector<256x32xf32>
    %c0_28 = arith.constant 0 : index
    %c0_29 = arith.constant 0 : index
    %23 = vector.load %arg4[%c0_28, %c0_29] : memref<1x32xf32, #tpu.memory_space<vmem>>, vector<1x32xf32>
    %24 = vector.broadcast %23 : vector<1x32xf32> to vector<256x32xf32>
    %25 = arith.mulf %22, %24 : vector<256x32xf32>
    %c0_30 = arith.constant 0 : index
    %c0_31 = arith.constant 0 : index
    %26 = vector.load %arg5[%c0_30, %c0_31] : memref<1x32xf32, #tpu.memory_space<vmem>>, vector<1x32xf32>
    %27 = vector.broadcast %26 : vector<1x32xf32> to vector<256x32xf32>
    %28 = arith.addf %25, %27 : vector<256x32xf32>
    %cst_32 = arith.constant 0.000000e+00 : f32
    %29 = vector.broadcast %cst_32 : f32 to vector<256x32xf32>
    %30 = arith.subf %29, %28 : vector<256x32xf32>
    %31 = math.exp %30 : vector<256x32xf32>
    %cst_33 = arith.constant 1.000000e+00 : f32
    %32 = vector.broadcast %cst_33 : f32 to vector<256x32xf32>
    %33 = arith.addf %32, %31 : vector<256x32xf32>
    %34 = tpu.reciprocal %33 {approx = true} : vector<256x32xf32> -> vector<256x32xf32>
    %35 = arith.mulf %28, %34 : vector<256x32xf32>
    %36 = arith.mulf %35, %4 : vector<256x32xf32>
    %37 = arith.truncf %36 : vector<256x32xf32> to vector<256x32xbf16>
    %c0_34 = arith.constant 0 : index
    %c0_35 = arith.constant 0 : index
    %c0_36 = arith.constant 0 : index
    %38 = vector.load %arg6[%c0_34, %c0_35, %c0_36] : memref<2x32x8xbf16, #tpu.memory_space<vmem>>, vector<1x32x8xbf16>
    %39 = vector.shape_cast %38 : vector<1x32x8xbf16> to vector<32x8xbf16>
    %cst_37 = arith.constant dense<0.000000e+00> : vector<256x8xf32>
    %40 = tpu.matmul %37, %39, %cst_37 {dimension_numbers = #tpu.dot_dimension_numbers<[1], [0], [0], [1], [0, 0, 1, 1], [], []>} : vector<256x32xbf16>, vector<32x8xbf16>, vector<256x8xf32> -> vector<256x8xf32>
    %c0_38 = arith.constant 0 : index
    %c0_39 = arith.constant 0 : index
    %c0_40 = arith.constant 0 : index
    %41 = vector.load %arg7[%c0_38, %c0_39, %c0_40] : memref<2x1x8xf32, #tpu.memory_space<vmem>>, vector<1x1x8xf32>
    %42 = vector.shape_cast %41 : vector<1x1x8xf32> to vector<1x8xf32>
    %43 = vector.broadcast %42 : vector<1x8xf32> to vector<256x8xf32>
    %44 = arith.mulf %40, %43 : vector<256x8xf32>
    %c0_41 = arith.constant 0 : index
    %c0_42 = arith.constant 0 : index
    %c0_43 = arith.constant 0 : index
    %45 = vector.load %arg8[%c0_41, %c0_42, %c0_43] : memref<2x1x8xf32, #tpu.memory_space<vmem>>, vector<1x1x8xf32>
    %46 = vector.shape_cast %45 : vector<1x1x8xf32> to vector<1x8xf32>
    %47 = vector.broadcast %46 : vector<1x8xf32> to vector<256x8xf32>
    %48 = arith.addf %44, %47 : vector<256x8xf32>
    %cst_44 = arith.constant 0.000000e+00 : f32
    %49 = vector.broadcast %cst_44 : f32 to vector<256x8xf32>
    %50 = arith.subf %49, %48 : vector<256x8xf32>
    %51 = math.exp %50 : vector<256x8xf32>
    %cst_45 = arith.constant 1.000000e+00 : f32
    %52 = vector.broadcast %cst_45 : f32 to vector<256x8xf32>
    %53 = arith.addf %52, %51 : vector<256x8xf32>
    %54 = tpu.reciprocal %53 {approx = true} : vector<256x8xf32> -> vector<256x8xf32>
    %55 = arith.mulf %48, %54 : vector<256x8xf32>
    %56 = arith.mulf %55, %2 : vector<256x8xf32>
    %57 = vector.shape_cast %56 : vector<256x8xf32> to vector<2x128x8xf32>
    %c0_46 = arith.constant 0 : index
    %c16_47 = arith.constant 16 : index
    %c0_48 = arith.constant 0 : index
    %58 = vector.load %arg25[%c0_46, %c16_47, %c0_48] : memref<2x160x8xf32, #tpu.memory_space<vmem>>, vector<2x128x8xf32>
    tpu.vector_store %arg25[%c0_46, %c16_47, %c0_48], %57 {strides = array<i32>} : memref<2x160x8xf32, #tpu.memory_space<vmem>>, vector<2x128x8xf32>,
    %c0_49 = arith.constant 0 : index
    %c0_50 = arith.constant 0 : index
    %c0_51 = arith.constant 0 : index
    %59 = vector.load %arg9[%c0_49, %c0_50, %c0_51] : memref<2x72x8xbf16, #tpu.memory_space<vmem>>, vector<1x72x8xbf16>
    %60 = vector.shape_cast %59 : vector<1x72x8xbf16> to vector<72x8xbf16>
    %c0_52 = arith.constant 0 : index
    %c4_53 = arith.constant 4 : index
    %c0_54 = arith.constant 0 : index
    %61 = vector.load %arg25[%c0_52, %c4_53, %c0_54] : memref<2x160x8xf32, #tpu.memory_space<vmem>>, vector<2x128x8xf32>
    %c0_55 = arith.constant 0 : index
    %c5_56 = arith.constant 5 : index
    %c0_57 = arith.constant 0 : index
    %62 = vector.load %arg25[%c0_55, %c5_56, %c0_57] : memref<2x160x8xf32, #tpu.memory_space<vmem>>, vector<2x128x8xf32>
    %c0_58 = arith.constant 0 : index
    %c6_59 = arith.constant 6 : index
    %c0_60 = arith.constant 0 : index
    %63 = vector.load %arg25[%c0_58, %c6_59, %c0_60] : memref<2x160x8xf32, #tpu.memory_space<vmem>>, vector<2x128x8xf32>
    %c0_61 = arith.constant 0 : index
    %c15_62 = arith.constant 15 : index
    %c0_63 = arith.constant 0 : index
    %64 = vector.load %arg25[%c0_61, %c15_62, %c0_63] : memref<2x160x8xf32, #tpu.memory_space<vmem>>, vector<2x128x8xf32>
    %c0_64 = arith.constant 0 : index
    %c16_65 = arith.constant 16 : index
    %c0_66 = arith.constant 0 : index
    %65 = vector.load %arg25[%c0_64, %c16_65, %c0_66] : memref<2x160x8xf32, #tpu.memory_space<vmem>>, vector<2x128x8xf32>
    %c0_67 = arith.constant 0 : index
    %c17_68 = arith.constant 17 : index
    %c0_69 = arith.constant 0 : index
    %66 = vector.load %arg25[%c0_67, %c17_68, %c0_69] : memref<2x160x8xf32, #tpu.memory_space<vmem>>, vector<2x128x8xf32>
    %c0_70 = arith.constant 0 : index
    %c26_71 = arith.constant 26 : index
    %c0_72 = arith.constant 0 : index
    %67 = vector.load %arg25[%c0_70, %c26_71, %c0_72] : memref<2x160x8xf32, #tpu.memory_space<vmem>>, vector<2x128x8xf32>
    %c0_73 = arith.constant 0 : index
    %c27_74 = arith.constant 27 : index
    %c0_75 = arith.constant 0 : index
    %68 = vector.load %arg25[%c0_73, %c27_74, %c0_75] : memref<2x160x8xf32, #tpu.memory_space<vmem>>, vector<2x128x8xf32>
    %c0_76 = arith.constant 0 : index
    %c28_77 = arith.constant 28 : index
    %c0_78 = arith.constant 0 : index
    %69 = vector.load %arg25[%c0_76, %c28_77, %c0_78] : memref<2x160x8xf32, #tpu.memory_space<vmem>>, vector<2x128x8xf32>
    %70 = tpu.concatenate %61, %62, %63, %64, %65, %66, %67, %68, %69 in 2 : vector<2x128x8xf32>, vector<2x128x8xf32>, vector<2x128x8xf32>, vector<2x128x8xf32>, vector<2x128x8xf32>, vector<2x128x8xf32>, vector<2x128x8xf32>, vector<2x128x8xf32>, vector<2x128x8xf32> -> vector<2x128x72xf32>
    %71 = vector.shape_cast %70 : vector<2x128x72xf32> to vector<256x72xf32>
    %72 = arith.truncf %71 : vector<256x72xf32> to vector<256x72xbf16>
    %cst_79 = arith.constant dense<0.000000e+00> : vector<256x8xf32>
    %73 = tpu.matmul %72, %60, %cst_79 {dimension_numbers = #tpu.dot_dimension_numbers<[1], [0], [0], [1], [0, 0, 1, 1], [], []>} : vector<256x72xbf16>, vector<72x8xbf16>, vector<256x8xf32> -> vector<256x8xf32>
    %c0_80 = arith.constant 0 : index
    %c0_81 = arith.constant 0 : index
    %c0_82 = arith.constant 0 : index
    %74 = vector.load %arg10[%c0_80, %c0_81, %c0_82] : memref<2x1x8xf32, #tpu.memory_space<vmem>>, vector<1x1x8xf32>
    %75 = vector.shape_cast %74 : vector<1x1x8xf32> to vector<1x8xf32>
    %76 = vector.broadcast %75 : vector<1x8xf32> to vector<256x8xf32>
    %77 = arith.mulf %73, %76 : vector<256x8xf32>
    %c0_83 = arith.constant 0 : index
    %c0_84 = arith.constant 0 : index
    %c0_85 = arith.constant 0 : index
    %78 = vector.load %arg11[%c0_83, %c0_84, %c0_85] : memref<2x1x8xf32, #tpu.memory_space<vmem>>, vector<1x1x8xf32>
    %79 = vector.shape_cast %78 : vector<1x1x8xf32> to vector<1x8xf32>
    %80 = vector.broadcast %79 : vector<1x8xf32> to vector<256x8xf32>
    %81 = arith.addf %77, %80 : vector<256x8xf32>
    %cst_86 = arith.constant 0.000000e+00 : f32
    %82 = vector.broadcast %cst_86 : f32 to vector<256x8xf32>
    %83 = arith.subf %82, %81 : vector<256x8xf32>
    %84 = math.exp %83 : vector<256x8xf32>
    %cst_87 = arith.constant 1.000000e+00 : f32
    %85 = vector.broadcast %cst_87 : f32 to vector<256x8xf32>
    %86 = arith.addf %85, %84 : vector<256x8xf32>
    %87 = tpu.reciprocal %86 {approx = true} : vector<256x8xf32> -> vector<256x8xf32>
    %88 = arith.mulf %81, %87 : vector<256x8xf32>
    %89 = arith.truncf %88 : vector<256x8xf32> to vector<256x8xbf16>
    %c0_88 = arith.constant 0 : index
    %c0_89 = arith.constant 0 : index
    %c0_90 = arith.constant 0 : index
    %90 = vector.load %arg12[%c0_88, %c0_89, %c0_90] : memref<2x8x32xbf16, #tpu.memory_space<vmem>>, vector<1x8x32xbf16>
    %91 = vector.shape_cast %90 : vector<1x8x32xbf16> to vector<8x32xbf16>
    %cst_91 = arith.constant dense<0.000000e+00> : vector<256x32xf32>
    %92 = tpu.matmul %89, %91, %cst_91 {dimension_numbers = #tpu.dot_dimension_numbers<[1], [0], [0], [1], [0, 0, 1, 1], [], []>} : vector<256x8xbf16>, vector<8x32xbf16>, vector<256x32xf32> -> vector<256x32xf32>
    %c0_92 = arith.constant 0 : index
    %c0_93 = arith.constant 0 : index
    %c0_94 = arith.constant 0 : index
    %93 = vector.load %arg13[%c0_92, %c0_93, %c0_94] : memref<2x1x32xf32, #tpu.memory_space<vmem>>, vector<1x1x32xf32>
    %94 = vector.shape_cast %93 : vector<1x1x32xf32> to vector<1x32xf32>
    %95 = vector.broadcast %94 : vector<1x32xf32> to vector<256x32xf32>
    %96 = arith.mulf %92, %95 : vector<256x32xf32>
    %c0_95 = arith.constant 0 : index
    %c0_96 = arith.constant 0 : index
    %c0_97 = arith.constant 0 : index
    %97 = vector.load %arg14[%c0_95, %c0_96, %c0_97] : memref<2x1x32xf32, #tpu.memory_space<vmem>>, vector<1x1x32xf32>
    %98 = vector.shape_cast %97 : vector<1x1x32xf32> to vector<1x32xf32>
    %99 = vector.broadcast %98 : vector<1x32xf32> to vector<256x32xf32>
    %100 = arith.addf %96, %99 : vector<256x32xf32>
    %101 = arith.mulf %100, %4 : vector<256x32xf32>
    %102 = vector.shape_cast %101 : vector<256x32xf32> to vector<2x128x32xf32>
    %cst_98 = arith.constant dense<0.000000e+00> : vector<2x32xf32>
    %103 = vector.multi_reduction <add>, %102, %cst_98 [1] : vector<2x128x32xf32> to vector<2x32xf32>
    %cst_99 = arith.constant 0.0123456791 : f32
    %104 = vector.broadcast %cst_99 : f32 to vector<2x32xf32>
    %105 = arith.mulf %103, %104 : vector<2x32xf32>
    %106 = arith.truncf %105 : vector<2x32xf32> to vector<2x32xbf16>
    %c0_100 = arith.constant 0 : index
    %c0_101 = arith.constant 0 : index
    %c0_102 = arith.constant 0 : index
    %107 = vector.load %arg15[%c0_100, %c0_101, %c0_102] : memref<2x32x8xbf16, #tpu.memory_space<vmem>>, vector<1x32x8xbf16>
    %108 = vector.shape_cast %107 : vector<1x32x8xbf16> to vector<32x8xbf16>
    %cst_103 = arith.constant dense<0.000000e+00> : vector<2x8xf32>
    %109 = tpu.matmul %106, %108, %cst_103 {dimension_numbers = #tpu.dot_dimension_numbers<[1], [0], [0], [1], [0, 0, 1, 1], [], []>} : vector<2x32xbf16>, vector<32x8xbf16>, vector<2x8xf32> -> vector<2x8xf32>
    %c0_104 = arith.constant 0 : index
    %c0_105 = arith.constant 0 : index
    %c0_106 = arith.constant 0 : index
    %110 = vector.load %arg16[%c0_104, %c0_105, %c0_106] : memref<2x1x8xf32, #tpu.memory_space<vmem>>, vector<1x1x8xf32>
    %111 = vector.shape_cast %110 : vector<1x1x8xf32> to vector<1x8xf32>
    %112 = vector.broadcast %111 : vector<1x8xf32> to vector<2x8xf32>
    %113 = arith.addf %109, %112 : vector<2x8xf32>
    %cst_107 = arith.constant 0.000000e+00 : f32
    %114 = vector.broadcast %cst_107 : f32 to vector<2x8xf32>
    %115 = arith.subf %114, %113 : vector<2x8xf32>
    %116 = math.exp %115 : vector<2x8xf32>
    %cst_108 = arith.constant 1.000000e+00 : f32
    %117 = vector.broadcast %cst_108 : f32 to vector<2x8xf32>
    %118 = arith.addf %117, %116 : vector<2x8xf32>
    %119 = tpu.reciprocal %118 {approx = true} : vector<2x8xf32> -> vector<2x8xf32>
    %120 = arith.mulf %113, %119 : vector<2x8xf32>
    %121 = arith.truncf %120 : vector<2x8xf32> to vector<2x8xbf16>
    %c0_109 = arith.constant 0 : index
    %c0_110 = arith.constant 0 : index
    %c0_111 = arith.constant 0 : index
    %122 = vector.load %arg17[%c0_109, %c0_110, %c0_111] : memref<2x8x32xbf16, #tpu.memory_space<vmem>>, vector<1x8x32xbf16>
    %123 = vector.shape_cast %122 : vector<1x8x32xbf16> to vector<8x32xbf16>
    %cst_112 = arith.constant dense<0.000000e+00> : vector<2x32xf32>
    %124 = tpu.matmul %121, %123, %cst_112 {dimension_numbers = #tpu.dot_dimension_numbers<[1], [0], [0], [1], [0, 0, 1, 1], [], []>} : vector<2x8xbf16>, vector<8x32xbf16>, vector<2x32xf32> -> vector<2x32xf32>
    %c0_113 = arith.constant 0 : index
    %c0_114 = arith.constant 0 : index
    %c0_115 = arith.constant 0 : index
    %125 = vector.load %arg18[%c0_113, %c0_114, %c0_115] : memref<2x1x32xf32, #tpu.memory_space<vmem>>, vector<1x1x32xf32>
    %126 = vector.shape_cast %125 : vector<1x1x32xf32> to vector<1x32xf32>
    %127 = vector.broadcast %126 : vector<1x32xf32> to vector<2x32xf32>
    %128 = arith.addf %124, %127 : vector<2x32xf32>
    %cst_116 = arith.constant 0.000000e+00 : f32
    %129 = vector.broadcast %cst_116 : f32 to vector<2x32xf32>
    %130 = arith.subf %129, %128 : vector<2x32xf32>
    %131 = math.exp %130 : vector<2x32xf32>
    %cst_117 = arith.constant 1.000000e+00 : f32
    %132 = vector.broadcast %cst_117 : f32 to vector<2x32xf32>
    %133 = arith.addf %132, %131 : vector<2x32xf32>
    %134 = tpu.reciprocal %133 {approx = true} : vector<2x32xf32> -> vector<2x32xf32>
    %135 = vector.shape_cast %100 : vector<256x32xf32> to vector<2x128x32xf32>
    %136 = vector.shape_cast %134 : vector<2x32xf32> to vector<2x1x32xf32>
    %137 = vector.broadcast %136 : vector<2x1x32xf32> to vector<2x128x32xf32>
    %138 = arith.mulf %135, %137 : vector<2x128x32xf32>
    %139 = vector.shape_cast %36 : vector<256x32xf32> to vector<2x128x32xf32>
    %140 = arith.addf %138, %139 : vector<2x128x32xf32>
    %cst_118 = arith.constant 0.000000e+00 : f32
    %141 = vector.broadcast %cst_118 : f32 to vector<2x128x32xf32>
    %142 = arith.subf %141, %140 : vector<2x128x32xf32>
    %143 = math.exp %142 : vector<2x128x32xf32>
    %cst_119 = arith.constant 1.000000e+00 : f32
    %144 = vector.broadcast %cst_119 : f32 to vector<2x128x32xf32>
    %145 = arith.addf %144, %143 : vector<2x128x32xf32>
    %146 = tpu.reciprocal %145 {approx = true} : vector<2x128x32xf32> -> vector<2x128x32xf32>
    %147 = arith.mulf %140, %146 : vector<2x128x32xf32>
    %148 = vector.shape_cast %147 : vector<2x128x32xf32> to vector<256x32xf32>
    %149 = arith.truncf %148 : vector<256x32xf32> to vector<256x32xbf16>
    %c1 = arith.constant 1 : index
    %c0_120 = arith.constant 0 : index
    %c0_121 = arith.constant 0 : index
    %150 = vector.load %arg6[%c1, %c0_120, %c0_121] : memref<2x32x8xbf16, #tpu.memory_space<vmem>>, vector<1x32x8xbf16>
    %151 = vector.shape_cast %150 : vector<1x32x8xbf16> to vector<32x8xbf16>
    %cst_122 = arith.constant dense<0.000000e+00> : vector<256x8xf32>
    %152 = tpu.matmul %149, %151, %cst_122 {dimension_numbers = #tpu.dot_dimension_numbers<[1], [0], [0], [1], [0, 0, 1, 1], [], []>} : vector<256x32xbf16>, vector<32x8xbf16>, vector<256x8xf32> -> vector<256x8xf32>
    %c1_123 = arith.constant 1 : index
    %c0_124 = arith.constant 0 : index
    %c0_125 = arith.constant 0 : index
    %153 = vector.load %arg7[%c1_123, %c0_124, %c0_125] : memref<2x1x8xf32, #tpu.memory_space<vmem>>, vector<1x1x8xf32>
    %154 = vector.shape_cast %153 : vector<1x1x8xf32> to vector<1x8xf32>
    %155 = vector.broadcast %154 : vector<1x8xf32> to vector<256x8xf32>
    %156 = arith.mulf %152, %155 : vector<256x8xf32>
    %c1_126 = arith.constant 1 : index
    %c0_127 = arith.constant 0 : index
    %c0_128 = arith.constant 0 : index
    %157 = vector.load %arg8[%c1_126, %c0_127, %c0_128] : memref<2x1x8xf32, #tpu.memory_space<vmem>>, vector<1x1x8xf32>
    %158 = vector.shape_cast %157 : vector<1x1x8xf32> to vector<1x8xf32>
    %159 = vector.broadcast %158 : vector<1x8xf32> to vector<256x8xf32>
    %160 = arith.addf %156, %159 : vector<256x8xf32>
    %cst_129 = arith.constant 0.000000e+00 : f32
    %161 = vector.broadcast %cst_129 : f32 to vector<256x8xf32>
    %162 = arith.subf %161, %160 : vector<256x8xf32>
    %163 = math.exp %162 : vector<256x8xf32>
    %cst_130 = arith.constant 1.000000e+00 : f32
    %164 = vector.broadcast %cst_130 : f32 to vector<256x8xf32>
    %165 = arith.addf %164, %163 : vector<256x8xf32>
    %166 = tpu.reciprocal %165 {approx = true} : vector<256x8xf32> -> vector<256x8xf32>
    %167 = arith.mulf %160, %166 : vector<256x8xf32>
    %168 = arith.mulf %167, %2 : vector<256x8xf32>
    %169 = vector.shape_cast %168 : vector<256x8xf32> to vector<2x128x8xf32>
    %c0_131 = arith.constant 0 : index
    %c16_132 = arith.constant 16 : index
    %c0_133 = arith.constant 0 : index
    %170 = vector.load %arg25[%c0_131, %c16_132, %c0_133] : memref<2x160x8xf32, #tpu.memory_space<vmem>>, vector<2x128x8xf32>
    tpu.vector_store %arg25[%c0_131, %c16_132, %c0_133], %169 {strides = array<i32>} : memref<2x160x8xf32, #tpu.memory_space<vmem>>, vector<2x128x8xf32>,
    %c1_134 = arith.constant 1 : index
    %c0_135 = arith.constant 0 : index
    %c0_136 = arith.constant 0 : index
    %171 = vector.load %arg9[%c1_134, %c0_135, %c0_136] : memref<2x72x8xbf16, #tpu.memory_space<vmem>>, vector<1x72x8xbf16>
    %172 = vector.shape_cast %171 : vector<1x72x8xbf16> to vector<72x8xbf16>
    %c0_137 = arith.constant 0 : index
    %c4_138 = arith.constant 4 : index
    %c0_139 = arith.constant 0 : index
    %173 = vector.load %arg25[%c0_137, %c4_138, %c0_139] : memref<2x160x8xf32, #tpu.memory_space<vmem>>, vector<2x128x8xf32>
    %c0_140 = arith.constant 0 : index
    %c5_141 = arith.constant 5 : index
    %c0_142 = arith.constant 0 : index
    %174 = vector.load %arg25[%c0_140, %c5_141, %c0_142] : memref<2x160x8xf32, #tpu.memory_space<vmem>>, vector<2x128x8xf32>
    %c0_143 = arith.constant 0 : index
    %c6_144 = arith.constant 6 : index
    %c0_145 = arith.constant 0 : index
    %175 = vector.load %arg25[%c0_143, %c6_144, %c0_145] : memref<2x160x8xf32, #tpu.memory_space<vmem>>, vector<2x128x8xf32>
    %c0_146 = arith.constant 0 : index
    %c15_147 = arith.constant 15 : index
    %c0_148 = arith.constant 0 : index
    %176 = vector.load %arg25[%c0_146, %c15_147, %c0_148] : memref<2x160x8xf32, #tpu.memory_space<vmem>>, vector<2x128x8xf32>
    %c0_149 = arith.constant 0 : index
    %c16_150 = arith.constant 16 : index
    %c0_151 = arith.constant 0 : index
    %177 = vector.load %arg25[%c0_149, %c16_150, %c0_151] : memref<2x160x8xf32, #tpu.memory_space<vmem>>, vector<2x128x8xf32>
    %c0_152 = arith.constant 0 : index
    %c17_153 = arith.constant 17 : index
    %c0_154 = arith.constant 0 : index
    %178 = vector.load %arg25[%c0_152, %c17_153, %c0_154] : memref<2x160x8xf32, #tpu.memory_space<vmem>>, vector<2x128x8xf32>
    %c0_155 = arith.constant 0 : index
    %c26_156 = arith.constant 26 : index
    %c0_157 = arith.constant 0 : index
    %179 = vector.load %arg25[%c0_155, %c26_156, %c0_157] : memref<2x160x8xf32, #tpu.memory_space<vmem>>, vector<2x128x8xf32>
    %c0_158 = arith.constant 0 : index
    %c27_159 = arith.constant 27 : index
    %c0_160 = arith.constant 0 : index
    %180 = vector.load %arg25[%c0_158, %c27_159, %c0_160] : memref<2x160x8xf32, #tpu.memory_space<vmem>>, vector<2x128x8xf32>
    %c0_161 = arith.constant 0 : index
    %c28_162 = arith.constant 28 : index
    %c0_163 = arith.constant 0 : index
    %181 = vector.load %arg25[%c0_161, %c28_162, %c0_163] : memref<2x160x8xf32, #tpu.memory_space<vmem>>, vector<2x128x8xf32>
    %182 = tpu.concatenate %173, %174, %175, %176, %177, %178, %179, %180, %181 in 2 : vector<2x128x8xf32>, vector<2x128x8xf32>, vector<2x128x8xf32>, vector<2x128x8xf32>, vector<2x128x8xf32>, vector<2x128x8xf32>, vector<2x128x8xf32>, vector<2x128x8xf32>, vector<2x128x8xf32> -> vector<2x128x72xf32>
    %183 = vector.shape_cast %182 : vector<2x128x72xf32> to vector<256x72xf32>
    %184 = arith.truncf %183 : vector<256x72xf32> to vector<256x72xbf16>
    %cst_164 = arith.constant dense<0.000000e+00> : vector<256x8xf32>
    %185 = tpu.matmul %184, %172, %cst_164 {dimension_numbers = #tpu.dot_dimension_numbers<[1], [0], [0], [1], [0, 0, 1, 1], [], []>} : vector<256x72xbf16>, vector<72x8xbf16>, vector<256x8xf32> -> vector<256x8xf32>
    %c1_165 = arith.constant 1 : index
    %c0_166 = arith.constant 0 : index
    %c0_167 = arith.constant 0 : index
    %186 = vector.load %arg10[%c1_165, %c0_166, %c0_167] : memref<2x1x8xf32, #tpu.memory_space<vmem>>, vector<1x1x8xf32>
    %187 = vector.shape_cast %186 : vector<1x1x8xf32> to vector<1x8xf32>
    %188 = vector.broadcast %187 : vector<1x8xf32> to vector<256x8xf32>
    %189 = arith.mulf %185, %188 : vector<256x8xf32>
    %c1_168 = arith.constant 1 : index
    %c0_169 = arith.constant 0 : index
    %c0_170 = arith.constant 0 : index
    %190 = vector.load %arg11[%c1_168, %c0_169, %c0_170] : memref<2x1x8xf32, #tpu.memory_space<vmem>>, vector<1x1x8xf32>
    %191 = vector.shape_cast %190 : vector<1x1x8xf32> to vector<1x8xf32>
    %192 = vector.broadcast %191 : vector<1x8xf32> to vector<256x8xf32>
    %193 = arith.addf %189, %192 : vector<256x8xf32>
    %cst_171 = arith.constant 0.000000e+00 : f32
    %194 = vector.broadcast %cst_171 : f32 to vector<256x8xf32>
    %195 = arith.subf %194, %193 : vector<256x8xf32>
    %196 = math.exp %195 : vector<256x8xf32>
    %cst_172 = arith.constant 1.000000e+00 : f32
    %197 = vector.broadcast %cst_172 : f32 to vector<256x8xf32>
    %198 = arith.addf %197, %196 : vector<256x8xf32>
    %199 = tpu.reciprocal %198 {approx = true} : vector<256x8xf32> -> vector<256x8xf32>
    %200 = arith.mulf %193, %199 : vector<256x8xf32>
    %201 = arith.truncf %200 : vector<256x8xf32> to vector<256x8xbf16>
    %c1_173 = arith.constant 1 : index
    %c0_174 = arith.constant 0 : index
    %c0_175 = arith.constant 0 : index
    %202 = vector.load %arg12[%c1_173, %c0_174, %c0_175] : memref<2x8x32xbf16, #tpu.memory_space<vmem>>, vector<1x8x32xbf16>
    %203 = vector.shape_cast %202 : vector<1x8x32xbf16> to vector<8x32xbf16>
    %cst_176 = arith.constant dense<0.000000e+00> : vector<256x32xf32>
    %204 = tpu.matmul %201, %203, %cst_176 {dimension_numbers = #tpu.dot_dimension_numbers<[1], [0], [0], [1], [0, 0, 1, 1], [], []>} : vector<256x8xbf16>, vector<8x32xbf16>, vector<256x32xf32> -> vector<256x32xf32>
    %c1_177 = arith.constant 1 : index
    %c0_178 = arith.constant 0 : index
    %c0_179 = arith.constant 0 : index
    %205 = vector.load %arg13[%c1_177, %c0_178, %c0_179] : memref<2x1x32xf32, #tpu.memory_space<vmem>>, vector<1x1x32xf32>
    %206 = vector.shape_cast %205 : vector<1x1x32xf32> to vector<1x32xf32>
    %207 = vector.broadcast %206 : vector<1x32xf32> to vector<256x32xf32>
    %208 = arith.mulf %204, %207 : vector<256x32xf32>
    %c1_180 = arith.constant 1 : index
    %c0_181 = arith.constant 0 : index
    %c0_182 = arith.constant 0 : index
    %209 = vector.load %arg14[%c1_180, %c0_181, %c0_182] : memref<2x1x32xf32, #tpu.memory_space<vmem>>, vector<1x1x32xf32>
    %210 = vector.shape_cast %209 : vector<1x1x32xf32> to vector<1x32xf32>
    %211 = vector.broadcast %210 : vector<1x32xf32> to vector<256x32xf32>
    %212 = arith.addf %208, %211 : vector<256x32xf32>
    %213 = arith.mulf %212, %4 : vector<256x32xf32>
    %214 = vector.shape_cast %213 : vector<256x32xf32> to vector<2x128x32xf32>
    %cst_183 = arith.constant dense<0.000000e+00> : vector<2x32xf32>
    %215 = vector.multi_reduction <add>, %214, %cst_183 [1] : vector<2x128x32xf32> to vector<2x32xf32>
    %cst_184 = arith.constant 0.0123456791 : f32
    %216 = vector.broadcast %cst_184 : f32 to vector<2x32xf32>
    %217 = arith.mulf %215, %216 : vector<2x32xf32>
    %218 = arith.truncf %217 : vector<2x32xf32> to vector<2x32xbf16>
    %c1_185 = arith.constant 1 : index
    %c0_186 = arith.constant 0 : index
    %c0_187 = arith.constant 0 : index
    %219 = vector.load %arg15[%c1_185, %c0_186, %c0_187] : memref<2x32x8xbf16, #tpu.memory_space<vmem>>, vector<1x32x8xbf16>
    %220 = vector.shape_cast %219 : vector<1x32x8xbf16> to vector<32x8xbf16>
    %cst_188 = arith.constant dense<0.000000e+00> : vector<2x8xf32>
    %221 = tpu.matmul %218, %220, %cst_188 {dimension_numbers = #tpu.dot_dimension_numbers<[1], [0], [0], [1], [0, 0, 1, 1], [], []>} : vector<2x32xbf16>, vector<32x8xbf16>, vector<2x8xf32> -> vector<2x8xf32>
    %c1_189 = arith.constant 1 : index
    %c0_190 = arith.constant 0 : index
    %c0_191 = arith.constant 0 : index
    %222 = vector.load %arg16[%c1_189, %c0_190, %c0_191] : memref<2x1x8xf32, #tpu.memory_space<vmem>>, vector<1x1x8xf32>
    %223 = vector.shape_cast %222 : vector<1x1x8xf32> to vector<1x8xf32>
    %224 = vector.broadcast %223 : vector<1x8xf32> to vector<2x8xf32>
    %225 = arith.addf %221, %224 : vector<2x8xf32>
    %cst_192 = arith.constant 0.000000e+00 : f32
    %226 = vector.broadcast %cst_192 : f32 to vector<2x8xf32>
    %227 = arith.subf %226, %225 : vector<2x8xf32>
    %228 = math.exp %227 : vector<2x8xf32>
    %cst_193 = arith.constant 1.000000e+00 : f32
    %229 = vector.broadcast %cst_193 : f32 to vector<2x8xf32>
    %230 = arith.addf %229, %228 : vector<2x8xf32>
    %231 = tpu.reciprocal %230 {approx = true} : vector<2x8xf32> -> vector<2x8xf32>
    %232 = arith.mulf %225, %231 : vector<2x8xf32>
    %233 = arith.truncf %232 : vector<2x8xf32> to vector<2x8xbf16>
    %c1_194 = arith.constant 1 : index
    %c0_195 = arith.constant 0 : index
    %c0_196 = arith.constant 0 : index
    %234 = vector.load %arg17[%c1_194, %c0_195, %c0_196] : memref<2x8x32xbf16, #tpu.memory_space<vmem>>, vector<1x8x32xbf16>
    %235 = vector.shape_cast %234 : vector<1x8x32xbf16> to vector<8x32xbf16>
    %cst_197 = arith.constant dense<0.000000e+00> : vector<2x32xf32>
    %236 = tpu.matmul %233, %235, %cst_197 {dimension_numbers = #tpu.dot_dimension_numbers<[1], [0], [0], [1], [0, 0, 1, 1], [], []>} : vector<2x8xbf16>, vector<8x32xbf16>, vector<2x32xf32> -> vector<2x32xf32>
    %c1_198 = arith.constant 1 : index
    %c0_199 = arith.constant 0 : index
    %c0_200 = arith.constant 0 : index
    %237 = vector.load %arg18[%c1_198, %c0_199, %c0_200] : memref<2x1x32xf32, #tpu.memory_space<vmem>>, vector<1x1x32xf32>
    %238 = vector.shape_cast %237 : vector<1x1x32xf32> to vector<1x32xf32>
    %239 = vector.broadcast %238 : vector<1x32xf32> to vector<2x32xf32>
    %240 = arith.addf %236, %239 : vector<2x32xf32>
    %cst_201 = arith.constant 0.000000e+00 : f32
    %241 = vector.broadcast %cst_201 : f32 to vector<2x32xf32>
    %242 = arith.subf %241, %240 : vector<2x32xf32>
    %243 = math.exp %242 : vector<2x32xf32>
    %cst_202 = arith.constant 1.000000e+00 : f32
    %244 = vector.broadcast %cst_202 : f32 to vector<2x32xf32>
    %245 = arith.addf %244, %243 : vector<2x32xf32>
    %246 = tpu.reciprocal %245 {approx = true} : vector<2x32xf32> -> vector<2x32xf32>
    %247 = vector.shape_cast %212 : vector<256x32xf32> to vector<2x128x32xf32>
    %248 = vector.shape_cast %246 : vector<2x32xf32> to vector<2x1x32xf32>
    %249 = vector.broadcast %248 : vector<2x1x32xf32> to vector<2x128x32xf32>
    %250 = arith.mulf %247, %249 : vector<2x128x32xf32>
    %251 = vector.shape_cast %148 : vector<256x32xf32> to vector<2x128x32xf32>
    %252 = arith.addf %250, %251 : vector<2x128x32xf32>
    %cst_203 = arith.constant 0.000000e+00 : f32
    %253 = vector.broadcast %cst_203 : f32 to vector<2x128x32xf32>
    %254 = arith.subf %253, %252 : vector<2x128x32xf32>
    %255 = math.exp %254 : vector<2x128x32xf32>
    %cst_204 = arith.constant 1.000000e+00 : f32
    %256 = vector.broadcast %cst_204 : f32 to vector<2x128x32xf32>
    %257 = arith.addf %256, %255 : vector<2x128x32xf32>
    %258 = tpu.reciprocal %257 {approx = true} : vector<2x128x32xf32> -> vector<2x128x32xf32>
    %259 = arith.mulf %252, %258 : vector<2x128x32xf32>
    %260 = vector.shape_cast %259 : vector<2x128x32xf32> to vector<256x32xf32>
    %261 = arith.truncf %260 : vector<256x32xf32> to vector<256x32xbf16>
    %c0_205 = arith.constant 0 : index
    %c0_206 = arith.constant 0 : index
    %262 = vector.load %arg19[%c0_205, %c0_206] : memref<32x16xbf16, #tpu.memory_space<vmem>>, vector<32x16xbf16>
    %cst_207 = arith.constant dense<0.000000e+00> : vector<256x16xf32>
    %263 = tpu.matmul %261, %262, %cst_207 {dimension_numbers = #tpu.dot_dimension_numbers<[1], [0], [0], [1], [0, 0, 1, 1], [], []>} : vector<256x32xbf16>, vector<32x16xbf16>, vector<256x16xf32> -> vector<256x16xf32>
    %264 = vector.extract_strided_slice %263 {offsets = [0, 0], sizes = [256, 8], strides = [1, 1]} : vector<256x16xf32> to vector<256x8xf32>
    %c0_208 = arith.constant 0 : index
    %c0_209 = arith.constant 0 : index
    %265 = vector.load %arg20[%c0_208, %c0_209] : memref<256x8xf32, #tpu.memory_space<vmem>>, vector<256x8xf32>
    %266 = arith.addf %264, %265 : vector<256x8xf32>
    %267 = vector.shape_cast %266 : vector<256x8xf32> to vector<2x128x8xf32>
    %c0_210 = arith.constant 0 : index
    %c0_211 = arith.constant 0 : index
    %c0_212 = arith.constant 0 : index
    %268 = vector.load %arg23[%c0_210, %c0_211, %c0_212] : memref<2x128x8xf32, #tpu.memory_space<vmem>>, vector<2x128x8xf32>
    tpu.vector_store %arg23[%c0_210, %c0_211, %c0_212], %267 {strides = array<i32>} : memref<2x128x8xf32, #tpu.memory_space<vmem>>, vector<2x128x8xf32>,
    %269 = vector.extract_strided_slice %263 {offsets = [0, 8], sizes = [256, 8], strides = [1, 1]} : vector<256x16xf32> to vector<256x8xf32>
    %c0_213 = arith.constant 0 : index
    %c0_214 = arith.constant 0 : index
    %270 = vector.load %arg21[%c0_213, %c0_214] : memref<1x8xf32, #tpu.memory_space<vmem>>, vector<1x8xf32>
    %271 = vector.broadcast %270 : vector<1x8xf32> to vector<256x8xf32>
    %272 = arith.mulf %269, %271 : vector<256x8xf32>
    %c0_215 = arith.constant 0 : index
    %c0_216 = arith.constant 0 : index
    %273 = vector.load %arg22[%c0_215, %c0_216] : memref<1x8xf32, #tpu.memory_space<vmem>>, vector<1x8xf32>
    %274 = vector.broadcast %273 : vector<1x8xf32> to vector<256x8xf32>
    %275 = arith.addf %272, %274 : vector<256x8xf32>
    %cst_217 = arith.constant 0.000000e+00 : f32
    %276 = vector.broadcast %cst_217 : f32 to vector<256x8xf32>
    %277 = arith.subf %276, %275 : vector<256x8xf32>
    %278 = math.exp %277 : vector<256x8xf32>
    %cst_218 = arith.constant 1.000000e+00 : f32
    %279 = vector.broadcast %cst_218 : f32 to vector<256x8xf32>
    %280 = arith.addf %279, %278 : vector<256x8xf32>
    %281 = tpu.reciprocal %280 {approx = true} : vector<256x8xf32> -> vector<256x8xf32>
    %282 = arith.mulf %275, %281 : vector<256x8xf32>
    %283 = vector.shape_cast %282 : vector<256x8xf32> to vector<2x128x8xf32>
    %c0_219 = arith.constant 0 : index
    %c0_220 = arith.constant 0 : index
    %c0_221 = arith.constant 0 : index
    %284 = vector.load %arg24[%c0_219, %c0_220, %c0_221] : memref<2x128x8xf32, #tpu.memory_space<vmem>>, vector<2x128x8xf32>
    tpu.vector_store %arg24[%c0_219, %c0_220, %c0_221], %283 {strides = array<i32>} : memref<2x128x8xf32, #tpu.memory_space<vmem>>, vector<2x128x8xf32>,
    return
  }
  func.func @transform_0(%arg0: i32) -> (i32, i32, i32) {
    %c0_i32 = arith.constant 0 : i32
    %c0_i32_0 = arith.constant 0 : i32
    %c0_i32_1 = arith.constant 0 : i32
    return %arg0, %c0_i32, %c0_i32_0 : i32, i32, i32
  }
  func.func @transform_1(%arg0: i32) -> (i32, i32) {
    %c0_i32 = arith.constant 0 : i32
    %c0_i32_0 = arith.constant 0 : i32
    %c0_i32_1 = arith.constant 0 : i32
    return %c0_i32, %c0_i32_0 : i32, i32
  }
  func.func @transform_2(%arg0: i32) -> (i32, i32) {
    %c0_i32 = arith.constant 0 : i32
    %c0_i32_0 = arith.constant 0 : i32
    %c0_i32_1 = arith.constant 0 : i32
    return %c0_i32, %c0_i32_0 : i32, i32
  }
  func.func @transform_3(%arg0: i32) -> (i32, i32) {
    %c0_i32 = arith.constant 0 : i32
    %c0_i32_0 = arith.constant 0 : i32
    %c0_i32_1 = arith.constant 0 : i32
    return %c0_i32, %c0_i32_0 : i32, i32
  }
  func.func @transform_4(%arg0: i32) -> (i32, i32) {
    %c0_i32 = arith.constant 0 : i32
    %c0_i32_0 = arith.constant 0 : i32
    %c0_i32_1 = arith.constant 0 : i32
    return %c0_i32, %c0_i32_0 : i32, i32
  }
  func.func @transform_5(%arg0: i32) -> (i32, i32, i32) {
    %c0_i32 = arith.constant 0 : i32
    %c0_i32_0 = arith.constant 0 : i32
    %c0_i32_1 = arith.constant 0 : i32
    %c0_i32_2 = arith.constant 0 : i32
    return %c0_i32, %c0_i32_0, %c0_i32_1 : i32, i32, i32
  }
  func.func @transform_6(%arg0: i32) -> (i32, i32, i32) {
    %c0_i32 = arith.constant 0 : i32
    %c0_i32_0 = arith.constant 0 : i32
    %c0_i32_1 = arith.constant 0 : i32
    %c0_i32_2 = arith.constant 0 : i32
    return %c0_i32, %c0_i32_0, %c0_i32_1 : i32, i32, i32
  }
  func.func @transform_7(%arg0: i32) -> (i32, i32, i32) {
    %c0_i32 = arith.constant 0 : i32
    %c0_i32_0 = arith.constant 0 : i32
    %c0_i32_1 = arith.constant 0 : i32
    %c0_i32_2 = arith.constant 0 : i32
    return %c0_i32, %c0_i32_0, %c0_i32_1 : i32, i32, i32
  }
  func.func @transform_8(%arg0: i32) -> (i32, i32, i32) {
    %c0_i32 = arith.constant 0 : i32
    %c0_i32_0 = arith.constant 0 : i32
    %c0_i32_1 = arith.constant 0 : i32
    %c0_i32_2 = arith.constant 0 : i32
    return %c0_i32, %c0_i32_0, %c0_i32_1 : i32, i32, i32
  }
  func.func @transform_9(%arg0: i32) -> (i32, i32, i32) {
    %c0_i32 = arith.constant 0 : i32
    %c0_i32_0 = arith.constant 0 : i32
    %c0_i32_1 = arith.constant 0 : i32
    %c0_i32_2 = arith.constant 0 : i32
    return %c0_i32, %c0_i32_0, %c0_i32_1 : i32, i32, i32
  }
  func.func @transform_10(%arg0: i32) -> (i32, i32, i32) {
    %c0_i32 = arith.constant 0 : i32
    %c0_i32_0 = arith.constant 0 : i32
    %c0_i32_1 = arith.constant 0 : i32
    %c0_i32_2 = arith.constant 0 : i32
    return %c0_i32, %c0_i32_0, %c0_i32_1 : i32, i32, i32
  }
  func.func @transform_11(%arg0: i32) -> (i32, i32, i32) {
    %c0_i32 = arith.constant 0 : i32
    %c0_i32_0 = arith.constant 0 : i32
    %c0_i32_1 = arith.constant 0 : i32
    %c0_i32_2 = arith.constant 0 : i32
    return %c0_i32, %c0_i32_0, %c0_i32_1 : i32, i32, i32
  }
  func.func @transform_12(%arg0: i32) -> (i32, i32, i32) {
    %c0_i32 = arith.constant 0 : i32
    %c0_i32_0 = arith.constant 0 : i32
    %c0_i32_1 = arith.constant 0 : i32
    %c0_i32_2 = arith.constant 0 : i32
    return %c0_i32, %c0_i32_0, %c0_i32_1 : i32, i32, i32
  }
  func.func @transform_13(%arg0: i32) -> (i32, i32, i32) {
    %c0_i32 = arith.constant 0 : i32
    %c0_i32_0 = arith.constant 0 : i32
    %c0_i32_1 = arith.constant 0 : i32
    %c0_i32_2 = arith.constant 0 : i32
    return %c0_i32, %c0_i32_0, %c0_i32_1 : i32, i32, i32
  }
  func.func @transform_14(%arg0: i32) -> (i32, i32, i32) {
    %c0_i32 = arith.constant 0 : i32
    %c0_i32_0 = arith.constant 0 : i32
    %c0_i32_1 = arith.constant 0 : i32
    %c0_i32_2 = arith.constant 0 : i32
    return %c0_i32, %c0_i32_0, %c0_i32_1 : i32, i32, i32
  }
  func.func @transform_15(%arg0: i32) -> (i32, i32, i32) {
    %c0_i32 = arith.constant 0 : i32
    %c0_i32_0 = arith.constant 0 : i32
    %c0_i32_1 = arith.constant 0 : i32
    %c0_i32_2 = arith.constant 0 : i32
    return %c0_i32, %c0_i32_0, %c0_i32_1 : i32, i32, i32
  }
  func.func @transform_16(%arg0: i32) -> (i32, i32, i32) {
    %c0_i32 = arith.constant 0 : i32
    %c0_i32_0 = arith.constant 0 : i32
    %c0_i32_1 = arith.constant 0 : i32
    %c0_i32_2 = arith.constant 0 : i32
    return %c0_i32, %c0_i32_0, %c0_i32_1 : i32, i32, i32
  }
  func.func @transform_17(%arg0: i32) -> (i32, i32, i32) {
    %c0_i32 = arith.constant 0 : i32
    %c0_i32_0 = arith.constant 0 : i32
    %c0_i32_1 = arith.constant 0 : i32
    %c0_i32_2 = arith.constant 0 : i32
    return %c0_i32, %c0_i32_0, %c0_i32_1 : i32, i32, i32
  }
  func.func @transform_18(%arg0: i32) -> (i32, i32) {
    %c0_i32 = arith.constant 0 : i32
    %c0_i32_0 = arith.constant 0 : i32
    %c0_i32_1 = arith.constant 0 : i32
    return %c0_i32, %c0_i32_0 : i32, i32
  }
  func.func @transform_19(%arg0: i32) -> (i32, i32) {
    %c0_i32 = arith.constant 0 : i32
    %c0_i32_0 = arith.constant 0 : i32
    %c0_i32_1 = arith.constant 0 : i32
    return %c0_i32, %c0_i32_0 : i32, i32
  }
  func.func @transform_20(%arg0: i32) -> (i32, i32) {
    %c0_i32 = arith.constant 0 : i32
    %c0_i32_0 = arith.constant 0 : i32
    %c0_i32_1 = arith.constant 0 : i32
    return %c0_i32, %c0_i32_0 : i32, i32
  }
  func.func @transform_21(%arg0: i32) -> (i32, i32) {
    %c0_i32 = arith.constant 0 : i32
    %c0_i32_0 = arith.constant 0 : i32
    %c0_i32_1 = arith.constant 0 : i32
    return %c0_i32, %c0_i32_0 : i32, i32
  }
  func.func @transform_22(%arg0: i32) -> (i32, i32, i32) {
    %c0_i32 = arith.constant 0 : i32
    %c0_i32_0 = arith.constant 0 : i32
    %c0_i32_1 = arith.constant 0 : i32
    return %arg0, %c0_i32, %c0_i32_0 : i32, i32, i32
  }
  func.func @transform_23(%arg0: i32) -> (i32, i32, i32) {
    %c0_i32 = arith.constant 0 : i32
    %c0_i32_0 = arith.constant 0 : i32
    %c0_i32_1 = arith.constant 0 : i32
    return %arg0, %c0_i32, %c0_i32_0 : i32, i32, i32
  }
}

module attributes {stable_mosaic.version = 11 : i64} {
  func.func @_value_mlp_kernel(%arg0: memref<2x1024xf32, #tpu.memory_space<vmem>>, %arg1: memref<1024x32xbf16, #tpu.memory_space<vmem>>, %arg2: memref<1x32xf32, #tpu.memory_space<vmem>>, %arg3: memref<32x1xbf16, #tpu.memory_space<vmem>>, %arg4: memref<1x1xf32, #tpu.memory_space<vmem>>, %arg5: memref<2x1xf32, #tpu.memory_space<vmem>>) attributes {dimension_semantics = [], scalar_prefetch = 0 : i64, scratch_operands = 0 : i64, tpu.core_type = #tpu.core_type<tc>} {
    %c0 = arith.constant 0 : index
    %c0_0 = arith.constant 0 : index
    %0 = vector.load %arg0[%c0, %c0_0] : memref<2x1024xf32, #tpu.memory_space<vmem>>, vector<2x1024xf32>
    %1 = arith.truncf %0 : vector<2x1024xf32> to vector<2x1024xbf16>
    %c0_1 = arith.constant 0 : index
    %c0_2 = arith.constant 0 : index
    %2 = vector.load %arg1[%c0_1, %c0_2] : memref<1024x32xbf16, #tpu.memory_space<vmem>>, vector<1024x32xbf16>
    %cst = arith.constant dense<0.000000e+00> : vector<2x32xf32>
    %3 = tpu.matmul %1, %2, %cst {dimension_numbers = #tpu.dot_dimension_numbers<[1], [0], [0], [1], [0, 0, 1, 1], [], []>} : vector<2x1024xbf16>, vector<1024x32xbf16>, vector<2x32xf32> -> vector<2x32xf32>
    %c0_3 = arith.constant 0 : index
    %c0_4 = arith.constant 0 : index
    %4 = vector.load %arg2[%c0_3, %c0_4] : memref<1x32xf32, #tpu.memory_space<vmem>>, vector<1x32xf32>
    %5 = vector.broadcast %4 : vector<1x32xf32> to vector<2x32xf32>
    %6 = arith.addf %3, %5 : vector<2x32xf32>
    %cst_5 = arith.constant 0.000000e+00 : f32
    %7 = vector.broadcast %cst_5 : f32 to vector<2x32xf32>
    %8 = arith.subf %7, %6 : vector<2x32xf32>
    %9 = math.exp %8 : vector<2x32xf32>
    %cst_6 = arith.constant 1.000000e+00 : f32
    %10 = vector.broadcast %cst_6 : f32 to vector<2x32xf32>
    %11 = arith.addf %10, %9 : vector<2x32xf32>
    %12 = tpu.reciprocal %11 {approx = true} : vector<2x32xf32> -> vector<2x32xf32>
    %13 = arith.mulf %6, %12 : vector<2x32xf32>
    %14 = arith.truncf %13 : vector<2x32xf32> to vector<2x32xbf16>
    %c0_7 = arith.constant 0 : index
    %c0_8 = arith.constant 0 : index
    %15 = vector.load %arg3[%c0_7, %c0_8] : memref<32x1xbf16, #tpu.memory_space<vmem>>, vector<32x1xbf16>
    %cst_9 = arith.constant dense<0.000000e+00> : vector<2x1xf32>
    %16 = tpu.matmul %14, %15, %cst_9 {dimension_numbers = #tpu.dot_dimension_numbers<[1], [0], [0], [1], [0, 0, 1, 1], [], []>} : vector<2x32xbf16>, vector<32x1xbf16>, vector<2x1xf32> -> vector<2x1xf32>
    %c0_10 = arith.constant 0 : index
    %c0_11 = arith.constant 0 : index
    %17 = vector.load %arg4[%c0_10, %c0_11] : memref<1x1xf32, #tpu.memory_space<vmem>>, vector<1x1xf32>
    %18 = vector.broadcast %17 : vector<1x1xf32> to vector<2x1xf32>
    %19 = arith.addf %16, %18 : vector<2x1xf32>
    %c0_12 = arith.constant 0 : index
    %c0_13 = arith.constant 0 : index
    %20 = vector.load %arg5[%c0_12, %c0_13] : memref<2x1xf32, #tpu.memory_space<vmem>>, vector<2x1xf32>
    tpu.vector_store %arg5[%c0_12, %c0_13], %19 {strides = array<i32>} : memref<2x1xf32, #tpu.memory_space<vmem>>, vector<2x1xf32>,
    return
  }
}

</mosaic_0001>

<llo_original>
// kernel: policy_value_forward.3
$region0: #{policy_value_forward.3}
  #allocation0 [shape = 'u32[]', space=smem, size = 0x4, offset = 0x4, fixed_abs, tag = 'smem constant byte address 0x4 - core index']
  #allocation1 [shape = 'u32[144,128]{1,0:T(1,128)}', space=vmem, size = 0x12000, scoped, tag = 'internal scratch']
  #allocation2 [shape = 'f32[1,1]{1,0:T(1,128)S(1)}', space=vmem, size = 0x200, scoped, tag = 'scoped memory for policy_value_forward.3']
  %s0 = inlined_call_operand.vmem [shape: f32[2,1024], index: 0, kind: input, shape index: {}]
  %s1 = inlined_call_operand.vmem [shape: bf16[1024,32], index: 1, kind: input, shape index: {}]
  %s2 = inlined_call_operand.vmem [shape: f32[1,32], index: 2, kind: input, shape index: {}]
  %s3 = inlined_call_operand.vmem [shape: bf16[32,1], index: 3, kind: input, shape index: {}]
  %s4 = inlined_call_operand.<no memory space> [shape: f32[1,1], index: 4, kind: input, shape index: {}]
  %s5 = inlined_call_operand.vmem [shape: f32[2,1], index: 5, kind: output, shape index: {}]
  %s6 = sld [smem:[#allocation0]]
  $region30: #{policy_value_forward.3} parent=0
    _
  %s8 = ssub.s32 1, %s6
  %s9 = scalar_select 0, %s8, %s6
  %v10 = vstv %s4
  %11 = vst [vmem:[#allocation2] sm:$0x1] %v10
  // Predicated region
  $region2: #{policy_value_forward.3} parent=0 // pred_check
    _
  $region3: #{policy_value_forward.3} parent=0 // pred_check_branch
    %13 = sbr.rel (0) target = $region5
  $region4: #{policy_value_forward.3} parent=0 // pred_region
    _
  $region5: #{policy_value_forward.3} parent=0 // pred_fallthru
    _
  // Predicated region
  $region6: #{policy_value_forward.3} parent=0 // pred_check
    _
  $region7: #{policy_value_forward.3} parent=0 // pred_check_branch
    %15 = sbr.rel (0) target = $region9
  $region8: #{policy_value_forward.3} parent=0 // pred_region
    _
  $region9: #{policy_value_forward.3} parent=0 // pred_fallthru
    _
  // Predicated region
  $region10: #{policy_value_forward.3} parent=0 // pred_check
    _
  $region11: #{policy_value_forward.3} parent=0 // pred_check_branch
    %17 = sbr.rel (0) target = $region13
  $region12: #{policy_value_forward.3} parent=0 // pred_region
    _
  $region13: #{policy_value_forward.3} parent=0 // pred_fallthru
    _
  // Predicated region
  $region14: #{policy_value_forward.3} parent=0 // pred_check
    _
  $region15: #{policy_value_forward.3} parent=0 // pred_check_branch
    %19 = sbr.rel (0) target = $region17
  $region16: #{policy_value_forward.3} parent=0 // pred_region
    _
  $region17: #{policy_value_forward.3} parent=0 // pred_fallthru
    _
  // Predicated region
  $region18: #{policy_value_forward.3} parent=0 // pred_check
    _
  $region19: #{policy_value_forward.3} parent=0 // pred_check_branch
    %21 = sbr.rel (0) target = $region21
  $region20: #{policy_value_forward.3} parent=0 // pred_region
    _
  $region21: #{policy_value_forward.3} parent=0 // pred_fallthru
    _
  %v23 = vld [vmem:[%s0] sm:$0xff]
  %v24 = vld [vmem:[%s0 + $0x8] sm:$0xff]
  %v27 = vcombine.high %v23, %v23
  %v29 = vunpack.c.l.s4 1983009808
  %v30 = vunpack.c.0.s8 %v29
  %v31 = vlaneseq
  %v32 = vshrl.u32 %v31, 7
  %v33 = vsub.s32 %v30, %v32
  %v34 = vrot.slane %v23, %v33
  %v36 = vunpack.c.l.s4 1983009808
  %v37 = vunpack.c.0.s8 %v36
  %v38 = vlaneseq
  %v39 = vshrl.u32 %v38, 7
  %v40 = vsub.s32 %v37, %v39
  %v41 = vrot.slane %v27, %v40
  %v42 = vcombine.high %v34, %v34
  %v43 = vcombine.high %v41, %v41
  %v44 = vcombine.high %v24, %v24
  %v46 = vunpack.c.l.s4 1983009808
  %v47 = vunpack.c.0.s8 %v46
  %v48 = vlaneseq
  %v49 = vshrl.u32 %v48, 7
  %v50 = vsub.s32 %v47, %v49
  %v51 = vrot.slane %v24, %v50
  %v53 = vunpack.c.l.s4 1983009808
  %v54 = vunpack.c.0.s8 %v53
  %v55 = vlaneseq
  %v56 = vshrl.u32 %v55, 7
  %v57 = vsub.s32 %v54, %v56
  %v58 = vrot.slane %v44, %v57
  %v59 = vcombine.high %v51, %v51
  %v60 = vcombine.high %v58, %v58
  %v69 = vpack.c.bf16 %v34, %v34
  %v70 = vpack.c.bf16 %v42, %v42
  %v71 = vpack.c.bf16 %v41, %v41
  %v72 = vpack.c.bf16 %v43, %v43
  %v73 = vpack.c.bf16 %v51, %v51
  %v74 = vpack.c.bf16 %v59, %v59
  %v75 = vpack.c.bf16 %v58, %v58
  %v76 = vpack.c.bf16 %v60, %v60
  %v77 = vld [vmem:[%s1] sm:$0xf]
  %v78 = vld [vmem:[%s1 + $0x4] sm:$0xf]
  %v79 = vld [vmem:[%s1 + $0x8] sm:$0xf]
  %v80 = vld [vmem:[%s1 + $0xc] sm:$0xf]
  %v81 = vld [vmem:[%s1 + $0x10] sm:$0xf]
  %v82 = vld [vmem:[%s1 + $0x14] sm:$0xf]
  %v83 = vld [vmem:[%s1 + $0x18] sm:$0xf]
  %v84 = vld [vmem:[%s1 + $0x1c] sm:$0xf]
  %v85 = vld [vmem:[%s1 + $0x20] sm:$0xf]
  %v86 = vld [vmem:[%s1 + $0x24] sm:$0xf]
  %v87 = vld [vmem:[%s1 + $0x28] sm:$0xf]
  %v88 = vld [vmem:[%s1 + $0x2c] sm:$0xf]
  %v89 = vld [vmem:[%s1 + $0x30] sm:$0xf]
  %v90 = vld [vmem:[%s1 + $0x34] sm:$0xf]
  %v91 = vld [vmem:[%s1 + $0x38] sm:$0xf]
  %v92 = vld [vmem:[%s1 + $0x3c] sm:$0xf]
  %v93 = vld [vmem:[%s1 + $0x40] sm:$0xf]
  %v94 = vld [vmem:[%s1 + $0x44] sm:$0xf]
  %v95 = vld [vmem:[%s1 + $0x48] sm:$0xf]
  %v96 = vld [vmem:[%s1 + $0x4c] sm:$0xf]
  %v97 = vld [vmem:[%s1 + $0x50] sm:$0xf]
  %v98 = vld [vmem:[%s1 + $0x54] sm:$0xf]
  %v99 = vld [vmem:[%s1 + $0x58] sm:$0xf]
  %v100 = vld [vmem:[%s1 + $0x5c] sm:$0xf]
  %v101 = vld [vmem:[%s1 + $0x60] sm:$0xf]
  %v102 = vld [vmem:[%s1 + $0x64] sm:$0xf]
  %v103 = vld [vmem:[%s1 + $0x68] sm:$0xf]
  %v104 = vld [vmem:[%s1 + $0x6c] sm:$0xf]
  %v105 = vld [vmem:[%s1 + $0x70] sm:$0xf]
  %v106 = vld [vmem:[%s1 + $0x74] sm:$0xf]
  %v107 = vld [vmem:[%s1 + $0x78] sm:$0xf]
  %v108 = vld [vmem:[%s1 + $0x7c] sm:$0xf]
  %v109 = vld [vmem:[%s1 + $0x80] sm:$0xf]
  %v110 = vld [vmem:[%s1 + $0x84] sm:$0xf]
  %v111 = vld [vmem:[%s1 + $0x88] sm:$0xf]
  %v112 = vld [vmem:[%s1 + $0x8c] sm:$0xf]
  %v113 = vld [vmem:[%s1 + $0x90] sm:$0xf]
  %v114 = vld [vmem:[%s1 + $0x94] sm:$0xf]
  %v115 = vld [vmem:[%s1 + $0x98] sm:$0xf]
  %v116 = vld [vmem:[%s1 + $0x9c] sm:$0xf]
  %v117 = vld [vmem:[%s1 + $0xa0] sm:$0xf]
  %v118 = vld [vmem:[%s1 + $0xa4] sm:$0xf]
  %v119 = vld [vmem:[%s1 + $0xa8] sm:$0xf]
  %v120 = vld [vmem:[%s1 + $0xac] sm:$0xf]
  %v121 = vld [vmem:[%s1 + $0xb0] sm:$0xf]
  %v122 = vld [vmem:[%s1 + $0xb4] sm:$0xf]
  %v123 = vld [vmem:[%s1 + $0xb8] sm:$0xf]
  %v124 = vld [vmem:[%s1 + $0xbc] sm:$0xf]
  %v125 = vld [vmem:[%s1 + $0xc0] sm:$0xf]
  %v126 = vld [vmem:[%s1 + $0xc4] sm:$0xf]
  %v127 = vld [vmem:[%s1 + $0xc8] sm:$0xf]
  %v128 = vld [vmem:[%s1 + $0xcc] sm:$0xf]
  %v129 = vld [vmem:[%s1 + $0xd0] sm:$0xf]
  %v130 = vld [vmem:[%s1 + $0xd4] sm:$0xf]
  %v131 = vld [vmem:[%s1 + $0xd8] sm:$0xf]
  %v132 = vld [vmem:[%s1 + $0xdc] sm:$0xf]
  %v133 = vld [vmem:[%s1 + $0xe0] sm:$0xf]
  %v134 = vld [vmem:[%s1 + $0xe4] sm:$0xf]
  %v135 = vld [vmem:[%s1 + $0xe8] sm:$0xf]
  %v136 = vld [vmem:[%s1 + $0xec] sm:$0xf]
  %v137 = vld [vmem:[%s1 + $0xf0] sm:$0xf]
  %v138 = vld [vmem:[%s1 + $0xf4] sm:$0xf]
  %v139 = vld [vmem:[%s1 + $0xf8] sm:$0xf]
  %v140 = vld [vmem:[%s1 + $0xfc] sm:$0xf]
  %v141 = vld [vmem:[%s1 + $0x100] sm:$0xf]
  %v142 = vld [vmem:[%s1 + $0x104] sm:$0xf]
  %v143 = vld [vmem:[%s1 + $0x108] sm:$0xf]
  %v144 = vld [vmem:[%s1 + $0x10c] sm:$0xf]
  %v145 = vld [vmem:[%s1 + $0x110] sm:$0xf]
  %v146 = vld [vmem:[%s1 + $0x114] sm:$0xf]
  %v147 = vld [vmem:[%s1 + $0x118] sm:$0xf]
  %v148 = vld [vmem:[%s1 + $0x11c] sm:$0xf]
  %v149 = vld [vmem:[%s1 + $0x120] sm:$0xf]
  %v150 = vld [vmem:[%s1 + $0x124] sm:$0xf]
  %v151 = vld [vmem:[%s1 + $0x128] sm:$0xf]
  %v152 = vld [vmem:[%s1 + $0x12c] sm:$0xf]
  %v153 = vld [vmem:[%s1 + $0x130] sm:$0xf]
  %v154 = vld [vmem:[%s1 + $0x134] sm:$0xf]
  %v155 = vld [vmem:[%s1 + $0x138] sm:$0xf]
  %v156 = vld [vmem:[%s1 + $0x13c] sm:$0xf]
  %v157 = vld [vmem:[%s1 + $0x140] sm:$0xf]
  %v158 = vld [vmem:[%s1 + $0x144] sm:$0xf]
  %v159 = vld [vmem:[%s1 + $0x148] sm:$0xf]
  %v160 = vld [vmem:[%s1 + $0x14c] sm:$0xf]
  %v161 = vld [vmem:[%s1 + $0x150] sm:$0xf]
  %v162 = vld [vmem:[%s1 + $0x154] sm:$0xf]
  %v163 = vld [vmem:[%s1 + $0x158] sm:$0xf]
  %v164 = vld [vmem:[%s1 + $0x15c] sm:$0xf]
  %v165 = vld [vmem:[%s1 + $0x160] sm:$0xf]
  %v166 = vld [vmem:[%s1 + $0x164] sm:$0xf]
  %v167 = vld [vmem:[%s1 + $0x168] sm:$0xf]
  %v168 = vld [vmem:[%s1 + $0x16c] sm:$0xf]
  %v169 = vld [vmem:[%s1 + $0x170] sm:$0xf]
  %v170 = vld [vmem:[%s1 + $0x174] sm:$0xf]
  %v171 = vld [vmem:[%s1 + $0x178] sm:$0xf]
  %v172 = vld [vmem:[%s1 + $0x17c] sm:$0xf]
  %v173 = vld [vmem:[%s1 + $0x180] sm:$0xf]
  %v174 = vld [vmem:[%s1 + $0x184] sm:$0xf]
  %v175 = vld [vmem:[%s1 + $0x188] sm:$0xf]
  %v176 = vld [vmem:[%s1 + $0x18c] sm:$0xf]
  %v177 = vld [vmem:[%s1 + $0x190] sm:$0xf]
  %v178 = vld [vmem:[%s1 + $0x194] sm:$0xf]
  %v179 = vld [vmem:[%s1 + $0x198] sm:$0xf]
  %v180 = vld [vmem:[%s1 + $0x19c] sm:$0xf]
  %v181 = vld [vmem:[%s1 + $0x1a0] sm:$0xf]
  %v182 = vld [vmem:[%s1 + $0x1a4] sm:$0xf]
  %v183 = vld [vmem:[%s1 + $0x1a8] sm:$0xf]
  %v184 = vld [vmem:[%s1 + $0x1ac] sm:$0xf]
  %v185 = vld [vmem:[%s1 + $0x1b0] sm:$0xf]
  %v186 = vld [vmem:[%s1 + $0x1b4] sm:$0xf]
  %v187 = vld [vmem:[%s1 + $0x1b8] sm:$0xf]
  %v188 = vld [vmem:[%s1 + $0x1bc] sm:$0xf]
  %v189 = vld [vmem:[%s1 + $0x1c0] sm:$0xf]
  %v190 = vld [vmem:[%s1 + $0x1c4] sm:$0xf]
  %v191 = vld [vmem:[%s1 + $0x1c8] sm:$0xf]
  %v192 = vld [vmem:[%s1 + $0x1cc] sm:$0xf]
  %v193 = vld [vmem:[%s1 + $0x1d0] sm:$0xf]
  %v194 = vld [vmem:[%s1 + $0x1d4] sm:$0xf]
  %v195 = vld [vmem:[%s1 + $0x1d8] sm:$0xf]
  %v196 = vld [vmem:[%s1 + $0x1dc] sm:$0xf]
  %v197 = vld [vmem:[%s1 + $0x1e0] sm:$0xf]
  %v198 = vld [vmem:[%s1 + $0x1e4] sm:$0xf]
  %v199 = vld [vmem:[%s1 + $0x1e8] sm:$0xf]
  %v200 = vld [vmem:[%s1 + $0x1ec] sm:$0xf]
  %v201 = vld [vmem:[%s1 + $0x1f0] sm:$0xf]
  %v202 = vld [vmem:[%s1 + $0x1f4] sm:$0xf]
  %v203 = vld [vmem:[%s1 + $0x1f8] sm:$0xf]
  %v204 = vld [vmem:[%s1 + $0x1fc] sm:$0xf]
  %v205 = vld [vmem:[%s2] sm:$0x1]
  %v207 = vlaneseq
  %v208 = vshrl.u32 %v207, 7
  %v209 = vsub.s32 0, %v208
  %v210 = vrot.slane %v205, %v209
  %v340 = vunpack.c.l.b16 %v77
  %v341 = vunpack.c.l.b16 %v78
  %v342 = vunpack.c.l.b16 %v79
  %v343 = vunpack.c.l.b16 %v80
  %v344 = vunpack.c.l.b16 %v81
  %v345 = vunpack.c.l.b16 %v82
  %v346 = vunpack.c.l.b16 %v83
  %v347 = vunpack.c.l.b16 %v84
  %v348 = vunpack.c.l.b16 %v85
  %v349 = vunpack.c.l.b16 %v86
  %v350 = vunpack.c.l.b16 %v87
  %v351 = vunpack.c.l.b16 %v88
  %v352 = vunpack.c.l.b16 %v89
  %v353 = vunpack.c.l.b16 %v90
  %v354 = vunpack.c.l.b16 %v91
  %v355 = vunpack.c.l.b16 %v92
  %v356 = vunpack.c.l.b16 %v93
  %v357 = vunpack.c.l.b16 %v94
  %v358 = vunpack.c.l.b16 %v95
  %v359 = vunpack.c.l.b16 %v96
  %v360 = vunpack.c.l.b16 %v97
  %v361 = vunpack.c.l.b16 %v98
  %v362 = vunpack.c.l.b16 %v99
  %v363 = vunpack.c.l.b16 %v100
  %v364 = vunpack.c.l.b16 %v101
  %v365 = vunpack.c.l.b16 %v102
  %v366 = vunpack.c.l.b16 %v103
  %v367 = vunpack.c.l.b16 %v104
  %v368 = vunpack.c.l.b16 %v105
  %v369 = vunpack.c.l.b16 %v106
  %v370 = vunpack.c.l.b16 %v107
  %v371 = vunpack.c.l.b16 %v108
  %v372 = vunpack.c.l.b16 %v109
  %v373 = vunpack.c.l.b16 %v110
  %v374 = vunpack.c.l.b16 %v111
  %v375 = vunpack.c.l.b16 %v112
  %v376 = vunpack.c.l.b16 %v113
  %v377 = vunpack.c.l.b16 %v114
  %v378 = vunpack.c.l.b16 %v115
  %v379 = vunpack.c.l.b16 %v116
  %v380 = vunpack.c.l.b16 %v117
  %v381 = vunpack.c.l.b16 %v118
  %v382 = vunpack.c.l.b16 %v119
  %v383 = vunpack.c.l.b16 %v120
  %v384 = vunpack.c.l.b16 %v121
  %v385 = vunpack.c.l.b16 %v122
  %v386 = vunpack.c.l.b16 %v123
  %v387 = vunpack.c.l.b16 %v124
  %v388 = vunpack.c.l.b16 %v125
  %v389 = vunpack.c.l.b16 %v126
  %v390 = vunpack.c.l.b16 %v127
  %v391 = vunpack.c.l.b16 %v128
  %v392 = vunpack.c.l.b16 %v129
  %v393 = vunpack.c.l.b16 %v130
  %v394 = vunpack.c.l.b16 %v131
  %v395 = vunpack.c.l.b16 %v132
  %v396 = vunpack.c.l.b16 %v133
  %v397 = vunpack.c.l.b16 %v134
  %v398 = vunpack.c.l.b16 %v135
  %v399 = vunpack.c.l.b16 %v136
  %v400 = vunpack.c.l.b16 %v137
  %v401 = vunpack.c.l.b16 %v138
  %v402 = vunpack.c.l.b16 %v139
  %v403 = vunpack.c.l.b16 %v140
  %v404 = vunpack.c.l.b16 %v141
  %v405 = vunpack.c.l.b16 %v142
  %v406 = vunpack.c.l.b16 %v143
  %v407 = vunpack.c.l.b16 %v144
  %v408 = vunpack.c.l.b16 %v145
  %v409 = vunpack.c.l.b16 %v146
  %v410 = vunpack.c.l.b16 %v147
  %v411 = vunpack.c.l.b16 %v148
  %v412 = vunpack.c.l.b16 %v149
  %v413 = vunpack.c.l.b16 %v150
  %v414 = vunpack.c.l.b16 %v151
  %v415 = vunpack.c.l.b16 %v152
  %v416 = vunpack.c.l.b16 %v153
  %v417 = vunpack.c.l.b16 %v154
  %v418 = vunpack.c.l.b16 %v155
  %v419 = vunpack.c.l.b16 %v156
  %v420 = vunpack.c.l.b16 %v157
  %v421 = vunpack.c.l.b16 %v158
  %v422 = vunpack.c.l.b16 %v159
  %v423 = vunpack.c.l.b16 %v160
  %v424 = vunpack.c.l.b16 %v161
  %v425 = vunpack.c.l.b16 %v162
  %v426 = vunpack.c.l.b16 %v163
  %v427 = vunpack.c.l.b16 %v164
  %v428 = vunpack.c.l.b16 %v165
  %v429 = vunpack.c.l.b16 %v166
  %v430 = vunpack.c.l.b16 %v167
  %v431 = vunpack.c.l.b16 %v168
  %v432 = vunpack.c.l.b16 %v169
  %v433 = vunpack.c.l.b16 %v170
  %v434 = vunpack.c.l.b16 %v171
  %v435 = vunpack.c.l.b16 %v172
  %v436 = vunpack.c.l.b16 %v173
  %v437 = vunpack.c.l.b16 %v174
  %v438 = vunpack.c.l.b16 %v175
  %v439 = vunpack.c.l.b16 %v176
  %v440 = vunpack.c.l.b16 %v177
  %v441 = vunpack.c.l.b16 %v178
  %v442 = vunpack.c.l.b16 %v179
  %v443 = vunpack.c.l.b16 %v180
  %v444 = vunpack.c.l.b16 %v181
  %v445 = vunpack.c.l.b16 %v182
  %v446 = vunpack.c.l.b16 %v183
  %v447 = vunpack.c.l.b16 %v184
  %v448 = vunpack.c.l.b16 %v185
  %v449 = vunpack.c.l.b16 %v186
  %v450 = vunpack.c.l.b16 %v187
  %v451 = vunpack.c.l.b16 %v188
  %v452 = vunpack.c.l.b16 %v189
  %v453 = vunpack.c.l.b16 %v190
  %v454 = vunpack.c.l.b16 %v191
  %v455 = vunpack.c.l.b16 %v192
  %v456 = vunpack.c.l.b16 %v193
  %v457 = vunpack.c.l.b16 %v194
  %v458 = vunpack.c.l.b16 %v195
  %v459 = vunpack.c.l.b16 %v196
  %v460 = vunpack.c.l.b16 %v197
  %v461 = vunpack.c.l.b16 %v198
  %v462 = vunpack.c.l.b16 %v199
  %v463 = vunpack.c.l.b16 %v200
  %v464 = vunpack.c.l.b16 %v201
  %v465 = vunpack.c.l.b16 %v202
  %v466 = vunpack.c.l.b16 %v203
  %v467 = vunpack.c.l.b16 %v204
  %v468 = vpack.c.b16 %v341, %v340
  %v469 = vpack.c.b16 %v343, %v342
  %v470 = vpack.c.b16 %v345, %v344
  %v471 = vpack.c.b16 %v347, %v346
  %v472 = vpack.c.b16 %v349, %v348
  %v473 = vpack.c.b16 %v351, %v350
  %v474 = vpack.c.b16 %v353, %v352
  %v475 = vpack.c.b16 %v355, %v354
  %v476 = vpack.c.b16 %v357, %v356
  %v477 = vpack.c.b16 %v359, %v358
  %v478 = vpack.c.b16 %v361, %v360
  %v479 = vpack.c.b16 %v363, %v362
  %v480 = vpack.c.b16 %v365, %v364
  %v481 = vpack.c.b16 %v367, %v366
  %v482 = vpack.c.b16 %v369, %v368
  %v483 = vpack.c.b16 %v371, %v370
  %v484 = vpack.c.b16 %v373, %v372
  %v485 = vpack.c.b16 %v375, %v374
  %v486 = vpack.c.b16 %v377, %v376
  %v487 = vpack.c.b16 %v379, %v378
  %v488 = vpack.c.b16 %v381, %v380
  %v489 = vpack.c.b16 %v383, %v382
  %v490 = vpack.c.b16 %v385, %v384
  %v491 = vpack.c.b16 %v387, %v386
  %v492 = vpack.c.b16 %v389, %v388
  %v493 = vpack.c.b16 %v391, %v390
  %v494 = vpack.c.b16 %v393, %v392
  %v495 = vpack.c.b16 %v395, %v394
  %v496 = vpack.c.b16 %v397, %v396
  %v497 = vpack.c.b16 %v399, %v398
  %v498 = vpack.c.b16 %v401, %v400
  %v499 = vpack.c.b16 %v403, %v402
  %v500 = vpack.c.b16 %v405, %v404
  %v501 = vpack.c.b16 %v407, %v406
  %v502 = vpack.c.b16 %v409, %v408
  %v503 = vpack.c.b16 %v411, %v410
  %v504 = vpack.c.b16 %v413, %v412
  %v505 = vpack.c.b16 %v415, %v414
  %v506 = vpack.c.b16 %v417, %v416
  %v507 = vpack.c.b16 %v419, %v418
  %v508 = vpack.c.b16 %v421, %v420
  %v509 = vpack.c.b16 %v423, %v422
  %v510 = vpack.c.b16 %v425, %v424
  %v511 = vpack.c.b16 %v427, %v426
  %v512 = vpack.c.b16 %v429, %v428
  %v513 = vpack.c.b16 %v431, %v430
  %v514 = vpack.c.b16 %v433, %v432
  %v515 = vpack.c.b16 %v435, %v434
  %v516 = vpack.c.b16 %v437, %v436
  %v517 = vpack.c.b16 %v439, %v438
  %v518 = vpack.c.b16 %v441, %v440
  %v519 = vpack.c.b16 %v443, %v442
  %v520 = vpack.c.b16 %v445, %v444
  %v521 = vpack.c.b16 %v447, %v446
  %v522 = vpack.c.b16 %v449, %v448
  %v523 = vpack.c.b16 %v451, %v450
  %v524 = vpack.c.b16 %v453, %v452
  %v525 = vpack.c.b16 %v455, %v454
  %v526 = vpack.c.b16 %v457, %v456
  %v527 = vpack.c.b16 %v459, %v458
  %v528 = vpack.c.b16 %v461, %v460
  %v529 = vpack.c.b16 %v463, %v462
  %v530 = vpack.c.b16 %v465, %v464
  %v531 = vpack.c.b16 %v467, %v466
  %596 = vmatprep.subr.bf16.mxu0 0
  %597 = vmatpush1.bf16.msra.mxu0 %v468
  %598 = vmatprep.subr.bf16.mxu0 0
  %599 = vmatpush1.bf16.msra.mxu0 %v469
  %600 = vmatprep.subr.bf16.mxu0 0
  %601 = vmatpush1.bf16.msra.mxu0 %v470
  %602 = vmatprep.subr.bf16.mxu0 0
  %603 = vmatpush1.bf16.msra.mxu0 %v471
  %604 = vmatprep.subr.bf16.mxu0 0
  %605 = vmatpush1.bf16.msra.mxu0 %v472
  %606 = vmatprep.subr.bf16.mxu0 0
  %607 = vmatpush1.bf16.msra.mxu0 %v473
  %608 = vmatprep.subr.bf16.mxu0 0
  %609 = vmatpush1.bf16.msra.mxu0 %v474
  %610 = vmatprep.subr.bf16.mxu0 0
  %611 = vmatpush1.bf16.msra.mxu0 %v475
  %612 = vmatprep.subr.bf16.mxu0 0
  %613 = vmatpush1.bf16.msra.mxu0 %v476
  %614 = vmatprep.subr.bf16.mxu0 0
  %615 = vmatpush1.bf16.msra.mxu0 %v477
  %616 = vmatprep.subr.bf16.mxu0 0
  %617 = vmatpush1.bf16.msra.mxu0 %v478
  %618 = vmatprep.subr.bf16.mxu0 0
  %619 = vmatpush1.bf16.msra.mxu0 %v479
  %620 = vmatprep.subr.bf16.mxu0 0
  %621 = vmatpush1.bf16.msra.mxu0 %v480
  %622 = vmatprep.subr.bf16.mxu0 0
  %623 = vmatpush1.bf16.msra.mxu0 %v481
  %624 = vmatprep.subr.bf16.mxu0 0
  %625 = vmatpush1.bf16.msra.mxu0 %v482
  %626 = vmatprep.subr.bf16.mxu0 0
  %627 = vmatpush1.bf16.msra.mxu0 %v483
  %628 = vmatprep.mubr.bf16.mxu0 %v70
  %629 = vmatmul.mubr.bf16.gmra.mrb[0].mxu0 %v69
  %v630 = vpop.f32.mrb[0].mxu0
  %v631 = vadd.f32 %v210, %v630
  %v632 = vpop.f32.mrb[0].mxu0
  %v633 = vpop.f32.mrb[0].mxu0
  %v634 = vpop.f32.mrb[0].mxu0
  %635 = vdwg.mxu0
  %636 = vmatprep.subr.bf16.mxu0 0
  %637 = vmatpush1.bf16.msra.mxu0 %v484
  %638 = vmatprep.subr.bf16.mxu0 0
  %639 = vmatpush1.bf16.msra.mxu0 %v485
  %640 = vmatprep.subr.bf16.mxu0 0
  %641 = vmatpush1.bf16.msra.mxu0 %v486
  %642 = vmatprep.subr.bf16.mxu0 0
  %643 = vmatpush1.bf16.msra.mxu0 %v487
  %644 = vmatprep.subr.bf16.mxu0 0
  %645 = vmatpush1.bf16.msra.mxu0 %v488
  %646 = vmatprep.subr.bf16.mxu0 0
  %647 = vmatpush1.bf16.msra.mxu0 %v489
  %648 = vmatprep.subr.bf16.mxu0 0
  %649 = vmatpush1.bf16.msra.mxu0 %v490
  %650 = vmatprep.subr.bf16.mxu0 0
  %651 = vmatpush1.bf16.msra.mxu0 %v491
  %652 = vmatprep.subr.bf16.mxu0 0
  %653 = vmatpush1.bf16.msra.mxu0 %v492
  %654 = vmatprep.subr.bf16.mxu0 0
  %655 = vmatpush1.bf16.msra.mxu0 %v493
  %656 = vmatprep.subr.bf16.mxu0 0
  %657 = vmatpush1.bf16.msra.mxu0 %v494
  %658 = vmatprep.subr.bf16.mxu0 0
  %659 = vmatpush1.bf16.msra.mxu0 %v495
  %660 = vmatprep.subr.bf16.mxu0 0
  %661 = vmatpush1.bf16.msra.mxu0 %v496
  %662 = vmatprep.subr.bf16.mxu0 0
  %663 = vmatpush1.bf16.msra.mxu0 %v497
  %664 = vmatprep.subr.bf16.mxu0 0
  %665 = vmatpush1.bf16.msra.mxu0 %v498
  %666 = vmatprep.subr.bf16.mxu0 0
  %667 = vmatpush1.bf16.msra.mxu0 %v499
  %668 = vmatprep.mubr.bf16.mxu0 %v72
  %669 = vmatmul.mubr.bf16.gmra.mrb[0].mxu0 %v71
  %v670 = vpop.f32.mrb[0].mxu0
  %v671 = vadd.f32 %v631, %v670
  %v672 = vpop.f32.mrb[0].mxu0
  %v673 = vpop.f32.mrb[0].mxu0
  %v674 = vpop.f32.mrb[0].mxu0
  %675 = vdwg.mxu0
  %676 = vmatprep.subr.bf16.mxu0 0
  %677 = vmatpush1.bf16.msra.mxu0 %v500
  %678 = vmatprep.subr.bf16.mxu0 0
  %679 = vmatpush1.bf16.msra.mxu0 %v501
  %680 = vmatprep.subr.bf16.mxu0 0
  %681 = vmatpush1.bf16.msra.mxu0 %v502
  %682 = vmatprep.subr.bf16.mxu0 0
  %683 = vmatpush1.bf16.msra.mxu0 %v503
  %684 = vmatprep.subr.bf16.mxu0 0
  %685 = vmatpush1.bf16.msra.mxu0 %v504
  %686 = vmatprep.subr.bf16.mxu0 0
  %687 = vmatpush1.bf16.msra.mxu0 %v505
  %688 = vmatprep.subr.bf16.mxu0 0
  %689 = vmatpush1.bf16.msra.mxu0 %v506
  %690 = vmatprep.subr.bf16.mxu0 0
  %691 = vmatpush1.bf16.msra.mxu0 %v507
  %692 = vmatprep.subr.bf16.mxu0 0
  %693 = vmatpush1.bf16.msra.mxu0 %v508
  %694 = vmatprep.subr.bf16.mxu0 0
  %695 = vmatpush1.bf16.msra.mxu0 %v509
  %696 = vmatprep.subr.bf16.mxu0 0
  %697 = vmatpush1.bf16.msra.mxu0 %v510
  %698 = vmatprep.subr.bf16.mxu0 0
  %699 = vmatpush1.bf16.msra.mxu0 %v511
  %700 = vmatprep.subr.bf16.mxu0 0
  %701 = vmatpush1.bf16.msra.mxu0 %v512
  %702 = vmatprep.subr.bf16.mxu0 0
  %703 = vmatpush1.bf16.msra.mxu0 %v513
  %704 = vmatprep.subr.bf16.mxu0 0
  %705 = vmatpush1.bf16.msra.mxu0 %v514
  %706 = vmatprep.subr.bf16.mxu0 0
  %707 = vmatpush1.bf16.msra.mxu0 %v515
  %708 = vmatprep.mubr.bf16.mxu0 %v74
  %709 = vmatmul.mubr.bf16.gmra.mrb[0].mxu0 %v73
  %v710 = vpop.f32.mrb[0].mxu0
  %v711 = vadd.f32 %v671, %v710
  %v712 = vpop.f32.mrb[0].mxu0
  %v713 = vpop.f32.mrb[0].mxu0
  %v714 = vpop.f32.mrb[0].mxu0
  %715 = vdwg.mxu0
  %716 = vmatprep.subr.bf16.mxu0 0
  %717 = vmatpush1.bf16.msra.mxu0 %v516
  %718 = vmatprep.subr.bf16.mxu0 0
  %719 = vmatpush1.bf16.msra.mxu0 %v517
  %720 = vmatprep.subr.bf16.mxu0 0
  %721 = vmatpush1.bf16.msra.mxu0 %v518
  %722 = vmatprep.subr.bf16.mxu0 0
  %723 = vmatpush1.bf16.msra.mxu0 %v519
  %724 = vmatprep.subr.bf16.mxu0 0
  %725 = vmatpush1.bf16.msra.mxu0 %v520
  %726 = vmatprep.subr.bf16.mxu0 0
  %727 = vmatpush1.bf16.msra.mxu0 %v521
  %728 = vmatprep.subr.bf16.mxu0 0
  %729 = vmatpush1.bf16.msra.mxu0 %v522
  %730 = vmatprep.subr.bf16.mxu0 0
  %731 = vmatpush1.bf16.msra.mxu0 %v523
  %732 = vmatprep.subr.bf16.mxu0 0
  %733 = vmatpush1.bf16.msra.mxu0 %v524
  %734 = vmatprep.subr.bf16.mxu0 0
  %735 = vmatpush1.bf16.msra.mxu0 %v525
  %736 = vmatprep.subr.bf16.mxu0 0
  %737 = vmatpush1.bf16.msra.mxu0 %v526
  %738 = vmatprep.subr.bf16.mxu0 0
  %739 = vmatpush1.bf16.msra.mxu0 %v527
  %740 = vmatprep.subr.bf16.mxu0 0
  %741 = vmatpush1.bf16.msra.mxu0 %v528
  %742 = vmatprep.subr.bf16.mxu0 0
  %743 = vmatpush1.bf16.msra.mxu0 %v529
  %744 = vmatprep.subr.bf16.mxu0 0
  %745 = vmatpush1.bf16.msra.mxu0 %v530
  %746 = vmatprep.subr.bf16.mxu0 0
  %747 = vmatpush1.bf16.msra.mxu0 %v531
  %748 = vmatprep.mubr.bf16.mxu0 %v76
  %749 = vmatmul.mubr.bf16.gmra.mrb[0].mxu0 %v75
  %v750 = vpop.f32.mrb[0].mxu0
  %v751 = vadd.f32 %v711, %v750
  %v752 = vpop.f32.mrb[0].mxu0
  %v753 = vpop.f32.mrb[0].mxu0
  %v754 = vpop.f32.mrb[0].mxu0
  %755 = vdwg.mxu0
  %v756 = vsub.f32 0.0, %v751
  %v757 = vmul.f32 %v756, 1.442695
  %v758 = vpow.pop %v757
  %v759 = vadd.f32 %v758, 1.0
  %v760 = vrcp.pop %v759
  %v761 = vmul.f32 %v751, %v760
  %v762 = vpack.c.bf16 %v761, %v761
  %v763 = vld [vmem:[%s3] sm:$0xf]
  %v764 = vld [vmem:[%s3 + $0x4] sm:$0xf]
  %v765 = vld [vmem:[%s3 + $0x8] sm:$0xf]
  %v766 = vld [vmem:[%s3 + $0xc] sm:$0xf]
  %v767 = vld [vmem:[#allocation2] sm:$0x1]
  %v769 = vlaneseq
  %v770 = vshrl.u32 %v769, 7
  %v771 = vsub.s32 0, %v770
  %v772 = vrot.slane %v767, %v771
  %v778 = vunpack.c.l.b16 %v763
  %v779 = vunpack.c.l.b16 %v764
  %v780 = vunpack.c.l.b16 %v765
  %v781 = vunpack.c.l.b16 %v766
  %v782 = vpack.c.b16 %v779, %v778
  %v783 = vpack.c.b16 %v781, %v780
  %vm786 = vcmask 261120
  %v788 = vsel %vm786, %v762, 0
  %790 = vmatprep.subr.bf16.mxu0 0
  %791 = vmatpush1.bf16.msra.mxu0 %v782
  %792 = vmatprep.subr.bf16.mxu0 0
  %793 = vmatpush1.bf16.msra.mxu0 %v783
  %794 = vmatprep.subr.bf16.mxu0 0
  %795 = vmatpush1.bf16.msra.mxu0 0
  %796 = vmatprep.subr.bf16.mxu0 0
  %797 = vmatpush1.bf16.msra.mxu0 0
  %798 = vmatprep.subr.bf16.mxu0 0
  %799 = vmatpush1.bf16.msra.mxu0 0
  %800 = vmatprep.subr.bf16.mxu0 0
  %801 = vmatpush1.bf16.msra.mxu0 0
  %802 = vmatprep.subr.bf16.mxu0 0
  %803 = vmatpush1.bf16.msra.mxu0 0
  %804 = vmatprep.subr.bf16.mxu0 0
  %805 = vmatpush1.bf16.msra.mxu0 0
  %806 = vmatprep.subr.bf16.mxu0 0
  %807 = vmatpush1.bf16.msra.mxu0 0
  %808 = vmatprep.subr.bf16.mxu0 0
  %809 = vmatpush1.bf16.msra.mxu0 0
  %810 = vmatprep.subr.bf16.mxu0 0
  %811 = vmatpush1.bf16.msra.mxu0 0
  %812 = vmatprep.subr.bf16.mxu0 0
  %813 = vmatpush1.bf16.msra.mxu0 0
  %814 = vmatprep.subr.bf16.mxu0 0
  %815 = vmatpush1.bf16.msra.mxu0 0
  %816 = vmatprep.subr.bf16.mxu0 0
  %817 = vmatpush1.bf16.msra.mxu0 0
  %818 = vmatprep.subr.bf16.mxu0 0
  %819 = vmatpush1.bf16.msra.mxu0 0
  %820 = vmatprep.subr.bf16.mxu0 0
  %821 = vmatpush1.bf16.msra.mxu0 0
  %822 = vmatprep.mubr.bf16.mxu0 0
  %823 = vmatmul.mubr.bf16.gmra.mrb[0].mxu0 %v788
  %v824 = vpop.f32.mrb[0].mxu0
  %v825 = vadd.f32 %v772, %v824
  %v826 = vpop.f32.mrb[0].mxu0
  %v827 = vpop.f32.mrb[0].mxu0
  %v828 = vpop.f32.mrb[0].mxu0
  %829 = vdwg.mxu0
  %vm830 = vcmask 1024
  %831 = vst.msk [vmem:[%s5] sm:$0x3] %vm830, %v825
  // Predicated region
  $region22: #{policy_value_forward.3} parent=0 // pred_check
    _
  $region23: #{policy_value_forward.3} parent=0 // pred_check_branch
    %833 = sbr.rel (0) target = $region25
  $region24: #{policy_value_forward.3} parent=0 // pred_region
    _
  $region25: #{policy_value_forward.3} parent=0 // pred_fallthru
    _
  // Predicated region
  $region26: #{policy_value_forward.3} parent=0 // pred_check
    _
  $region27: #{policy_value_forward.3} parent=0 // pred_check_branch
    %835 = sbr.rel (0) target = $region29
  $region28: #{policy_value_forward.3} parent=0 // pred_region
    _
  $region29: #{policy_value_forward.3} parent=0 // pred_fallthru
    _

// kernel: policy_value_forward.2
$region0: #{policy_value_forward.2}
  #allocation0 [shape = 'u32[]', space=smem, size = 0x4, offset = 0x4, fixed_abs, tag = 'smem constant byte address 0x4 - core index']
  #allocation1 [shape = 'u32[144,128]{1,0:T(1,128)}', space=vmem, size = 0x12000, scoped, tag = 'internal scratch']
  #allocation2 [shape = 'f32[2,160,8]{2,1,0:T(8,128)}', space=vmem, size = 0x28000, scoped, tag = 'scratch operand']
  %s0 = inlined_call_operand.hbm [shape: f32[2,160,8], index: 0, kind: input, shape index: {}]
  %s1 = inlined_call_operand.hbm [shape: f32[256,1], index: 1, kind: input, shape index: {}]
  %s2 = inlined_call_operand.hbm [shape: bf16[72,32], index: 2, kind: input, shape index: {}]
  %s3 = inlined_call_operand.hbm [shape: f32[1,32], index: 3, kind: input, shape index: {}]
  %s4 = inlined_call_operand.hbm [shape: f32[1,32], index: 4, kind: input, shape index: {}]
  %s5 = inlined_call_operand.hbm [shape: bf16[2,32,8], index: 5, kind: input, shape index: {}]
  %s6 = inlined_call_operand.hbm [shape: f32[2,1,8], index: 6, kind: input, shape index: {}]
  %s7 = inlined_call_operand.hbm [shape: f32[2,1,8], index: 7, kind: input, shape index: {}]
  %s8 = inlined_call_operand.hbm [shape: bf16[2,72,8], index: 8, kind: input, shape index: {}]
  %s9 = inlined_call_operand.hbm [shape: f32[2,1,8], index: 9, kind: input, shape index: {}]
  %s10 = inlined_call_operand.hbm [shape: f32[2,1,8], index: 10, kind: input, shape index: {}]
  %s11 = inlined_call_operand.hbm [shape: bf16[2,8,32], index: 11, kind: input, shape index: {}]
  %s12 = inlined_call_operand.hbm [shape: f32[2,1,32], index: 12, kind: input, shape index: {}]
  %s13 = inlined_call_operand.hbm [shape: f32[2,1,32], index: 13, kind: input, shape index: {}]
  %s14 = inlined_call_operand.hbm [shape: bf16[2,32,8], index: 14, kind: input, shape index: {}]
  %s15 = inlined_call_operand.hbm [shape: f32[2,1,8], index: 15, kind: input, shape index: {}]
  %s16 = inlined_call_operand.hbm [shape: bf16[2,8,32], index: 16, kind: input, shape index: {}]
  %s17 = inlined_call_operand.hbm [shape: f32[2,1,32], index: 17, kind: input, shape index: {}]
  %s18 = inlined_call_operand.hbm [shape: bf16[32,16], index: 18, kind: input, shape index: {}]
  %s19 = inlined_call_operand.hbm [shape: f32[256,8], index: 19, kind: input, shape index: {}]
  %s20 = inlined_call_operand.hbm [shape: f32[1,8], index: 20, kind: input, shape index: {}]
  %s21 = inlined_call_operand.hbm [shape: f32[1,8], index: 21, kind: input, shape index: {}]
  %s22 = inlined_call_operand.hbm [shape: f32[2,128,8], index: 22, kind: output, shape index: {0}]
  %s23 = inlined_call_operand.hbm [shape: f32[2,128,8], index: 23, kind: output, shape index: {1}]
  %24 = xla_tuple %s22, %s23
  %s25 = sld [smem:[#allocation0]]
  $region194: #{policy_value_forward.2} parent=0
    _
  %s27 = ssub.s32 1, %s25
  %s28 = scalar_select 0, %s27, %s25
  $region1: #{policy_value_forward.2} parent=0
    #allocation3 [shape = 'u8[163840]{0}', space=vmem, size = 0x28000, scoped, tag = 'input window, operand 0, single buffered']
    #allocation4 [shape = 's32[1]{0}', space=sflag, size = 0x4, scoped, tag = 'scoped memory for policy_value_forward.2']
    #allocation5 [shape = 's32[1]{0}', space=sflag, size = 0x4, scoped, tag = 'scoped memory for policy_value_forward.2']
    #allocation6 [shape = 'u8[131072]{0}', space=vmem, size = 0x20000, scoped, tag = 'input window, operand 1, single buffered']
    #allocation7 [shape = 's32[1]{0}', space=sflag, size = 0x4, scoped, tag = 'scoped memory for policy_value_forward.2']
    #allocation8 [shape = 'u8[18432]{0}', space=vmem, size = 0x4800, scoped, tag = 'input window, operand 2, single buffered']
    #allocation9 [shape = 'u8[512]{0}', space=vmem, size = 0x400, scoped, tag = 'input window, operand 3, single buffered']
    #allocation10 [shape = 's32[1]{0}', space=sflag, size = 0x4, scoped, tag = 'scoped memory for policy_value_forward.2']
    #allocation11 [shape = 'u8[512]{0}', space=vmem, size = 0x400, scoped, tag = 'input window, operand 4, single buffered']
    #allocation12 [shape = 'u8[16384]{0}', space=vmem, size = 0x4000, scoped, tag = 'input window, operand 5, single buffered']
    #allocation13 [shape = 's32[1]{0}', space=sflag, size = 0x4, scoped, tag = 'scoped memory for policy_value_forward.2']
    #allocation14 [shape = 'u8[1024]{0}', space=vmem, size = 0x400, scoped, tag = 'input window, operand 6, single buffered']
    #allocation15 [shape = 'u8[1024]{0}', space=vmem, size = 0x400, scoped, tag = 'input window, operand 7, single buffered']
    #allocation16 [shape = 's32[1]{0}', space=sflag, size = 0x4, scoped, tag = 'scoped memory for policy_value_forward.2']
    #allocation17 [shape = 'u8[36864]{0}', space=vmem, size = 0x9000, scoped, tag = 'input window, operand 8, single buffered']
    #allocation18 [shape = 'u8[1024]{0}', space=vmem, size = 0x400, scoped, tag = 'input window, operand 9, single buffered']
    #allocation19 [shape = 's32[1]{0}', space=sflag, size = 0x4, scoped, tag = 'scoped memory for policy_value_forward.2']
    #allocation20 [shape = 'u8[1024]{0}', space=vmem, size = 0x400, scoped, tag = 'input window, operand 10, single buffered']
    #allocation21 [shape = 'u8[4096]{0}', space=vmem, size = 0x1000, scoped, tag = 'input window, operand 11, single buffered']
    #allocation22 [shape = 's32[1]{0}', space=sflag, size = 0x4, scoped, tag = 'scoped memory for policy_value_forward.2']
    #allocation23 [shape = 'u8[1024]{0}', space=vmem, size = 0x400, scoped, tag = 'input window, operand 12, single buffered']
    #allocation24 [shape = 'u8[1024]{0}', space=vmem, size = 0x400, scoped, tag = 'input window, operand 13, single buffered']
    #allocation25 [shape = 's32[1]{0}', space=sflag, size = 0x4, scoped, tag = 'scoped memory for policy_value_forward.2']
    #allocation26 [shape = 'u8[16384]{0}', space=vmem, size = 0x4000, scoped, tag = 'input window, operand 14, single buffered']
    #allocation27 [shape = 'u8[1024]{0}', space=vmem, size = 0x400, scoped, tag = 'input window, operand 15, single buffered']
    #allocation28 [shape = 's32[1]{0}', space=sflag, size = 0x4, scoped, tag = 'scoped memory for policy_value_forward.2']
    #allocation29 [shape = 'u8[4096]{0}', space=vmem, size = 0x1000, scoped, tag = 'input window, operand 16, single buffered']
    #allocation30 [shape = 'u8[1024]{0}', space=vmem, size = 0x400, scoped, tag = 'input window, operand 17, single buffered']
    #allocation31 [shape = 's32[1]{0}', space=sflag, size = 0x4, scoped, tag = 'scoped memory for policy_value_forward.2']
    #allocation32 [shape = 'u8[8192]{0}', space=vmem, size = 0x2000, scoped, tag = 'input window, operand 18, single buffered']
    #allocation33 [shape = 'u8[131072]{0}', space=vmem, size = 0x20000, scoped, tag = 'input window, operand 19, single buffered']
    #allocation34 [shape = 's32[1]{0}', space=sflag, size = 0x4, scoped, tag = 'scoped memory for policy_value_forward.2']
    #allocation35 [shape = 'u8[512]{0}', space=vmem, size = 0x400, scoped, tag = 'input window, operand 20, single buffered']
    #allocation36 [shape = 'u8[512]{0}', space=vmem, size = 0x400, scoped, tag = 'input window, operand 21, single buffered']
    #allocation37 [shape = 's32[1]{0}', space=sflag, size = 0x4, scoped, tag = 'scoped memory for policy_value_forward.2']
    #allocation38 [shape = 'u8[131072]{0}', space=vmem, size = 0x20000, scoped, tag = 'output window, operand 0, single buffered']
    #allocation39 [shape = 'u8[131072]{0}', space=vmem, size = 0x20000, scoped, tag = 'output window, operand 1, single buffered']
    #allocation40 [shape = 's32[1]{0}', space=sflag, size = 0x4, scoped, tag = 'scoped memory for policy_value_forward.2']
    %29 = vsyncpa [#allocation4], 0
    %30 = vsyncpa [#allocation7], 0
    %31 = vsyncpa [#allocation10], 0
    %32 = vsyncpa [#allocation13], 0
    %33 = vsyncpa [#allocation16], 0
    %34 = vsyncpa [#allocation19], 0
    %35 = vsyncpa [#allocation22], 0
    %36 = vsyncpa [#allocation25], 0
    %37 = vsyncpa [#allocation28], 0
    %38 = vsyncpa [#allocation31], 0
    %39 = vsyncpa [#allocation34], 0
    %40 = vsyncpa [#allocation37], 0
    %41 = vsyncpa [#allocation5], 0
    %42 = vsyncpa [#allocation40], 0
    // Predicated region
    $region2: #{policy_value_forward.2} parent=1 // pred_check
      _
    $region3: #{policy_value_forward.2} parent=1 // pred_check_branch
      %44 = sbr.rel (0) target = $region5
    $region4: #{policy_value_forward.2} parent=1 // pred_region
      %s46 = ssub.s32 5120, 5120
      %47 = vsyncadd [#allocation4], %s46
      %s48 = sshll.u32 [#allocation3], 4
      %s49 = int_to_ptr.vmem [resolvable:$true] %s48
      %54 = dma.hbm_to_vmem [thread:$0]  %s0, 5120, %s49, [#allocation4], 128, 128, 8
    $region5: #{policy_value_forward.2} parent=1 // pred_fallthru
      _
    // Predicated region
    $region6: #{policy_value_forward.2} parent=1 // pred_check
      _
    $region7: #{policy_value_forward.2} parent=1 // pred_check_branch
      %56 = sbr.rel (0) target = $region9
    $region8: #{policy_value_forward.2} parent=1 // pred_region
      %s58 = ssub.s32 4096, 4096
      %59 = vsyncadd [#allocation7], %s58
      %s60 = sshll.u32 [#allocation6], 4
      %s61 = int_to_ptr.vmem [resolvable:$true] %s60
      %66 = dma.hbm_to_vmem [thread:$0]  %s1, 4096, %s61, [#allocation7], 128, 128, 8
    $region9: #{policy_value_forward.2} parent=1 // pred_fallthru
      _
    // Predicated region
    $region10: #{policy_value_forward.2} parent=1 // pred_check
      _
    $region11: #{policy_value_forward.2} parent=1 // pred_check_branch
      %68 = sbr.rel (0) target = $region13
    $region12: #{policy_value_forward.2} parent=1 // pred_region
      %s70 = ssub.s32 576, 576
      %71 = vsyncadd [#allocation7], %s70
      %s72 = sshll.u32 [#allocation8], 4
      %s73 = int_to_ptr.vmem [resolvable:$true] %s72
      %78 = dma.hbm_to_vmem [thread:$0]  %s2, 576, %s73, [#allocation7], 64, 64, 4
    $region13: #{policy_value_forward.2} parent=1 // pred_fallthru
      _
    // Predicated region
    $region14: #{policy_value_forward.2} parent=1 // pred_check
      _
    $region15: #{policy_value_forward.2} parent=1 // pred_check_branch
      %80 = sbr.rel (0) target = $region17
    $region16: #{policy_value_forward.2} parent=1 // pred_region
      %s82 = ssub.s32 16, 16
      %83 = vsyncadd [#allocation10], %s82
      %s85 = sshll.u32 [#allocation9], 4
      %s86 = int_to_ptr.vmem [resolvable:$true] %s85
      %88 = dma.hbm_to_vmem [thread:$0]  %s3, 16, %s86, [#allocation10]
    $region17: #{policy_value_forward.2} parent=1 // pred_fallthru
      _
    // Predicated region
    $region18: #{policy_value_forward.2} parent=1 // pred_check
      _
    $region19: #{policy_value_forward.2} parent=1 // pred_check_branch
      %90 = sbr.rel (0) target = $region21
    $region20: #{policy_value_forward.2} parent=1 // pred_region
      %s92 = ssub.s32 16, 16
      %93 = vsyncadd [#allocation10], %s92
      %s95 = sshll.u32 [#allocation11], 4
      %s96 = int_to_ptr.vmem [resolvable:$true] %s95
      %98 = dma.hbm_to_vmem [thread:$0]  %s4, 16, %s96, [#allocation10]
    $region21: #{policy_value_forward.2} parent=1 // pred_fallthru
      _
    // Predicated region
    $region22: #{policy_value_forward.2} parent=1 // pred_check
      _
    $region23: #{policy_value_forward.2} parent=1 // pred_check_branch
      %100 = sbr.rel (0) target = $region25
    $region24: #{policy_value_forward.2} parent=1 // pred_region
      %s102 = ssub.s32 512, 512
      %103 = vsyncadd [#allocation13], %s102
      %s104 = sshll.u32 [#allocation12], 4
      %s105 = int_to_ptr.vmem [resolvable:$true] %s104
      %110 = dma.hbm_to_vmem [thread:$0]  %s5, 512, %s105, [#allocation13], 64, 64, 4
    $region25: #{policy_value_forward.2} parent=1 // pred_fallthru
      _
    // Predicated region
    $region26: #{policy_value_forward.2} parent=1 // pred_check
      _
    $region27: #{policy_value_forward.2} parent=1 // pred_check_branch
      %112 = sbr.rel (0) target = $region29
    $region28: #{policy_value_forward.2} parent=1 // pred_region
      %s114 = ssub.s32 32, 32
      %115 = vsyncadd [#allocation13], %s114
      %s116 = sshll.u32 [#allocation14], 4
      %s117 = int_to_ptr.vmem [resolvable:$true] %s116
      %122 = dma.hbm_to_vmem [thread:$0]  %s6, 32, %s117, [#allocation13], 16, 16, 1
    $region29: #{policy_value_forward.2} parent=1 // pred_fallthru
      _
    // Predicated region
    $region30: #{policy_value_forward.2} parent=1 // pred_check
      _
    $region31: #{policy_value_forward.2} parent=1 // pred_check_branch
      %124 = sbr.rel (0) target = $region33
    $region32: #{policy_value_forward.2} parent=1 // pred_region
      %s126 = ssub.s32 32, 32
      %127 = vsyncadd [#allocation16], %s126
      %s128 = sshll.u32 [#allocation15], 4
      %s129 = int_to_ptr.vmem [resolvable:$true] %s128
      %134 = dma.hbm_to_vmem [thread:$0]  %s7, 32, %s129, [#allocation16], 16, 16, 1
    $region33: #{policy_value_forward.2} parent=1 // pred_fallthru
      _
    // Predicated region
    $region34: #{policy_value_forward.2} parent=1 // pred_check
      _
    $region35: #{policy_value_forward.2} parent=1 // pred_check_branch
      %136 = sbr.rel (0) target = $region37
    $region36: #{policy_value_forward.2} parent=1 // pred_region
      %s138 = ssub.s32 1152, 1152
      %139 = vsyncadd [#allocation16], %s138
      %s140 = sshll.u32 [#allocation17], 4
      %s141 = int_to_ptr.vmem [resolvable:$true] %s140
      %146 = dma.hbm_to_vmem [thread:$0]  %s8, 1152, %s141, [#allocation16], 64, 64, 4
    $region37: #{policy_value_forward.2} parent=1 // pred_fallthru
      _
    // Predicated region
    $region38: #{policy_value_forward.2} parent=1 // pred_check
      _
    $region39: #{policy_value_forward.2} parent=1 // pred_check_branch
      %148 = sbr.rel (0) target = $region41
    $region40: #{policy_value_forward.2} parent=1 // pred_region
      %s150 = ssub.s32 32, 32
      %151 = vsyncadd [#allocation19], %s150
      %s152 = sshll.u32 [#allocation18], 4
      %s153 = int_to_ptr.vmem [resolvable:$true] %s152
      %158 = dma.hbm_to_vmem [thread:$0]  %s9, 32, %s153, [#allocation19], 16, 16, 1
    $region41: #{policy_value_forward.2} parent=1 // pred_fallthru
      _
    // Predicated region
    $region42: #{policy_value_forward.2} parent=1 // pred_check
      _
    $region43: #{policy_value_forward.2} parent=1 // pred_check_branch
      %160 = sbr.rel (0) target = $region45
    $region44: #{policy_value_forward.2} parent=1 // pred_region
      %s162 = ssub.s32 32, 32
      %163 = vsyncadd [#allocation19], %s162
      %s164 = sshll.u32 [#allocation20], 4
      %s165 = int_to_ptr.vmem [resolvable:$true] %s164
      %170 = dma.hbm_to_vmem [thread:$0]  %s10, 32, %s165, [#allocation19], 16, 16, 1
    $region45: #{policy_value_forward.2} parent=1 // pred_fallthru
      _
    // Predicated region
    $region46: #{policy_value_forward.2} parent=1 // pred_check
      _
    $region47: #{policy_value_forward.2} parent=1 // pred_check_branch
      %172 = sbr.rel (0) target = $region49
    $region48: #{policy_value_forward.2} parent=1 // pred_region
      %s174 = ssub.s32 128, 128
      %175 = vsyncadd [#allocation22], %s174
      %s176 = sshll.u32 [#allocation21], 4
      %s177 = int_to_ptr.vmem [resolvable:$true] %s176
      %182 = dma.hbm_to_vmem [thread:$0]  %s11, 128, %s177, [#allocation22], 64, 64, 4
    $region49: #{policy_value_forward.2} parent=1 // pred_fallthru
      _
    // Predicated region
    $region50: #{policy_value_forward.2} parent=1 // pred_check
      _
    $region51: #{policy_value_forward.2} parent=1 // pred_check_branch
      %184 = sbr.rel (0) target = $region53
    $region52: #{policy_value_forward.2} parent=1 // pred_region
      %s186 = ssub.s32 32, 32
      %187 = vsyncadd [#allocation22], %s186
      %s188 = sshll.u32 [#allocation23], 4
      %s189 = int_to_ptr.vmem [resolvable:$true] %s188
      %194 = dma.hbm_to_vmem [thread:$0]  %s12, 32, %s189, [#allocation22], 16, 16, 1
    $region53: #{policy_value_forward.2} parent=1 // pred_fallthru
      _
    // Predicated region
    $region54: #{policy_value_forward.2} parent=1 // pred_check
      _
    $region55: #{policy_value_forward.2} parent=1 // pred_check_branch
      %196 = sbr.rel (0) target = $region57
    $region56: #{policy_value_forward.2} parent=1 // pred_region
      %s198 = ssub.s32 32, 32
      %199 = vsyncadd [#allocation25], %s198
      %s200 = sshll.u32 [#allocation24], 4
      %s201 = int_to_ptr.vmem [resolvable:$true] %s200
      %206 = dma.hbm_to_vmem [thread:$0]  %s13, 32, %s201, [#allocation25], 16, 16, 1
    $region57: #{policy_value_forward.2} parent=1 // pred_fallthru
      _
    // Predicated region
    $region58: #{policy_value_forward.2} parent=1 // pred_check
      _
    $region59: #{policy_value_forward.2} parent=1 // pred_check_branch
      %208 = sbr.rel (0) target = $region61
    $region60: #{policy_value_forward.2} parent=1 // pred_region
      %s210 = ssub.s32 512, 512
      %211 = vsyncadd [#allocation25], %s210
      %s212 = sshll.u32 [#allocation26], 4
      %s213 = int_to_ptr.vmem [resolvable:$true] %s212
      %218 = dma.hbm_to_vmem [thread:$0]  %s14, 512, %s213, [#allocation25], 64, 64, 4
    $region61: #{policy_value_forward.2} parent=1 // pred_fallthru
      _
    // Predicated region
    $region62: #{policy_value_forward.2} parent=1 // pred_check
      _
    $region63: #{policy_value_forward.2} parent=1 // pred_check_branch
      %220 = sbr.rel (0) target = $region65
    $region64: #{policy_value_forward.2} parent=1 // pred_region
      %s222 = ssub.s32 32, 32
      %223 = vsyncadd [#allocation28], %s222
      %s224 = sshll.u32 [#allocation27], 4
      %s225 = int_to_ptr.vmem [resolvable:$true] %s224
      %230 = dma.hbm_to_vmem [thread:$0]  %s15, 32, %s225, [#allocation28], 16, 16, 1
    $region65: #{policy_value_forward.2} parent=1 // pred_fallthru
      _
    // Predicated region
    $region66: #{policy_value_forward.2} parent=1 // pred_check
      _
    $region67: #{policy_value_forward.2} parent=1 // pred_check_branch
      %232 = sbr.rel (0) target = $region69
    $region68: #{policy_value_forward.2} parent=1 // pred_region
      %s234 = ssub.s32 128, 128
      %235 = vsyncadd [#allocation28], %s234
      %s236 = sshll.u32 [#allocation29], 4
      %s237 = int_to_ptr.vmem [resolvable:$true] %s236
      %242 = dma.hbm_to_vmem [thread:$0]  %s16, 128, %s237, [#allocation28], 64, 64, 4
    $region69: #{policy_value_forward.2} parent=1 // pred_fallthru
      _
    // Predicated region
    $region70: #{policy_value_forward.2} parent=1 // pred_check
      _
    $region71: #{policy_value_forward.2} parent=1 // pred_check_branch
      %244 = sbr.rel (0) target = $region73
    $region72: #{policy_value_forward.2} parent=1 // pred_region
      %s246 = ssub.s32 32, 32
      %247 = vsyncadd [#allocation31], %s246
      %s248 = sshll.u32 [#allocation30], 4
      %s249 = int_to_ptr.vmem [resolvable:$true] %s248
      %254 = dma.hbm_to_vmem [thread:$0]  %s17, 32, %s249, [#allocation31], 16, 16, 1
    $region73: #{policy_value_forward.2} parent=1 // pred_fallthru
      _
    // Predicated region
    $region74: #{policy_value_forward.2} parent=1 // pred_check
      _
    $region75: #{policy_value_forward.2} parent=1 // pred_check_branch
      %256 = sbr.rel (0) target = $region77
    $region76: #{policy_value_forward.2} parent=1 // pred_region
      %s258 = ssub.s32 256, 256
      %259 = vsyncadd [#allocation31], %s258
      %s260 = sshll.u32 [#allocation32], 4
      %s261 = int_to_ptr.vmem [resolvable:$true] %s260
      %266 = dma.hbm_to_vmem [thread:$0]  %s18, 256, %s261, [#allocation31], 64, 64, 4
    $region77: #{policy_value_forward.2} parent=1 // pred_fallthru
      _
    // Predicated region
    $region78: #{policy_value_forward.2} parent=1 // pred_check
      _
    $region79: #{policy_value_forward.2} parent=1 // pred_check_branch
      %268 = sbr.rel (0) target = $region81
    $region80: #{policy_value_forward.2} parent=1 // pred_region
      %s270 = ssub.s32 4096, 4096
      %271 = vsyncadd [#allocation34], %s270
      %s272 = sshll.u32 [#allocation33], 4
      %s273 = int_to_ptr.vmem [resolvable:$true] %s272
      %278 = dma.hbm_to_vmem [thread:$0]  %s19, 4096, %s273, [#allocation34], 128, 128, 8
    $region81: #{policy_value_forward.2} parent=1 // pred_fallthru
      _
    // Predicated region
    $region82: #{policy_value_forward.2} parent=1 // pred_check
      _
    $region83: #{policy_value_forward.2} parent=1 // pred_check_branch
      %280 = sbr.rel (0) target = $region85
    $region84: #{policy_value_forward.2} parent=1 // pred_region
      %s282 = ssub.s32 16, 16
      %283 = vsyncadd [#allocation34], %s282
      %s285 = sshll.u32 [#allocation35], 4
      %s286 = int_to_ptr.vmem [resolvable:$true] %s285
      %288 = dma.hbm_to_vmem [thread:$0]  %s20, 16, %s286, [#allocation34]
    $region85: #{policy_value_forward.2} parent=1 // pred_fallthru
      _
    // Predicated region
    $region86: #{policy_value_forward.2} parent=1 // pred_check
      _
    $region87: #{policy_value_forward.2} parent=1 // pred_check_branch
      %290 = sbr.rel (0) target = $region89
    $region88: #{policy_value_forward.2} parent=1 // pred_region
      %s292 = ssub.s32 16, 16
      %293 = vsyncadd [#allocation37], %s292
      %s295 = sshll.u32 [#allocation36], 4
      %s296 = int_to_ptr.vmem [resolvable:$true] %s295
      %298 = dma.hbm_to_vmem [thread:$0]  %s21, 16, %s296, [#allocation37]
    $region89: #{policy_value_forward.2} parent=1 // pred_fallthru
      _
    // Predicated region
    $region90: #{policy_value_forward.2} parent=1 // pred_check
      _
    $region91: #{policy_value_forward.2} parent=1 // pred_check_branch
      %300 = sbr.rel (0) target = $region93
    $region92: #{policy_value_forward.2} parent=1 // pred_region
      %301 = dma.done [#allocation4], 5120
    $region93: #{policy_value_forward.2} parent=1 // pred_fallthru
      _
    // Predicated region
    $region94: #{policy_value_forward.2} parent=1 // pred_check
      _
    $region95: #{policy_value_forward.2} parent=1 // pred_check_branch
      %303 = sbr.rel (0) target = $region97
    $region96: #{policy_value_forward.2} parent=1 // pred_region
      %304 = dma.done [#allocation7], 4096
    $region97: #{policy_value_forward.2} parent=1 // pred_fallthru
      _
    // Predicated region
    $region98: #{policy_value_forward.2} parent=1 // pred_check
      _
    $region99: #{policy_value_forward.2} parent=1 // pred_check_branch
      %306 = sbr.rel (0) target = $region101
    $region100: #{policy_value_forward.2} parent=1 // pred_region
      %307 = dma.done [#allocation7], 576
    $region101: #{policy_value_forward.2} parent=1 // pred_fallthru
      _
    // Predicated region
    $region102: #{policy_value_forward.2} parent=1 // pred_check
      _
    $region103: #{policy_value_forward.2} parent=1 // pred_check_branch
      %309 = sbr.rel (0) target = $region105
    $region104: #{policy_value_forward.2} parent=1 // pred_region
      %310 = dma.done [#allocation10], 16
    $region105: #{policy_value_forward.2} parent=1 // pred_fallthru
      _
    // Predicated region
    $region106: #{policy_value_forward.2} parent=1 // pred_check
      _
    $region107: #{policy_value_forward.2} parent=1 // pred_check_branch
      %312 = sbr.rel (0) target = $region109
    $region108: #{policy_value_forward.2} parent=1 // pred_region
      %313 = dma.done [#allocation10], 16
    $region109: #{policy_value_forward.2} parent=1 // pred_fallthru
      _
    // Predicated region
    $region110: #{policy_value_forward.2} parent=1 // pred_check
      _
    $region111: #{policy_value_forward.2} parent=1 // pred_check_branch
      %315 = sbr.rel (0) target = $region113
    $region112: #{policy_value_forward.2} parent=1 // pred_region
      %316 = dma.done [#allocation13], 512
    $region113: #{policy_value_forward.2} parent=1 // pred_fallthru
      _
    // Predicated region
    $region114: #{policy_value_forward.2} parent=1 // pred_check
      _
    $region115: #{policy_value_forward.2} parent=1 // pred_check_branch
      %318 = sbr.rel (0) target = $region117
    $region116: #{policy_value_forward.2} parent=1 // pred_region
      %319 = dma.done [#allocation13], 32
    $region117: #{policy_value_forward.2} parent=1 // pred_fallthru
      _
    // Predicated region
    $region118: #{policy_value_forward.2} parent=1 // pred_check
      _
    $region119: #{policy_value_forward.2} parent=1 // pred_check_branch
      %321 = sbr.rel (0) target = $region121
    $region120: #{policy_value_forward.2} parent=1 // pred_region
      %322 = dma.done [#allocation16], 32
    $region121: #{policy_value_forward.2} parent=1 // pred_fallthru
      _
    // Predicated region
    $region122: #{policy_value_forward.2} parent=1 // pred_check
      _
    $region123: #{policy_value_forward.2} parent=1 // pred_check_branch
      %324 = sbr.rel (0) target = $region125
    $region124: #{policy_value_forward.2} parent=1 // pred_region
      %325 = dma.done [#allocation16], 1152
    $region125: #{policy_value_forward.2} parent=1 // pred_fallthru
      _
    // Predicated region
    $region126: #{policy_value_forward.2} parent=1 // pred_check
      _
    $region127: #{policy_value_forward.2} parent=1 // pred_check_branch
      %327 = sbr.rel (0) target = $region129
    $region128: #{policy_value_forward.2} parent=1 // pred_region
      %328 = dma.done [#allocation19], 32
    $region129: #{policy_value_forward.2} parent=1 // pred_fallthru
      _
    // Predicated region
    $region130: #{policy_value_forward.2} parent=1 // pred_check
      _
    $region131: #{policy_value_forward.2} parent=1 // pred_check_branch
      %330 = sbr.rel (0) target = $region133
    $region132: #{policy_value_forward.2} parent=1 // pred_region
      %331 = dma.done [#allocation19], 32
    $region133: #{policy_value_forward.2} parent=1 // pred_fallthru
      _
    // Predicated region
    $region134: #{policy_value_forward.2} parent=1 // pred_check
      _
    $region135: #{policy_value_forward.2} parent=1 // pred_check_branch
      %333 = sbr.rel (0) target = $region137
    $region136: #{policy_value_forward.2} parent=1 // pred_region
      %334 = dma.done [#allocation22], 128
    $region137: #{policy_value_forward.2} parent=1 // pred_fallthru
      _
    // Predicated region
    $region138: #{policy_value_forward.2} parent=1 // pred_check
      _
    $region139: #{policy_value_forward.2} parent=1 // pred_check_branch
      %336 = sbr.rel (0) target = $region141
    $region140: #{policy_value_forward.2} parent=1 // pred_region
      %337 = dma.done [#allocation22], 32
    $region141: #{policy_value_forward.2} parent=1 // pred_fallthru
      _
    // Predicated region
    $region142: #{policy_value_forward.2} parent=1 // pred_check
      _
    $region143: #{policy_value_forward.2} parent=1 // pred_check_branch
      %339 = sbr.rel (0) target = $region145
    $region144: #{policy_value_forward.2} parent=1 // pred_region
      %340 = dma.done [#allocation25], 32
    $region145: #{policy_value_forward.2} parent=1 // pred_fallthru
      _
    // Predicated region
    $region146: #{policy_value_forward.2} parent=1 // pred_check
      _
    $region147: #{policy_value_forward.2} parent=1 // pred_check_branch
      %342 = sbr.rel (0) target = $region149
    $region148: #{policy_value_forward.2} parent=1 // pred_region
      %343 = dma.done [#allocation25], 512
    $region149: #{policy_value_forward.2} parent=1 // pred_fallthru
      _
    // Predicated region
    $region150: #{policy_value_forward.2} parent=1 // pred_check
      _
    $region151: #{policy_value_forward.2} parent=1 // pred_check_branch
      %345 = sbr.rel (0) target = $region153
    $region152: #{policy_value_forward.2} parent=1 // pred_region
      %346 = dma.done [#allocation28], 32
    $region153: #{policy_value_forward.2} parent=1 // pred_fallthru
      _
    // Predicated region
    $region154: #{policy_value_forward.2} parent=1 // pred_check
      _
    $region155: #{policy_value_forward.2} parent=1 // pred_check_branch
      %348 = sbr.rel (0) target = $region157
    $region156: #{policy_value_forward.2} parent=1 // pred_region
      %349 = dma.done [#allocation28], 128
    $region157: #{policy_value_forward.2} parent=1 // pred_fallthru
      _
    // Predicated region
    $region158: #{policy_value_forward.2} parent=1 // pred_check
      _
    $region159: #{policy_value_forward.2} parent=1 // pred_check_branch
      %351 = sbr.rel (0) target = $region161
    $region160: #{policy_value_forward.2} parent=1 // pred_region
      %352 = dma.done [#allocation31], 32
    $region161: #{policy_value_forward.2} parent=1 // pred_fallthru
      _
    // Predicated region
    $region162: #{policy_value_forward.2} parent=1 // pred_check
      _
    $region163: #{policy_value_forward.2} parent=1 // pred_check_branch
      %354 = sbr.rel (0) target = $region165
    $region164: #{policy_value_forward.2} parent=1 // pred_region
      %355 = dma.done [#allocation31], 256
    $region165: #{policy_value_forward.2} parent=1 // pred_fallthru
      _
    // Predicated region
    $region166: #{policy_value_forward.2} parent=1 // pred_check
      _
    $region167: #{policy_value_forward.2} parent=1 // pred_check_branch
      %357 = sbr.rel (0) target = $region169
    $region168: #{policy_value_forward.2} parent=1 // pred_region
      %358 = dma.done [#allocation34], 4096
    $region169: #{policy_value_forward.2} parent=1 // pred_fallthru
      _
    // Predicated region
    $region170: #{policy_value_forward.2} parent=1 // pred_check
      _
    $region171: #{policy_value_forward.2} parent=1 // pred_check_branch
      %360 = sbr.rel (0) target = $region173
    $region172: #{policy_value_forward.2} parent=1 // pred_region
      %361 = dma.done [#allocation34], 16
    $region173: #{policy_value_forward.2} parent=1 // pred_fallthru
      _
    // Predicated region
    $region174: #{policy_value_forward.2} parent=1 // pred_check
      _
    $region175: #{policy_value_forward.2} parent=1 // pred_check_branch
      %363 = sbr.rel (0) target = $region177
    $region176: #{policy_value_forward.2} parent=1 // pred_region
      %364 = dma.done [#allocation37], 16
    $region177: #{policy_value_forward.2} parent=1 // pred_fallthru
      _
    %v366 = vld [vmem:[#allocation6] sm:$0xff]
    %v367 = vld [vmem:[#allocation6 + $0x8] sm:$0xff]
    %v368 = vld [vmem:[#allocation6 + $0x10] sm:$0xff]
    %v369 = vld [vmem:[#allocation6 + $0x18] sm:$0xff]
    %v370 = vld [vmem:[#allocation6 + $0x20] sm:$0xff]
    %v371 = vld [vmem:[#allocation6 + $0x28] sm:$0xff]
    %v372 = vld [vmem:[#allocation6 + $0x30] sm:$0xff]
    %v373 = vld [vmem:[#allocation6 + $0x38] sm:$0xff]
    %v374 = vld [vmem:[#allocation6 + $0x40] sm:$0xff]
    %v375 = vld [vmem:[#allocation6 + $0x48] sm:$0xff]
    %v376 = vld [vmem:[#allocation6 + $0x50] sm:$0xff]
    %v377 = vld [vmem:[#allocation6 + $0x58] sm:$0xff]
    %v378 = vld [vmem:[#allocation6 + $0x60] sm:$0xff]
    %v379 = vld [vmem:[#allocation6 + $0x68] sm:$0xff]
    %v380 = vld [vmem:[#allocation6 + $0x70] sm:$0xff]
    %v381 = vld [vmem:[#allocation6 + $0x78] sm:$0xff]
    %v382 = vld [vmem:[#allocation6 + $0x80] sm:$0xff]
    %v383 = vld [vmem:[#allocation6 + $0x88] sm:$0xff]
    %v384 = vld [vmem:[#allocation6 + $0x90] sm:$0xff]
    %v385 = vld [vmem:[#allocation6 + $0x98] sm:$0xff]
    %v386 = vld [vmem:[#allocation6 + $0xa0] sm:$0xff]
    %v387 = vld [vmem:[#allocation6 + $0xa8] sm:$0xff]
    %v388 = vld [vmem:[#allocation6 + $0xb0] sm:$0xff]
    %v389 = vld [vmem:[#allocation6 + $0xb8] sm:$0xff]
    %v390 = vld [vmem:[#allocation6 + $0xc0] sm:$0xff]
    %v391 = vld [vmem:[#allocation6 + $0xc8] sm:$0xff]
    %v392 = vld [vmem:[#allocation6 + $0xd0] sm:$0xff]
    %v393 = vld [vmem:[#allocation6 + $0xd8] sm:$0xff]
    %v394 = vld [vmem:[#allocation6 + $0xe0] sm:$0xff]
    %v395 = vld [vmem:[#allocation6 + $0xe8] sm:$0xff]
    %v396 = vld [vmem:[#allocation6 + $0xf0] sm:$0xff]
    %v397 = vld [vmem:[#allocation6 + $0xf8] sm:$0xff]
    %399 = vset.pattern.permute.xlu0 0
    %400 = vperm.xlu0 %399, %v366
    %v401 = vpop.permute.xlu0 %400
    %404 = vset.pattern.permute.xlu0 0
    %405 = vperm.xlu0 %404, %v367
    %v406 = vpop.permute.xlu0 %405
    %409 = vset.pattern.permute.xlu0 0
    %410 = vperm.xlu0 %409, %v368
    %v411 = vpop.permute.xlu0 %410
    %414 = vset.pattern.permute.xlu0 0
    %415 = vperm.xlu0 %414, %v369
    %v416 = vpop.permute.xlu0 %415
    %419 = vset.pattern.permute.xlu0 0
    %420 = vperm.xlu0 %419, %v370
    %v421 = vpop.permute.xlu0 %420
    %424 = vset.pattern.permute.xlu0 0
    %425 = vperm.xlu0 %424, %v371
    %v426 = vpop.permute.xlu0 %425
    %429 = vset.pattern.permute.xlu0 0
    %430 = vperm.xlu0 %429, %v372
    %v431 = vpop.permute.xlu0 %430
    %434 = vset.pattern.permute.xlu0 0
    %435 = vperm.xlu0 %434, %v373
    %v436 = vpop.permute.xlu0 %435
    %439 = vset.pattern.permute.xlu0 0
    %440 = vperm.xlu0 %439, %v374
    %v441 = vpop.permute.xlu0 %440
    %444 = vset.pattern.permute.xlu0 0
    %445 = vperm.xlu0 %444, %v375
    %v446 = vpop.permute.xlu0 %445
    %449 = vset.pattern.permute.xlu0 0
    %450 = vperm.xlu0 %449, %v376
    %v451 = vpop.permute.xlu0 %450
    %454 = vset.pattern.permute.xlu0 0
    %455 = vperm.xlu0 %454, %v377
    %v456 = vpop.permute.xlu0 %455
    %459 = vset.pattern.permute.xlu0 0
    %460 = vperm.xlu0 %459, %v378
    %v461 = vpop.permute.xlu0 %460
    %464 = vset.pattern.permute.xlu0 0
    %465 = vperm.xlu0 %464, %v379
    %v466 = vpop.permute.xlu0 %465
    %469 = vset.pattern.permute.xlu0 0
    %470 = vperm.xlu0 %469, %v380
    %v471 = vpop.permute.xlu0 %470
    %474 = vset.pattern.permute.xlu0 0
    %475 = vperm.xlu0 %474, %v381
    %v476 = vpop.permute.xlu0 %475
    %479 = vset.pattern.permute.xlu0 0
    %480 = vperm.xlu0 %479, %v382
    %v481 = vpop.permute.xlu0 %480
    %484 = vset.pattern.permute.xlu0 0
    %485 = vperm.xlu0 %484, %v383
    %v486 = vpop.permute.xlu0 %485
    %489 = vset.pattern.permute.xlu0 0
    %490 = vperm.xlu0 %489, %v384
    %v491 = vpop.permute.xlu0 %490
    %494 = vset.pattern.permute.xlu0 0
    %495 = vperm.xlu0 %494, %v385
    %v496 = vpop.permute.xlu0 %495
    %499 = vset.pattern.permute.xlu0 0
    %500 = vperm.xlu0 %499, %v386
    %v501 = vpop.permute.xlu0 %500
    %504 = vset.pattern.permute.xlu0 0
    %505 = vperm.xlu0 %504, %v387
    %v506 = vpop.permute.xlu0 %505
    %509 = vset.pattern.permute.xlu0 0
    %510 = vperm.xlu0 %509, %v388
    %v511 = vpop.permute.xlu0 %510
    %514 = vset.pattern.permute.xlu0 0
    %515 = vperm.xlu0 %514, %v389
    %v516 = vpop.permute.xlu0 %515
    %519 = vset.pattern.permute.xlu0 0
    %520 = vperm.xlu0 %519, %v390
    %v521 = vpop.permute.xlu0 %520
    %524 = vset.pattern.permute.xlu0 0
    %525 = vperm.xlu0 %524, %v391
    %v526 = vpop.permute.xlu0 %525
    %529 = vset.pattern.permute.xlu0 0
    %530 = vperm.xlu0 %529, %v392
    %v531 = vpop.permute.xlu0 %530
    %534 = vset.pattern.permute.xlu0 0
    %535 = vperm.xlu0 %534, %v393
    %v536 = vpop.permute.xlu0 %535
    %539 = vset.pattern.permute.xlu0 0
    %540 = vperm.xlu0 %539, %v394
    %v541 = vpop.permute.xlu0 %540
    %544 = vset.pattern.permute.xlu0 0
    %545 = vperm.xlu0 %544, %v395
    %v546 = vpop.permute.xlu0 %545
    %549 = vset.pattern.permute.xlu0 0
    %550 = vperm.xlu0 %549, %v396
    %v551 = vpop.permute.xlu0 %550
    %554 = vset.pattern.permute.xlu0 0
    %555 = vperm.xlu0 %554, %v397
    %v556 = vpop.permute.xlu0 %555
    %vm558 = vcmask 64512
    %559 = vst.msk [vmem:[#allocation2] sm:$0xff] %vm558, 0.0
    %560 = vst.msk [vmem:[#allocation2 + $0x8] sm:$0xff] %vm558, 0.0
    %561 = vst.msk [vmem:[#allocation2 + $0xa0] sm:$0xff] %vm558, 0.0
    %562 = vst.msk [vmem:[#allocation2 + $0xa8] sm:$0xff] %vm558, 0.0
    %563 = vst.msk [vmem:[#allocation2 + $0x90] sm:$0xff] %vm558, 0.0
    %564 = vst.msk [vmem:[#allocation2 + $0x98] sm:$0xff] %vm558, 0.0
    %565 = vst.msk [vmem:[#allocation2 + $0x130] sm:$0xff] %vm558, 0.0
    %566 = vst.msk [vmem:[#allocation2 + $0x138] sm:$0xff] %vm558, 0.0
    %v567 = vld [vmem:[#allocation8] sm:$0xf]
    %v568 = vld [vmem:[#allocation8 + $0x4] sm:$0xf]
    %v569 = vld [vmem:[#allocation8 + $0x8] sm:$0xf]
    %v570 = vld [vmem:[#allocation8 + $0xc] sm:$0xf]
    %v571 = vld [vmem:[#allocation8 + $0x10] sm:$0xf]
    %v572 = vld [vmem:[#allocation8 + $0x14] sm:$0xf]
    %v573 = vld [vmem:[#allocation8 + $0x18] sm:$0xf]
    %v574 = vld [vmem:[#allocation8 + $0x1c] sm:$0xf]
    %v575 = vld [vmem:[#allocation8 + $0x20] sm:$0xf]
    %v576 = vld [vmem:[#allocation3 + $0x4] sm:$0xff]
    %v577 = vld [vmem:[#allocation3 + $0xc] sm:$0xff]
    %v578 = vld [vmem:[#allocation3 + $0x14] sm:$0xff]
    %v579 = vld [vmem:[#allocation3 + $0x1c] sm:$0xff]
    %v580 = vld [vmem:[#allocation3 + $0x24] sm:$0xff]
    %v581 = vld [vmem:[#allocation3 + $0x2c] sm:$0xff]
    %v582 = vld [vmem:[#allocation3 + $0x34] sm:$0xff]
    %v583 = vld [vmem:[#allocation3 + $0x3c] sm:$0xff]
    %v584 = vld [vmem:[#allocation3 + $0x44] sm:$0xff]
    %v585 = vld [vmem:[#allocation3 + $0x4c] sm:$0xff]
    %v586 = vld [vmem:[#allocation3 + $0x54] sm:$0xff]
    %v587 = vld [vmem:[#allocation3 + $0x5c] sm:$0xff]
    %v588 = vld [vmem:[#allocation3 + $0x64] sm:$0xff]
    %v589 = vld [vmem:[#allocation3 + $0x6c] sm:$0xff]
    %v590 = vld [vmem:[#allocation3 + $0x74] sm:$0xff]
    %v591 = vld [vmem:[#allocation3 + $0x7c] sm:$0xff]
    %v592 = vld [vmem:[#allocation3 + $0xa4] sm:$0xff]
    %v593 = vld [vmem:[#allocation3 + $0xac] sm:$0xff]
    %v594 = vld [vmem:[#allocation3 + $0xb4] sm:$0xff]
    %v595 = vld [vmem:[#allocation3 + $0xbc] sm:$0xff]
    %v596 = vld [vmem:[#allocation3 + $0xc4] sm:$0xff]
    %v597 = vld [vmem:[#allocation3 + $0xcc] sm:$0xff]
    %v598 = vld [vmem:[#allocation3 + $0xd4] sm:$0xff]
    %v599 = vld [vmem:[#allocation3 + $0xdc] sm:$0xff]
    %v600 = vld [vmem:[#allocation3 + $0xe4] sm:$0xff]
    %v601 = vld [vmem:[#allocation3 + $0xec] sm:$0xff]
    %v602 = vld [vmem:[#allocation3 + $0xf4] sm:$0xff]
    %v603 = vld [vmem:[#allocation3 + $0xfc] sm:$0xff]
    %v604 = vld [vmem:[#allocation3 + $0x104] sm:$0xff]
    %v605 = vld [vmem:[#allocation3 + $0x10c] sm:$0xff]
    %v606 = vld [vmem:[#allocation3 + $0x114] sm:$0xff]
    %v607 = vld [vmem:[#allocation3 + $0x11c] sm:$0xff]
    %v608 = vld [vmem:[#allocation3 + $0x5] sm:$0xff]
    %v609 = vld [vmem:[#allocation3 + $0xd] sm:$0xff]
    %v610 = vld [vmem:[#allocation3 + $0x15] sm:$0xff]
    %v611 = vld [vmem:[#allocation3 + $0x1d] sm:$0xff]
    %v612 = vld [vmem:[#allocation3 + $0x25] sm:$0xff]
    %v613 = vld [vmem:[#allocation3 + $0x2d] sm:$0xff]
    %v614 = vld [vmem:[#allocation3 + $0x35] sm:$0xff]
    %v615 = vld [vmem:[#allocation3 + $0x3d] sm:$0xff]
    %v616 = vld [vmem:[#allocation3 + $0x45] sm:$0xff]
    %v617 = vld [vmem:[#allocation3 + $0x4d] sm:$0xff]
    %v618 = vld [vmem:[#allocation3 + $0x55] sm:$0xff]
    %v619 = vld [vmem:[#allocation3 + $0x5d] sm:$0xff]
    %v620 = vld [vmem:[#allocation3 + $0x65] sm:$0xff]
    %v621 = vld [vmem:[#allocation3 + $0x6d] sm:$0xff]
    %v622 = vld [vmem:[#allocation3 + $0x75] sm:$0xff]
    %v623 = vld [vmem:[#allocation3 + $0x7d] sm:$0xff]
    %v624 = vld [vmem:[#allocation3 + $0xa5] sm:$0xff]
    %v625 = vld [vmem:[#allocation3 + $0xad] sm:$0xff]
    %v626 = vld [vmem:[#allocation3 + $0xb5] sm:$0xff]
    %v627 = vld [vmem:[#allocation3 + $0xbd] sm:$0xff]
    %v628 = vld [vmem:[#allocation3 + $0xc5] sm:$0xff]
    %v629 = vld [vmem:[#allocation3 + $0xcd] sm:$0xff]
    %v630 = vld [vmem:[#allocation3 + $0xd5] sm:$0xff]
    %v631 = vld [vmem:[#allocation3 + $0xdd] sm:$0xff]
    %v632 = vld [vmem:[#allocation3 + $0xe5] sm:$0xff]
    %v633 = vld [vmem:[#allocation3 + $0xed] sm:$0xff]
    %v634 = vld [vmem:[#allocation3 + $0xf5] sm:$0xff]
    %v635 = vld [vmem:[#allocation3 + $0xfd] sm:$0xff]
    %v636 = vld [vmem:[#allocation3 + $0x105] sm:$0xff]
    %v637 = vld [vmem:[#allocation3 + $0x10d] sm:$0xff]
    %v638 = vld [vmem:[#allocation3 + $0x115] sm:$0xff]
    %v639 = vld [vmem:[#allocation3 + $0x11d] sm:$0xff]
    %v640 = vld [vmem:[#allocation3 + $0x6] sm:$0xff]
    %v641 = vld [vmem:[#allocation3 + $0xe] sm:$0xff]
    %v642 = vld [vmem:[#allocation3 + $0x16] sm:$0xff]
    %v643 = vld [vmem:[#allocation3 + $0x1e] sm:$0xff]
    %v644 = vld [vmem:[#allocation3 + $0x26] sm:$0xff]
    %v645 = vld [vmem:[#allocation3 + $0x2e] sm:$0xff]
    %v646 = vld [vmem:[#allocation3 + $0x36] sm:$0xff]
    %v647 = vld [vmem:[#allocation3 + $0x3e] sm:$0xff]
    %v648 = vld [vmem:[#allocation3 + $0x46] sm:$0xff]
    %v649 = vld [vmem:[#allocation3 + $0x4e] sm:$0xff]
    %v650 = vld [vmem:[#allocation3 + $0x56] sm:$0xff]
    %v651 = vld [vmem:[#allocation3 + $0x5e] sm:$0xff]
    %v652 = vld [vmem:[#allocation3 + $0x66] sm:$0xff]
    %v653 = vld [vmem:[#allocation3 + $0x6e] sm:$0xff]
    %v654 = vld [vmem:[#allocation3 + $0x76] sm:$0xff]
    %v655 = vld [vmem:[#allocation3 + $0x7e] sm:$0xff]
    %v656 = vld [vmem:[#allocation3 + $0xa6] sm:$0xff]
    %v657 = vld [vmem:[#allocation3 + $0xae] sm:$0xff]
    %v658 = vld [vmem:[#allocation3 + $0xb6] sm:$0xff]
    %v659 = vld [vmem:[#allocation3 + $0xbe] sm:$0xff]
    %v660 = vld [vmem:[#allocation3 + $0xc6] sm:$0xff]
    %v661 = vld [vmem:[#allocation3 + $0xce] sm:$0xff]
    %v662 = vld [vmem:[#allocation3 + $0xd6] sm:$0xff]
    %v663 = vld [vmem:[#allocation3 + $0xde] sm:$0xff]
    %v664 = vld [vmem:[#allocation3 + $0xe6] sm:$0xff]
    %v665 = vld [vmem:[#allocation3 + $0xee] sm:$0xff]
    %v666 = vld [vmem:[#allocation3 + $0xf6] sm:$0xff]
    %v667 = vld [vmem:[#allocation3 + $0xfe] sm:$0xff]
    %v668 = vld [vmem:[#allocation3 + $0x106] sm:$0xff]
    %v669 = vld [vmem:[#allocation3 + $0x10e] sm:$0xff]
    %v670 = vld [vmem:[#allocation3 + $0x116] sm:$0xff]
    %v671 = vld [vmem:[#allocation3 + $0x11e] sm:$0xff]
    %v672 = vld [vmem:[#allocation3 + $0xf] sm:$0xff]
    %v673 = vld [vmem:[#allocation3 + $0x17] sm:$0xff]
    %v674 = vld [vmem:[#allocation3 + $0x1f] sm:$0xff]
    %v675 = vld [vmem:[#allocation3 + $0x27] sm:$0xff]
    %v676 = vld [vmem:[#allocation3 + $0x2f] sm:$0xff]
    %v677 = vld [vmem:[#allocation3 + $0x37] sm:$0xff]
    %v678 = vld [vmem:[#allocation3 + $0x3f] sm:$0xff]
    %v679 = vld [vmem:[#allocation3 + $0x47] sm:$0xff]
    %v680 = vld [vmem:[#allocation3 + $0x4f] sm:$0xff]
    %v681 = vld [vmem:[#allocation3 + $0x57] sm:$0xff]
    %v682 = vld [vmem:[#allocation3 + $0x5f] sm:$0xff]
    %v683 = vld [vmem:[#allocation3 + $0x67] sm:$0xff]
    %v684 = vld [vmem:[#allocation3 + $0x6f] sm:$0xff]
    %v685 = vld [vmem:[#allocation3 + $0x77] sm:$0xff]
    %v686 = vld [vmem:[#allocation3 + $0x7f] sm:$0xff]
    %v687 = vld [vmem:[#allocation3 + $0x87] sm:$0xff]
    %v688 = vld [vmem:[#allocation3 + $0xaf] sm:$0xff]
    %v689 = vld [vmem:[#allocation3 + $0xb7] sm:$0xff]
    %v690 = vld [vmem:[#allocation3 + $0xbf] sm:$0xff]
    %v691 = vld [vmem:[#allocation3 + $0xc7] sm:$0xff]
    %v692 = vld [vmem:[#allocation3 + $0xcf] sm:$0xff]
    %v693 = vld [vmem:[#allocation3 + $0xd7] sm:$0xff]
    %v694 = vld [vmem:[#allocation3 + $0xdf] sm:$0xff]
    %v695 = vld [vmem:[#allocation3 + $0xe7] sm:$0xff]
    %v696 = vld [vmem:[#allocation3 + $0xef] sm:$0xff]
    %v697 = vld [vmem:[#allocation3 + $0xf7] sm:$0xff]
    %v698 = vld [vmem:[#allocation3 + $0xff] sm:$0xff]
    %v699 = vld [vmem:[#allocation3 + $0x107] sm:$0xff]
    %v700 = vld [vmem:[#allocation3 + $0x10f] sm:$0xff]
    %v701 = vld [vmem:[#allocation3 + $0x117] sm:$0xff]
    %v702 = vld [vmem:[#allocation3 + $0x11f] sm:$0xff]
    %v703 = vld [vmem:[#allocation3 + $0x127] sm:$0xff]
    %v704 = vld [vmem:[#allocation3 + $0x10] sm:$0xff]
    %v705 = vld [vmem:[#allocation3 + $0x18] sm:$0xff]
    %v706 = vld [vmem:[#allocation3 + $0x20] sm:$0xff]
    %v707 = vld [vmem:[#allocation3 + $0x28] sm:$0xff]
    %v708 = vld [vmem:[#allocation3 + $0x30] sm:$0xff]
    %v709 = vld [vmem:[#allocation3 + $0x38] sm:$0xff]
    %v710 = vld [vmem:[#allocation3 + $0x40] sm:$0xff]
    %v711 = vld [vmem:[#allocation3 + $0x48] sm:$0xff]
    %v712 = vld [vmem:[#allocation3 + $0x50] sm:$0xff]
    %v713 = vld [vmem:[#allocation3 + $0x58] sm:$0xff]
    %v714 = vld [vmem:[#allocation3 + $0x60] sm:$0xff]
    %v715 = vld [vmem:[#allocation3 + $0x68] sm:$0xff]
    %v716 = vld [vmem:[#allocation3 + $0x70] sm:$0xff]
    %v717 = vld [vmem:[#allocation3 + $0x78] sm:$0xff]
    %v718 = vld [vmem:[#allocation3 + $0x80] sm:$0xff]
    %v719 = vld [vmem:[#allocation3 + $0x88] sm:$0xff]
    %v720 = vld [vmem:[#allocation3 + $0xb0] sm:$0xff]
    %v721 = vld [vmem:[#allocation3 + $0xb8] sm:$0xff]
    %v722 = vld [vmem:[#allocation3 + $0xc0] sm:$0xff]
    %v723 = vld [vmem:[#allocation3 + $0xc8] sm:$0xff]
    %v724 = vld [vmem:[#allocation3 + $0xd0] sm:$0xff]
    %v725 = vld [vmem:[#allocation3 + $0xd8] sm:$0xff]
    %v726 = vld [vmem:[#allocation3 + $0xe0] sm:$0xff]
    %v727 = vld [vmem:[#allocation3 + $0xe8] sm:$0xff]
    %v728 = vld [vmem:[#allocation3 + $0xf0] sm:$0xff]
    %v729 = vld [vmem:[#allocation3 + $0xf8] sm:$0xff]
    %v730 = vld [vmem:[#allocation3 + $0x100] sm:$0xff]
    %v731 = vld [vmem:[#allocation3 + $0x108] sm:$0xff]
    %v732 = vld [vmem:[#allocation3 + $0x110] sm:$0xff]
    %v733 = vld [vmem:[#allocation3 + $0x118] sm:$0xff]
    %v734 = vld [vmem:[#allocation3 + $0x120] sm:$0xff]
    %v735 = vld [vmem:[#allocation3 + $0x128] sm:$0xff]
    %v736 = vld [vmem:[#allocation3 + $0x11] sm:$0xff]
    %v737 = vld [vmem:[#allocation3 + $0x19] sm:$0xff]
    %v738 = vld [vmem:[#allocation3 + $0x21] sm:$0xff]
    %v739 = vld [vmem:[#allocation3 + $0x29] sm:$0xff]
    %v740 = vld [vmem:[#allocation3 + $0x31] sm:$0xff]
    %v741 = vld [vmem:[#allocation3 + $0x39] sm:$0xff]
    %v742 = vld [vmem:[#allocation3 + $0x41] sm:$0xff]
    %v743 = vld [vmem:[#allocation3 + $0x49] sm:$0xff]
    %v744 = vld [vmem:[#allocation3 + $0x51] sm:$0xff]
    %v745 = vld [vmem:[#allocation3 + $0x59] sm:$0xff]
    %v746 = vld [vmem:[#allocation3 + $0x61] sm:$0xff]
    %v747 = vld [vmem:[#allocation3 + $0x69] sm:$0xff]
    %v748 = vld [vmem:[#allocation3 + $0x71] sm:$0xff]
    %v749 = vld [vmem:[#allocation3 + $0x79] sm:$0xff]
    %v750 = vld [vmem:[#allocation3 + $0x81] sm:$0xff]
    %v751 = vld [vmem:[#allocation3 + $0x89] sm:$0xff]
    %v752 = vld [vmem:[#allocation3 + $0xb1] sm:$0xff]
    %v753 = vld [vmem:[#allocation3 + $0xb9] sm:$0xff]
    %v754 = vld [vmem:[#allocation3 + $0xc1] sm:$0xff]
    %v755 = vld [vmem:[#allocation3 + $0xc9] sm:$0xff]
    %v756 = vld [vmem:[#allocation3 + $0xd1] sm:$0xff]
    %v757 = vld [vmem:[#allocation3 + $0xd9] sm:$0xff]
    %v758 = vld [vmem:[#allocation3 + $0xe1] sm:$0xff]
    %v759 = vld [vmem:[#allocation3 + $0xe9] sm:$0xff]
    %v760 = vld [vmem:[#allocation3 + $0xf1] sm:$0xff]
    %v761 = vld [vmem:[#allocation3 + $0xf9] sm:$0xff]
    %v762 = vld [vmem:[#allocation3 + $0x101] sm:$0xff]
    %v763 = vld [vmem:[#allocation3 + $0x109] sm:$0xff]
    %v764 = vld [vmem:[#allocation3 + $0x111] sm:$0xff]
    %v765 = vld [vmem:[#allocation3 + $0x119] sm:$0xff]
    %v766 = vld [vmem:[#allocation3 + $0x121] sm:$0xff]
    %v767 = vld [vmem:[#allocation3 + $0x129] sm:$0xff]
    %v768 = vld [vmem:[#allocation3 + $0x1a] sm:$0xff]
    %v769 = vld [vmem:[#allocation3 + $0x22] sm:$0xff]
    %v770 = vld [vmem:[#allocation3 + $0x2a] sm:$0xff]
    %v771 = vld [vmem:[#allocation3 + $0x32] sm:$0xff]
    %v772 = vld [vmem:[#allocation3 + $0x3a] sm:$0xff]
    %v773 = vld [vmem:[#allocation3 + $0x42] sm:$0xff]
    %v774 = vld [vmem:[#allocation3 + $0x4a] sm:$0xff]
    %v775 = vld [vmem:[#allocation3 + $0x52] sm:$0xff]
    %v776 = vld [vmem:[#allocation3 + $0x5a] sm:$0xff]
    %v777 = vld [vmem:[#allocation3 + $0x62] sm:$0xff]
    %v778 = vld [vmem:[#allocation3 + $0x6a] sm:$0xff]
    %v779 = vld [vmem:[#allocation3 + $0x72] sm:$0xff]
    %v780 = vld [vmem:[#allocation3 + $0x7a] sm:$0xff]
    %v781 = vld [vmem:[#allocation3 + $0x82] sm:$0xff]
    %v782 = vld [vmem:[#allocation3 + $0x8a] sm:$0xff]
    %v783 = vld [vmem:[#allocation3 + $0x92] sm:$0xff]
    %v784 = vld [vmem:[#allocation3 + $0xba] sm:$0xff]
    %v785 = vld [vmem:[#allocation3 + $0xc2] sm:$0xff]
    %v786 = vld [vmem:[#allocation3 + $0xca] sm:$0xff]
    %v787 = vld [vmem:[#allocation3 + $0xd2] sm:$0xff]
    %v788 = vld [vmem:[#allocation3 + $0xda] sm:$0xff]
    %v789 = vld [vmem:[#allocation3 + $0xe2] sm:$0xff]
    %v790 = vld [vmem:[#allocation3 + $0xea] sm:$0xff]
    %v791 = vld [vmem:[#allocation3 + $0xf2] sm:$0xff]
    %v792 = vld [vmem:[#allocation3 + $0xfa] sm:$0xff]
    %v793 = vld [vmem:[#allocation3 + $0x102] sm:$0xff]
    %v794 = vld [vmem:[#allocation3 + $0x10a] sm:$0xff]
    %v795 = vld [vmem:[#allocation3 + $0x112] sm:$0xff]
    %v796 = vld [vmem:[#allocation3 + $0x11a] sm:$0xff]
    %v797 = vld [vmem:[#allocation3 + $0x122] sm:$0xff]
    %v798 = vld [vmem:[#allocation3 + $0x12a] sm:$0xff]
    %v799 = vld [vmem:[#allocation3 + $0x132] sm:$0xff]
    %v800 = vld [vmem:[#allocation3 + $0x1b] sm:$0xff]
    %v801 = vld [vmem:[#allocation3 + $0x23] sm:$0xff]
    %v802 = vld [vmem:[#allocation3 + $0x2b] sm:$0xff]
    %v803 = vld [vmem:[#allocation3 + $0x33] sm:$0xff]
    %v804 = vld [vmem:[#allocation3 + $0x3b] sm:$0xff]
    %v805 = vld [vmem:[#allocation3 + $0x43] sm:$0xff]
    %v806 = vld [vmem:[#allocation3 + $0x4b] sm:$0xff]
    %v807 = vld [vmem:[#allocation3 + $0x53] sm:$0xff]
    %v808 = vld [vmem:[#allocation3 + $0x5b] sm:$0xff]
    %v809 = vld [vmem:[#allocation3 + $0x63] sm:$0xff]
    %v810 = vld [vmem:[#allocation3 + $0x6b] sm:$0xff]
    %v811 = vld [vmem:[#allocation3 + $0x73] sm:$0xff]
    %v812 = vld [vmem:[#allocation3 + $0x7b] sm:$0xff]
    %v813 = vld [vmem:[#allocation3 + $0x83] sm:$0xff]
    %v814 = vld [vmem:[#allocation3 + $0x8b] sm:$0xff]
    %v815 = vld [vmem:[#allocation3 + $0x93] sm:$0xff]
    %v816 = vld [vmem:[#allocation3 + $0xbb] sm:$0xff]
    %v817 = vld [vmem:[#allocation3 + $0xc3] sm:$0xff]
    %v818 = vld [vmem:[#allocation3 + $0xcb] sm:$0xff]
    %v819 = vld [vmem:[#allocation3 + $0xd3] sm:$0xff]
    %v820 = vld [vmem:[#allocation3 + $0xdb] sm:$0xff]
    %v821 = vld [vmem:[#allocation3 + $0xe3] sm:$0xff]
    %v822 = vld [vmem:[#allocation3 + $0xeb] sm:$0xff]
    %v823 = vld [vmem:[#allocation3 + $0xf3] sm:$0xff]
    %v824 = vld [vmem:[#allocation3 + $0xfb] sm:$0xff]
    %v825 = vld [vmem:[#allocation3 + $0x103] sm:$0xff]
    %v826 = vld [vmem:[#allocation3 + $0x10b] sm:$0xff]
    %v827 = vld [vmem:[#allocation3 + $0x113] sm:$0xff]
    %v828 = vld [vmem:[#allocation3 + $0x11b] sm:$0xff]
    %v829 = vld [vmem:[#allocation3 + $0x123] sm:$0xff]
    %v830 = vld [vmem:[#allocation3 + $0x12b] sm:$0xff]
    %v831 = vld [vmem:[#allocation3 + $0x133] sm:$0xff]
    %v832 = vld [vmem:[#allocation3 + $0x84] sm:$0xff]
    %v833 = vld [vmem:[#allocation3 + $0x8c] sm:$0xff]
    %v834 = vld [vmem:[#allocation3 + $0x94] sm:$0xff]
    %v835 = vld [vmem:[#allocation3 + $0x124] sm:$0xff]
    %v836 = vld [vmem:[#allocation3 + $0x12c] sm:$0xff]
    %v837 = vld [vmem:[#allocation3 + $0x134] sm:$0xff]
    %870 = vrot.lane.b32.xlu0 %v608, 8
    %v871 = vpop.permute.xlu0 %870
    %872 = vrot.lane.b32.xlu0 %v609, 8
    %v873 = vpop.permute.xlu0 %872
    %874 = vrot.lane.b32.xlu0 %v610, 8
    %v875 = vpop.permute.xlu0 %874
    %876 = vrot.lane.b32.xlu0 %v611, 8
    %v877 = vpop.permute.xlu0 %876
    %878 = vrot.lane.b32.xlu0 %v612, 8
    %v879 = vpop.permute.xlu0 %878
    %880 = vrot.lane.b32.xlu0 %v613, 8
    %v881 = vpop.permute.xlu0 %880
    %882 = vrot.lane.b32.xlu0 %v614, 8
    %v883 = vpop.permute.xlu0 %882
    %884 = vrot.lane.b32.xlu0 %v615, 8
    %v885 = vpop.permute.xlu0 %884
    %886 = vrot.lane.b32.xlu0 %v616, 8
    %v887 = vpop.permute.xlu0 %886
    %888 = vrot.lane.b32.xlu0 %v617, 8
    %v889 = vpop.permute.xlu0 %888
    %890 = vrot.lane.b32.xlu0 %v618, 8
    %v891 = vpop.permute.xlu0 %890
    %892 = vrot.lane.b32.xlu0 %v619, 8
    %v893 = vpop.permute.xlu0 %892
    %894 = vrot.lane.b32.xlu0 %v620, 8
    %v895 = vpop.permute.xlu0 %894
    %896 = vrot.lane.b32.xlu0 %v621, 8
    %v897 = vpop.permute.xlu0 %896
    %898 = vrot.lane.b32.xlu0 %v622, 8
    %v899 = vpop.permute.xlu0 %898
    %900 = vrot.lane.b32.xlu0 %v623, 8
    %v901 = vpop.permute.xlu0 %900
    %902 = vrot.lane.b32.xlu0 %v624, 8
    %v903 = vpop.permute.xlu0 %902
    %904 = vrot.lane.b32.xlu0 %v625, 8
    %v905 = vpop.permute.xlu0 %904
    %906 = vrot.lane.b32.xlu0 %v626, 8
    %v907 = vpop.permute.xlu0 %906
    %908 = vrot.lane.b32.xlu0 %v627, 8
    %v909 = vpop.permute.xlu0 %908
    %910 = vrot.lane.b32.xlu0 %v628, 8
    %v911 = vpop.permute.xlu0 %910
    %912 = vrot.lane.b32.xlu0 %v629, 8
    %v913 = vpop.permute.xlu0 %912
    %914 = vrot.lane.b32.xlu0 %v630, 8
    %v915 = vpop.permute.xlu0 %914
    %916 = vrot.lane.b32.xlu0 %v631, 8
    %v917 = vpop.permute.xlu0 %916
    %918 = vrot.lane.b32.xlu0 %v632, 8
    %v919 = vpop.permute.xlu0 %918
    %920 = vrot.lane.b32.xlu0 %v633, 8
    %v921 = vpop.permute.xlu0 %920
    %922 = vrot.lane.b32.xlu0 %v634, 8
    %v923 = vpop.permute.xlu0 %922
    %924 = vrot.lane.b32.xlu0 %v635, 8
    %v925 = vpop.permute.xlu0 %924
    %926 = vrot.lane.b32.xlu0 %v636, 8
    %v927 = vpop.permute.xlu0 %926
    %928 = vrot.lane.b32.xlu0 %v637, 8
    %v929 = vpop.permute.xlu0 %928
    %930 = vrot.lane.b32.xlu0 %v638, 8
    %v931 = vpop.permute.xlu0 %930
    %932 = vrot.lane.b32.xlu0 %v639, 8
    %v933 = vpop.permute.xlu0 %932
    %998 = vrot.lane.b32.xlu0 %v640, 16
    %v999 = vpop.permute.xlu0 %998
    %1000 = vrot.lane.b32.xlu0 %v641, 16
    %v1001 = vpop.permute.xlu0 %1000
    %1002 = vrot.lane.b32.xlu0 %v642, 16
    %v1003 = vpop.permute.xlu0 %1002
    %1004 = vrot.lane.b32.xlu0 %v643, 16
    %v1005 = vpop.permute.xlu0 %1004
    %1006 = vrot.lane.b32.xlu0 %v644, 16
    %v1007 = vpop.permute.xlu0 %1006
    %1008 = vrot.lane.b32.xlu0 %v645, 16
    %v1009 = vpop.permute.xlu0 %1008
    %1010 = vrot.lane.b32.xlu0 %v646, 16
    %v1011 = vpop.permute.xlu0 %1010
    %1012 = vrot.lane.b32.xlu0 %v647, 16
    %v1013 = vpop.permute.xlu0 %1012
    %1014 = vrot.lane.b32.xlu0 %v648, 16
    %v1015 = vpop.permute.xlu0 %1014
    %1016 = vrot.lane.b32.xlu0 %v649, 16
    %v1017 = vpop.permute.xlu0 %1016
    %1018 = vrot.lane.b32.xlu0 %v650, 16
    %v1019 = vpop.permute.xlu0 %1018
    %1020 = vrot.lane.b32.xlu0 %v651, 16
    %v1021 = vpop.permute.xlu0 %1020
    %1022 = vrot.lane.b32.xlu0 %v652, 16
    %v1023 = vpop.permute.xlu0 %1022
    %1024 = vrot.lane.b32.xlu0 %v653, 16
    %v1025 = vpop.permute.xlu0 %1024
    %1026 = vrot.lane.b32.xlu0 %v654, 16
    %v1027 = vpop.permute.xlu0 %1026
    %1028 = vrot.lane.b32.xlu0 %v655, 16
    %v1029 = vpop.permute.xlu0 %1028
    %1030 = vrot.lane.b32.xlu0 %v656, 16
    %v1031 = vpop.permute.xlu0 %1030
    %1032 = vrot.lane.b32.xlu0 %v657, 16
    %v1033 = vpop.permute.xlu0 %1032
    %1034 = vrot.lane.b32.xlu0 %v658, 16
    %v1035 = vpop.permute.xlu0 %1034
    %1036 = vrot.lane.b32.xlu0 %v659, 16
    %v1037 = vpop.permute.xlu0 %1036
    %1038 = vrot.lane.b32.xlu0 %v660, 16
    %v1039 = vpop.permute.xlu0 %1038
    %1040 = vrot.lane.b32.xlu0 %v661, 16
    %v1041 = vpop.permute.xlu0 %1040
    %1042 = vrot.lane.b32.xlu0 %v662, 16
    %v1043 = vpop.permute.xlu0 %1042
    %1044 = vrot.lane.b32.xlu0 %v663, 16
    %v1045 = vpop.permute.xlu0 %1044
    %1046 = vrot.lane.b32.xlu0 %v664, 16
    %v1047 = vpop.permute.xlu0 %1046
    %1048 = vrot.lane.b32.xlu0 %v665, 16
    %v1049 = vpop.permute.xlu0 %1048
    %1050 = vrot.lane.b32.xlu0 %v666, 16
    %v1051 = vpop.permute.xlu0 %1050
    %1052 = vrot.lane.b32.xlu0 %v667, 16
    %v1053 = vpop.permute.xlu0 %1052
    %1054 = vrot.lane.b32.xlu0 %v668, 16
    %v1055 = vpop.permute.xlu0 %1054
    %1056 = vrot.lane.b32.xlu0 %v669, 16
    %v1057 = vpop.permute.xlu0 %1056
    %1058 = vrot.lane.b32.xlu0 %v670, 16
    %v1059 = vpop.permute.xlu0 %1058
    %1060 = vrot.lane.b32.xlu0 %v671, 16
    %v1061 = vpop.permute.xlu0 %1060
    %1126 = vrot.lane.b32.xlu0 %v672, 24
    %v1127 = vpop.permute.xlu0 %1126
    %1128 = vrot.lane.b32.xlu0 %v673, 24
    %v1129 = vpop.permute.xlu0 %1128
    %1130 = vrot.lane.b32.xlu0 %v674, 24
    %v1131 = vpop.permute.xlu0 %1130
    %1132 = vrot.lane.b32.xlu0 %v675, 24
    %v1133 = vpop.permute.xlu0 %1132
    %1134 = vrot.lane.b32.xlu0 %v676, 24
    %v1135 = vpop.permute.xlu0 %1134
    %1136 = vrot.lane.b32.xlu0 %v677, 24
    %v1137 = vpop.permute.xlu0 %1136
    %1138 = vrot.lane.b32.xlu0 %v678, 24
    %v1139 = vpop.permute.xlu0 %1138
    %1140 = vrot.lane.b32.xlu0 %v679, 24
    %v1141 = vpop.permute.xlu0 %1140
    %1142 = vrot.lane.b32.xlu0 %v680, 24
    %v1143 = vpop.permute.xlu0 %1142
    %1144 = vrot.lane.b32.xlu0 %v681, 24
    %v1145 = vpop.permute.xlu0 %1144
    %1146 = vrot.lane.b32.xlu0 %v682, 24
    %v1147 = vpop.permute.xlu0 %1146
    %1148 = vrot.lane.b32.xlu0 %v683, 24
    %v1149 = vpop.permute.xlu0 %1148
    %1150 = vrot.lane.b32.xlu0 %v684, 24
    %v1151 = vpop.permute.xlu0 %1150
    %1152 = vrot.lane.b32.xlu0 %v685, 24
    %v1153 = vpop.permute.xlu0 %1152
    %1154 = vrot.lane.b32.xlu0 %v686, 24
    %v1155 = vpop.permute.xlu0 %1154
    %1156 = vrot.lane.b32.xlu0 %v687, 24
    %v1157 = vpop.permute.xlu0 %1156
    %1158 = vrot.lane.b32.xlu0 %v688, 24
    %v1159 = vpop.permute.xlu0 %1158
    %1160 = vrot.lane.b32.xlu0 %v689, 24
    %v1161 = vpop.permute.xlu0 %1160
    %1162 = vrot.lane.b32.xlu0 %v690, 24
    %v1163 = vpop.permute.xlu0 %1162
    %1164 = vrot.lane.b32.xlu0 %v691, 24
    %v1165 = vpop.permute.xlu0 %1164
    %1166 = vrot.lane.b32.xlu0 %v692, 24
    %v1167 = vpop.permute.xlu0 %1166
    %1168 = vrot.lane.b32.xlu0 %v693, 24
    %v1169 = vpop.permute.xlu0 %1168
    %1170 = vrot.lane.b32.xlu0 %v694, 24
    %v1171 = vpop.permute.xlu0 %1170
    %1172 = vrot.lane.b32.xlu0 %v695, 24
    %v1173 = vpop.permute.xlu0 %1172
    %1174 = vrot.lane.b32.xlu0 %v696, 24
    %v1175 = vpop.permute.xlu0 %1174
    %1176 = vrot.lane.b32.xlu0 %v697, 24
    %v1177 = vpop.permute.xlu0 %1176
    %1178 = vrot.lane.b32.xlu0 %v698, 24
    %v1179 = vpop.permute.xlu0 %1178
    %1180 = vrot.lane.b32.xlu0 %v699, 24
    %v1181 = vpop.permute.xlu0 %1180
    %1182 = vrot.lane.b32.xlu0 %v700, 24
    %v1183 = vpop.permute.xlu0 %1182
    %1184 = vrot.lane.b32.xlu0 %v701, 24
    %v1185 = vpop.permute.xlu0 %1184
    %1186 = vrot.lane.b32.xlu0 %v702, 24
    %v1187 = vpop.permute.xlu0 %1186
    %1188 = vrot.lane.b32.xlu0 %v703, 24
    %v1189 = vpop.permute.xlu0 %1188
    %1254 = vrot.lane.b32.xlu0 %v704, 32
    %v1255 = vpop.permute.xlu0 %1254
    %1256 = vrot.lane.b32.xlu0 %v705, 32
    %v1257 = vpop.permute.xlu0 %1256
    %1258 = vrot.lane.b32.xlu0 %v706, 32
    %v1259 = vpop.permute.xlu0 %1258
    %1260 = vrot.lane.b32.xlu0 %v707, 32
    %v1261 = vpop.permute.xlu0 %1260
    %1262 = vrot.lane.b32.xlu0 %v708, 32
    %v1263 = vpop.permute.xlu0 %1262
    %1264 = vrot.lane.b32.xlu0 %v709, 32
    %v1265 = vpop.permute.xlu0 %1264
    %1266 = vrot.lane.b32.xlu0 %v710, 32
    %v1267 = vpop.permute.xlu0 %1266
    %1268 = vrot.lane.b32.xlu0 %v711, 32
    %v1269 = vpop.permute.xlu0 %1268
    %1270 = vrot.lane.b32.xlu0 %v712, 32
    %v1271 = vpop.permute.xlu0 %1270
    %1272 = vrot.lane.b32.xlu0 %v713, 32
    %v1273 = vpop.permute.xlu0 %1272
    %1274 = vrot.lane.b32.xlu0 %v714, 32
    %v1275 = vpop.permute.xlu0 %1274
    %1276 = vrot.lane.b32.xlu0 %v715, 32
    %v1277 = vpop.permute.xlu0 %1276
    %1278 = vrot.lane.b32.xlu0 %v716, 32
    %v1279 = vpop.permute.xlu0 %1278
    %1280 = vrot.lane.b32.xlu0 %v717, 32
    %v1281 = vpop.permute.xlu0 %1280
    %1282 = vrot.lane.b32.xlu0 %v718, 32
    %v1283 = vpop.permute.xlu0 %1282
    %1284 = vrot.lane.b32.xlu0 %v719, 32
    %v1285 = vpop.permute.xlu0 %1284
    %1286 = vrot.lane.b32.xlu0 %v720, 32
    %v1287 = vpop.permute.xlu0 %1286
    %1288 = vrot.lane.b32.xlu0 %v721, 32
    %v1289 = vpop.permute.xlu0 %1288
    %1290 = vrot.lane.b32.xlu0 %v722, 32
    %v1291 = vpop.permute.xlu0 %1290
    %1292 = vrot.lane.b32.xlu0 %v723, 32
    %v1293 = vpop.permute.xlu0 %1292
    %1294 = vrot.lane.b32.xlu0 %v724, 32
    %v1295 = vpop.permute.xlu0 %1294
    %1296 = vrot.lane.b32.xlu0 %v725, 32
    %v1297 = vpop.permute.xlu0 %1296
    %1298 = vrot.lane.b32.xlu0 %v726, 32
    %v1299 = vpop.permute.xlu0 %1298
    %1300 = vrot.lane.b32.xlu0 %v727, 32
    %v1301 = vpop.permute.xlu0 %1300
    %1302 = vrot.lane.b32.xlu0 %v728, 32
    %v1303 = vpop.permute.xlu0 %1302
    %1304 = vrot.lane.b32.xlu0 %v729, 32
    %v1305 = vpop.permute.xlu0 %1304
    %1306 = vrot.lane.b32.xlu0 %v730, 32
    %v1307 = vpop.permute.xlu0 %1306
    %1308 = vrot.lane.b32.xlu0 %v731, 32
    %v1309 = vpop.permute.xlu0 %1308
    %1310 = vrot.lane.b32.xlu0 %v732, 32
    %v1311 = vpop.permute.xlu0 %1310
    %1312 = vrot.lane.b32.xlu0 %v733, 32
    %v1313 = vpop.permute.xlu0 %1312
    %1314 = vrot.lane.b32.xlu0 %v734, 32
    %v1315 = vpop.permute.xlu0 %1314
    %1316 = vrot.lane.b32.xlu0 %v735, 32
    %v1317 = vpop.permute.xlu0 %1316
    %1382 = vrot.lane.b32.xlu0 %v736, 40
    %v1383 = vpop.permute.xlu0 %1382
    %1384 = vrot.lane.b32.xlu0 %v737, 40
    %v1385 = vpop.permute.xlu0 %1384
    %1386 = vrot.lane.b32.xlu0 %v738, 40
    %v1387 = vpop.permute.xlu0 %1386
    %1388 = vrot.lane.b32.xlu0 %v739, 40
    %v1389 = vpop.permute.xlu0 %1388
    %1390 = vrot.lane.b32.xlu0 %v740, 40
    %v1391 = vpop.permute.xlu0 %1390
    %1392 = vrot.lane.b32.xlu0 %v741, 40
    %v1393 = vpop.permute.xlu0 %1392
    %1394 = vrot.lane.b32.xlu0 %v742, 40
    %v1395 = vpop.permute.xlu0 %1394
    %1396 = vrot.lane.b32.xlu0 %v743, 40
    %v1397 = vpop.permute.xlu0 %1396
    %1398 = vrot.lane.b32.xlu0 %v744, 40
    %v1399 = vpop.permute.xlu0 %1398
    %1400 = vrot.lane.b32.xlu0 %v745, 40
    %v1401 = vpop.permute.xlu0 %1400
    %1402 = vrot.lane.b32.xlu0 %v746, 40
    %v1403 = vpop.permute.xlu0 %1402
    %1404 = vrot.lane.b32.xlu0 %v747, 40
    %v1405 = vpop.permute.xlu0 %1404
    %1406 = vrot.lane.b32.xlu0 %v748, 40
    %v1407 = vpop.permute.xlu0 %1406
    %1408 = vrot.lane.b32.xlu0 %v749, 40
    %v1409 = vpop.permute.xlu0 %1408
    %1410 = vrot.lane.b32.xlu0 %v750, 40
    %v1411 = vpop.permute.xlu0 %1410
    %1412 = vrot.lane.b32.xlu0 %v751, 40
    %v1413 = vpop.permute.xlu0 %1412
    %1414 = vrot.lane.b32.xlu0 %v752, 40
    %v1415 = vpop.permute.xlu0 %1414
    %1416 = vrot.lane.b32.xlu0 %v753, 40
    %v1417 = vpop.permute.xlu0 %1416
    %1418 = vrot.lane.b32.xlu0 %v754, 40
    %v1419 = vpop.permute.xlu0 %1418
    %1420 = vrot.lane.b32.xlu0 %v755, 40
    %v1421 = vpop.permute.xlu0 %1420
    %1422 = vrot.lane.b32.xlu0 %v756, 40
    %v1423 = vpop.permute.xlu0 %1422
    %1424 = vrot.lane.b32.xlu0 %v757, 40
    %v1425 = vpop.permute.xlu0 %1424
    %1426 = vrot.lane.b32.xlu0 %v758, 40
    %v1427 = vpop.permute.xlu0 %1426
    %1428 = vrot.lane.b32.xlu0 %v759, 40
    %v1429 = vpop.permute.xlu0 %1428
    %1430 = vrot.lane.b32.xlu0 %v760, 40
    %v1431 = vpop.permute.xlu0 %1430
    %1432 = vrot.lane.b32.xlu0 %v761, 40
    %v1433 = vpop.permute.xlu0 %1432
    %1434 = vrot.lane.b32.xlu0 %v762, 40
    %v1435 = vpop.permute.xlu0 %1434
    %1436 = vrot.lane.b32.xlu0 %v763, 40
    %v1437 = vpop.permute.xlu0 %1436
    %1438 = vrot.lane.b32.xlu0 %v764, 40
    %v1439 = vpop.permute.xlu0 %1438
    %1440 = vrot.lane.b32.xlu0 %v765, 40
    %v1441 = vpop.permute.xlu0 %1440
    %1442 = vrot.lane.b32.xlu0 %v766, 40
    %v1443 = vpop.permute.xlu0 %1442
    %1444 = vrot.lane.b32.xlu0 %v767, 40
    %v1445 = vpop.permute.xlu0 %1444
    %1510 = vrot.lane.b32.xlu0 %v768, 48
    %v1511 = vpop.permute.xlu0 %1510
    %1512 = vrot.lane.b32.xlu0 %v769, 48
    %v1513 = vpop.permute.xlu0 %1512
    %1514 = vrot.lane.b32.xlu0 %v770, 48
    %v1515 = vpop.permute.xlu0 %1514
    %1516 = vrot.lane.b32.xlu0 %v771, 48
    %v1517 = vpop.permute.xlu0 %1516
    %1518 = vrot.lane.b32.xlu0 %v772, 48
    %v1519 = vpop.permute.xlu0 %1518
    %1520 = vrot.lane.b32.xlu0 %v773, 48
    %v1521 = vpop.permute.xlu0 %1520
    %1522 = vrot.lane.b32.xlu0 %v774, 48
    %v1523 = vpop.permute.xlu0 %1522
    %1524 = vrot.lane.b32.xlu0 %v775, 48
    %v1525 = vpop.permute.xlu0 %1524
    %1526 = vrot.lane.b32.xlu0 %v776, 48
    %v1527 = vpop.permute.xlu0 %1526
    %1528 = vrot.lane.b32.xlu0 %v777, 48
    %v1529 = vpop.permute.xlu0 %1528
    %1530 = vrot.lane.b32.xlu0 %v778, 48
    %v1531 = vpop.permute.xlu0 %1530
    %1532 = vrot.lane.b32.xlu0 %v779, 48
    %v1533 = vpop.permute.xlu0 %1532
    %1534 = vrot.lane.b32.xlu0 %v780, 48
    %v1535 = vpop.permute.xlu0 %1534
    %1536 = vrot.lane.b32.xlu0 %v781, 48
    %v1537 = vpop.permute.xlu0 %1536
    %1538 = vrot.lane.b32.xlu0 %v782, 48
    %v1539 = vpop.permute.xlu0 %1538
    %1540 = vrot.lane.b32.xlu0 %v783, 48
    %v1541 = vpop.permute.xlu0 %1540
    %1542 = vrot.lane.b32.xlu0 %v784, 48
    %v1543 = vpop.permute.xlu0 %1542
    %1544 = vrot.lane.b32.xlu0 %v785, 48
    %v1545 = vpop.permute.xlu0 %1544
    %1546 = vrot.lane.b32.xlu0 %v786, 48
    %v1547 = vpop.permute.xlu0 %1546
    %1548 = vrot.lane.b32.xlu0 %v787, 48
    %v1549 = vpop.permute.xlu0 %1548
    %1550 = vrot.lane.b32.xlu0 %v788, 48
    %v1551 = vpop.permute.xlu0 %1550
    %1552 = vrot.lane.b32.xlu0 %v789, 48
    %v1553 = vpop.permute.xlu0 %1552
    %1554 = vrot.lane.b32.xlu0 %v790, 48
    %v1555 = vpop.permute.xlu0 %1554
    %1556 = vrot.lane.b32.xlu0 %v791, 48
    %v1557 = vpop.permute.xlu0 %1556
    %1558 = vrot.lane.b32.xlu0 %v792, 48
    %v1559 = vpop.permute.xlu0 %1558
    %1560 = vrot.lane.b32.xlu0 %v793, 48
    %v1561 = vpop.permute.xlu0 %1560
    %1562 = vrot.lane.b32.xlu0 %v794, 48
    %v1563 = vpop.permute.xlu0 %1562
    %1564 = vrot.lane.b32.xlu0 %v795, 48
    %v1565 = vpop.permute.xlu0 %1564
    %1566 = vrot.lane.b32.xlu0 %v796, 48
    %v1567 = vpop.permute.xlu0 %1566
    %1568 = vrot.lane.b32.xlu0 %v797, 48
    %v1569 = vpop.permute.xlu0 %1568
    %1570 = vrot.lane.b32.xlu0 %v798, 48
    %v1571 = vpop.permute.xlu0 %1570
    %1572 = vrot.lane.b32.xlu0 %v799, 48
    %v1573 = vpop.permute.xlu0 %1572
    %1638 = vrot.lane.b32.xlu0 %v800, 56
    %v1639 = vpop.permute.xlu0 %1638
    %1640 = vrot.lane.b32.xlu0 %v801, 56
    %v1641 = vpop.permute.xlu0 %1640
    %1642 = vrot.lane.b32.xlu0 %v802, 56
    %v1643 = vpop.permute.xlu0 %1642
    %1644 = vrot.lane.b32.xlu0 %v803, 56
    %v1645 = vpop.permute.xlu0 %1644
    %1646 = vrot.lane.b32.xlu0 %v804, 56
    %v1647 = vpop.permute.xlu0 %1646
    %1648 = vrot.lane.b32.xlu0 %v805, 56
    %v1649 = vpop.permute.xlu0 %1648
    %1650 = vrot.lane.b32.xlu0 %v806, 56
    %v1651 = vpop.permute.xlu0 %1650
    %1652 = vrot.lane.b32.xlu0 %v807, 56
    %v1653 = vpop.permute.xlu0 %1652
    %1654 = vrot.lane.b32.xlu0 %v808, 56
    %v1655 = vpop.permute.xlu0 %1654
    %1656 = vrot.lane.b32.xlu0 %v809, 56
    %v1657 = vpop.permute.xlu0 %1656
    %1658 = vrot.lane.b32.xlu0 %v810, 56
    %v1659 = vpop.permute.xlu0 %1658
    %1660 = vrot.lane.b32.xlu0 %v811, 56
    %v1661 = vpop.permute.xlu0 %1660
    %1662 = vrot.lane.b32.xlu0 %v812, 56
    %v1663 = vpop.permute.xlu0 %1662
    %1664 = vrot.lane.b32.xlu0 %v813, 56
    %v1665 = vpop.permute.xlu0 %1664
    %1666 = vrot.lane.b32.xlu0 %v814, 56
    %v1667 = vpop.permute.xlu0 %1666
    %1668 = vrot.lane.b32.xlu0 %v815, 56
    %v1669 = vpop.permute.xlu0 %1668
    %1670 = vrot.lane.b32.xlu0 %v816, 56
    %v1671 = vpop.permute.xlu0 %1670
    %1672 = vrot.lane.b32.xlu0 %v817, 56
    %v1673 = vpop.permute.xlu0 %1672
    %1674 = vrot.lane.b32.xlu0 %v818, 56
    %v1675 = vpop.permute.xlu0 %1674
    %1676 = vrot.lane.b32.xlu0 %v819, 56
    %v1677 = vpop.permute.xlu0 %1676
    %1678 = vrot.lane.b32.xlu0 %v820, 56
    %v1679 = vpop.permute.xlu0 %1678
    %1680 = vrot.lane.b32.xlu0 %v821, 56
    %v1681 = vpop.permute.xlu0 %1680
    %1682 = vrot.lane.b32.xlu0 %v822, 56
    %v1683 = vpop.permute.xlu0 %1682
    %1684 = vrot.lane.b32.xlu0 %v823, 56
    %v1685 = vpop.permute.xlu0 %1684
    %1686 = vrot.lane.b32.xlu0 %v824, 56
    %v1687 = vpop.permute.xlu0 %1686
    %1688 = vrot.lane.b32.xlu0 %v825, 56
    %v1689 = vpop.permute.xlu0 %1688
    %1690 = vrot.lane.b32.xlu0 %v826, 56
    %v1691 = vpop.permute.xlu0 %1690
    %1692 = vrot.lane.b32.xlu0 %v827, 56
    %v1693 = vpop.permute.xlu0 %1692
    %1694 = vrot.lane.b32.xlu0 %v828, 56
    %v1695 = vpop.permute.xlu0 %1694
    %1696 = vrot.lane.b32.xlu0 %v829, 56
    %v1697 = vpop.permute.xlu0 %1696
    %1698 = vrot.lane.b32.xlu0 %v830, 56
    %v1699 = vpop.permute.xlu0 %1698
    %1700 = vrot.lane.b32.xlu0 %v831, 56
    %v1701 = vpop.permute.xlu0 %1700
    %1766 = vrot.lane.b32.xlu0 %v579, 64
    %v1767 = vpop.permute.xlu0 %1766
    %1768 = vrot.lane.b32.xlu0 %v580, 64
    %v1769 = vpop.permute.xlu0 %1768
    %1770 = vrot.lane.b32.xlu0 %v581, 64
    %v1771 = vpop.permute.xlu0 %1770
    %1772 = vrot.lane.b32.xlu0 %v582, 64
    %v1773 = vpop.permute.xlu0 %1772
    %1774 = vrot.lane.b32.xlu0 %v583, 64
    %v1775 = vpop.permute.xlu0 %1774
    %1776 = vrot.lane.b32.xlu0 %v584, 64
    %v1777 = vpop.permute.xlu0 %1776
    %1778 = vrot.lane.b32.xlu0 %v585, 64
    %v1779 = vpop.permute.xlu0 %1778
    %1780 = vrot.lane.b32.xlu0 %v586, 64
    %v1781 = vpop.permute.xlu0 %1780
    %1782 = vrot.lane.b32.xlu0 %v587, 64
    %v1783 = vpop.permute.xlu0 %1782
    %1784 = vrot.lane.b32.xlu0 %v588, 64
    %v1785 = vpop.permute.xlu0 %1784
    %1786 = vrot.lane.b32.xlu0 %v589, 64
    %v1787 = vpop.permute.xlu0 %1786
    %1788 = vrot.lane.b32.xlu0 %v590, 64
    %v1789 = vpop.permute.xlu0 %1788
    %1790 = vrot.lane.b32.xlu0 %v591, 64
    %v1791 = vpop.permute.xlu0 %1790
    %1792 = vrot.lane.b32.xlu0 %v832, 64
    %v1793 = vpop.permute.xlu0 %1792
    %1794 = vrot.lane.b32.xlu0 %v833, 64
    %v1795 = vpop.permute.xlu0 %1794
    %1796 = vrot.lane.b32.xlu0 %v834, 64
    %v1797 = vpop.permute.xlu0 %1796
    %1798 = vrot.lane.b32.xlu0 %v595, 64
    %v1799 = vpop.permute.xlu0 %1798
    %1800 = vrot.lane.b32.xlu0 %v596, 64
    %v1801 = vpop.permute.xlu0 %1800
    %1802 = vrot.lane.b32.xlu0 %v597, 64
    %v1803 = vpop.permute.xlu0 %1802
    %1804 = vrot.lane.b32.xlu0 %v598, 64
    %v1805 = vpop.permute.xlu0 %1804
    %1806 = vrot.lane.b32.xlu0 %v599, 64
    %v1807 = vpop.permute.xlu0 %1806
    %1808 = vrot.lane.b32.xlu0 %v600, 64
    %v1809 = vpop.permute.xlu0 %1808
    %1810 = vrot.lane.b32.xlu0 %v601, 64
    %v1811 = vpop.permute.xlu0 %1810
    %1812 = vrot.lane.b32.xlu0 %v602, 64
    %v1813 = vpop.permute.xlu0 %1812
    %1814 = vrot.lane.b32.xlu0 %v603, 64
    %v1815 = vpop.permute.xlu0 %1814
    %1816 = vrot.lane.b32.xlu0 %v604, 64
    %v1817 = vpop.permute.xlu0 %1816
    %1818 = vrot.lane.b32.xlu0 %v605, 64
    %v1819 = vpop.permute.xlu0 %1818
    %1820 = vrot.lane.b32.xlu0 %v606, 64
    %v1821 = vpop.permute.xlu0 %1820
    %1822 = vrot.lane.b32.xlu0 %v607, 64
    %v1823 = vpop.permute.xlu0 %1822
    %1824 = vrot.lane.b32.xlu0 %v835, 64
    %v1825 = vpop.permute.xlu0 %1824
    %1826 = vrot.lane.b32.xlu0 %v836, 64
    %v1827 = vpop.permute.xlu0 %1826
    %1828 = vrot.lane.b32.xlu0 %v837, 64
    %v1829 = vpop.permute.xlu0 %1828
    %v1862 = vsel %vm558, %v576, %v871
    %v1863 = vsel %vm558, %v577, %v873
    %v1864 = vsel %vm558, %v578, %v875
    %v1865 = vsel %vm558, %v579, %v877
    %v1866 = vsel %vm558, %v580, %v879
    %v1867 = vsel %vm558, %v581, %v881
    %v1868 = vsel %vm558, %v582, %v883
    %v1869 = vsel %vm558, %v583, %v885
    %v1870 = vsel %vm558, %v584, %v887
    %v1871 = vsel %vm558, %v585, %v889
    %v1872 = vsel %vm558, %v586, %v891
    %v1873 = vsel %vm558, %v587, %v893
    %v1874 = vsel %vm558, %v588, %v895
    %v1875 = vsel %vm558, %v589, %v897
    %v1876 = vsel %vm558, %v590, %v899
    %v1877 = vsel %vm558, %v591, %v901
    %v1878 = vsel %vm558, %v592, %v903
    %v1879 = vsel %vm558, %v593, %v905
    %v1880 = vsel %vm558, %v594, %v907
    %v1881 = vsel %vm558, %v595, %v909
    %v1882 = vsel %vm558, %v596, %v911
    %v1883 = vsel %vm558, %v597, %v913
    %v1884 = vsel %vm558, %v598, %v915
    %v1885 = vsel %vm558, %v599, %v917
    %v1886 = vsel %vm558, %v600, %v919
    %v1887 = vsel %vm558, %v601, %v921
    %v1888 = vsel %vm558, %v602, %v923
    %v1889 = vsel %vm558, %v603, %v925
    %v1890 = vsel %vm558, %v604, %v927
    %v1891 = vsel %vm558, %v605, %v929
    %v1892 = vsel %vm558, %v606, %v931
    %v1893 = vsel %vm558, %v607, %v933
    %vm1894 = vcmask 130048
    %v1895 = vsel %vm1894, %v1862, %v999
    %v1896 = vsel %vm1894, %v1863, %v1001
    %v1897 = vsel %vm1894, %v1864, %v1003
    %v1898 = vsel %vm1894, %v1865, %v1005
    %v1899 = vsel %vm1894, %v1866, %v1007
    %v1900 = vsel %vm1894, %v1867, %v1009
    %v1901 = vsel %vm1894, %v1868, %v1011
    %v1902 = vsel %vm1894, %v1869, %v1013
    %v1903 = vsel %vm1894, %v1870, %v1015
    %v1904 = vsel %vm1894, %v1871, %v1017
    %v1905 = vsel %vm1894, %v1872, %v1019
    %v1906 = vsel %vm1894, %v1873, %v1021
    %v1907 = vsel %vm1894, %v1874, %v1023
    %v1908 = vsel %vm1894, %v1875, %v1025
    %v1909 = vsel %vm1894, %v1876, %v1027
    %v1910 = vsel %vm1894, %v1877, %v1029
    %v1911 = vsel %vm1894, %v1878, %v1031
    %v1912 = vsel %vm1894, %v1879, %v1033
    %v1913 = vsel %vm1894, %v1880, %v1035
    %v1914 = vsel %vm1894, %v1881, %v1037
    %v1915 = vsel %vm1894, %v1882, %v1039
    %v1916 = vsel %vm1894, %v1883, %v1041
    %v1917 = vsel %vm1894, %v1884, %v1043
    %v1918 = vsel %vm1894, %v1885, %v1045
    %v1919 = vsel %vm1894, %v1886, %v1047
    %v1920 = vsel %vm1894, %v1887, %v1049
    %v1921 = vsel %vm1894, %v1888, %v1051
    %v1922 = vsel %vm1894, %v1889, %v1053
    %v1923 = vsel %vm1894, %v1890, %v1055
    %v1924 = vsel %vm1894, %v1891, %v1057
    %v1925 = vsel %vm1894, %v1892, %v1059
    %v1926 = vsel %vm1894, %v1893, %v1061
    %vm1927 = vcmask 195584
    %v1928 = vsel %vm1927, %v1895, %v1127
    %v1929 = vsel %vm1927, %v1896, %v1129
    %v1930 = vsel %vm1927, %v1897, %v1131
    %v1931 = vsel %vm1927, %v1898, %v1133
    %v1932 = vsel %vm1927, %v1899, %v1135
    %v1933 = vsel %vm1927, %v1900, %v1137
    %v1934 = vsel %vm1927, %v1901, %v1139
    %v1935 = vsel %vm1927, %v1902, %v1141
    %v1936 = vsel %vm1927, %v1903, %v1143
    %v1937 = vsel %vm1927, %v1904, %v1145
    %v1938 = vsel %vm1927, %v1905, %v1147
    %v1939 = vsel %vm1927, %v1906, %v1149
    %v1940 = vsel %vm1927, %v1907, %v1151
    %v1941 = vsel %vm1927, %v1908, %v1153
    %v1942 = vsel %vm1927, %v1909, %v1155
    %v1943 = vsel %vm1927, %v1910, %v1157
    %v1944 = vsel %vm1927, %v1911, %v1159
    %v1945 = vsel %vm1927, %v1912, %v1161
    %v1946 = vsel %vm1927, %v1913, %v1163
    %v1947 = vsel %vm1927, %v1914, %v1165
    %v1948 = vsel %vm1927, %v1915, %v1167
    %v1949 = vsel %vm1927, %v1916, %v1169
    %v1950 = vsel %vm1927, %v1917, %v1171
    %v1951 = vsel %vm1927, %v1918, %v1173
    %v1952 = vsel %vm1927, %v1919, %v1175
    %v1953 = vsel %vm1927, %v1920, %v1177
    %v1954 = vsel %vm1927, %v1921, %v1179
    %v1955 = vsel %vm1927, %v1922, %v1181
    %v1956 = vsel %vm1927, %v1923, %v1183
    %v1957 = vsel %vm1927, %v1924, %v1185
    %v1958 = vsel %vm1927, %v1925, %v1187
    %v1959 = vsel %vm1927, %v1926, %v1189
    %vm1960 = vcmask 261120
    %v1961 = vsel %vm1960, %v1928, %v1255
    %v1962 = vsel %vm1960, %v1929, %v1257
    %v1963 = vsel %vm1960, %v1930, %v1259
    %v1964 = vsel %vm1960, %v1931, %v1261
    %v1965 = vsel %vm1960, %v1932, %v1263
    %v1966 = vsel %vm1960, %v1933, %v1265
    %v1967 = vsel %vm1960, %v1934, %v1267
    %v1968 = vsel %vm1960, %v1935, %v1269
    %v1969 = vsel %vm1960, %v1936, %v1271
    %v1970 = vsel %vm1960, %v1937, %v1273
    %v1971 = vsel %vm1960, %v1938, %v1275
    %v1972 = vsel %vm1960, %v1939, %v1277
    %v1973 = vsel %vm1960, %v1940, %v1279
    %v1974 = vsel %vm1960, %v1941, %v1281
    %v1975 = vsel %vm1960, %v1942, %v1283
    %v1976 = vsel %vm1960, %v1943, %v1285
    %v1977 = vsel %vm1960, %v1944, %v1287
    %v1978 = vsel %vm1960, %v1945, %v1289
    %v1979 = vsel %vm1960, %v1946, %v1291
    %v1980 = vsel %vm1960, %v1947, %v1293
    %v1981 = vsel %vm1960, %v1948, %v1295
    %v1982 = vsel %vm1960, %v1949, %v1297
    %v1983 = vsel %vm1960, %v1950, %v1299
    %v1984 = vsel %vm1960, %v1951, %v1301
    %v1985 = vsel %vm1960, %v1952, %v1303
    %v1986 = vsel %vm1960, %v1953, %v1305
    %v1987 = vsel %vm1960, %v1954, %v1307
    %v1988 = vsel %vm1960, %v1955, %v1309
    %v1989 = vsel %vm1960, %v1956, %v1311
    %v1990 = vsel %vm1960, %v1957, %v1313
    %v1991 = vsel %vm1960, %v1958, %v1315
    %v1992 = vsel %vm1960, %v1959, %v1317
    %vm1993 = vcmask 326656
    %v1994 = vsel %vm1993, %v1961, %v1383
    %v1995 = vsel %vm1993, %v1962, %v1385
    %v1996 = vsel %vm1993, %v1963, %v1387
    %v1997 = vsel %vm1993, %v1964, %v1389
    %v1998 = vsel %vm1993, %v1965, %v1391
    %v1999 = vsel %vm1993, %v1966, %v1393
    %v2000 = vsel %vm1993, %v1967, %v1395
    %v2001 = vsel %vm1993, %v1968, %v1397
    %v2002 = vsel %vm1993, %v1969, %v1399
    %v2003 = vsel %vm1993, %v1970, %v1401
    %v2004 = vsel %vm1993, %v1971, %v1403
    %v2005 = vsel %vm1993, %v1972, %v1405
    %v2006 = vsel %vm1993, %v1973, %v1407
    %v2007 = vsel %vm1993, %v1974, %v1409
    %v2008 = vsel %vm1993, %v1975, %v1411
    %v2009 = vsel %vm1993, %v1976, %v1413
    %v2010 = vsel %vm1993, %v1977, %v1415
    %v2011 = vsel %vm1993, %v1978, %v1417
    %v2012 = vsel %vm1993, %v1979, %v1419
    %v2013 = vsel %vm1993, %v1980, %v1421
    %v2014 = vsel %vm1993, %v1981, %v1423
    %v2015 = vsel %vm1993, %v1982, %v1425
    %v2016 = vsel %vm1993, %v1983, %v1427
    %v2017 = vsel %vm1993, %v1984, %v1429
    %v2018 = vsel %vm1993, %v1985, %v1431
    %v2019 = vsel %vm1993, %v1986, %v1433
    %v2020 = vsel %vm1993, %v1987, %v1435
    %v2021 = vsel %vm1993, %v1988, %v1437
    %v2022 = vsel %vm1993, %v1989, %v1439
    %v2023 = vsel %vm1993, %v1990, %v1441
    %v2024 = vsel %vm1993, %v1991, %v1443
    %v2025 = vsel %vm1993, %v1992, %v1445
    %vm2026 = vcmask 392192
    %v2027 = vsel %vm2026, %v1994, %v1511
    %v2028 = vsel %vm2026, %v1995, %v1513
    %v2029 = vsel %vm2026, %v1996, %v1515
    %v2030 = vsel %vm2026, %v1997, %v1517
    %v2031 = vsel %vm2026, %v1998, %v1519
    %v2032 = vsel %vm2026, %v1999, %v1521
    %v2033 = vsel %vm2026, %v2000, %v1523
    %v2034 = vsel %vm2026, %v2001, %v1525
    %v2035 = vsel %vm2026, %v2002, %v1527
    %v2036 = vsel %vm2026, %v2003, %v1529
    %v2037 = vsel %vm2026, %v2004, %v1531
    %v2038 = vsel %vm2026, %v2005, %v1533
    %v2039 = vsel %vm2026, %v2006, %v1535
    %v2040 = vsel %vm2026, %v2007, %v1537
    %v2041 = vsel %vm2026, %v2008, %v1539
    %v2042 = vsel %vm2026, %v2009, %v1541
    %v2043 = vsel %vm2026, %v2010, %v1543
    %v2044 = vsel %vm2026, %v2011, %v1545
    %v2045 = vsel %vm2026, %v2012, %v1547
    %v2046 = vsel %vm2026, %v2013, %v1549
    %v2047 = vsel %vm2026, %v2014, %v1551
    %v2048 = vsel %vm2026, %v2015, %v1553
    %v2049 = vsel %vm2026, %v2016, %v1555
    %v2050 = vsel %vm2026, %v2017, %v1557
    %v2051 = vsel %vm2026, %v2018, %v1559
    %v2052 = vsel %vm2026, %v2019, %v1561
    %v2053 = vsel %vm2026, %v2020, %v1563
    %v2054 = vsel %vm2026, %v2021, %v1565
    %v2055 = vsel %vm2026, %v2022, %v1567
    %v2056 = vsel %vm2026, %v2023, %v1569
    %v2057 = vsel %vm2026, %v2024, %v1571
    %v2058 = vsel %vm2026, %v2025, %v1573
    %vm2059 = vcmask 457728
    %v2060 = vsel %vm2059, %v2027, %v1639
    %v2061 = vsel %vm2059, %v2028, %v1641
    %v2062 = vsel %vm2059, %v2029, %v1643
    %v2063 = vsel %vm2059, %v2030, %v1645
    %v2064 = vsel %vm2059, %v2031, %v1647
    %v2065 = vsel %vm2059, %v2032, %v1649
    %v2066 = vsel %vm2059, %v2033, %v1651
    %v2067 = vsel %vm2059, %v2034, %v1653
    %v2068 = vsel %vm2059, %v2035, %v1655
    %v2069 = vsel %vm2059, %v2036, %v1657
    %v2070 = vsel %vm2059, %v2037, %v1659
    %v2071 = vsel %vm2059, %v2038, %v1661
    %v2072 = vsel %vm2059, %v2039, %v1663
    %v2073 = vsel %vm2059, %v2040, %v1665
    %v2074 = vsel %vm2059, %v2041, %v1667
    %v2075 = vsel %vm2059, %v2042, %v1669
    %v2076 = vsel %vm2059, %v2043, %v1671
    %v2077 = vsel %vm2059, %v2044, %v1673
    %v2078 = vsel %vm2059, %v2045, %v1675
    %v2079 = vsel %vm2059, %v2046, %v1677
    %v2080 = vsel %vm2059, %v2047, %v1679
    %v2081 = vsel %vm2059, %v2048, %v1681
    %v2082 = vsel %vm2059, %v2049, %v1683
    %v2083 = vsel %vm2059, %v2050, %v1685
    %v2084 = vsel %vm2059, %v2051, %v1687
    %v2085 = vsel %vm2059, %v2052, %v1689
    %v2086 = vsel %vm2059, %v2053, %v1691
    %v2087 = vsel %vm2059, %v2054, %v1693
    %v2088 = vsel %vm2059, %v2055, %v1695
    %v2089 = vsel %vm2059, %v2056, %v1697
    %v2090 = vsel %vm2059, %v2057, %v1699
    %v2091 = vsel %vm2059, %v2058, %v1701
    %vm2092 = vcmask 523264
    %v2093 = vsel %vm2092, %v2060, %v1767
    %v2094 = vsel %vm2092, %v2061, %v1769
    %v2095 = vsel %vm2092, %v2062, %v1771
    %v2096 = vsel %vm2092, %v2063, %v1773
    %v2097 = vsel %vm2092, %v2064, %v1775
    %v2098 = vsel %vm2092, %v2065, %v1777
    %v2099 = vsel %vm2092, %v2066, %v1779
    %v2100 = vsel %vm2092, %v2067, %v1781
    %v2101 = vsel %vm2092, %v2068, %v1783
    %v2102 = vsel %vm2092, %v2069, %v1785
    %v2103 = vsel %vm2092, %v2070, %v1787
    %v2104 = vsel %vm2092, %v2071, %v1789
    %v2105 = vsel %vm2092, %v2072, %v1791
    %v2106 = vsel %vm2092, %v2073, %v1793
    %v2107 = vsel %vm2092, %v2074, %v1795
    %v2108 = vsel %vm2092, %v2075, %v1797
    %v2109 = vsel %vm2092, %v2076, %v1799
    %v2110 = vsel %vm2092, %v2077, %v1801
    %v2111 = vsel %vm2092, %v2078, %v1803
    %v2112 = vsel %vm2092, %v2079, %v1805
    %v2113 = vsel %vm2092, %v2080, %v1807
    %v2114 = vsel %vm2092, %v2081, %v1809
    %v2115 = vsel %vm2092, %v2082, %v1811
    %v2116 = vsel %vm2092, %v2083, %v1813
    %v2117 = vsel %vm2092, %v2084, %v1815
    %v2118 = vsel %vm2092, %v2085, %v1817
    %v2119 = vsel %vm2092, %v2086, %v1819
    %v2120 = vsel %vm2092, %v2087, %v1821
    %v2121 = vsel %vm2092, %v2088, %v1823
    %v2122 = vsel %vm2092, %v2089, %v1825
    %v2123 = vsel %vm2092, %v2090, %v1827
    %v2124 = vsel %vm2092, %v2091, %v1829
    %v2125 = vpack.c.bf16 %v2094, %v2093
    %v2126 = vpack.c.bf16 %v2096, %v2095
    %v2127 = vpack.c.bf16 %v2098, %v2097
    %v2128 = vpack.c.bf16 %v2100, %v2099
    %v2129 = vpack.c.bf16 %v2102, %v2101
    %v2130 = vpack.c.bf16 %v2104, %v2103
    %v2131 = vpack.c.bf16 %v2106, %v2105
    %v2132 = vpack.c.bf16 %v2108, %v2107
    %v2133 = vpack.c.bf16 %v2110, %v2109
    %v2134 = vpack.c.bf16 %v2112, %v2111
    %v2135 = vpack.c.bf16 %v2114, %v2113
    %v2136 = vpack.c.bf16 %v2116, %v2115
    %v2137 = vpack.c.bf16 %v2118, %v2117
    %v2138 = vpack.c.bf16 %v2120, %v2119
    %v2139 = vpack.c.bf16 %v2122, %v2121
    %v2140 = vpack.c.bf16 %v2124, %v2123
    %v2150 = vunpack.c.l.b16 %v567
    %v2151 = vunpack.c.l.b16 %v568
    %v2152 = vunpack.c.l.b16 %v569
    %v2153 = vunpack.c.l.b16 %v570
    %v2154 = vunpack.c.l.b16 %v571
    %v2155 = vunpack.c.l.b16 %v572
    %v2156 = vunpack.c.l.b16 %v573
    %v2157 = vunpack.c.l.b16 %v574
    %v2158 = vunpack.c.l.b16 %v575
    %v2159 = vpack.c.b16 %v2151, %v2150
    %v2160 = vpack.c.b16 %v2153, %v2152
    %v2161 = vpack.c.b16 %v2155, %v2154
    %v2162 = vpack.c.b16 %v2157, %v2156
    %v2163 = vpack.c.b16 %v2158, %v2158
    %vm2168 = vcmask 588800
    %v2170 = vsel %vm2168, %v2125, 0
    %v2173 = vsel %vm2168, %v2126, 0
    %v2176 = vsel %vm2168, %v2127, 0
    %v2179 = vsel %vm2168, %v2128, 0
    %v2182 = vsel %vm2168, %v2129, 0
    %v2185 = vsel %vm2168, %v2130, 0
    %v2188 = vsel %vm2168, %v2131, 0
    %v2191 = vsel %vm2168, %v2132, 0
    %v2194 = vsel %vm2168, %v2133, 0
    %v2197 = vsel %vm2168, %v2134, 0
    %v2200 = vsel %vm2168, %v2135, 0
    %v2203 = vsel %vm2168, %v2136, 0
    %v2206 = vsel %vm2168, %v2137, 0
    %v2209 = vsel %vm2168, %v2138, 0
    %v2212 = vsel %vm2168, %v2139, 0
    %v2215 = vsel %vm2168, %v2140, 0
    %vm2217 = vcmask 1043456
    %v2219 = vsel %vm2217, %v2163, 0
    %2221 = vmatprep.subr.bf16.mxu0 0
    %2222 = vmatpush1.bf16.msra.mxu0 %v2159
    %2223 = vmatprep.subr.bf16.mxu0 0
    %2224 = vmatpush1.bf16.msra.mxu0 %v2160
    %2225 = vmatprep.subr.bf16.mxu0 0
    %2226 = vmatpush1.bf16.msra.mxu0 %v2161
    %2227 = vmatprep.subr.bf16.mxu0 0
    %2228 = vmatpush1.bf16.msra.mxu0 %v2162
    %2229 = vmatprep.subr.bf16.mxu0 0
    %2230 = vmatpush1.bf16.msra.mxu0 %v2219
    %2231 = vmatprep.subr.bf16.mxu0 0
    %2232 = vmatpush1.bf16.msra.mxu0 0
    %2233 = vmatprep.subr.bf16.mxu0 0
    %2234 = vmatpush1.bf16.msra.mxu0 0
    %2235 = vmatprep.subr.bf16.mxu0 0
    %2236 = vmatpush1.bf16.msra.mxu0 0
    %2237 = vmatprep.subr.bf16.mxu0 0
    %2238 = vmatpush1.bf16.msra.mxu0 0
    %2239 = vmatprep.subr.bf16.mxu0 0
    %2240 = vmatpush1.bf16.msra.mxu0 0
    %2241 = vmatprep.subr.bf16.mxu0 0
    %2242 = vmatpush1.bf16.msra.mxu0 0
    %2243 = vmatprep.subr.bf16.mxu0 0
    %2244 = vmatpush1.bf16.msra.mxu0 0
    %2245 = vmatprep.subr.bf16.mxu0 0
    %2246 = vmatpush1.bf16.msra.mxu0 0
    %2247 = vmatprep.subr.bf16.mxu0 0
    %2248 = vmatpush1.bf16.msra.mxu0 0
    %2249 = vmatprep.subr.bf16.mxu0 0
    %2250 = vmatpush1.bf16.msra.mxu0 0
    %2251 = vmatprep.subr.bf16.mxu0 0
    %2252 = vmatpush1.bf16.msra.mxu0 0
    %2253 = vmatprep.mubr.bf16.mxu0 0
    %2254 = vmatmul.mubr.bf16.gmra.mrb[0].mxu0 %v2170
    %v2255 = vpop.f32.mrb[0].mxu0
    %v2256 = vadd.f32 0.0, %v2255
    %v2257 = vpop.f32.mrb[0].mxu0
    %v2258 = vpop.f32.mrb[0].mxu0
    %v2259 = vadd.f32 0.0, %v2258
    %v2260 = vpop.f32.mrb[0].mxu0
    %2261 = vmatprep.mubr.bf16.mxu0 0
    %2262 = vmatmul.mubr.bf16.gmra.mrb[0].mxu0 %v2173
    %v2263 = vpop.f32.mrb[0].mxu0
    %v2264 = vadd.f32 0.0, %v2263
    %v2265 = vpop.f32.mrb[0].mxu0
    %v2266 = vpop.f32.mrb[0].mxu0
    %v2267 = vadd.f32 0.0, %v2266
    %v2268 = vpop.f32.mrb[0].mxu0
    %2269 = vmatprep.mubr.bf16.mxu0 0
    %2270 = vmatmul.mubr.bf16.gmra.mrb[0].mxu0 %v2176
    %v2271 = vpop.f32.mrb[0].mxu0
    %v2272 = vadd.f32 0.0, %v2271
    %v2273 = vpop.f32.mrb[0].mxu0
    %v2274 = vpop.f32.mrb[0].mxu0
    %v2275 = vadd.f32 0.0, %v2274
    %v2276 = vpop.f32.mrb[0].mxu0
    %2277 = vmatprep.mubr.bf16.mxu0 0
    %2278 = vmatmul.mubr.bf16.gmra.mrb[0].mxu0 %v2179
    %v2279 = vpop.f32.mrb[0].mxu0
    %v2280 = vadd.f32 0.0, %v2279
    %v2281 = vpop.f32.mrb[0].mxu0
    %v2282 = vpop.f32.mrb[0].mxu0
    %v2283 = vadd.f32 0.0, %v2282
    %v2284 = vpop.f32.mrb[0].mxu0
    %2285 = vmatprep.mubr.bf16.mxu0 0
    %2286 = vmatmul.mubr.bf16.gmra.mrb[0].mxu0 %v2182
    %v2287 = vpop.f32.mrb[0].mxu0
    %v2288 = vadd.f32 0.0, %v2287
    %v2289 = vpop.f32.mrb[0].mxu0
    %v2290 = vpop.f32.mrb[0].mxu0
    %v2291 = vadd.f32 0.0, %v2290
    %v2292 = vpop.f32.mrb[0].mxu0
    %2293 = vmatprep.mubr.bf16.mxu0 0
    %2294 = vmatmul.mubr.bf16.gmra.mrb[0].mxu0 %v2185
    %v2295 = vpop.f32.mrb[0].mxu0
    %v2296 = vadd.f32 0.0, %v2295
    %v2297 = vpop.f32.mrb[0].mxu0
    %v2298 = vpop.f32.mrb[0].mxu0
    %v2299 = vadd.f32 0.0, %v2298
    %v2300 = vpop.f32.mrb[0].mxu0
    %2301 = vmatprep.mubr.bf16.mxu0 0
    %2302 = vmatmul.mubr.bf16.gmra.mrb[0].mxu0 %v2188
    %v2303 = vpop.f32.mrb[0].mxu0
    %v2304 = vadd.f32 0.0, %v2303
    %v2305 = vpop.f32.mrb[0].mxu0
    %v2306 = vpop.f32.mrb[0].mxu0
    %v2307 = vadd.f32 0.0, %v2306
    %v2308 = vpop.f32.mrb[0].mxu0
    %2309 = vmatprep.mubr.bf16.mxu0 0
    %2310 = vmatmul.mubr.bf16.gmra.mrb[0].mxu0 %v2191
    %v2311 = vpop.f32.mrb[0].mxu0
    %v2312 = vadd.f32 0.0, %v2311
    %v2313 = vpop.f32.mrb[0].mxu0
    %v2314 = vpop.f32.mrb[0].mxu0
    %v2315 = vadd.f32 0.0, %v2314
    %v2316 = vpop.f32.mrb[0].mxu0
    %2317 = vmatprep.mubr.bf16.mxu0 0
    %2318 = vmatmul.mubr.bf16.gmra.mrb[0].mxu0 %v2194
    %v2319 = vpop.f32.mrb[0].mxu0
    %v2320 = vadd.f32 0.0, %v2319
    %v2321 = vpop.f32.mrb[0].mxu0
    %v2322 = vpop.f32.mrb[0].mxu0
    %v2323 = vadd.f32 0.0, %v2322
    %v2324 = vpop.f32.mrb[0].mxu0
    %2325 = vmatprep.mubr.bf16.mxu0 0
    %2326 = vmatmul.mubr.bf16.gmra.mrb[0].mxu0 %v2197
    %v2327 = vpop.f32.mrb[0].mxu0
    %v2328 = vadd.f32 0.0, %v2327
    %v2329 = vpop.f32.mrb[0].mxu0
    %v2330 = vpop.f32.mrb[0].mxu0
    %v2331 = vadd.f32 0.0, %v2330
    %v2332 = vpop.f32.mrb[0].mxu0
    %2333 = vmatprep.mubr.bf16.mxu0 0
    %2334 = vmatmul.mubr.bf16.gmra.mrb[0].mxu0 %v2200
    %v2335 = vpop.f32.mrb[0].mxu0
    %v2336 = vadd.f32 0.0, %v2335
    %v2337 = vpop.f32.mrb[0].mxu0
    %v2338 = vpop.f32.mrb[0].mxu0
    %v2339 = vadd.f32 0.0, %v2338
    %v2340 = vpop.f32.mrb[0].mxu0
    %2341 = vmatprep.mubr.bf16.mxu0 0
    %2342 = vmatmul.mubr.bf16.gmra.mrb[0].mxu0 %v2203
    %v2343 = vpop.f32.mrb[0].mxu0
    %v2344 = vadd.f32 0.0, %v2343
    %v2345 = vpop.f32.mrb[0].mxu0
    %v2346 = vpop.f32.mrb[0].mxu0
    %v2347 = vadd.f32 0.0, %v2346
    %v2348 = vpop.f32.mrb[0].mxu0
    %2349 = vmatprep.mubr.bf16.mxu0 0
    %2350 = vmatmul.mubr.bf16.gmra.mrb[0].mxu0 %v2206
    %v2351 = vpop.f32.mrb[0].mxu0
    %v2352 = vadd.f32 0.0, %v2351
    %v2353 = vpop.f32.mrb[0].mxu0
    %v2354 = vpop.f32.mrb[0].mxu0
    %v2355 = vadd.f32 0.0, %v2354
    %v2356 = vpop.f32.mrb[0].mxu0
    %2357 = vmatprep.mubr.bf16.mxu0 0
    %2358 = vmatmul.mubr.bf16.gmra.mrb[0].mxu0 %v2209
    %v2359 = vpop.f32.mrb[0].mxu0
    %v2360 = vadd.f32 0.0, %v2359
    %v2361 = vpop.f32.mrb[0].mxu0
    %v2362 = vpop.f32.mrb[0].mxu0
    %v2363 = vadd.f32 0.0, %v2362
    %v2364 = vpop.f32.mrb[0].mxu0
    %2365 = vmatprep.mubr.bf16.mxu0 0
    %2366 = vmatmul.mubr.bf16.gmra.mrb[0].mxu0 %v2212
    %v2367 = vpop.f32.mrb[0].mxu0
    %v2368 = vadd.f32 0.0, %v2367
    %v2369 = vpop.f32.mrb[0].mxu0
    %v2370 = vpop.f32.mrb[0].mxu0
    %v2371 = vadd.f32 0.0, %v2370
    %v2372 = vpop.f32.mrb[0].mxu0
    %2373 = vmatprep.mubr.bf16.mxu0 0
    %2374 = vmatmul.mubr.bf16.gmra.mrb[0].mxu0 %v2215
    %v2375 = vpop.f32.mrb[0].mxu0
    %v2376 = vadd.f32 0.0, %v2375
    %v2377 = vpop.f32.mrb[0].mxu0
    %v2378 = vpop.f32.mrb[0].mxu0
    %v2379 = vadd.f32 0.0, %v2378
    %v2380 = vpop.f32.mrb[0].mxu0
    %2381 = vdwg.mxu0
    %v2382 = vld [vmem:[#allocation9] sm:$0x1]
    %v2384 = vlaneseq
    %v2385 = vshrl.u32 %v2384, 7
    %v2386 = vsub.s32 0, %v2385
    %v2387 = vrot.slane %v2382, %v2386
    %v2389 = vmul.f32 %v2256, %v2387
    %v2390 = vmul.f32 %v2259, %v2387
    %v2391 = vmul.f32 %v2264, %v2387
    %v2392 = vmul.f32 %v2267, %v2387
    %v2393 = vmul.f32 %v2272, %v2387
    %v2394 = vmul.f32 %v2275, %v2387
    %v2395 = vmul.f32 %v2280, %v2387
    %v2396 = vmul.f32 %v2283, %v2387
    %v2397 = vmul.f32 %v2288, %v2387
    %v2398 = vmul.f32 %v2291, %v2387
    %v2399 = vmul.f32 %v2296, %v2387
    %v2400 = vmul.f32 %v2299, %v2387
    %v2401 = vmul.f32 %v2304, %v2387
    %v2402 = vmul.f32 %v2307, %v2387
    %v2403 = vmul.f32 %v2312, %v2387
    %v2404 = vmul.f32 %v2315, %v2387
    %v2405 = vmul.f32 %v2320, %v2387
    %v2406 = vmul.f32 %v2323, %v2387
    %v2407 = vmul.f32 %v2328, %v2387
    %v2408 = vmul.f32 %v2331, %v2387
    %v2409 = vmul.f32 %v2336, %v2387
    %v2410 = vmul.f32 %v2339, %v2387
    %v2411 = vmul.f32 %v2344, %v2387
    %v2412 = vmul.f32 %v2347, %v2387
    %v2413 = vmul.f32 %v2352, %v2387
    %v2414 = vmul.f32 %v2355, %v2387
    %v2415 = vmul.f32 %v2360, %v2387
    %v2416 = vmul.f32 %v2363, %v2387
    %v2417 = vmul.f32 %v2368, %v2387
    %v2418 = vmul.f32 %v2371, %v2387
    %v2419 = vmul.f32 %v2376, %v2387
    %v2420 = vmul.f32 %v2379, %v2387
    %v2421 = vld [vmem:[#allocation11] sm:$0x1]
    %v2423 = vlaneseq
    %v2424 = vshrl.u32 %v2423, 7
    %v2425 = vsub.s32 0, %v2424
    %v2426 = vrot.slane %v2421, %v2425
    %v2428 = vadd.f32 %v2389, %v2426
    %v2429 = vadd.f32 %v2390, %v2426
    %v2430 = vadd.f32 %v2391, %v2426
    %v2431 = vadd.f32 %v2392, %v2426
    %v2432 = vadd.f32 %v2393, %v2426
    %v2433 = vadd.f32 %v2394, %v2426
    %v2434 = vadd.f32 %v2395, %v2426
    %v2435 = vadd.f32 %v2396, %v2426
    %v2436 = vadd.f32 %v2397, %v2426
    %v2437 = vadd.f32 %v2398, %v2426
    %v2438 = vadd.f32 %v2399, %v2426
    %v2439 = vadd.f32 %v2400, %v2426
    %v2440 = vadd.f32 %v2401, %v2426
    %v2441 = vadd.f32 %v2402, %v2426
    %v2442 = vadd.f32 %v2403, %v2426
    %v2443 = vadd.f32 %v2404, %v2426
    %v2444 = vadd.f32 %v2405, %v2426
    %v2445 = vadd.f32 %v2406, %v2426
    %v2446 = vadd.f32 %v2407, %v2426
    %v2447 = vadd.f32 %v2408, %v2426
    %v2448 = vadd.f32 %v2409, %v2426
    %v2449 = vadd.f32 %v2410, %v2426
    %v2450 = vadd.f32 %v2411, %v2426
    %v2451 = vadd.f32 %v2412, %v2426
    %v2452 = vadd.f32 %v2413, %v2426
    %v2453 = vadd.f32 %v2414, %v2426
    %v2454 = vadd.f32 %v2415, %v2426
    %v2455 = vadd.f32 %v2416, %v2426
    %v2456 = vadd.f32 %v2417, %v2426
    %v2457 = vadd.f32 %v2418, %v2426
    %v2458 = vadd.f32 %v2419, %v2426
    %v2459 = vadd.f32 %v2420, %v2426
    %v2460 = vsub.f32 0.0, %v2428
    %v2461 = vsub.f32 0.0, %v2429
    %v2462 = vsub.f32 0.0, %v2430
    %v2463 = vsub.f32 0.0, %v2431
    %v2464 = vsub.f32 0.0, %v2432
    %v2465 = vsub.f32 0.0, %v2433
    %v2466 = vsub.f32 0.0, %v2434
    %v2467 = vsub.f32 0.0, %v2435
    %v2468 = vsub.f32 0.0, %v2436
    %v2469 = vsub.f32 0.0, %v2437
    %v2470 = vsub.f32 0.0, %v2438
    %v2471 = vsub.f32 0.0, %v2439
    %v2472 = vsub.f32 0.0, %v2440
    %v2473 = vsub.f32 0.0, %v2441
    %v2474 = vsub.f32 0.0, %v2442
    %v2475 = vsub.f32 0.0, %v2443
    %v2476 = vsub.f32 0.0, %v2444
    %v2477 = vsub.f32 0.0, %v2445
    %v2478 = vsub.f32 0.0, %v2446
    %v2479 = vsub.f32 0.0, %v2447
    %v2480 = vsub.f32 0.0, %v2448
    %v2481 = vsub.f32 0.0, %v2449
    %v2482 = vsub.f32 0.0, %v2450
    %v2483 = vsub.f32 0.0, %v2451
    %v2484 = vsub.f32 0.0, %v2452
    %v2485 = vsub.f32 0.0, %v2453
    %v2486 = vsub.f32 0.0, %v2454
    %v2487 = vsub.f32 0.0, %v2455
    %v2488 = vsub.f32 0.0, %v2456
    %v2489 = vsub.f32 0.0, %v2457
    %v2490 = vsub.f32 0.0, %v2458
    %v2491 = vsub.f32 0.0, %v2459
    %v2492 = vmul.f32 %v2460, 1.442695
    %v2493 = vpow.pop %v2492
    %v2494 = vmul.f32 %v2461, 1.442695
    %v2495 = vpow.pop %v2494
    %v2496 = vmul.f32 %v2462, 1.442695
    %v2497 = vpow.pop %v2496
    %v2498 = vmul.f32 %v2463, 1.442695
    %v2499 = vpow.pop %v2498
    %v2500 = vmul.f32 %v2464, 1.442695
    %v2501 = vpow.pop %v2500
    %v2502 = vmul.f32 %v2465, 1.442695
    %v2503 = vpow.pop %v2502
    %v2504 = vmul.f32 %v2466, 1.442695
    %v2505 = vpow.pop %v2504
    %v2506 = vmul.f32 %v2467, 1.442695
    %v2507 = vpow.pop %v2506
    %v2508 = vmul.f32 %v2468, 1.442695
    %v2509 = vpow.pop %v2508
    %v2510 = vmul.f32 %v2469, 1.442695
    %v2511 = vpow.pop %v2510
    %v2512 = vmul.f32 %v2470, 1.442695
    %v2513 = vpow.pop %v2512
    %v2514 = vmul.f32 %v2471, 1.442695
    %v2515 = vpow.pop %v2514
    %v2516 = vmul.f32 %v2472, 1.442695
    %v2517 = vpow.pop %v2516
    %v2518 = vmul.f32 %v2473, 1.442695
    %v2519 = vpow.pop %v2518
    %v2520 = vmul.f32 %v2474, 1.442695
    %v2521 = vpow.pop %v2520
    %v2522 = vmul.f32 %v2475, 1.442695
    %v2523 = vpow.pop %v2522
    %v2524 = vmul.f32 %v2476, 1.442695
    %v2525 = vpow.pop %v2524
    %v2526 = vmul.f32 %v2477, 1.442695
    %v2527 = vpow.pop %v2526
    %v2528 = vmul.f32 %v2478, 1.442695
    %v2529 = vpow.pop %v2528
    %v2530 = vmul.f32 %v2479, 1.442695
    %v2531 = vpow.pop %v2530
    %v2532 = vmul.f32 %v2480, 1.442695
    %v2533 = vpow.pop %v2532
    %v2534 = vmul.f32 %v2481, 1.442695
    %v2535 = vpow.pop %v2534
    %v2536 = vmul.f32 %v2482, 1.442695
    %v2537 = vpow.pop %v2536
    %v2538 = vmul.f32 %v2483, 1.442695
    %v2539 = vpow.pop %v2538
    %v2540 = vmul.f32 %v2484, 1.442695
    %v2541 = vpow.pop %v2540
    %v2542 = vmul.f32 %v2485, 1.442695
    %v2543 = vpow.pop %v2542
    %v2544 = vmul.f32 %v2486, 1.442695
    %v2545 = vpow.pop %v2544
    %v2546 = vmul.f32 %v2487, 1.442695
    %v2547 = vpow.pop %v2546
    %v2548 = vmul.f32 %v2488, 1.442695
    %v2549 = vpow.pop %v2548
    %v2550 = vmul.f32 %v2489, 1.442695
    %v2551 = vpow.pop %v2550
    %v2552 = vmul.f32 %v2490, 1.442695
    %v2553 = vpow.pop %v2552
    %v2554 = vmul.f32 %v2491, 1.442695
    %v2555 = vpow.pop %v2554
    %v2556 = vadd.f32 %v2493, 1.0
    %v2557 = vadd.f32 %v2495, 1.0
    %v2558 = vadd.f32 %v2497, 1.0
    %v2559 = vadd.f32 %v2499, 1.0
    %v2560 = vadd.f32 %v2501, 1.0
    %v2561 = vadd.f32 %v2503, 1.0
    %v2562 = vadd.f32 %v2505, 1.0
    %v2563 = vadd.f32 %v2507, 1.0
    %v2564 = vadd.f32 %v2509, 1.0
    %v2565 = vadd.f32 %v2511, 1.0
    %v2566 = vadd.f32 %v2513, 1.0
    %v2567 = vadd.f32 %v2515, 1.0
    %v2568 = vadd.f32 %v2517, 1.0
    %v2569 = vadd.f32 %v2519, 1.0
    %v2570 = vadd.f32 %v2521, 1.0
    %v2571 = vadd.f32 %v2523, 1.0
    %v2572 = vadd.f32 %v2525, 1.0
    %v2573 = vadd.f32 %v2527, 1.0
    %v2574 = vadd.f32 %v2529, 1.0
    %v2575 = vadd.f32 %v2531, 1.0
    %v2576 = vadd.f32 %v2533, 1.0
    %v2577 = vadd.f32 %v2535, 1.0
    %v2578 = vadd.f32 %v2537, 1.0
    %v2579 = vadd.f32 %v2539, 1.0
    %v2580 = vadd.f32 %v2541, 1.0
    %v2581 = vadd.f32 %v2543, 1.0
    %v2582 = vadd.f32 %v2545, 1.0
    %v2583 = vadd.f32 %v2547, 1.0
    %v2584 = vadd.f32 %v2549, 1.0
    %v2585 = vadd.f32 %v2551, 1.0
    %v2586 = vadd.f32 %v2553, 1.0
    %v2587 = vadd.f32 %v2555, 1.0
    %v2588 = vrcp.pop %v2556
    %v2589 = vrcp.pop %v2557
    %v2590 = vrcp.pop %v2558
    %v2591 = vrcp.pop %v2559
    %v2592 = vrcp.pop %v2560
    %v2593 = vrcp.pop %v2561
    %v2594 = vrcp.pop %v2562
    %v2595 = vrcp.pop %v2563
    %v2596 = vrcp.pop %v2564
    %v2597 = vrcp.pop %v2565
    %v2598 = vrcp.pop %v2566
    %v2599 = vrcp.pop %v2567
    %v2600 = vrcp.pop %v2568
    %v2601 = vrcp.pop %v2569
    %v2602 = vrcp.pop %v2570
    %v2603 = vrcp.pop %v2571
    %v2604 = vrcp.pop %v2572
    %v2605 = vrcp.pop %v2573
    %v2606 = vrcp.pop %v2574
    %v2607 = vrcp.pop %v2575
    %v2608 = vrcp.pop %v2576
    %v2609 = vrcp.pop %v2577
    %v2610 = vrcp.pop %v2578
    %v2611 = vrcp.pop %v2579
    %v2612 = vrcp.pop %v2580
    %v2613 = vrcp.pop %v2581
    %v2614 = vrcp.pop %v2582
    %v2615 = vrcp.pop %v2583
    %v2616 = vrcp.pop %v2584
    %v2617 = vrcp.pop %v2585
    %v2618 = vrcp.pop %v2586
    %v2619 = vrcp.pop %v2587
    %v2620 = vmul.f32 %v2428, %v2588
    %v2621 = vmul.f32 %v2429, %v2589
    %v2622 = vmul.f32 %v2430, %v2590
    %v2623 = vmul.f32 %v2431, %v2591
    %v2624 = vmul.f32 %v2432, %v2592
    %v2625 = vmul.f32 %v2433, %v2593
    %v2626 = vmul.f32 %v2434, %v2594
    %v2627 = vmul.f32 %v2435, %v2595
    %v2628 = vmul.f32 %v2436, %v2596
    %v2629 = vmul.f32 %v2437, %v2597
    %v2630 = vmul.f32 %v2438, %v2598
    %v2631 = vmul.f32 %v2439, %v2599
    %v2632 = vmul.f32 %v2440, %v2600
    %v2633 = vmul.f32 %v2441, %v2601
    %v2634 = vmul.f32 %v2442, %v2602
    %v2635 = vmul.f32 %v2443, %v2603
    %v2636 = vmul.f32 %v2444, %v2604
    %v2637 = vmul.f32 %v2445, %v2605
    %v2638 = vmul.f32 %v2446, %v2606
    %v2639 = vmul.f32 %v2447, %v2607
    %v2640 = vmul.f32 %v2448, %v2608
    %v2641 = vmul.f32 %v2449, %v2609
    %v2642 = vmul.f32 %v2450, %v2610
    %v2643 = vmul.f32 %v2451, %v2611
    %v2644 = vmul.f32 %v2452, %v2612
    %v2645 = vmul.f32 %v2453, %v2613
    %v2646 = vmul.f32 %v2454, %v2614
    %v2647 = vmul.f32 %v2455, %v2615
    %v2648 = vmul.f32 %v2456, %v2616
    %v2649 = vmul.f32 %v2457, %v2617
    %v2650 = vmul.f32 %v2458, %v2618
    %v2651 = vmul.f32 %v2459, %v2619
    %v2652 = vmul.f32 %v2620, %v401
    %v2653 = vmul.f32 %v2621, %v406
    %v2654 = vmul.f32 %v2622, %v411
    %v2655 = vmul.f32 %v2623, %v416
    %v2656 = vmul.f32 %v2624, %v421
    %v2657 = vmul.f32 %v2625, %v426
    %v2658 = vmul.f32 %v2626, %v431
    %v2659 = vmul.f32 %v2627, %v436
    %v2660 = vmul.f32 %v2628, %v441
    %v2661 = vmul.f32 %v2629, %v446
    %v2662 = vmul.f32 %v2630, %v451
    %v2663 = vmul.f32 %v2631, %v456
    %v2664 = vmul.f32 %v2632, %v461
    %v2665 = vmul.f32 %v2633, %v466
    %v2666 = vmul.f32 %v2634, %v471
    %v2667 = vmul.f32 %v2635, %v476
    %v2668 = vmul.f32 %v2636, %v481
    %v2669 = vmul.f32 %v2637, %v486
    %v2670 = vmul.f32 %v2638, %v491
    %v2671 = vmul.f32 %v2639, %v496
    %v2672 = vmul.f32 %v2640, %v501
    %v2673 = vmul.f32 %v2641, %v506
    %v2674 = vmul.f32 %v2642, %v511
    %v2675 = vmul.f32 %v2643, %v516
    %v2676 = vmul.f32 %v2644, %v521
    %v2677 = vmul.f32 %v2645, %v526
    %v2678 = vmul.f32 %v2646, %v531
    %v2679 = vmul.f32 %v2647, %v536
    %v2680 = vmul.f32 %v2648, %v541
    %v2681 = vmul.f32 %v2649, %v546
    %v2682 = vmul.f32 %v2650, %v551
    %v2683 = vmul.f32 %v2651, %v556
    %v2684 = vpack.c.bf16 %v2653, %v2652
    %v2685 = vpack.c.bf16 %v2655, %v2654
    %v2686 = vpack.c.bf16 %v2657, %v2656
    %v2687 = vpack.c.bf16 %v2659, %v2658
    %v2688 = vpack.c.bf16 %v2661, %v2660
    %v2689 = vpack.c.bf16 %v2663, %v2662
    %v2690 = vpack.c.bf16 %v2665, %v2664
    %v2691 = vpack.c.bf16 %v2667, %v2666
    %v2692 = vpack.c.bf16 %v2669, %v2668
    %v2693 = vpack.c.bf16 %v2671, %v2670
    %v2694 = vpack.c.bf16 %v2673, %v2672
    %v2695 = vpack.c.bf16 %v2675, %v2674
    %v2696 = vpack.c.bf16 %v2677, %v2676
    %v2697 = vpack.c.bf16 %v2679, %v2678
    %v2698 = vpack.c.bf16 %v2681, %v2680
    %v2699 = vpack.c.bf16 %v2683, %v2682
    %v2700 = vld [vmem:[#allocation12] sm:$0xf]
    %v2701 = vld [vmem:[#allocation12 + $0x4] sm:$0xf]
    %v2702 = vld [vmem:[#allocation12 + $0x8] sm:$0xf]
    %v2703 = vld [vmem:[#allocation12 + $0xc] sm:$0xf]
    %v2708 = vunpack.c.l.b16 %v2700
    %v2709 = vunpack.c.l.b16 %v2701
    %v2710 = vunpack.c.l.b16 %v2702
    %v2711 = vunpack.c.l.b16 %v2703
    %v2712 = vpack.c.b16 %v2709, %v2708
    %v2713 = vpack.c.b16 %v2711, %v2710
    %v2717 = vsel %vm1960, %v2684, 0
    %v2720 = vsel %vm1960, %v2685, 0
    %v2723 = vsel %vm1960, %v2686, 0
    %v2726 = vsel %vm1960, %v2687, 0
    %v2729 = vsel %vm1960, %v2688, 0
    %v2732 = vsel %vm1960, %v2689, 0
    %v2735 = vsel %vm1960, %v2690, 0
    %v2738 = vsel %vm1960, %v2691, 0
    %v2741 = vsel %vm1960, %v2692, 0
    %v2744 = vsel %vm1960, %v2693, 0
    %v2747 = vsel %vm1960, %v2694, 0
    %v2750 = vsel %vm1960, %v2695, 0
    %v2753 = vsel %vm1960, %v2696, 0
    %v2756 = vsel %vm1960, %v2697, 0
    %v2759 = vsel %vm1960, %v2698, 0
    %v2762 = vsel %vm1960, %v2699, 0
    %2764 = vmatprep.subr.bf16.mxu0 0
    %2765 = vmatpush1.bf16.msra.mxu0 %v2712
    %2766 = vmatprep.subr.bf16.mxu0 0
    %2767 = vmatpush1.bf16.msra.mxu0 %v2713
    %2768 = vmatprep.subr.bf16.mxu0 0
    %2769 = vmatpush1.bf16.msra.mxu0 0
    %2770 = vmatprep.subr.bf16.mxu0 0
    %2771 = vmatpush1.bf16.msra.mxu0 0
    %2772 = vmatprep.subr.bf16.mxu0 0
    %2773 = vmatpush1.bf16.msra.mxu0 0
    %2774 = vmatprep.subr.bf16.mxu0 0
    %2775 = vmatpush1.bf16.msra.mxu0 0
    %2776 = vmatprep.subr.bf16.mxu0 0
    %2777 = vmatpush1.bf16.msra.mxu0 0
    %2778 = vmatprep.subr.bf16.mxu0 0
    %2779 = vmatpush1.bf16.msra.mxu0 0
    %2780 = vmatprep.subr.bf16.mxu0 0
    %2781 = vmatpush1.bf16.msra.mxu0 0
    %2782 = vmatprep.subr.bf16.mxu0 0
    %2783 = vmatpush1.bf16.msra.mxu0 0
    %2784 = vmatprep.subr.bf16.mxu0 0
    %2785 = vmatpush1.bf16.msra.mxu0 0
    %2786 = vmatprep.subr.bf16.mxu0 0
    %2787 = vmatpush1.bf16.msra.mxu0 0
    %2788 = vmatprep.subr.bf16.mxu0 0
    %2789 = vmatpush1.bf16.msra.mxu0 0
    %2790 = vmatprep.subr.bf16.mxu0 0
    %2791 = vmatpush1.bf16.msra.mxu0 0
    %2792 = vmatprep.subr.bf16.mxu0 0
    %2793 = vmatpush1.bf16.msra.mxu0 0
    %2794 = vmatprep.subr.bf16.mxu0 0
    %2795 = vmatpush1.bf16.msra.mxu0 0
    %2796 = vmatprep.mubr.bf16.mxu0 0
    %2797 = vmatmul.mubr.bf16.gmra.mrb[0].mxu0 %v2717
    %v2798 = vpop.f32.mrb[0].mxu0
    %v2799 = vadd.f32 0.0, %v2798
    %v2800 = vpop.f32.mrb[0].mxu0
    %v2801 = vpop.f32.mrb[0].mxu0
    %v2802 = vadd.f32 0.0, %v2801
    %v2803 = vpop.f32.mrb[0].mxu0
    %2804 = vmatprep.mubr.bf16.mxu0 0
    %2805 = vmatmul.mubr.bf16.gmra.mrb[0].mxu0 %v2720
    %v2806 = vpop.f32.mrb[0].mxu0
    %v2807 = vadd.f32 0.0, %v2806
    %v2808 = vpop.f32.mrb[0].mxu0
    %v2809 = vpop.f32.mrb[0].mxu0
    %v2810 = vadd.f32 0.0, %v2809
    %v2811 = vpop.f32.mrb[0].mxu0
    %2812 = vmatprep.mubr.bf16.mxu0 0
    %2813 = vmatmul.mubr.bf16.gmra.mrb[0].mxu0 %v2723
    %v2814 = vpop.f32.mrb[0].mxu0
    %v2815 = vadd.f32 0.0, %v2814
    %v2816 = vpop.f32.mrb[0].mxu0
    %v2817 = vpop.f32.mrb[0].mxu0
    %v2818 = vadd.f32 0.0, %v2817
    %v2819 = vpop.f32.mrb[0].mxu0
    %2820 = vmatprep.mubr.bf16.mxu0 0
    %2821 = vmatmul.mubr.bf16.gmra.mrb[0].mxu0 %v2726
    %v2822 = vpop.f32.mrb[0].mxu0
    %v2823 = vadd.f32 0.0, %v2822
    %v2824 = vpop.f32.mrb[0].mxu0
    %v2825 = vpop.f32.mrb[0].mxu0
    %v2826 = vadd.f32 0.0, %v2825
    %v2827 = vpop.f32.mrb[0].mxu0
    %2828 = vmatprep.mubr.bf16.mxu0 0
    %2829 = vmatmul.mubr.bf16.gmra.mrb[0].mxu0 %v2729
    %v2830 = vpop.f32.mrb[0].mxu0
    %v2831 = vadd.f32 0.0, %v2830
    %v2832 = vpop.f32.mrb[0].mxu0
    %v2833 = vpop.f32.mrb[0].mxu0
    %v2834 = vadd.f32 0.0, %v2833
    %v2835 = vpop.f32.mrb[0].mxu0
    %2836 = vmatprep.mubr.bf16.mxu0 0
    %2837 = vmatmul.mubr.bf16.gmra.mrb[0].mxu0 %v2732
    %v2838 = vpop.f32.mrb[0].mxu0
    %v2839 = vadd.f32 0.0, %v2838
    %v2840 = vpop.f32.mrb[0].mxu0
    %v2841 = vpop.f32.mrb[0].mxu0
    %v2842 = vadd.f32 0.0, %v2841
    %v2843 = vpop.f32.mrb[0].mxu0
    %2844 = vmatprep.mubr.bf16.mxu0 0
    %2845 = vmatmul.mubr.bf16.gmra.mrb[0].mxu0 %v2735
    %v2846 = vpop.f32.mrb[0].mxu0
    %v2847 = vadd.f32 0.0, %v2846
    %v2848 = vpop.f32.mrb[0].mxu0
    %v2849 = vpop.f32.mrb[0].mxu0
    %v2850 = vadd.f32 0.0, %v2849
    %v2851 = vpop.f32.mrb[0].mxu0
    %2852 = vmatprep.mubr.bf16.mxu0 0
    %2853 = vmatmul.mubr.bf16.gmra.mrb[0].mxu0 %v2738
    %v2854 = vpop.f32.mrb[0].mxu0
    %v2855 = vadd.f32 0.0, %v2854
    %v2856 = vpop.f32.mrb[0].mxu0
    %v2857 = vpop.f32.mrb[0].mxu0
    %v2858 = vadd.f32 0.0, %v2857
    %v2859 = vpop.f32.mrb[0].mxu0
    %2860 = vmatprep.mubr.bf16.mxu0 0
    %2861 = vmatmul.mubr.bf16.gmra.mrb[0].mxu0 %v2741
    %v2862 = vpop.f32.mrb[0].mxu0
    %v2863 = vadd.f32 0.0, %v2862
    %v2864 = vpop.f32.mrb[0].mxu0
    %v2865 = vpop.f32.mrb[0].mxu0
    %v2866 = vadd.f32 0.0, %v2865
    %v2867 = vpop.f32.mrb[0].mxu0
    %2868 = vmatprep.mubr.bf16.mxu0 0
    %2869 = vmatmul.mubr.bf16.gmra.mrb[0].mxu0 %v2744
    %v2870 = vpop.f32.mrb[0].mxu0
    %v2871 = vadd.f32 0.0, %v2870
    %v2872 = vpop.f32.mrb[0].mxu0
    %v2873 = vpop.f32.mrb[0].mxu0
    %v2874 = vadd.f32 0.0, %v2873
    %v2875 = vpop.f32.mrb[0].mxu0
    %2876 = vmatprep.mubr.bf16.mxu0 0
    %2877 = vmatmul.mubr.bf16.gmra.mrb[0].mxu0 %v2747
    %v2878 = vpop.f32.mrb[0].mxu0
    %v2879 = vadd.f32 0.0, %v2878
    %v2880 = vpop.f32.mrb[0].mxu0
    %v2881 = vpop.f32.mrb[0].mxu0
    %v2882 = vadd.f32 0.0, %v2881
    %v2883 = vpop.f32.mrb[0].mxu0
    %2884 = vmatprep.mubr.bf16.mxu0 0
    %2885 = vmatmul.mubr.bf16.gmra.mrb[0].mxu0 %v2750
    %v2886 = vpop.f32.mrb[0].mxu0
    %v2887 = vadd.f32 0.0, %v2886
    %v2888 = vpop.f32.mrb[0].mxu0
    %v2889 = vpop.f32.mrb[0].mxu0
    %v2890 = vadd.f32 0.0, %v2889
    %v2891 = vpop.f32.mrb[0].mxu0
    %2892 = vmatprep.mubr.bf16.mxu0 0
    %2893 = vmatmul.mubr.bf16.gmra.mrb[0].mxu0 %v2753
    %v2894 = vpop.f32.mrb[0].mxu0
    %v2895 = vadd.f32 0.0, %v2894
    %v2896 = vpop.f32.mrb[0].mxu0
    %v2897 = vpop.f32.mrb[0].mxu0
    %v2898 = vadd.f32 0.0, %v2897
    %v2899 = vpop.f32.mrb[0].mxu0
    %2900 = vmatprep.mubr.bf16.mxu0 0
    %2901 = vmatmul.mubr.bf16.gmra.mrb[0].mxu0 %v2756
    %v2902 = vpop.f32.mrb[0].mxu0
    %v2903 = vadd.f32 0.0, %v2902
    %v2904 = vpop.f32.mrb[0].mxu0
    %v2905 = vpop.f32.mrb[0].mxu0
    %v2906 = vadd.f32 0.0, %v2905
    %v2907 = vpop.f32.mrb[0].mxu0
    %2908 = vmatprep.mubr.bf16.mxu0 0
    %2909 = vmatmul.mubr.bf16.gmra.mrb[0].mxu0 %v2759
    %v2910 = vpop.f32.mrb[0].mxu0
    %v2911 = vadd.f32 0.0, %v2910
    %v2912 = vpop.f32.mrb[0].mxu0
    %v2913 = vpop.f32.mrb[0].mxu0
    %v2914 = vadd.f32 0.0, %v2913
    %v2915 = vpop.f32.mrb[0].mxu0
    %2916 = vmatprep.mubr.bf16.mxu0 0
    %2917 = vmatmul.mubr.bf16.gmra.mrb[0].mxu0 %v2762
    %v2918 = vpop.f32.mrb[0].mxu0
    %v2919 = vadd.f32 0.0, %v2918
    %v2920 = vpop.f32.mrb[0].mxu0
    %v2921 = vpop.f32.mrb[0].mxu0
    %v2922 = vadd.f32 0.0, %v2921
    %v2923 = vpop.f32.mrb[0].mxu0
    %2924 = vdwg.mxu0
    %v2925 = vld [vmem:[#allocation14] sm:$0x1]
    %v2927 = vlaneseq
    %v2928 = vshrl.u32 %v2927, 7
    %v2929 = vsub.s32 0, %v2928
    %v2930 = vrot.slane %v2925, %v2929
    %v2932 = vmul.f32 %v2799, %v2930
    %v2933 = vmul.f32 %v2802, %v2930
    %v2934 = vmul.f32 %v2807, %v2930
    %v2935 = vmul.f32 %v2810, %v2930
    %v2936 = vmul.f32 %v2815, %v2930
    %v2937 = vmul.f32 %v2818, %v2930
    %v2938 = vmul.f32 %v2823, %v2930
    %v2939 = vmul.f32 %v2826, %v2930
    %v2940 = vmul.f32 %v2831, %v2930
    %v2941 = vmul.f32 %v2834, %v2930
    %v2942 = vmul.f32 %v2839, %v2930
    %v2943 = vmul.f32 %v2842, %v2930
    %v2944 = vmul.f32 %v2847, %v2930
    %v2945 = vmul.f32 %v2850, %v2930
    %v2946 = vmul.f32 %v2855, %v2930
    %v2947 = vmul.f32 %v2858, %v2930
    %v2948 = vmul.f32 %v2863, %v2930
    %v2949 = vmul.f32 %v2866, %v2930
    %v2950 = vmul.f32 %v2871, %v2930
    %v2951 = vmul.f32 %v2874, %v2930
    %v2952 = vmul.f32 %v2879, %v2930
    %v2953 = vmul.f32 %v2882, %v2930
    %v2954 = vmul.f32 %v2887, %v2930
    %v2955 = vmul.f32 %v2890, %v2930
    %v2956 = vmul.f32 %v2895, %v2930
    %v2957 = vmul.f32 %v2898, %v2930
    %v2958 = vmul.f32 %v2903, %v2930
    %v2959 = vmul.f32 %v2906, %v2930
    %v2960 = vmul.f32 %v2911, %v2930
    %v2961 = vmul.f32 %v2914, %v2930
    %v2962 = vmul.f32 %v2919, %v2930
    %v2963 = vmul.f32 %v2922, %v2930
    %v2964 = vld [vmem:[#allocation15] sm:$0x1]
    %v2966 = vlaneseq
    %v2967 = vshrl.u32 %v2966, 7
    %v2968 = vsub.s32 0, %v2967
    %v2969 = vrot.slane %v2964, %v2968
    %v2971 = vadd.f32 %v2932, %v2969
    %v2972 = vadd.f32 %v2933, %v2969
    %v2973 = vadd.f32 %v2934, %v2969
    %v2974 = vadd.f32 %v2935, %v2969
    %v2975 = vadd.f32 %v2936, %v2969
    %v2976 = vadd.f32 %v2937, %v2969
    %v2977 = vadd.f32 %v2938, %v2969
    %v2978 = vadd.f32 %v2939, %v2969
    %v2979 = vadd.f32 %v2940, %v2969
    %v2980 = vadd.f32 %v2941, %v2969
    %v2981 = vadd.f32 %v2942, %v2969
    %v2982 = vadd.f32 %v2943, %v2969
    %v2983 = vadd.f32 %v2944, %v2969
    %v2984 = vadd.f32 %v2945, %v2969
    %v2985 = vadd.f32 %v2946, %v2969
    %v2986 = vadd.f32 %v2947, %v2969
    %v2987 = vadd.f32 %v2948, %v2969
    %v2988 = vadd.f32 %v2949, %v2969
    %v2989 = vadd.f32 %v2950, %v2969
    %v2990 = vadd.f32 %v2951, %v2969
    %v2991 = vadd.f32 %v2952, %v2969
    %v2992 = vadd.f32 %v2953, %v2969
    %v2993 = vadd.f32 %v2954, %v2969
    %v2994 = vadd.f32 %v2955, %v2969
    %v2995 = vadd.f32 %v2956, %v2969
    %v2996 = vadd.f32 %v2957, %v2969
    %v2997 = vadd.f32 %v2958, %v2969
    %v2998 = vadd.f32 %v2959, %v2969
    %v2999 = vadd.f32 %v2960, %v2969
    %v3000 = vadd.f32 %v2961, %v2969
    %v3001 = vadd.f32 %v2962, %v2969
    %v3002 = vadd.f32 %v2963, %v2969
    %v3003 = vsub.f32 0.0, %v2971
    %v3004 = vsub.f32 0.0, %v2972
    %v3005 = vsub.f32 0.0, %v2973
    %v3006 = vsub.f32 0.0, %v2974
    %v3007 = vsub.f32 0.0, %v2975
    %v3008 = vsub.f32 0.0, %v2976
    %v3009 = vsub.f32 0.0, %v2977
    %v3010 = vsub.f32 0.0, %v2978
    %v3011 = vsub.f32 0.0, %v2979
    %v3012 = vsub.f32 0.0, %v2980
    %v3013 = vsub.f32 0.0, %v2981
    %v3014 = vsub.f32 0.0, %v2982
    %v3015 = vsub.f32 0.0, %v2983
    %v3016 = vsub.f32 0.0, %v2984
    %v3017 = vsub.f32 0.0, %v2985
    %v3018 = vsub.f32 0.0, %v2986
    %v3019 = vsub.f32 0.0, %v2987
    %v3020 = vsub.f32 0.0, %v2988
    %v3021 = vsub.f32 0.0, %v2989
    %v3022 = vsub.f32 0.0, %v2990
    %v3023 = vsub.f32 0.0, %v2991
    %v3024 = vsub.f32 0.0, %v2992
    %v3025 = vsub.f32 0.0, %v2993
    %v3026 = vsub.f32 0.0, %v2994
    %v3027 = vsub.f32 0.0, %v2995
    %v3028 = vsub.f32 0.0, %v2996
    %v3029 = vsub.f32 0.0, %v2997
    %v3030 = vsub.f32 0.0, %v2998
    %v3031 = vsub.f32 0.0, %v2999
    %v3032 = vsub.f32 0.0, %v3000
    %v3033 = vsub.f32 0.0, %v3001
    %v3034 = vsub.f32 0.0, %v3002
    %v3035 = vmul.f32 %v3003, 1.442695
    %v3036 = vpow.pop %v3035
    %v3037 = vmul.f32 %v3004, 1.442695
    %v3038 = vpow.pop %v3037
    %v3039 = vmul.f32 %v3005, 1.442695
    %v3040 = vpow.pop %v3039
    %v3041 = vmul.f32 %v3006, 1.442695
    %v3042 = vpow.pop %v3041
    %v3043 = vmul.f32 %v3007, 1.442695
    %v3044 = vpow.pop %v3043
    %v3045 = vmul.f32 %v3008, 1.442695
    %v3046 = vpow.pop %v3045
    %v3047 = vmul.f32 %v3009, 1.442695
    %v3048 = vpow.pop %v3047
    %v3049 = vmul.f32 %v3010, 1.442695
    %v3050 = vpow.pop %v3049
    %v3051 = vmul.f32 %v3011, 1.442695
    %v3052 = vpow.pop %v3051
    %v3053 = vmul.f32 %v3012, 1.442695
    %v3054 = vpow.pop %v3053
    %v3055 = vmul.f32 %v3013, 1.442695
    %v3056 = vpow.pop %v3055
    %v3057 = vmul.f32 %v3014, 1.442695
    %v3058 = vpow.pop %v3057
    %v3059 = vmul.f32 %v3015, 1.442695
    %v3060 = vpow.pop %v3059
    %v3061 = vmul.f32 %v3016, 1.442695
    %v3062 = vpow.pop %v3061
    %v3063 = vmul.f32 %v3017, 1.442695
    %v3064 = vpow.pop %v3063
    %v3065 = vmul.f32 %v3018, 1.442695
    %v3066 = vpow.pop %v3065
    %v3067 = vmul.f32 %v3019, 1.442695
    %v3068 = vpow.pop %v3067
    %v3069 = vmul.f32 %v3020, 1.442695
    %v3070 = vpow.pop %v3069
    %v3071 = vmul.f32 %v3021, 1.442695
    %v3072 = vpow.pop %v3071
    %v3073 = vmul.f32 %v3022, 1.442695
    %v3074 = vpow.pop %v3073
    %v3075 = vmul.f32 %v3023, 1.442695
    %v3076 = vpow.pop %v3075
    %v3077 = vmul.f32 %v3024, 1.442695
    %v3078 = vpow.pop %v3077
    %v3079 = vmul.f32 %v3025, 1.442695
    %v3080 = vpow.pop %v3079
    %v3081 = vmul.f32 %v3026, 1.442695
    %v3082 = vpow.pop %v3081
    %v3083 = vmul.f32 %v3027, 1.442695
    %v3084 = vpow.pop %v3083
    %v3085 = vmul.f32 %v3028, 1.442695
    %v3086 = vpow.pop %v3085
    %v3087 = vmul.f32 %v3029, 1.442695
    %v3088 = vpow.pop %v3087
    %v3089 = vmul.f32 %v3030, 1.442695
    %v3090 = vpow.pop %v3089
    %v3091 = vmul.f32 %v3031, 1.442695
    %v3092 = vpow.pop %v3091
    %v3093 = vmul.f32 %v3032, 1.442695
    %v3094 = vpow.pop %v3093
    %v3095 = vmul.f32 %v3033, 1.442695
    %v3096 = vpow.pop %v3095
    %v3097 = vmul.f32 %v3034, 1.442695
    %v3098 = vpow.pop %v3097
    %v3099 = vadd.f32 %v3036, 1.0
    %v3100 = vadd.f32 %v3038, 1.0
    %v3101 = vadd.f32 %v3040, 1.0
    %v3102 = vadd.f32 %v3042, 1.0
    %v3103 = vadd.f32 %v3044, 1.0
    %v3104 = vadd.f32 %v3046, 1.0
    %v3105 = vadd.f32 %v3048, 1.0
    %v3106 = vadd.f32 %v3050, 1.0
    %v3107 = vadd.f32 %v3052, 1.0
    %v3108 = vadd.f32 %v3054, 1.0
    %v3109 = vadd.f32 %v3056, 1.0
    %v3110 = vadd.f32 %v3058, 1.0
    %v3111 = vadd.f32 %v3060, 1.0
    %v3112 = vadd.f32 %v3062, 1.0
    %v3113 = vadd.f32 %v3064, 1.0
    %v3114 = vadd.f32 %v3066, 1.0
    %v3115 = vadd.f32 %v3068, 1.0
    %v3116 = vadd.f32 %v3070, 1.0
    %v3117 = vadd.f32 %v3072, 1.0
    %v3118 = vadd.f32 %v3074, 1.0
    %v3119 = vadd.f32 %v3076, 1.0
    %v3120 = vadd.f32 %v3078, 1.0
    %v3121 = vadd.f32 %v3080, 1.0
    %v3122 = vadd.f32 %v3082, 1.0
    %v3123 = vadd.f32 %v3084, 1.0
    %v3124 = vadd.f32 %v3086, 1.0
    %v3125 = vadd.f32 %v3088, 1.0
    %v3126 = vadd.f32 %v3090, 1.0
    %v3127 = vadd.f32 %v3092, 1.0
    %v3128 = vadd.f32 %v3094, 1.0
    %v3129 = vadd.f32 %v3096, 1.0
    %v3130 = vadd.f32 %v3098, 1.0
    %v3131 = vrcp.pop %v3099
    %v3132 = vrcp.pop %v3100
    %v3133 = vrcp.pop %v3101
    %v3134 = vrcp.pop %v3102
    %v3135 = vrcp.pop %v3103
    %v3136 = vrcp.pop %v3104
    %v3137 = vrcp.pop %v3105
    %v3138 = vrcp.pop %v3106
    %v3139 = vrcp.pop %v3107
    %v3140 = vrcp.pop %v3108
    %v3141 = vrcp.pop %v3109
    %v3142 = vrcp.pop %v3110
    %v3143 = vrcp.pop %v3111
    %v3144 = vrcp.pop %v3112
    %v3145 = vrcp.pop %v3113
    %v3146 = vrcp.pop %v3114
    %v3147 = vrcp.pop %v3115
    %v3148 = vrcp.pop %v3116
    %v3149 = vrcp.pop %v3117
    %v3150 = vrcp.pop %v3118
    %v3151 = vrcp.pop %v3119
    %v3152 = vrcp.pop %v3120
    %v3153 = vrcp.pop %v3121
    %v3154 = vrcp.pop %v3122
    %v3155 = vrcp.pop %v3123
    %v3156 = vrcp.pop %v3124
    %v3157 = vrcp.pop %v3125
    %v3158 = vrcp.pop %v3126
    %v3159 = vrcp.pop %v3127
    %v3160 = vrcp.pop %v3128
    %v3161 = vrcp.pop %v3129
    %v3162 = vrcp.pop %v3130
    %v3163 = vmul.f32 %v2971, %v3131
    %v3164 = vmul.f32 %v2972, %v3132
    %v3165 = vmul.f32 %v2973, %v3133
    %v3166 = vmul.f32 %v2974, %v3134
    %v3167 = vmul.f32 %v2975, %v3135
    %v3168 = vmul.f32 %v2976, %v3136
    %v3169 = vmul.f32 %v2977, %v3137
    %v3170 = vmul.f32 %v2978, %v3138
    %v3171 = vmul.f32 %v2979, %v3139
    %v3172 = vmul.f32 %v2980, %v3140
    %v3173 = vmul.f32 %v2981, %v3141
    %v3174 = vmul.f32 %v2982, %v3142
    %v3175 = vmul.f32 %v2983, %v3143
    %v3176 = vmul.f32 %v2984, %v3144
    %v3177 = vmul.f32 %v2985, %v3145
    %v3178 = vmul.f32 %v2986, %v3146
    %v3179 = vmul.f32 %v2987, %v3147
    %v3180 = vmul.f32 %v2988, %v3148
    %v3181 = vmul.f32 %v2989, %v3149
    %v3182 = vmul.f32 %v2990, %v3150
    %v3183 = vmul.f32 %v2991, %v3151
    %v3184 = vmul.f32 %v2992, %v3152
    %v3185 = vmul.f32 %v2993, %v3153
    %v3186 = vmul.f32 %v2994, %v3154
    %v3187 = vmul.f32 %v2995, %v3155
    %v3188 = vmul.f32 %v2996, %v3156
    %v3189 = vmul.f32 %v2997, %v3157
    %v3190 = vmul.f32 %v2998, %v3158
    %v3191 = vmul.f32 %v2999, %v3159
    %v3192 = vmul.f32 %v3000, %v3160
    %v3193 = vmul.f32 %v3001, %v3161
    %v3194 = vmul.f32 %v3002, %v3162
    %v3195 = vmul.f32 %v3163, %v401
    %v3196 = vmul.f32 %v3164, %v406
    %v3197 = vmul.f32 %v3165, %v411
    %v3198 = vmul.f32 %v3166, %v416
    %v3199 = vmul.f32 %v3167, %v421
    %v3200 = vmul.f32 %v3168, %v426
    %v3201 = vmul.f32 %v3169, %v431
    %v3202 = vmul.f32 %v3170, %v436
    %v3203 = vmul.f32 %v3171, %v441
    %v3204 = vmul.f32 %v3172, %v446
    %v3205 = vmul.f32 %v3173, %v451
    %v3206 = vmul.f32 %v3174, %v456
    %v3207 = vmul.f32 %v3175, %v461
    %v3208 = vmul.f32 %v3176, %v466
    %v3209 = vmul.f32 %v3177, %v471
    %v3210 = vmul.f32 %v3178, %v476
    %v3211 = vmul.f32 %v3179, %v481
    %v3212 = vmul.f32 %v3180, %v486
    %v3213 = vmul.f32 %v3181, %v491
    %v3214 = vmul.f32 %v3182, %v496
    %v3215 = vmul.f32 %v3183, %v501
    %v3216 = vmul.f32 %v3184, %v506
    %v3217 = vmul.f32 %v3185, %v511
    %v3218 = vmul.f32 %v3186, %v516
    %v3219 = vmul.f32 %v3187, %v521
    %v3220 = vmul.f32 %v3188, %v526
    %v3221 = vmul.f32 %v3189, %v531
    %v3222 = vmul.f32 %v3190, %v536
    %v3223 = vmul.f32 %v3191, %v541
    %v3224 = vmul.f32 %v3192, %v546
    %v3225 = vmul.f32 %v3193, %v551
    %v3226 = vmul.f32 %v3194, %v556
    %3227 = vst.msk [vmem:[#allocation2 + $0x10] sm:$0xff] %vm558, %v3195
    %3228 = vst.msk [vmem:[#allocation2 + $0x18] sm:$0xff] %vm558, %v3196
    %3229 = vst.msk [vmem:[#allocation2 + $0x20] sm:$0xff] %vm558, %v3197
    %3230 = vst.msk [vmem:[#allocation2 + $0x28] sm:$0xff] %vm558, %v3198
    %3231 = vst.msk [vmem:[#allocation2 + $0x30] sm:$0xff] %vm558, %v3199
    %3232 = vst.msk [vmem:[#allocation2 + $0x38] sm:$0xff] %vm558, %v3200
    %3233 = vst.msk [vmem:[#allocation2 + $0x40] sm:$0xff] %vm558, %v3201
    %3234 = vst.msk [vmem:[#allocation2 + $0x48] sm:$0xff] %vm558, %v3202
    %3235 = vst.msk [vmem:[#allocation2 + $0x50] sm:$0xff] %vm558, %v3203
    %3236 = vst.msk [vmem:[#allocation2 + $0x58] sm:$0xff] %vm558, %v3204
    %3237 = vst.msk [vmem:[#allocation2 + $0x60] sm:$0xff] %vm558, %v3205
    %3238 = vst.msk [vmem:[#allocation2 + $0x68] sm:$0xff] %vm558, %v3206
    %3239 = vst.msk [vmem:[#allocation2 + $0x70] sm:$0xff] %vm558, %v3207
    %3240 = vst.msk [vmem:[#allocation2 + $0x78] sm:$0xff] %vm558, %v3208
    %3241 = vst.msk [vmem:[#allocation2 + $0x80] sm:$0xff] %vm558, %v3209
    %3242 = vst.msk [vmem:[#allocation2 + $0x88] sm:$0xff] %vm558, %v3210
    %3243 = vst.msk [vmem:[#allocation2 + $0xb0] sm:$0xff] %vm558, %v3211
    %3244 = vst.msk [vmem:[#allocation2 + $0xb8] sm:$0xff] %vm558, %v3212
    %3245 = vst.msk [vmem:[#allocation2 + $0xc0] sm:$0xff] %vm558, %v3213
    %3246 = vst.msk [vmem:[#allocation2 + $0xc8] sm:$0xff] %vm558, %v3214
    %3247 = vst.msk [vmem:[#allocation2 + $0xd0] sm:$0xff] %vm558, %v3215
    %3248 = vst.msk [vmem:[#allocation2 + $0xd8] sm:$0xff] %vm558, %v3216
    %3249 = vst.msk [vmem:[#allocation2 + $0xe0] sm:$0xff] %vm558, %v3217
    %3250 = vst.msk [vmem:[#allocation2 + $0xe8] sm:$0xff] %vm558, %v3218
    %3251 = vst.msk [vmem:[#allocation2 + $0xf0] sm:$0xff] %vm558, %v3219
    %3252 = vst.msk [vmem:[#allocation2 + $0xf8] sm:$0xff] %vm558, %v3220
    %3253 = vst.msk [vmem:[#allocation2 + $0x100] sm:$0xff] %vm558, %v3221
    %3254 = vst.msk [vmem:[#allocation2 + $0x108] sm:$0xff] %vm558, %v3222
    %3255 = vst.msk [vmem:[#allocation2 + $0x110] sm:$0xff] %vm558, %v3223
    %3256 = vst.msk [vmem:[#allocation2 + $0x118] sm:$0xff] %vm558, %v3224
    %3257 = vst.msk [vmem:[#allocation2 + $0x120] sm:$0xff] %vm558, %v3225
    %3258 = vst.msk [vmem:[#allocation2 + $0x128] sm:$0xff] %vm558, %v3226
    %v3259 = vld [vmem:[#allocation17] sm:$0xf]
    %v3260 = vld [vmem:[#allocation17 + $0x4] sm:$0xf]
    %v3261 = vld [vmem:[#allocation17 + $0x8] sm:$0xf]
    %v3262 = vld [vmem:[#allocation17 + $0xc] sm:$0xf]
    %v3263 = vld [vmem:[#allocation17 + $0x10] sm:$0xf]
    %v3264 = vld [vmem:[#allocation17 + $0x14] sm:$0xf]
    %v3265 = vld [vmem:[#allocation17 + $0x18] sm:$0xf]
    %v3266 = vld [vmem:[#allocation17 + $0x1c] sm:$0xf]
    %v3267 = vld [vmem:[#allocation17 + $0x20] sm:$0xf]
    %v3268 = vld [vmem:[#allocation2 + $0x4] sm:$0xff]
    %v3269 = vld [vmem:[#allocation2 + $0xc] sm:$0xff]
    %v3270 = vld [vmem:[#allocation2 + $0x14] sm:$0xff]
    %v3271 = vld [vmem:[#allocation2 + $0x1c] sm:$0xff]
    %v3272 = vld [vmem:[#allocation2 + $0x24] sm:$0xff]
    %v3273 = vld [vmem:[#allocation2 + $0x2c] sm:$0xff]
    %v3274 = vld [vmem:[#allocation2 + $0x34] sm:$0xff]
    %v3275 = vld [vmem:[#allocation2 + $0x3c] sm:$0xff]
    %v3276 = vld [vmem:[#allocation2 + $0x44] sm:$0xff]
    %v3277 = vld [vmem:[#allocation2 + $0x4c] sm:$0xff]
    %v3278 = vld [vmem:[#allocation2 + $0x54] sm:$0xff]
    %v3279 = vld [vmem:[#allocation2 + $0x5c] sm:$0xff]
    %v3280 = vld [vmem:[#allocation2 + $0x64] sm:$0xff]
    %v3281 = vld [vmem:[#allocation2 + $0x6c] sm:$0xff]
    %v3282 = vld [vmem:[#allocation2 + $0x74] sm:$0xff]
    %v3283 = vld [vmem:[#allocation2 + $0x7c] sm:$0xff]
    %v3284 = vld [vmem:[#allocation2 + $0xa4] sm:$0xff]
    %v3285 = vld [vmem:[#allocation2 + $0xac] sm:$0xff]
    %v3286 = vld [vmem:[#allocation2 + $0xb4] sm:$0xff]
    %v3287 = vld [vmem:[#allocation2 + $0xbc] sm:$0xff]
    %v3288 = vld [vmem:[#allocation2 + $0xc4] sm:$0xff]
    %v3289 = vld [vmem:[#allocation2 + $0xcc] sm:$0xff]
    %v3290 = vld [vmem:[#allocation2 + $0xd4] sm:$0xff]
    %v3291 = vld [vmem:[#allocation2 + $0xdc] sm:$0xff]
    %v3292 = vld [vmem:[#allocation2 + $0xe4] sm:$0xff]
    %v3293 = vld [vmem:[#allocation2 + $0xec] sm:$0xff]
    %v3294 = vld [vmem:[#allocation2 + $0xf4] sm:$0xff]
    %v3295 = vld [vmem:[#allocation2 + $0xfc] sm:$0xff]
    %v3296 = vld [vmem:[#allocation2 + $0x104] sm:$0xff]
    %v3297 = vld [vmem:[#allocation2 + $0x10c] sm:$0xff]
    %v3298 = vld [vmem:[#allocation2 + $0x114] sm:$0xff]
    %v3299 = vld [vmem:[#allocation2 + $0x11c] sm:$0xff]
    %v3300 = vld [vmem:[#allocation2 + $0x5] sm:$0xff]
    %v3301 = vld [vmem:[#allocation2 + $0xd] sm:$0xff]
    %v3302 = vld [vmem:[#allocation2 + $0x15] sm:$0xff]
    %v3303 = vld [vmem:[#allocation2 + $0x1d] sm:$0xff]
    %v3304 = vld [vmem:[#allocation2 + $0x25] sm:$0xff]
    %v3305 = vld [vmem:[#allocation2 + $0x2d] sm:$0xff]
    %v3306 = vld [vmem:[#allocation2 + $0x35] sm:$0xff]
    %v3307 = vld [vmem:[#allocation2 + $0x3d] sm:$0xff]
    %v3308 = vld [vmem:[#allocation2 + $0x45] sm:$0xff]
    %v3309 = vld [vmem:[#allocation2 + $0x4d] sm:$0xff]
    %v3310 = vld [vmem:[#allocation2 + $0x55] sm:$0xff]
    %v3311 = vld [vmem:[#allocation2 + $0x5d] sm:$0xff]
    %v3312 = vld [vmem:[#allocation2 + $0x65] sm:$0xff]
    %v3313 = vld [vmem:[#allocation2 + $0x6d] sm:$0xff]
    %v3314 = vld [vmem:[#allocation2 + $0x75] sm:$0xff]
    %v3315 = vld [vmem:[#allocation2 + $0x7d] sm:$0xff]
    %v3316 = vld [vmem:[#allocation2 + $0xa5] sm:$0xff]
    %v3317 = vld [vmem:[#allocation2 + $0xad] sm:$0xff]
    %v3318 = vld [vmem:[#allocation2 + $0xb5] sm:$0xff]
    %v3319 = vld [vmem:[#allocation2 + $0xbd] sm:$0xff]
    %v3320 = vld [vmem:[#allocation2 + $0xc5] sm:$0xff]
    %v3321 = vld [vmem:[#allocation2 + $0xcd] sm:$0xff]
    %v3322 = vld [vmem:[#allocation2 + $0xd5] sm:$0xff]
    %v3323 = vld [vmem:[#allocation2 + $0xdd] sm:$0xff]
    %v3324 = vld [vmem:[#allocation2 + $0xe5] sm:$0xff]
    %v3325 = vld [vmem:[#allocation2 + $0xed] sm:$0xff]
    %v3326 = vld [vmem:[#allocation2 + $0xf5] sm:$0xff]
    %v3327 = vld [vmem:[#allocation2 + $0xfd] sm:$0xff]
    %v3328 = vld [vmem:[#allocation2 + $0x105] sm:$0xff]
    %v3329 = vld [vmem:[#allocation2 + $0x10d] sm:$0xff]
    %v3330 = vld [vmem:[#allocation2 + $0x115] sm:$0xff]
    %v3331 = vld [vmem:[#allocation2 + $0x11d] sm:$0xff]
    %v3332 = vld [vmem:[#allocation2 + $0x6] sm:$0xff]
    %v3333 = vld [vmem:[#allocation2 + $0xe] sm:$0xff]
    %v3334 = vld [vmem:[#allocation2 + $0x16] sm:$0xff]
    %v3335 = vld [vmem:[#allocation2 + $0x1e] sm:$0xff]
    %v3336 = vld [vmem:[#allocation2 + $0x26] sm:$0xff]
    %v3337 = vld [vmem:[#allocation2 + $0x2e] sm:$0xff]
    %v3338 = vld [vmem:[#allocation2 + $0x36] sm:$0xff]
    %v3339 = vld [vmem:[#allocation2 + $0x3e] sm:$0xff]
    %v3340 = vld [vmem:[#allocation2 + $0x46] sm:$0xff]
    %v3341 = vld [vmem:[#allocation2 + $0x4e] sm:$0xff]
    %v3342 = vld [vmem:[#allocation2 + $0x56] sm:$0xff]
    %v3343 = vld [vmem:[#allocation2 + $0x5e] sm:$0xff]
    %v3344 = vld [vmem:[#allocation2 + $0x66] sm:$0xff]
    %v3345 = vld [vmem:[#allocation2 + $0x6e] sm:$0xff]
    %v3346 = vld [vmem:[#allocation2 + $0x76] sm:$0xff]
    %v3347 = vld [vmem:[#allocation2 + $0x7e] sm:$0xff]
    %v3348 = vld [vmem:[#allocation2 + $0xa6] sm:$0xff]
    %v3349 = vld [vmem:[#allocation2 + $0xae] sm:$0xff]
    %v3350 = vld [vmem:[#allocation2 + $0xb6] sm:$0xff]
    %v3351 = vld [vmem:[#allocation2 + $0xbe] sm:$0xff]
    %v3352 = vld [vmem:[#allocation2 + $0xc6] sm:$0xff]
    %v3353 = vld [vmem:[#allocation2 + $0xce] sm:$0xff]
    %v3354 = vld [vmem:[#allocation2 + $0xd6] sm:$0xff]
    %v3355 = vld [vmem:[#allocation2 + $0xde] sm:$0xff]
    %v3356 = vld [vmem:[#allocation2 + $0xe6] sm:$0xff]
    %v3357 = vld [vmem:[#allocation2 + $0xee] sm:$0xff]
    %v3358 = vld [vmem:[#allocation2 + $0xf6] sm:$0xff]
    %v3359 = vld [vmem:[#allocation2 + $0xfe] sm:$0xff]
    %v3360 = vld [vmem:[#allocation2 + $0x106] sm:$0xff]
    %v3361 = vld [vmem:[#allocation2 + $0x10e] sm:$0xff]
    %v3362 = vld [vmem:[#allocation2 + $0x116] sm:$0xff]
    %v3363 = vld [vmem:[#allocation2 + $0x11e] sm:$0xff]
    %v3364 = vld [vmem:[#allocation2 + $0xf] sm:$0xff]
    %v3365 = vld [vmem:[#allocation2 + $0x17] sm:$0xff]
    %v3366 = vld [vmem:[#allocation2 + $0x1f] sm:$0xff]
    %v3367 = vld [vmem:[#allocation2 + $0x27] sm:$0xff]
    %v3368 = vld [vmem:[#allocation2 + $0x2f] sm:$0xff]
    %v3369 = vld [vmem:[#allocation2 + $0x37] sm:$0xff]
    %v3370 = vld [vmem:[#allocation2 + $0x3f] sm:$0xff]
    %v3371 = vld [vmem:[#allocation2 + $0x47] sm:$0xff]
    %v3372 = vld [vmem:[#allocation2 + $0x4f] sm:$0xff]
    %v3373 = vld [vmem:[#allocation2 + $0x57] sm:$0xff]
    %v3374 = vld [vmem:[#allocation2 + $0x5f] sm:$0xff]
    %v3375 = vld [vmem:[#allocation2 + $0x67] sm:$0xff]
    %v3376 = vld [vmem:[#allocation2 + $0x6f] sm:$0xff]
    %v3377 = vld [vmem:[#allocation2 + $0x77] sm:$0xff]
    %v3378 = vld [vmem:[#allocation2 + $0x7f] sm:$0xff]
    %v3379 = vld [vmem:[#allocation2 + $0x87] sm:$0xff]
    %v3380 = vld [vmem:[#allocation2 + $0xaf] sm:$0xff]
    %v3381 = vld [vmem:[#allocation2 + $0xb7] sm:$0xff]
    %v3382 = vld [vmem:[#allocation2 + $0xbf] sm:$0xff]
    %v3383 = vld [vmem:[#allocation2 + $0xc7] sm:$0xff]
    %v3384 = vld [vmem:[#allocation2 + $0xcf] sm:$0xff]
    %v3385 = vld [vmem:[#allocation2 + $0xd7] sm:$0xff]
    %v3386 = vld [vmem:[#allocation2 + $0xdf] sm:$0xff]
    %v3387 = vld [vmem:[#allocation2 + $0xe7] sm:$0xff]
    %v3388 = vld [vmem:[#allocation2 + $0xef] sm:$0xff]
    %v3389 = vld [vmem:[#allocation2 + $0xf7] sm:$0xff]
    %v3390 = vld [vmem:[#allocation2 + $0xff] sm:$0xff]
    %v3391 = vld [vmem:[#allocation2 + $0x107] sm:$0xff]
    %v3392 = vld [vmem:[#allocation2 + $0x10f] sm:$0xff]
    %v3393 = vld [vmem:[#allocation2 + $0x117] sm:$0xff]
    %v3394 = vld [vmem:[#allocation2 + $0x11f] sm:$0xff]
    %v3395 = vld [vmem:[#allocation2 + $0x127] sm:$0xff]
    %v3396 = vld [vmem:[#allocation2 + $0x10] sm:$0xff]
    %v3397 = vld [vmem:[#allocation2 + $0x18] sm:$0xff]
    %v3398 = vld [vmem:[#allocation2 + $0x20] sm:$0xff]
    %v3399 = vld [vmem:[#allocation2 + $0x28] sm:$0xff]
    %v3400 = vld [vmem:[#allocation2 + $0x30] sm:$0xff]
    %v3401 = vld [vmem:[#allocation2 + $0x38] sm:$0xff]
    %v3402 = vld [vmem:[#allocation2 + $0x40] sm:$0xff]
    %v3403 = vld [vmem:[#allocation2 + $0x48] sm:$0xff]
    %v3404 = vld [vmem:[#allocation2 + $0x50] sm:$0xff]
    %v3405 = vld [vmem:[#allocation2 + $0x58] sm:$0xff]
    %v3406 = vld [vmem:[#allocation2 + $0x60] sm:$0xff]
    %v3407 = vld [vmem:[#allocation2 + $0x68] sm:$0xff]
    %v3408 = vld [vmem:[#allocation2 + $0x70] sm:$0xff]
    %v3409 = vld [vmem:[#allocation2 + $0x78] sm:$0xff]
    %v3410 = vld [vmem:[#allocation2 + $0x80] sm:$0xff]
    %v3411 = vld [vmem:[#allocation2 + $0x88] sm:$0xff]
    %v3412 = vld [vmem:[#allocation2 + $0xb0] sm:$0xff]
    %v3413 = vld [vmem:[#allocation2 + $0xb8] sm:$0xff]
    %v3414 = vld [vmem:[#allocation2 + $0xc0] sm:$0xff]
    %v3415 = vld [vmem:[#allocation2 + $0xc8] sm:$0xff]
    %v3416 = vld [vmem:[#allocation2 + $0xd0] sm:$0xff]
    %v3417 = vld [vmem:[#allocation2 + $0xd8] sm:$0xff]
    %v3418 = vld [vmem:[#allocation2 + $0xe0] sm:$0xff]
    %v3419 = vld [vmem:[#allocation2 + $0xe8] sm:$0xff]
    %v3420 = vld [vmem:[#allocation2 + $0xf0] sm:$0xff]
    %v3421 = vld [vmem:[#allocation2 + $0xf8] sm:$0xff]
    %v3422 = vld [vmem:[#allocation2 + $0x100] sm:$0xff]
    %v3423 = vld [vmem:[#allocation2 + $0x108] sm:$0xff]
    %v3424 = vld [vmem:[#allocation2 + $0x110] sm:$0xff]
    %v3425 = vld [vmem:[#allocation2 + $0x118] sm:$0xff]
    %v3426 = vld [vmem:[#allocation2 + $0x120] sm:$0xff]
    %v3427 = vld [vmem:[#allocation2 + $0x128] sm:$0xff]
    %v3428 = vld [vmem:[#allocation2 + $0x11] sm:$0xff]
    %v3429 = vld [vmem:[#allocation2 + $0x19] sm:$0xff]
    %v3430 = vld [vmem:[#allocation2 + $0x21] sm:$0xff]
    %v3431 = vld [vmem:[#allocation2 + $0x29] sm:$0xff]
    %v3432 = vld [vmem:[#allocation2 + $0x31] sm:$0xff]
    %v3433 = vld [vmem:[#allocation2 + $0x39] sm:$0xff]
    %v3434 = vld [vmem:[#allocation2 + $0x41] sm:$0xff]
    %v3435 = vld [vmem:[#allocation2 + $0x49] sm:$0xff]
    %v3436 = vld [vmem:[#allocation2 + $0x51] sm:$0xff]
    %v3437 = vld [vmem:[#allocation2 + $0x59] sm:$0xff]
    %v3438 = vld [vmem:[#allocation2 + $0x61] sm:$0xff]
    %v3439 = vld [vmem:[#allocation2 + $0x69] sm:$0xff]
    %v3440 = vld [vmem:[#allocation2 + $0x71] sm:$0xff]
    %v3441 = vld [vmem:[#allocation2 + $0x79] sm:$0xff]
    %v3442 = vld [vmem:[#allocation2 + $0x81] sm:$0xff]
    %v3443 = vld [vmem:[#allocation2 + $0x89] sm:$0xff]
    %v3444 = vld [vmem:[#allocation2 + $0xb1] sm:$0xff]
    %v3445 = vld [vmem:[#allocation2 + $0xb9] sm:$0xff]
    %v3446 = vld [vmem:[#allocation2 + $0xc1] sm:$0xff]
    %v3447 = vld [vmem:[#allocation2 + $0xc9] sm:$0xff]
    %v3448 = vld [vmem:[#allocation2 + $0xd1] sm:$0xff]
    %v3449 = vld [vmem:[#allocation2 + $0xd9] sm:$0xff]
    %v3450 = vld [vmem:[#allocation2 + $0xe1] sm:$0xff]
    %v3451 = vld [vmem:[#allocation2 + $0xe9] sm:$0xff]
    %v3452 = vld [vmem:[#allocation2 + $0xf1] sm:$0xff]
    %v3453 = vld [vmem:[#allocation2 + $0xf9] sm:$0xff]
    %v3454 = vld [vmem:[#allocation2 + $0x101] sm:$0xff]
    %v3455 = vld [vmem:[#allocation2 + $0x109] sm:$0xff]
    %v3456 = vld [vmem:[#allocation2 + $0x111] sm:$0xff]
    %v3457 = vld [vmem:[#allocation2 + $0x119] sm:$0xff]
    %v3458 = vld [vmem:[#allocation2 + $0x121] sm:$0xff]
    %v3459 = vld [vmem:[#allocation2 + $0x129] sm:$0xff]
    %v3460 = vld [vmem:[#allocation2 + $0x1a] sm:$0xff]
    %v3461 = vld [vmem:[#allocation2 + $0x22] sm:$0xff]
    %v3462 = vld [vmem:[#allocation2 + $0x2a] sm:$0xff]
    %v3463 = vld [vmem:[#allocation2 + $0x32] sm:$0xff]
    %v3464 = vld [vmem:[#allocation2 + $0x3a] sm:$0xff]
    %v3465 = vld [vmem:[#allocation2 + $0x42] sm:$0xff]
    %v3466 = vld [vmem:[#allocation2 + $0x4a] sm:$0xff]
    %v3467 = vld [vmem:[#allocation2 + $0x52] sm:$0xff]
    %v3468 = vld [vmem:[#allocation2 + $0x5a] sm:$0xff]
    %v3469 = vld [vmem:[#allocation2 + $0x62] sm:$0xff]
    %v3470 = vld [vmem:[#allocation2 + $0x6a] sm:$0xff]
    %v3471 = vld [vmem:[#allocation2 + $0x72] sm:$0xff]
    %v3472 = vld [vmem:[#allocation2 + $0x7a] sm:$0xff]
    %v3473 = vld [vmem:[#allocation2 + $0x82] sm:$0xff]
    %v3474 = vld [vmem:[#allocation2 + $0x8a] sm:$0xff]
    %v3475 = vld [vmem:[#allocation2 + $0x92] sm:$0xff]
    %v3476 = vld [vmem:[#allocation2 + $0xba] sm:$0xff]
    %v3477 = vld [vmem:[#allocation2 + $0xc2] sm:$0xff]
    %v3478 = vld [vmem:[#allocation2 + $0xca] sm:$0xff]
    %v3479 = vld [vmem:[#allocation2 + $0xd2] sm:$0xff]
    %v3480 = vld [vmem:[#allocation2 + $0xda] sm:$0xff]
    %v3481 = vld [vmem:[#allocation2 + $0xe2] sm:$0xff]
    %v3482 = vld [vmem:[#allocation2 + $0xea] sm:$0xff]
    %v3483 = vld [vmem:[#allocation2 + $0xf2] sm:$0xff]
    %v3484 = vld [vmem:[#allocation2 + $0xfa] sm:$0xff]
    %v3485 = vld [vmem:[#allocation2 + $0x102] sm:$0xff]
    %v3486 = vld [vmem:[#allocation2 + $0x10a] sm:$0xff]
    %v3487 = vld [vmem:[#allocation2 + $0x112] sm:$0xff]
    %v3488 = vld [vmem:[#allocation2 + $0x11a] sm:$0xff]
    %v3489 = vld [vmem:[#allocation2 + $0x122] sm:$0xff]
    %v3490 = vld [vmem:[#allocation2 + $0x12a] sm:$0xff]
    %v3491 = vld [vmem:[#allocation2 + $0x132] sm:$0xff]
    %v3492 = vld [vmem:[#allocation2 + $0x1b] sm:$0xff]
    %v3493 = vld [vmem:[#allocation2 + $0x23] sm:$0xff]
    %v3494 = vld [vmem:[#allocation2 + $0x2b] sm:$0xff]
    %v3495 = vld [vmem:[#allocation2 + $0x33] sm:$0xff]
    %v3496 = vld [vmem:[#allocation2 + $0x3b] sm:$0xff]
    %v3497 = vld [vmem:[#allocation2 + $0x43] sm:$0xff]
    %v3498 = vld [vmem:[#allocation2 + $0x4b] sm:$0xff]
    %v3499 = vld [vmem:[#allocation2 + $0x53] sm:$0xff]
    %v3500 = vld [vmem:[#allocation2 + $0x5b] sm:$0xff]
    %v3501 = vld [vmem:[#allocation2 + $0x63] sm:$0xff]
    %v3502 = vld [vmem:[#allocation2 + $0x6b] sm:$0xff]
    %v3503 = vld [vmem:[#allocation2 + $0x73] sm:$0xff]
    %v3504 = vld [vmem:[#allocation2 + $0x7b] sm:$0xff]
    %v3505 = vld [vmem:[#allocation2 + $0x83] sm:$0xff]
    %v3506 = vld [vmem:[#allocation2 + $0x8b] sm:$0xff]
    %v3507 = vld [vmem:[#allocation2 + $0x93] sm:$0xff]
    %v3508 = vld [vmem:[#allocation2 + $0xbb] sm:$0xff]
    %v3509 = vld [vmem:[#allocation2 + $0xc3] sm:$0xff]
    %v3510 = vld [vmem:[#allocation2 + $0xcb] sm:$0xff]
    %v3511 = vld [vmem:[#allocation2 + $0xd3] sm:$0xff]
    %v3512 = vld [vmem:[#allocation2 + $0xdb] sm:$0xff]
    %v3513 = vld [vmem:[#allocation2 + $0xe3] sm:$0xff]
    %v3514 = vld [vmem:[#allocation2 + $0xeb] sm:$0xff]
    %v3515 = vld [vmem:[#allocation2 + $0xf3] sm:$0xff]
    %v3516 = vld [vmem:[#allocation2 + $0xfb] sm:$0xff]
    %v3517 = vld [vmem:[#allocation2 + $0x103] sm:$0xff]
    %v3518 = vld [vmem:[#allocation2 + $0x10b] sm:$0xff]
    %v3519 = vld [vmem:[#allocation2 + $0x113] sm:$0xff]
    %v3520 = vld [vmem:[#allocation2 + $0x11b] sm:$0xff]
    %v3521 = vld [vmem:[#allocation2 + $0x123] sm:$0xff]
    %v3522 = vld [vmem:[#allocation2 + $0x12b] sm:$0xff]
    %v3523 = vld [vmem:[#allocation2 + $0x133] sm:$0xff]
    %v3524 = vld [vmem:[#allocation2 + $0x84] sm:$0xff]
    %v3525 = vld [vmem:[#allocation2 + $0x8c] sm:$0xff]
    %v3526 = vld [vmem:[#allocation2 + $0x94] sm:$0xff]
    %v3527 = vld [vmem:[#allocation2 + $0x124] sm:$0xff]
    %v3528 = vld [vmem:[#allocation2 + $0x12c] sm:$0xff]
    %v3529 = vld [vmem:[#allocation2 + $0x134] sm:$0xff]
    %3562 = vrot.lane.b32.xlu0 %v3300, 8
    %v3563 = vpop.permute.xlu0 %3562
    %3564 = vrot.lane.b32.xlu0 %v3301, 8
    %v3565 = vpop.permute.xlu0 %3564
    %3566 = vrot.lane.b32.xlu0 %v3302, 8
    %v3567 = vpop.permute.xlu0 %3566
    %3568 = vrot.lane.b32.xlu0 %v3303, 8
    %v3569 = vpop.permute.xlu0 %3568
    %3570 = vrot.lane.b32.xlu0 %v3304, 8
    %v3571 = vpop.permute.xlu0 %3570
    %3572 = vrot.lane.b32.xlu0 %v3305, 8
    %v3573 = vpop.permute.xlu0 %3572
    %3574 = vrot.lane.b32.xlu0 %v3306, 8
    %v3575 = vpop.permute.xlu0 %3574
    %3576 = vrot.lane.b32.xlu0 %v3307, 8
    %v3577 = vpop.permute.xlu0 %3576
    %3578 = vrot.lane.b32.xlu0 %v3308, 8
    %v3579 = vpop.permute.xlu0 %3578
    %3580 = vrot.lane.b32.xlu0 %v3309, 8
    %v3581 = vpop.permute.xlu0 %3580
    %3582 = vrot.lane.b32.xlu0 %v3310, 8
    %v3583 = vpop.permute.xlu0 %3582
    %3584 = vrot.lane.b32.xlu0 %v3311, 8
    %v3585 = vpop.permute.xlu0 %3584
    %3586 = vrot.lane.b32.xlu0 %v3312, 8
    %v3587 = vpop.permute.xlu0 %3586
    %3588 = vrot.lane.b32.xlu0 %v3313, 8
    %v3589 = vpop.permute.xlu0 %3588
    %3590 = vrot.lane.b32.xlu0 %v3314, 8
    %v3591 = vpop.permute.xlu0 %3590
    %3592 = vrot.lane.b32.xlu0 %v3315, 8
    %v3593 = vpop.permute.xlu0 %3592
    %3594 = vrot.lane.b32.xlu0 %v3316, 8
    %v3595 = vpop.permute.xlu0 %3594
    %3596 = vrot.lane.b32.xlu0 %v3317, 8
    %v3597 = vpop.permute.xlu0 %3596
    %3598 = vrot.lane.b32.xlu0 %v3318, 8
    %v3599 = vpop.permute.xlu0 %3598
    %3600 = vrot.lane.b32.xlu0 %v3319, 8
    %v3601 = vpop.permute.xlu0 %3600
    %3602 = vrot.lane.b32.xlu0 %v3320, 8
    %v3603 = vpop.permute.xlu0 %3602
    %3604 = vrot.lane.b32.xlu0 %v3321, 8
    %v3605 = vpop.permute.xlu0 %3604
    %3606 = vrot.lane.b32.xlu0 %v3322, 8
    %v3607 = vpop.permute.xlu0 %3606
    %3608 = vrot.lane.b32.xlu0 %v3323, 8
    %v3609 = vpop.permute.xlu0 %3608
    %3610 = vrot.lane.b32.xlu0 %v3324, 8
    %v3611 = vpop.permute.xlu0 %3610
    %3612 = vrot.lane.b32.xlu0 %v3325, 8
    %v3613 = vpop.permute.xlu0 %3612
    %3614 = vrot.lane.b32.xlu0 %v3326, 8
    %v3615 = vpop.permute.xlu0 %3614
    %3616 = vrot.lane.b32.xlu0 %v3327, 8
    %v3617 = vpop.permute.xlu0 %3616
    %3618 = vrot.lane.b32.xlu0 %v3328, 8
    %v3619 = vpop.permute.xlu0 %3618
    %3620 = vrot.lane.b32.xlu0 %v3329, 8
    %v3621 = vpop.permute.xlu0 %3620
    %3622 = vrot.lane.b32.xlu0 %v3330, 8
    %v3623 = vpop.permute.xlu0 %3622
    %3624 = vrot.lane.b32.xlu0 %v3331, 8
    %v3625 = vpop.permute.xlu0 %3624
    %3690 = vrot.lane.b32.xlu0 %v3332, 16
    %v3691 = vpop.permute.xlu0 %3690
    %3692 = vrot.lane.b32.xlu0 %v3333, 16
    %v3693 = vpop.permute.xlu0 %3692
    %3694 = vrot.lane.b32.xlu0 %v3334, 16
    %v3695 = vpop.permute.xlu0 %3694
    %3696 = vrot.lane.b32.xlu0 %v3335, 16
    %v3697 = vpop.permute.xlu0 %3696
    %3698 = vrot.lane.b32.xlu0 %v3336, 16
    %v3699 = vpop.permute.xlu0 %3698
    %3700 = vrot.lane.b32.xlu0 %v3337, 16
    %v3701 = vpop.permute.xlu0 %3700
    %3702 = vrot.lane.b32.xlu0 %v3338, 16
    %v3703 = vpop.permute.xlu0 %3702
    %3704 = vrot.lane.b32.xlu0 %v3339, 16
    %v3705 = vpop.permute.xlu0 %3704
    %3706 = vrot.lane.b32.xlu0 %v3340, 16
    %v3707 = vpop.permute.xlu0 %3706
    %3708 = vrot.lane.b32.xlu0 %v3341, 16
    %v3709 = vpop.permute.xlu0 %3708
    %3710 = vrot.lane.b32.xlu0 %v3342, 16
    %v3711 = vpop.permute.xlu0 %3710
    %3712 = vrot.lane.b32.xlu0 %v3343, 16
    %v3713 = vpop.permute.xlu0 %3712
    %3714 = vrot.lane.b32.xlu0 %v3344, 16
    %v3715 = vpop.permute.xlu0 %3714
    %3716 = vrot.lane.b32.xlu0 %v3345, 16
    %v3717 = vpop.permute.xlu0 %3716
    %3718 = vrot.lane.b32.xlu0 %v3346, 16
    %v3719 = vpop.permute.xlu0 %3718
    %3720 = vrot.lane.b32.xlu0 %v3347, 16
    %v3721 = vpop.permute.xlu0 %3720
    %3722 = vrot.lane.b32.xlu0 %v3348, 16
    %v3723 = vpop.permute.xlu0 %3722
    %3724 = vrot.lane.b32.xlu0 %v3349, 16
    %v3725 = vpop.permute.xlu0 %3724
    %3726 = vrot.lane.b32.xlu0 %v3350, 16
    %v3727 = vpop.permute.xlu0 %3726
    %3728 = vrot.lane.b32.xlu0 %v3351, 16
    %v3729 = vpop.permute.xlu0 %3728
    %3730 = vrot.lane.b32.xlu0 %v3352, 16
    %v3731 = vpop.permute.xlu0 %3730
    %3732 = vrot.lane.b32.xlu0 %v3353, 16
    %v3733 = vpop.permute.xlu0 %3732
    %3734 = vrot.lane.b32.xlu0 %v3354, 16
    %v3735 = vpop.permute.xlu0 %3734
    %3736 = vrot.lane.b32.xlu0 %v3355, 16
    %v3737 = vpop.permute.xlu0 %3736
    %3738 = vrot.lane.b32.xlu0 %v3356, 16
    %v3739 = vpop.permute.xlu0 %3738
    %3740 = vrot.lane.b32.xlu0 %v3357, 16
    %v3741 = vpop.permute.xlu0 %3740
    %3742 = vrot.lane.b32.xlu0 %v3358, 16
    %v3743 = vpop.permute.xlu0 %3742
    %3744 = vrot.lane.b32.xlu0 %v3359, 16
    %v3745 = vpop.permute.xlu0 %3744
    %3746 = vrot.lane.b32.xlu0 %v3360, 16
    %v3747 = vpop.permute.xlu0 %3746
    %3748 = vrot.lane.b32.xlu0 %v3361, 16
    %v3749 = vpop.permute.xlu0 %3748
    %3750 = vrot.lane.b32.xlu0 %v3362, 16
    %v3751 = vpop.permute.xlu0 %3750
    %3752 = vrot.lane.b32.xlu0 %v3363, 16
    %v3753 = vpop.permute.xlu0 %3752
    %3818 = vrot.lane.b32.xlu0 %v3364, 24
    %v3819 = vpop.permute.xlu0 %3818
    %3820 = vrot.lane.b32.xlu0 %v3365, 24
    %v3821 = vpop.permute.xlu0 %3820
    %3822 = vrot.lane.b32.xlu0 %v3366, 24
    %v3823 = vpop.permute.xlu0 %3822
    %3824 = vrot.lane.b32.xlu0 %v3367, 24
    %v3825 = vpop.permute.xlu0 %3824
    %3826 = vrot.lane.b32.xlu0 %v3368, 24
    %v3827 = vpop.permute.xlu0 %3826
    %3828 = vrot.lane.b32.xlu0 %v3369, 24
    %v3829 = vpop.permute.xlu0 %3828
    %3830 = vrot.lane.b32.xlu0 %v3370, 24
    %v3831 = vpop.permute.xlu0 %3830
    %3832 = vrot.lane.b32.xlu0 %v3371, 24
    %v3833 = vpop.permute.xlu0 %3832
    %3834 = vrot.lane.b32.xlu0 %v3372, 24
    %v3835 = vpop.permute.xlu0 %3834
    %3836 = vrot.lane.b32.xlu0 %v3373, 24
    %v3837 = vpop.permute.xlu0 %3836
    %3838 = vrot.lane.b32.xlu0 %v3374, 24
    %v3839 = vpop.permute.xlu0 %3838
    %3840 = vrot.lane.b32.xlu0 %v3375, 24
    %v3841 = vpop.permute.xlu0 %3840
    %3842 = vrot.lane.b32.xlu0 %v3376, 24
    %v3843 = vpop.permute.xlu0 %3842
    %3844 = vrot.lane.b32.xlu0 %v3377, 24
    %v3845 = vpop.permute.xlu0 %3844
    %3846 = vrot.lane.b32.xlu0 %v3378, 24
    %v3847 = vpop.permute.xlu0 %3846
    %3848 = vrot.lane.b32.xlu0 %v3379, 24
    %v3849 = vpop.permute.xlu0 %3848
    %3850 = vrot.lane.b32.xlu0 %v3380, 24
    %v3851 = vpop.permute.xlu0 %3850
    %3852 = vrot.lane.b32.xlu0 %v3381, 24
    %v3853 = vpop.permute.xlu0 %3852
    %3854 = vrot.lane.b32.xlu0 %v3382, 24
    %v3855 = vpop.permute.xlu0 %3854
    %3856 = vrot.lane.b32.xlu0 %v3383, 24
    %v3857 = vpop.permute.xlu0 %3856
    %3858 = vrot.lane.b32.xlu0 %v3384, 24
    %v3859 = vpop.permute.xlu0 %3858
    %3860 = vrot.lane.b32.xlu0 %v3385, 24
    %v3861 = vpop.permute.xlu0 %3860
    %3862 = vrot.lane.b32.xlu0 %v3386, 24
    %v3863 = vpop.permute.xlu0 %3862
    %3864 = vrot.lane.b32.xlu0 %v3387, 24
    %v3865 = vpop.permute.xlu0 %3864
    %3866 = vrot.lane.b32.xlu0 %v3388, 24
    %v3867 = vpop.permute.xlu0 %3866
    %3868 = vrot.lane.b32.xlu0 %v3389, 24
    %v3869 = vpop.permute.xlu0 %3868
    %3870 = vrot.lane.b32.xlu0 %v3390, 24
    %v3871 = vpop.permute.xlu0 %3870
    %3872 = vrot.lane.b32.xlu0 %v3391, 24
    %v3873 = vpop.permute.xlu0 %3872
    %3874 = vrot.lane.b32.xlu0 %v3392, 24
    %v3875 = vpop.permute.xlu0 %3874
    %3876 = vrot.lane.b32.xlu0 %v3393, 24
    %v3877 = vpop.permute.xlu0 %3876
    %3878 = vrot.lane.b32.xlu0 %v3394, 24
    %v3879 = vpop.permute.xlu0 %3878
    %3880 = vrot.lane.b32.xlu0 %v3395, 24
    %v3881 = vpop.permute.xlu0 %3880
    %3946 = vrot.lane.b32.xlu0 %v3396, 32
    %v3947 = vpop.permute.xlu0 %3946
    %3948 = vrot.lane.b32.xlu0 %v3397, 32
    %v3949 = vpop.permute.xlu0 %3948
    %3950 = vrot.lane.b32.xlu0 %v3398, 32
    %v3951 = vpop.permute.xlu0 %3950
    %3952 = vrot.lane.b32.xlu0 %v3399, 32
    %v3953 = vpop.permute.xlu0 %3952
    %3954 = vrot.lane.b32.xlu0 %v3400, 32
    %v3955 = vpop.permute.xlu0 %3954
    %3956 = vrot.lane.b32.xlu0 %v3401, 32
    %v3957 = vpop.permute.xlu0 %3956
    %3958 = vrot.lane.b32.xlu0 %v3402, 32
    %v3959 = vpop.permute.xlu0 %3958
    %3960 = vrot.lane.b32.xlu0 %v3403, 32
    %v3961 = vpop.permute.xlu0 %3960
    %3962 = vrot.lane.b32.xlu0 %v3404, 32
    %v3963 = vpop.permute.xlu0 %3962
    %3964 = vrot.lane.b32.xlu0 %v3405, 32
    %v3965 = vpop.permute.xlu0 %3964
    %3966 = vrot.lane.b32.xlu0 %v3406, 32
    %v3967 = vpop.permute.xlu0 %3966
    %3968 = vrot.lane.b32.xlu0 %v3407, 32
    %v3969 = vpop.permute.xlu0 %3968
    %3970 = vrot.lane.b32.xlu0 %v3408, 32
    %v3971 = vpop.permute.xlu0 %3970
    %3972 = vrot.lane.b32.xlu0 %v3409, 32
    %v3973 = vpop.permute.xlu0 %3972
    %3974 = vrot.lane.b32.xlu0 %v3410, 32
    %v3975 = vpop.permute.xlu0 %3974
    %3976 = vrot.lane.b32.xlu0 %v3411, 32
    %v3977 = vpop.permute.xlu0 %3976
    %3978 = vrot.lane.b32.xlu0 %v3412, 32
    %v3979 = vpop.permute.xlu0 %3978
    %3980 = vrot.lane.b32.xlu0 %v3413, 32
    %v3981 = vpop.permute.xlu0 %3980
    %3982 = vrot.lane.b32.xlu0 %v3414, 32
    %v3983 = vpop.permute.xlu0 %3982
    %3984 = vrot.lane.b32.xlu0 %v3415, 32
    %v3985 = vpop.permute.xlu0 %3984
    %3986 = vrot.lane.b32.xlu0 %v3416, 32
    %v3987 = vpop.permute.xlu0 %3986
    %3988 = vrot.lane.b32.xlu0 %v3417, 32
    %v3989 = vpop.permute.xlu0 %3988
    %3990 = vrot.lane.b32.xlu0 %v3418, 32
    %v3991 = vpop.permute.xlu0 %3990
    %3992 = vrot.lane.b32.xlu0 %v3419, 32
    %v3993 = vpop.permute.xlu0 %3992
    %3994 = vrot.lane.b32.xlu0 %v3420, 32
    %v3995 = vpop.permute.xlu0 %3994
    %3996 = vrot.lane.b32.xlu0 %v3421, 32
    %v3997 = vpop.permute.xlu0 %3996
    %3998 = vrot.lane.b32.xlu0 %v3422, 32
    %v3999 = vpop.permute.xlu0 %3998
    %4000 = vrot.lane.b32.xlu0 %v3423, 32
    %v4001 = vpop.permute.xlu0 %4000
    %4002 = vrot.lane.b32.xlu0 %v3424, 32
    %v4003 = vpop.permute.xlu0 %4002
    %4004 = vrot.lane.b32.xlu0 %v3425, 32
    %v4005 = vpop.permute.xlu0 %4004
    %4006 = vrot.lane.b32.xlu0 %v3426, 32
    %v4007 = vpop.permute.xlu0 %4006
    %4008 = vrot.lane.b32.xlu0 %v3427, 32
    %v4009 = vpop.permute.xlu0 %4008
    %4074 = vrot.lane.b32.xlu0 %v3428, 40
    %v4075 = vpop.permute.xlu0 %4074
    %4076 = vrot.lane.b32.xlu0 %v3429, 40
    %v4077 = vpop.permute.xlu0 %4076
    %4078 = vrot.lane.b32.xlu0 %v3430, 40
    %v4079 = vpop.permute.xlu0 %4078
    %4080 = vrot.lane.b32.xlu0 %v3431, 40
    %v4081 = vpop.permute.xlu0 %4080
    %4082 = vrot.lane.b32.xlu0 %v3432, 40
    %v4083 = vpop.permute.xlu0 %4082
    %4084 = vrot.lane.b32.xlu0 %v3433, 40
    %v4085 = vpop.permute.xlu0 %4084
    %4086 = vrot.lane.b32.xlu0 %v3434, 40
    %v4087 = vpop.permute.xlu0 %4086
    %4088 = vrot.lane.b32.xlu0 %v3435, 40
    %v4089 = vpop.permute.xlu0 %4088
    %4090 = vrot.lane.b32.xlu0 %v3436, 40
    %v4091 = vpop.permute.xlu0 %4090
    %4092 = vrot.lane.b32.xlu0 %v3437, 40
    %v4093 = vpop.permute.xlu0 %4092
    %4094 = vrot.lane.b32.xlu0 %v3438, 40
    %v4095 = vpop.permute.xlu0 %4094
    %4096 = vrot.lane.b32.xlu0 %v3439, 40
    %v4097 = vpop.permute.xlu0 %4096
    %4098 = vrot.lane.b32.xlu0 %v3440, 40
    %v4099 = vpop.permute.xlu0 %4098
    %4100 = vrot.lane.b32.xlu0 %v3441, 40
    %v4101 = vpop.permute.xlu0 %4100
    %4102 = vrot.lane.b32.xlu0 %v3442, 40
    %v4103 = vpop.permute.xlu0 %4102
    %4104 = vrot.lane.b32.xlu0 %v3443, 40
    %v4105 = vpop.permute.xlu0 %4104
    %4106 = vrot.lane.b32.xlu0 %v3444, 40
    %v4107 = vpop.permute.xlu0 %4106
    %4108 = vrot.lane.b32.xlu0 %v3445, 40
    %v4109 = vpop.permute.xlu0 %4108
    %4110 = vrot.lane.b32.xlu0 %v3446, 40
    %v4111 = vpop.permute.xlu0 %4110
    %4112 = vrot.lane.b32.xlu0 %v3447, 40
    %v4113 = vpop.permute.xlu0 %4112
    %4114 = vrot.lane.b32.xlu0 %v3448, 40
    %v4115 = vpop.permute.xlu0 %4114
    %4116 = vrot.lane.b32.xlu0 %v3449, 40
    %v4117 = vpop.permute.xlu0 %4116
    %4118 = vrot.lane.b32.xlu0 %v3450, 40
    %v4119 = vpop.permute.xlu0 %4118
    %4120 = vrot.lane.b32.xlu0 %v3451, 40
    %v4121 = vpop.permute.xlu0 %4120
    %4122 = vrot.lane.b32.xlu0 %v3452, 40
    %v4123 = vpop.permute.xlu0 %4122
    %4124 = vrot.lane.b32.xlu0 %v3453, 40
    %v4125 = vpop.permute.xlu0 %4124
    %4126 = vrot.lane.b32.xlu0 %v3454, 40
    %v4127 = vpop.permute.xlu0 %4126
    %4128 = vrot.lane.b32.xlu0 %v3455, 40
    %v4129 = vpop.permute.xlu0 %4128
    %4130 = vrot.lane.b32.xlu0 %v3456, 40
    %v4131 = vpop.permute.xlu0 %4130
    %4132 = vrot.lane.b32.xlu0 %v3457, 40
    %v4133 = vpop.permute.xlu0 %4132
    %4134 = vrot.lane.b32.xlu0 %v3458, 40
    %v4135 = vpop.permute.xlu0 %4134
    %4136 = vrot.lane.b32.xlu0 %v3459, 40
    %v4137 = vpop.permute.xlu0 %4136
    %4202 = vrot.lane.b32.xlu0 %v3460, 48
    %v4203 = vpop.permute.xlu0 %4202
    %4204 = vrot.lane.b32.xlu0 %v3461, 48
    %v4205 = vpop.permute.xlu0 %4204
    %4206 = vrot.lane.b32.xlu0 %v3462, 48
    %v4207 = vpop.permute.xlu0 %4206
    %4208 = vrot.lane.b32.xlu0 %v3463, 48
    %v4209 = vpop.permute.xlu0 %4208
    %4210 = vrot.lane.b32.xlu0 %v3464, 48
    %v4211 = vpop.permute.xlu0 %4210
    %4212 = vrot.lane.b32.xlu0 %v3465, 48
    %v4213 = vpop.permute.xlu0 %4212
    %4214 = vrot.lane.b32.xlu0 %v3466, 48
    %v4215 = vpop.permute.xlu0 %4214
    %4216 = vrot.lane.b32.xlu0 %v3467, 48
    %v4217 = vpop.permute.xlu0 %4216
    %4218 = vrot.lane.b32.xlu0 %v3468, 48
    %v4219 = vpop.permute.xlu0 %4218
    %4220 = vrot.lane.b32.xlu0 %v3469, 48
    %v4221 = vpop.permute.xlu0 %4220
    %4222 = vrot.lane.b32.xlu0 %v3470, 48
    %v4223 = vpop.permute.xlu0 %4222
    %4224 = vrot.lane.b32.xlu0 %v3471, 48
    %v4225 = vpop.permute.xlu0 %4224
    %4226 = vrot.lane.b32.xlu0 %v3472, 48
    %v4227 = vpop.permute.xlu0 %4226
    %4228 = vrot.lane.b32.xlu0 %v3473, 48
    %v4229 = vpop.permute.xlu0 %4228
    %4230 = vrot.lane.b32.xlu0 %v3474, 48
    %v4231 = vpop.permute.xlu0 %4230
    %4232 = vrot.lane.b32.xlu0 %v3475, 48
    %v4233 = vpop.permute.xlu0 %4232
    %4234 = vrot.lane.b32.xlu0 %v3476, 48
    %v4235 = vpop.permute.xlu0 %4234
    %4236 = vrot.lane.b32.xlu0 %v3477, 48
    %v4237 = vpop.permute.xlu0 %4236
    %4238 = vrot.lane.b32.xlu0 %v3478, 48
    %v4239 = vpop.permute.xlu0 %4238
    %4240 = vrot.lane.b32.xlu0 %v3479, 48
    %v4241 = vpop.permute.xlu0 %4240
    %4242 = vrot.lane.b32.xlu0 %v3480, 48
    %v4243 = vpop.permute.xlu0 %4242
    %4244 = vrot.lane.b32.xlu0 %v3481, 48
    %v4245 = vpop.permute.xlu0 %4244
    %4246 = vrot.lane.b32.xlu0 %v3482, 48
    %v4247 = vpop.permute.xlu0 %4246
    %4248 = vrot.lane.b32.xlu0 %v3483, 48
    %v4249 = vpop.permute.xlu0 %4248
    %4250 = vrot.lane.b32.xlu0 %v3484, 48
    %v4251 = vpop.permute.xlu0 %4250
    %4252 = vrot.lane.b32.xlu0 %v3485, 48
    %v4253 = vpop.permute.xlu0 %4252
    %4254 = vrot.lane.b32.xlu0 %v3486, 48
    %v4255 = vpop.permute.xlu0 %4254
    %4256 = vrot.lane.b32.xlu0 %v3487, 48
    %v4257 = vpop.permute.xlu0 %4256
    %4258 = vrot.lane.b32.xlu0 %v3488, 48
    %v4259 = vpop.permute.xlu0 %4258
    %4260 = vrot.lane.b32.xlu0 %v3489, 48
    %v4261 = vpop.permute.xlu0 %4260
    %4262 = vrot.lane.b32.xlu0 %v3490, 48
    %v4263 = vpop.permute.xlu0 %4262
    %4264 = vrot.lane.b32.xlu0 %v3491, 48
    %v4265 = vpop.permute.xlu0 %4264
    %4330 = vrot.lane.b32.xlu0 %v3492, 56
    %v4331 = vpop.permute.xlu0 %4330
    %4332 = vrot.lane.b32.xlu0 %v3493, 56
    %v4333 = vpop.permute.xlu0 %4332
    %4334 = vrot.lane.b32.xlu0 %v3494, 56
    %v4335 = vpop.permute.xlu0 %4334
    %4336 = vrot.lane.b32.xlu0 %v3495, 56
    %v4337 = vpop.permute.xlu0 %4336
    %4338 = vrot.lane.b32.xlu0 %v3496, 56
    %v4339 = vpop.permute.xlu0 %4338
    %4340 = vrot.lane.b32.xlu0 %v3497, 56
    %v4341 = vpop.permute.xlu0 %4340
    %4342 = vrot.lane.b32.xlu0 %v3498, 56
    %v4343 = vpop.permute.xlu0 %4342
    %4344 = vrot.lane.b32.xlu0 %v3499, 56
    %v4345 = vpop.permute.xlu0 %4344
    %4346 = vrot.lane.b32.xlu0 %v3500, 56
    %v4347 = vpop.permute.xlu0 %4346
    %4348 = vrot.lane.b32.xlu0 %v3501, 56
    %v4349 = vpop.permute.xlu0 %4348
    %4350 = vrot.lane.b32.xlu0 %v3502, 56
    %v4351 = vpop.permute.xlu0 %4350
    %4352 = vrot.lane.b32.xlu0 %v3503, 56
    %v4353 = vpop.permute.xlu0 %4352
    %4354 = vrot.lane.b32.xlu0 %v3504, 56
    %v4355 = vpop.permute.xlu0 %4354
    %4356 = vrot.lane.b32.xlu0 %v3505, 56
    %v4357 = vpop.permute.xlu0 %4356
    %4358 = vrot.lane.b32.xlu0 %v3506, 56
    %v4359 = vpop.permute.xlu0 %4358
    %4360 = vrot.lane.b32.xlu0 %v3507, 56
    %v4361 = vpop.permute.xlu0 %4360
    %4362 = vrot.lane.b32.xlu0 %v3508, 56
    %v4363 = vpop.permute.xlu0 %4362
    %4364 = vrot.lane.b32.xlu0 %v3509, 56
    %v4365 = vpop.permute.xlu0 %4364
    %4366 = vrot.lane.b32.xlu0 %v3510, 56
    %v4367 = vpop.permute.xlu0 %4366
    %4368 = vrot.lane.b32.xlu0 %v3511, 56
    %v4369 = vpop.permute.xlu0 %4368
    %4370 = vrot.lane.b32.xlu0 %v3512, 56
    %v4371 = vpop.permute.xlu0 %4370
    %4372 = vrot.lane.b32.xlu0 %v3513, 56
    %v4373 = vpop.permute.xlu0 %4372
    %4374 = vrot.lane.b32.xlu0 %v3514, 56
    %v4375 = vpop.permute.xlu0 %4374
    %4376 = vrot.lane.b32.xlu0 %v3515, 56
    %v4377 = vpop.permute.xlu0 %4376
    %4378 = vrot.lane.b32.xlu0 %v3516, 56
    %v4379 = vpop.permute.xlu0 %4378
    %4380 = vrot.lane.b32.xlu0 %v3517, 56
    %v4381 = vpop.permute.xlu0 %4380
    %4382 = vrot.lane.b32.xlu0 %v3518, 56
    %v4383 = vpop.permute.xlu0 %4382
    %4384 = vrot.lane.b32.xlu0 %v3519, 56
    %v4385 = vpop.permute.xlu0 %4384
    %4386 = vrot.lane.b32.xlu0 %v3520, 56
    %v4387 = vpop.permute.xlu0 %4386
    %4388 = vrot.lane.b32.xlu0 %v3521, 56
    %v4389 = vpop.permute.xlu0 %4388
    %4390 = vrot.lane.b32.xlu0 %v3522, 56
    %v4391 = vpop.permute.xlu0 %4390
    %4392 = vrot.lane.b32.xlu0 %v3523, 56
    %v4393 = vpop.permute.xlu0 %4392
    %4458 = vrot.lane.b32.xlu0 %v3271, 64
    %v4459 = vpop.permute.xlu0 %4458
    %4460 = vrot.lane.b32.xlu0 %v3272, 64
    %v4461 = vpop.permute.xlu0 %4460
    %4462 = vrot.lane.b32.xlu0 %v3273, 64
    %v4463 = vpop.permute.xlu0 %4462
    %4464 = vrot.lane.b32.xlu0 %v3274, 64
    %v4465 = vpop.permute.xlu0 %4464
    %4466 = vrot.lane.b32.xlu0 %v3275, 64
    %v4467 = vpop.permute.xlu0 %4466
    %4468 = vrot.lane.b32.xlu0 %v3276, 64
    %v4469 = vpop.permute.xlu0 %4468
    %4470 = vrot.lane.b32.xlu0 %v3277, 64
    %v4471 = vpop.permute.xlu0 %4470
    %4472 = vrot.lane.b32.xlu0 %v3278, 64
    %v4473 = vpop.permute.xlu0 %4472
    %4474 = vrot.lane.b32.xlu0 %v3279, 64
    %v4475 = vpop.permute.xlu0 %4474
    %4476 = vrot.lane.b32.xlu0 %v3280, 64
    %v4477 = vpop.permute.xlu0 %4476
    %4478 = vrot.lane.b32.xlu0 %v3281, 64
    %v4479 = vpop.permute.xlu0 %4478
    %4480 = vrot.lane.b32.xlu0 %v3282, 64
    %v4481 = vpop.permute.xlu0 %4480
    %4482 = vrot.lane.b32.xlu0 %v3283, 64
    %v4483 = vpop.permute.xlu0 %4482
    %4484 = vrot.lane.b32.xlu0 %v3524, 64
    %v4485 = vpop.permute.xlu0 %4484
    %4486 = vrot.lane.b32.xlu0 %v3525, 64
    %v4487 = vpop.permute.xlu0 %4486
    %4488 = vrot.lane.b32.xlu0 %v3526, 64
    %v4489 = vpop.permute.xlu0 %4488
    %4490 = vrot.lane.b32.xlu0 %v3287, 64
    %v4491 = vpop.permute.xlu0 %4490
    %4492 = vrot.lane.b32.xlu0 %v3288, 64
    %v4493 = vpop.permute.xlu0 %4492
    %4494 = vrot.lane.b32.xlu0 %v3289, 64
    %v4495 = vpop.permute.xlu0 %4494
    %4496 = vrot.lane.b32.xlu0 %v3290, 64
    %v4497 = vpop.permute.xlu0 %4496
    %4498 = vrot.lane.b32.xlu0 %v3291, 64
    %v4499 = vpop.permute.xlu0 %4498
    %4500 = vrot.lane.b32.xlu0 %v3292, 64
    %v4501 = vpop.permute.xlu0 %4500
    %4502 = vrot.lane.b32.xlu0 %v3293, 64
    %v4503 = vpop.permute.xlu0 %4502
    %4504 = vrot.lane.b32.xlu0 %v3294, 64
    %v4505 = vpop.permute.xlu0 %4504
    %4506 = vrot.lane.b32.xlu0 %v3295, 64
    %v4507 = vpop.permute.xlu0 %4506
    %4508 = vrot.lane.b32.xlu0 %v3296, 64
    %v4509 = vpop.permute.xlu0 %4508
    %4510 = vrot.lane.b32.xlu0 %v3297, 64
    %v4511 = vpop.permute.xlu0 %4510
    %4512 = vrot.lane.b32.xlu0 %v3298, 64
    %v4513 = vpop.permute.xlu0 %4512
    %4514 = vrot.lane.b32.xlu0 %v3299, 64
    %v4515 = vpop.permute.xlu0 %4514
    %4516 = vrot.lane.b32.xlu0 %v3527, 64
    %v4517 = vpop.permute.xlu0 %4516
    %4518 = vrot.lane.b32.xlu0 %v3528, 64
    %v4519 = vpop.permute.xlu0 %4518
    %4520 = vrot.lane.b32.xlu0 %v3529, 64
    %v4521 = vpop.permute.xlu0 %4520
    %v4554 = vsel %vm558, %v3268, %v3563
    %v4555 = vsel %vm558, %v3269, %v3565
    %v4556 = vsel %vm558, %v3270, %v3567
    %v4557 = vsel %vm558, %v3271, %v3569
    %v4558 = vsel %vm558, %v3272, %v3571
    %v4559 = vsel %vm558, %v3273, %v3573
    %v4560 = vsel %vm558, %v3274, %v3575
    %v4561 = vsel %vm558, %v3275, %v3577
    %v4562 = vsel %vm558, %v3276, %v3579
    %v4563 = vsel %vm558, %v3277, %v3581
    %v4564 = vsel %vm558, %v3278, %v3583
    %v4565 = vsel %vm558, %v3279, %v3585
    %v4566 = vsel %vm558, %v3280, %v3587
    %v4567 = vsel %vm558, %v3281, %v3589
    %v4568 = vsel %vm558, %v3282, %v3591
    %v4569 = vsel %vm558, %v3283, %v3593
    %v4570 = vsel %vm558, %v3284, %v3595
    %v4571 = vsel %vm558, %v3285, %v3597
    %v4572 = vsel %vm558, %v3286, %v3599
    %v4573 = vsel %vm558, %v3287, %v3601
    %v4574 = vsel %vm558, %v3288, %v3603
    %v4575 = vsel %vm558, %v3289, %v3605
    %v4576 = vsel %vm558, %v3290, %v3607
    %v4577 = vsel %vm558, %v3291, %v3609
    %v4578 = vsel %vm558, %v3292, %v3611
    %v4579 = vsel %vm558, %v3293, %v3613
    %v4580 = vsel %vm558, %v3294, %v3615
    %v4581 = vsel %vm558, %v3295, %v3617
    %v4582 = vsel %vm558, %v3296, %v3619
    %v4583 = vsel %vm558, %v3297, %v3621
    %v4584 = vsel %vm558, %v3298, %v3623
    %v4585 = vsel %vm558, %v3299, %v3625
    %v4586 = vsel %vm1894, %v4554, %v3691
    %v4587 = vsel %vm1894, %v4555, %v3693
    %v4588 = vsel %vm1894, %v4556, %v3695
    %v4589 = vsel %vm1894, %v4557, %v3697
    %v4590 = vsel %vm1894, %v4558, %v3699
    %v4591 = vsel %vm1894, %v4559, %v3701
    %v4592 = vsel %vm1894, %v4560, %v3703
    %v4593 = vsel %vm1894, %v4561, %v3705
    %v4594 = vsel %vm1894, %v4562, %v3707
    %v4595 = vsel %vm1894, %v4563, %v3709
    %v4596 = vsel %vm1894, %v4564, %v3711
    %v4597 = vsel %vm1894, %v4565, %v3713
    %v4598 = vsel %vm1894, %v4566, %v3715
    %v4599 = vsel %vm1894, %v4567, %v3717
    %v4600 = vsel %vm1894, %v4568, %v3719
    %v4601 = vsel %vm1894, %v4569, %v3721
    %v4602 = vsel %vm1894, %v4570, %v3723
    %v4603 = vsel %vm1894, %v4571, %v3725
    %v4604 = vsel %vm1894, %v4572, %v3727
    %v4605 = vsel %vm1894, %v4573, %v3729
    %v4606 = vsel %vm1894, %v4574, %v3731
    %v4607 = vsel %vm1894, %v4575, %v3733
    %v4608 = vsel %vm1894, %v4576, %v3735
    %v4609 = vsel %vm1894, %v4577, %v3737
    %v4610 = vsel %vm1894, %v4578, %v3739
    %v4611 = vsel %vm1894, %v4579, %v3741
    %v4612 = vsel %vm1894, %v4580, %v3743
    %v4613 = vsel %vm1894, %v4581, %v3745
    %v4614 = vsel %vm1894, %v4582, %v3747
    %v4615 = vsel %vm1894, %v4583, %v3749
    %v4616 = vsel %vm1894, %v4584, %v3751
    %v4617 = vsel %vm1894, %v4585, %v3753
    %v4618 = vsel %vm1927, %v4586, %v3819
    %v4619 = vsel %vm1927, %v4587, %v3821
    %v4620 = vsel %vm1927, %v4588, %v3823
    %v4621 = vsel %vm1927, %v4589, %v3825
    %v4622 = vsel %vm1927, %v4590, %v3827
    %v4623 = vsel %vm1927, %v4591, %v3829
    %v4624 = vsel %vm1927, %v4592, %v3831
    %v4625 = vsel %vm1927, %v4593, %v3833
    %v4626 = vsel %vm1927, %v4594, %v3835
    %v4627 = vsel %vm1927, %v4595, %v3837
    %v4628 = vsel %vm1927, %v4596, %v3839
    %v4629 = vsel %vm1927, %v4597, %v3841
    %v4630 = vsel %vm1927, %v4598, %v3843
    %v4631 = vsel %vm1927, %v4599, %v3845
    %v4632 = vsel %vm1927, %v4600, %v3847
    %v4633 = vsel %vm1927, %v4601, %v3849
    %v4634 = vsel %vm1927, %v4602, %v3851
    %v4635 = vsel %vm1927, %v4603, %v3853
    %v4636 = vsel %vm1927, %v4604, %v3855
    %v4637 = vsel %vm1927, %v4605, %v3857
    %v4638 = vsel %vm1927, %v4606, %v3859
    %v4639 = vsel %vm1927, %v4607, %v3861
    %v4640 = vsel %vm1927, %v4608, %v3863
    %v4641 = vsel %vm1927, %v4609, %v3865
    %v4642 = vsel %vm1927, %v4610, %v3867
    %v4643 = vsel %vm1927, %v4611, %v3869
    %v4644 = vsel %vm1927, %v4612, %v3871
    %v4645 = vsel %vm1927, %v4613, %v3873
    %v4646 = vsel %vm1927, %v4614, %v3875
    %v4647 = vsel %vm1927, %v4615, %v3877
    %v4648 = vsel %vm1927, %v4616, %v3879
    %v4649 = vsel %vm1927, %v4617, %v3881
    %v4650 = vsel %vm1960, %v4618, %v3947
    %v4651 = vsel %vm1960, %v4619, %v3949
    %v4652 = vsel %vm1960, %v4620, %v3951
    %v4653 = vsel %vm1960, %v4621, %v3953
    %v4654 = vsel %vm1960, %v4622, %v3955
    %v4655 = vsel %vm1960, %v4623, %v3957
    %v4656 = vsel %vm1960, %v4624, %v3959
    %v4657 = vsel %vm1960, %v4625, %v3961
    %v4658 = vsel %vm1960, %v4626, %v3963
    %v4659 = vsel %vm1960, %v4627, %v3965
    %v4660 = vsel %vm1960, %v4628, %v3967
    %v4661 = vsel %vm1960, %v4629, %v3969
    %v4662 = vsel %vm1960, %v4630, %v3971
    %v4663 = vsel %vm1960, %v4631, %v3973
    %v4664 = vsel %vm1960, %v4632, %v3975
    %v4665 = vsel %vm1960, %v4633, %v3977
    %v4666 = vsel %vm1960, %v4634, %v3979
    %v4667 = vsel %vm1960, %v4635, %v3981
    %v4668 = vsel %vm1960, %v4636, %v3983
    %v4669 = vsel %vm1960, %v4637, %v3985
    %v4670 = vsel %vm1960, %v4638, %v3987
    %v4671 = vsel %vm1960, %v4639, %v3989
    %v4672 = vsel %vm1960, %v4640, %v3991
    %v4673 = vsel %vm1960, %v4641, %v3993
    %v4674 = vsel %vm1960, %v4642, %v3995
    %v4675 = vsel %vm1960, %v4643, %v3997
    %v4676 = vsel %vm1960, %v4644, %v3999
    %v4677 = vsel %vm1960, %v4645, %v4001
    %v4678 = vsel %vm1960, %v4646, %v4003
    %v4679 = vsel %vm1960, %v4647, %v4005
    %v4680 = vsel %vm1960, %v4648, %v4007
    %v4681 = vsel %vm1960, %v4649, %v4009
    %v4682 = vsel %vm1993, %v4650, %v4075
    %v4683 = vsel %vm1993, %v4651, %v4077
    %v4684 = vsel %vm1993, %v4652, %v4079
    %v4685 = vsel %vm1993, %v4653, %v4081
    %v4686 = vsel %vm1993, %v4654, %v4083
    %v4687 = vsel %vm1993, %v4655, %v4085
    %v4688 = vsel %vm1993, %v4656, %v4087
    %v4689 = vsel %vm1993, %v4657, %v4089
    %v4690 = vsel %vm1993, %v4658, %v4091
    %v4691 = vsel %vm1993, %v4659, %v4093
    %v4692 = vsel %vm1993, %v4660, %v4095
    %v4693 = vsel %vm1993, %v4661, %v4097
    %v4694 = vsel %vm1993, %v4662, %v4099
    %v4695 = vsel %vm1993, %v4663, %v4101
    %v4696 = vsel %vm1993, %v4664, %v4103
    %v4697 = vsel %vm1993, %v4665, %v4105
    %v4698 = vsel %vm1993, %v4666, %v4107
    %v4699 = vsel %vm1993, %v4667, %v4109
    %v4700 = vsel %vm1993, %v4668, %v4111
    %v4701 = vsel %vm1993, %v4669, %v4113
    %v4702 = vsel %vm1993, %v4670, %v4115
    %v4703 = vsel %vm1993, %v4671, %v4117
    %v4704 = vsel %vm1993, %v4672, %v4119
    %v4705 = vsel %vm1993, %v4673, %v4121
    %v4706 = vsel %vm1993, %v4674, %v4123
    %v4707 = vsel %vm1993, %v4675, %v4125
    %v4708 = vsel %vm1993, %v4676, %v4127
    %v4709 = vsel %vm1993, %v4677, %v4129
    %v4710 = vsel %vm1993, %v4678, %v4131
    %v4711 = vsel %vm1993, %v4679, %v4133
    %v4712 = vsel %vm1993, %v4680, %v4135
    %v4713 = vsel %vm1993, %v4681, %v4137
    %v4714 = vsel %vm2026, %v4682, %v4203
    %v4715 = vsel %vm2026, %v4683, %v4205
    %v4716 = vsel %vm2026, %v4684, %v4207
    %v4717 = vsel %vm2026, %v4685, %v4209
    %v4718 = vsel %vm2026, %v4686, %v4211
    %v4719 = vsel %vm2026, %v4687, %v4213
    %v4720 = vsel %vm2026, %v4688, %v4215
    %v4721 = vsel %vm2026, %v4689, %v4217
    %v4722 = vsel %vm2026, %v4690, %v4219
    %v4723 = vsel %vm2026, %v4691, %v4221
    %v4724 = vsel %vm2026, %v4692, %v4223
    %v4725 = vsel %vm2026, %v4693, %v4225
    %v4726 = vsel %vm2026, %v4694, %v4227
    %v4727 = vsel %vm2026, %v4695, %v4229
    %v4728 = vsel %vm2026, %v4696, %v4231
    %v4729 = vsel %vm2026, %v4697, %v4233
    %v4730 = vsel %vm2026, %v4698, %v4235
    %v4731 = vsel %vm2026, %v4699, %v4237
    %v4732 = vsel %vm2026, %v4700, %v4239
    %v4733 = vsel %vm2026, %v4701, %v4241
    %v4734 = vsel %vm2026, %v4702, %v4243
    %v4735 = vsel %vm2026, %v4703, %v4245
    %v4736 = vsel %vm2026, %v4704, %v4247
    %v4737 = vsel %vm2026, %v4705, %v4249
    %v4738 = vsel %vm2026, %v4706, %v4251
    %v4739 = vsel %vm2026, %v4707, %v4253
    %v4740 = vsel %vm2026, %v4708, %v4255
    %v4741 = vsel %vm2026, %v4709, %v4257
    %v4742 = vsel %vm2026, %v4710, %v4259
    %v4743 = vsel %vm2026, %v4711, %v4261
    %v4744 = vsel %vm2026, %v4712, %v4263
    %v4745 = vsel %vm2026, %v4713, %v4265
    %v4746 = vsel %vm2059, %v4714, %v4331
    %v4747 = vsel %vm2059, %v4715, %v4333
    %v4748 = vsel %vm2059, %v4716, %v4335
    %v4749 = vsel %vm2059, %v4717, %v4337
    %v4750 = vsel %vm2059, %v4718, %v4339
    %v4751 = vsel %vm2059, %v4719, %v4341
    %v4752 = vsel %vm2059, %v4720, %v4343
    %v4753 = vsel %vm2059, %v4721, %v4345
    %v4754 = vsel %vm2059, %v4722, %v4347
    %v4755 = vsel %vm2059, %v4723, %v4349
    %v4756 = vsel %vm2059, %v4724, %v4351
    %v4757 = vsel %vm2059, %v4725, %v4353
    %v4758 = vsel %vm2059, %v4726, %v4355
    %v4759 = vsel %vm2059, %v4727, %v4357
    %v4760 = vsel %vm2059, %v4728, %v4359
    %v4761 = vsel %vm2059, %v4729, %v4361
    %v4762 = vsel %vm2059, %v4730, %v4363
    %v4763 = vsel %vm2059, %v4731, %v4365
    %v4764 = vsel %vm2059, %v4732, %v4367
    %v4765 = vsel %vm2059, %v4733, %v4369
    %v4766 = vsel %vm2059, %v4734, %v4371
    %v4767 = vsel %vm2059, %v4735, %v4373
    %v4768 = vsel %vm2059, %v4736, %v4375
    %v4769 = vsel %vm2059, %v4737, %v4377
    %v4770 = vsel %vm2059, %v4738, %v4379
    %v4771 = vsel %vm2059, %v4739, %v4381
    %v4772 = vsel %vm2059, %v4740, %v4383
    %v4773 = vsel %vm2059, %v4741, %v4385
    %v4774 = vsel %vm2059, %v4742, %v4387
    %v4775 = vsel %vm2059, %v4743, %v4389
    %v4776 = vsel %vm2059, %v4744, %v4391
    %v4777 = vsel %vm2059, %v4745, %v4393
    %v4778 = vsel %vm2092, %v4746, %v4459
    %v4779 = vsel %vm2092, %v4747, %v4461
    %v4780 = vsel %vm2092, %v4748, %v4463
    %v4781 = vsel %vm2092, %v4749, %v4465
    %v4782 = vsel %vm2092, %v4750, %v4467
    %v4783 = vsel %vm2092, %v4751, %v4469
    %v4784 = vsel %vm2092, %v4752, %v4471
    %v4785 = vsel %vm2092, %v4753, %v4473
    %v4786 = vsel %vm2092, %v4754, %v4475
    %v4787 = vsel %vm2092, %v4755, %v4477
    %v4788 = vsel %vm2092, %v4756, %v4479
    %v4789 = vsel %vm2092, %v4757, %v4481
    %v4790 = vsel %vm2092, %v4758, %v4483
    %v4791 = vsel %vm2092, %v4759, %v4485
    %v4792 = vsel %vm2092, %v4760, %v4487
    %v4793 = vsel %vm2092, %v4761, %v4489
    %v4794 = vsel %vm2092, %v4762, %v4491
    %v4795 = vsel %vm2092, %v4763, %v4493
    %v4796 = vsel %vm2092, %v4764, %v4495
    %v4797 = vsel %vm2092, %v4765, %v4497
    %v4798 = vsel %vm2092, %v4766, %v4499
    %v4799 = vsel %vm2092, %v4767, %v4501
    %v4800 = vsel %vm2092, %v4768, %v4503
    %v4801 = vsel %vm2092, %v4769, %v4505
    %v4802 = vsel %vm2092, %v4770, %v4507
    %v4803 = vsel %vm2092, %v4771, %v4509
    %v4804 = vsel %vm2092, %v4772, %v4511
    %v4805 = vsel %vm2092, %v4773, %v4513
    %v4806 = vsel %vm2092, %v4774, %v4515
    %v4807 = vsel %vm2092, %v4775, %v4517
    %v4808 = vsel %vm2092, %v4776, %v4519
    %v4809 = vsel %vm2092, %v4777, %v4521
    %v4810 = vpack.c.bf16 %v4779, %v4778
    %v4811 = vpack.c.bf16 %v4781, %v4780
    %v4812 = vpack.c.bf16 %v4783, %v4782
    %v4813 = vpack.c.bf16 %v4785, %v4784
    %v4814 = vpack.c.bf16 %v4787, %v4786
    %v4815 = vpack.c.bf16 %v4789, %v4788
    %v4816 = vpack.c.bf16 %v4791, %v4790
    %v4817 = vpack.c.bf16 %v4793, %v4792
    %v4818 = vpack.c.bf16 %v4795, %v4794
    %v4819 = vpack.c.bf16 %v4797, %v4796
    %v4820 = vpack.c.bf16 %v4799, %v4798
    %v4821 = vpack.c.bf16 %v4801, %v4800
    %v4822 = vpack.c.bf16 %v4803, %v4802
    %v4823 = vpack.c.bf16 %v4805, %v4804
    %v4824 = vpack.c.bf16 %v4807, %v4806
    %v4825 = vpack.c.bf16 %v4809, %v4808
    %v4835 = vunpack.c.l.b16 %v3259
    %v4836 = vunpack.c.l.b16 %v3260
    %v4837 = vunpack.c.l.b16 %v3261
    %v4838 = vunpack.c.l.b16 %v3262
    %v4839 = vunpack.c.l.b16 %v3263
    %v4840 = vunpack.c.l.b16 %v3264
    %v4841 = vunpack.c.l.b16 %v3265
    %v4842 = vunpack.c.l.b16 %v3266
    %v4843 = vunpack.c.l.b16 %v3267
    %v4844 = vpack.c.b16 %v4836, %v4835
    %v4845 = vpack.c.b16 %v4838, %v4837
    %v4846 = vpack.c.b16 %v4840, %v4839
    %v4847 = vpack.c.b16 %v4842, %v4841
    %v4848 = vpack.c.b16 %v4843, %v4843
    %v4854 = vsel %vm2168, %v4810, 0
    %v4857 = vsel %vm2168, %v4811, 0
    %v4860 = vsel %vm2168, %v4812, 0
    %v4863 = vsel %vm2168, %v4813, 0
    %v4866 = vsel %vm2168, %v4814, 0
    %v4869 = vsel %vm2168, %v4815, 0
    %v4872 = vsel %vm2168, %v4816, 0
    %v4875 = vsel %vm2168, %v4817, 0
    %v4878 = vsel %vm2168, %v4818, 0
    %v4881 = vsel %vm2168, %v4819, 0
    %v4884 = vsel %vm2168, %v4820, 0
    %v4887 = vsel %vm2168, %v4821, 0
    %v4890 = vsel %vm2168, %v4822, 0
    %v4893 = vsel %vm2168, %v4823, 0
    %v4896 = vsel %vm2168, %v4824, 0
    %v4899 = vsel %vm2168, %v4825, 0
    %v4902 = vsel %vm2217, %v4848, 0
    %4904 = vmatprep.subr.bf16.mxu0 0
    %4905 = vmatpush1.bf16.msra.mxu0 %v4844
    %4906 = vmatprep.subr.bf16.mxu0 0
    %4907 = vmatpush1.bf16.msra.mxu0 %v4845
    %4908 = vmatprep.subr.bf16.mxu0 0
    %4909 = vmatpush1.bf16.msra.mxu0 %v4846
    %4910 = vmatprep.subr.bf16.mxu0 0
    %4911 = vmatpush1.bf16.msra.mxu0 %v4847
    %4912 = vmatprep.subr.bf16.mxu0 0
    %4913 = vmatpush1.bf16.msra.mxu0 %v4902
    %4914 = vmatprep.subr.bf16.mxu0 0
    %4915 = vmatpush1.bf16.msra.mxu0 0
    %4916 = vmatprep.subr.bf16.mxu0 0
    %4917 = vmatpush1.bf16.msra.mxu0 0
    %4918 = vmatprep.subr.bf16.mxu0 0
    %4919 = vmatpush1.bf16.msra.mxu0 0
    %4920 = vmatprep.subr.bf16.mxu0 0
    %4921 = vmatpush1.bf16.msra.mxu0 0
    %4922 = vmatprep.subr.bf16.mxu0 0
    %4923 = vmatpush1.bf16.msra.mxu0 0
    %4924 = vmatprep.subr.bf16.mxu0 0
    %4925 = vmatpush1.bf16.msra.mxu0 0
    %4926 = vmatprep.subr.bf16.mxu0 0
    %4927 = vmatpush1.bf16.msra.mxu0 0
    %4928 = vmatprep.subr.bf16.mxu0 0
    %4929 = vmatpush1.bf16.msra.mxu0 0
    %4930 = vmatprep.subr.bf16.mxu0 0
    %4931 = vmatpush1.bf16.msra.mxu0 0
    %4932 = vmatprep.subr.bf16.mxu0 0
    %4933 = vmatpush1.bf16.msra.mxu0 0
    %4934 = vmatprep.subr.bf16.mxu0 0
    %4935 = vmatpush1.bf16.msra.mxu0 0
    %4936 = vmatprep.mubr.bf16.mxu0 0
    %4937 = vmatmul.mubr.bf16.gmra.mrb[0].mxu0 %v4854
    %v4938 = vpop.f32.mrb[0].mxu0
    %v4939 = vadd.f32 0.0, %v4938
    %v4940 = vpop.f32.mrb[0].mxu0
    %v4941 = vpop.f32.mrb[0].mxu0
    %v4942 = vadd.f32 0.0, %v4941
    %v4943 = vpop.f32.mrb[0].mxu0
    %4944 = vmatprep.mubr.bf16.mxu0 0
    %4945 = vmatmul.mubr.bf16.gmra.mrb[0].mxu0 %v4857
    %v4946 = vpop.f32.mrb[0].mxu0
    %v4947 = vadd.f32 0.0, %v4946
    %v4948 = vpop.f32.mrb[0].mxu0
    %v4949 = vpop.f32.mrb[0].mxu0
    %v4950 = vadd.f32 0.0, %v4949
    %v4951 = vpop.f32.mrb[0].mxu0
    %4952 = vmatprep.mubr.bf16.mxu0 0
    %4953 = vmatmul.mubr.bf16.gmra.mrb[0].mxu0 %v4860
    %v4954 = vpop.f32.mrb[0].mxu0
    %v4955 = vadd.f32 0.0, %v4954
    %v4956 = vpop.f32.mrb[0].mxu0
    %v4957 = vpop.f32.mrb[0].mxu0
    %v4958 = vadd.f32 0.0, %v4957
    %v4959 = vpop.f32.mrb[0].mxu0
    %4960 = vmatprep.mubr.bf16.mxu0 0
    %4961 = vmatmul.mubr.bf16.gmra.mrb[0].mxu0 %v4863
    %v4962 = vpop.f32.mrb[0].mxu0
    %v4963 = vadd.f32 0.0, %v4962
    %v4964 = vpop.f32.mrb[0].mxu0
    %v4965 = vpop.f32.mrb[0].mxu0
    %v4966 = vadd.f32 0.0, %v4965
    %v4967 = vpop.f32.mrb[0].mxu0
    %4968 = vmatprep.mubr.bf16.mxu0 0
    %4969 = vmatmul.mubr.bf16.gmra.mrb[0].mxu0 %v4866
    %v4970 = vpop.f32.mrb[0].mxu0
    %v4971 = vadd.f32 0.0, %v4970
    %v4972 = vpop.f32.mrb[0].mxu0
    %v4973 = vpop.f32.mrb[0].mxu0
    %v4974 = vadd.f32 0.0, %v4973
    %v4975 = vpop.f32.mrb[0].mxu0
    %4976 = vmatprep.mubr.bf16.mxu0 0
    %4977 = vmatmul.mubr.bf16.gmra.mrb[0].mxu0 %v4869
    %v4978 = vpop.f32.mrb[0].mxu0
    %v4979 = vadd.f32 0.0, %v4978
    %v4980 = vpop.f32.mrb[0].mxu0
    %v4981 = vpop.f32.mrb[0].mxu0
    %v4982 = vadd.f32 0.0, %v4981
    %v4983 = vpop.f32.mrb[0].mxu0
    %4984 = vmatprep.mubr.bf16.mxu0 0
    %4985 = vmatmul.mubr.bf16.gmra.mrb[0].mxu0 %v4872
    %v4986 = vpop.f32.mrb[0].mxu0
    %v4987 = vadd.f32 0.0, %v4986
    %v4988 = vpop.f32.mrb[0].mxu0
    %v4989 = vpop.f32.mrb[0].mxu0
    %v4990 = vadd.f32 0.0, %v4989
    %v4991 = vpop.f32.mrb[0].mxu0
    %4992 = vmatprep.mubr.bf16.mxu0 0
    %4993 = vmatmul.mubr.bf16.gmra.mrb[0].mxu0 %v4875
    %v4994 = vpop.f32.mrb[0].mxu0
    %v4995 = vadd.f32 0.0, %v4994
    %v4996 = vpop.f32.mrb[0].mxu0
    %v4997 = vpop.f32.mrb[0].mxu0
    %v4998 = vadd.f32 0.0, %v4997
    %v4999 = vpop.f32.mrb[0].mxu0
    %5000 = vmatprep.mubr.bf16.mxu0 0
    %5001 = vmatmul.mubr.bf16.gmra.mrb[0].mxu0 %v4878
    %v5002 = vpop.f32.mrb[0].mxu0
    %v5003 = vadd.f32 0.0, %v5002
    %v5004 = vpop.f32.mrb[0].mxu0
    %v5005 = vpop.f32.mrb[0].mxu0
    %v5006 = vadd.f32 0.0, %v5005
    %v5007 = vpop.f32.mrb[0].mxu0
    %5008 = vmatprep.mubr.bf16.mxu0 0
    %5009 = vmatmul.mubr.bf16.gmra.mrb[0].mxu0 %v4881
    %v5010 = vpop.f32.mrb[0].mxu0
    %v5011 = vadd.f32 0.0, %v5010
    %v5012 = vpop.f32.mrb[0].mxu0
    %v5013 = vpop.f32.mrb[0].mxu0
    %v5014 = vadd.f32 0.0, %v5013
    %v5015 = vpop.f32.mrb[0].mxu0
    %5016 = vmatprep.mubr.bf16.mxu0 0
    %5017 = vmatmul.mubr.bf16.gmra.mrb[0].mxu0 %v4884
    %v5018 = vpop.f32.mrb[0].mxu0
    %v5019 = vadd.f32 0.0, %v5018
    %v5020 = vpop.f32.mrb[0].mxu0
    %v5021 = vpop.f32.mrb[0].mxu0
    %v5022 = vadd.f32 0.0, %v5021
    %v5023 = vpop.f32.mrb[0].mxu0
    %5024 = vmatprep.mubr.bf16.mxu0 0
    %5025 = vmatmul.mubr.bf16.gmra.mrb[0].mxu0 %v4887
    %v5026 = vpop.f32.mrb[0].mxu0
    %v5027 = vadd.f32 0.0, %v5026
    %v5028 = vpop.f32.mrb[0].mxu0
    %v5029 = vpop.f32.mrb[0].mxu0
    %v5030 = vadd.f32 0.0, %v5029
    %v5031 = vpop.f32.mrb[0].mxu0
    %5032 = vmatprep.mubr.bf16.mxu0 0
    %5033 = vmatmul.mubr.bf16.gmra.mrb[0].mxu0 %v4890
    %v5034 = vpop.f32.mrb[0].mxu0
    %v5035 = vadd.f32 0.0, %v5034
    %v5036 = vpop.f32.mrb[0].mxu0
    %v5037 = vpop.f32.mrb[0].mxu0
    %v5038 = vadd.f32 0.0, %v5037
    %v5039 = vpop.f32.mrb[0].mxu0
    %5040 = vmatprep.mubr.bf16.mxu0 0
    %5041 = vmatmul.mubr.bf16.gmra.mrb[0].mxu0 %v4893
    %v5042 = vpop.f32.mrb[0].mxu0
    %v5043 = vadd.f32 0.0, %v5042
    %v5044 = vpop.f32.mrb[0].mxu0
    %v5045 = vpop.f32.mrb[0].mxu0
    %v5046 = vadd.f32 0.0, %v5045
    %v5047 = vpop.f32.mrb[0].mxu0
    %5048 = vmatprep.mubr.bf16.mxu0 0
    %5049 = vmatmul.mubr.bf16.gmra.mrb[0].mxu0 %v4896
    %v5050 = vpop.f32.mrb[0].mxu0
    %v5051 = vadd.f32 0.0, %v5050
    %v5052 = vpop.f32.mrb[0].mxu0
    %v5053 = vpop.f32.mrb[0].mxu0
    %v5054 = vadd.f32 0.0, %v5053
    %v5055 = vpop.f32.mrb[0].mxu0
    %5056 = vmatprep.mubr.bf16.mxu0 0
    %5057 = vmatmul.mubr.bf16.gmra.mrb[0].mxu0 %v4899
    %v5058 = vpop.f32.mrb[0].mxu0
    %v5059 = vadd.f32 0.0, %v5058
    %v5060 = vpop.f32.mrb[0].mxu0
    %v5061 = vpop.f32.mrb[0].mxu0
    %v5062 = vadd.f32 0.0, %v5061
    %v5063 = vpop.f32.mrb[0].mxu0
    %5064 = vdwg.mxu0
    %v5065 = vld [vmem:[#allocation18] sm:$0x1]
    %v5067 = vlaneseq
    %v5068 = vshrl.u32 %v5067, 7
    %v5069 = vsub.s32 0, %v5068
    %v5070 = vrot.slane %v5065, %v5069
    %v5072 = vmul.f32 %v4939, %v5070
    %v5073 = vmul.f32 %v4942, %v5070
    %v5074 = vmul.f32 %v4947, %v5070
    %v5075 = vmul.f32 %v4950, %v5070
    %v5076 = vmul.f32 %v4955, %v5070
    %v5077 = vmul.f32 %v4958, %v5070
    %v5078 = vmul.f32 %v4963, %v5070
    %v5079 = vmul.f32 %v4966, %v5070
    %v5080 = vmul.f32 %v4971, %v5070
    %v5081 = vmul.f32 %v4974, %v5070
    %v5082 = vmul.f32 %v4979, %v5070
    %v5083 = vmul.f32 %v4982, %v5070
    %v5084 = vmul.f32 %v4987, %v5070
    %v5085 = vmul.f32 %v4990, %v5070
    %v5086 = vmul.f32 %v4995, %v5070
    %v5087 = vmul.f32 %v4998, %v5070
    %v5088 = vmul.f32 %v5003, %v5070
    %v5089 = vmul.f32 %v5006, %v5070
    %v5090 = vmul.f32 %v5011, %v5070
    %v5091 = vmul.f32 %v5014, %v5070
    %v5092 = vmul.f32 %v5019, %v5070
    %v5093 = vmul.f32 %v5022, %v5070
    %v5094 = vmul.f32 %v5027, %v5070
    %v5095 = vmul.f32 %v5030, %v5070
    %v5096 = vmul.f32 %v5035, %v5070
    %v5097 = vmul.f32 %v5038, %v5070
    %v5098 = vmul.f32 %v5043, %v5070
    %v5099 = vmul.f32 %v5046, %v5070
    %v5100 = vmul.f32 %v5051, %v5070
    %v5101 = vmul.f32 %v5054, %v5070
    %v5102 = vmul.f32 %v5059, %v5070
    %v5103 = vmul.f32 %v5062, %v5070
    %v5104 = vld [vmem:[#allocation20] sm:$0x1]
    %v5106 = vlaneseq
    %v5107 = vshrl.u32 %v5106, 7
    %v5108 = vsub.s32 0, %v5107
    %v5109 = vrot.slane %v5104, %v5108
    %v5111 = vadd.f32 %v5072, %v5109
    %v5112 = vadd.f32 %v5073, %v5109
    %v5113 = vadd.f32 %v5074, %v5109
    %v5114 = vadd.f32 %v5075, %v5109
    %v5115 = vadd.f32 %v5076, %v5109
    %v5116 = vadd.f32 %v5077, %v5109
    %v5117 = vadd.f32 %v5078, %v5109
    %v5118 = vadd.f32 %v5079, %v5109
    %v5119 = vadd.f32 %v5080, %v5109
    %v5120 = vadd.f32 %v5081, %v5109
    %v5121 = vadd.f32 %v5082, %v5109
    %v5122 = vadd.f32 %v5083, %v5109
    %v5123 = vadd.f32 %v5084, %v5109
    %v5124 = vadd.f32 %v5085, %v5109
    %v5125 = vadd.f32 %v5086, %v5109
    %v5126 = vadd.f32 %v5087, %v5109
    %v5127 = vadd.f32 %v5088, %v5109
    %v5128 = vadd.f32 %v5089, %v5109
    %v5129 = vadd.f32 %v5090, %v5109
    %v5130 = vadd.f32 %v5091, %v5109
    %v5131 = vadd.f32 %v5092, %v5109
    %v5132 = vadd.f32 %v5093, %v5109
    %v5133 = vadd.f32 %v5094, %v5109
    %v5134 = vadd.f32 %v5095, %v5109
    %v5135 = vadd.f32 %v5096, %v5109
    %v5136 = vadd.f32 %v5097, %v5109
    %v5137 = vadd.f32 %v5098, %v5109
    %v5138 = vadd.f32 %v5099, %v5109
    %v5139 = vadd.f32 %v5100, %v5109
    %v5140 = vadd.f32 %v5101, %v5109
    %v5141 = vadd.f32 %v5102, %v5109
    %v5142 = vadd.f32 %v5103, %v5109
    %v5143 = vsub.f32 0.0, %v5111
    %v5144 = vsub.f32 0.0, %v5112
    %v5145 = vsub.f32 0.0, %v5113
    %v5146 = vsub.f32 0.0, %v5114
    %v5147 = vsub.f32 0.0, %v5115
    %v5148 = vsub.f32 0.0, %v5116
    %v5149 = vsub.f32 0.0, %v5117
    %v5150 = vsub.f32 0.0, %v5118
    %v5151 = vsub.f32 0.0, %v5119
    %v5152 = vsub.f32 0.0, %v5120
    %v5153 = vsub.f32 0.0, %v5121
    %v5154 = vsub.f32 0.0, %v5122
    %v5155 = vsub.f32 0.0, %v5123
    %v5156 = vsub.f32 0.0, %v5124
    %v5157 = vsub.f32 0.0, %v5125
    %v5158 = vsub.f32 0.0, %v5126
    %v5159 = vsub.f32 0.0, %v5127
    %v5160 = vsub.f32 0.0, %v5128
    %v5161 = vsub.f32 0.0, %v5129
    %v5162 = vsub.f32 0.0, %v5130
    %v5163 = vsub.f32 0.0, %v5131
    %v5164 = vsub.f32 0.0, %v5132
    %v5165 = vsub.f32 0.0, %v5133
    %v5166 = vsub.f32 0.0, %v5134
    %v5167 = vsub.f32 0.0, %v5135
    %v5168 = vsub.f32 0.0, %v5136
    %v5169 = vsub.f32 0.0, %v5137
    %v5170 = vsub.f32 0.0, %v5138
    %v5171 = vsub.f32 0.0, %v5139
    %v5172 = vsub.f32 0.0, %v5140
    %v5173 = vsub.f32 0.0, %v5141
    %v5174 = vsub.f32 0.0, %v5142
    %v5175 = vmul.f32 %v5143, 1.442695
    %v5176 = vpow.pop %v5175
    %v5177 = vmul.f32 %v5144, 1.442695
    %v5178 = vpow.pop %v5177
    %v5179 = vmul.f32 %v5145, 1.442695
    %v5180 = vpow.pop %v5179
    %v5181 = vmul.f32 %v5146, 1.442695
    %v5182 = vpow.pop %v5181
    %v5183 = vmul.f32 %v5147, 1.442695
    %v5184 = vpow.pop %v5183
    %v5185 = vmul.f32 %v5148, 1.442695
    %v5186 = vpow.pop %v5185
    %v5187 = vmul.f32 %v5149, 1.442695
    %v5188 = vpow.pop %v5187
    %v5189 = vmul.f32 %v5150, 1.442695
    %v5190 = vpow.pop %v5189
    %v5191 = vmul.f32 %v5151, 1.442695
    %v5192 = vpow.pop %v5191
    %v5193 = vmul.f32 %v5152, 1.442695
    %v5194 = vpow.pop %v5193
    %v5195 = vmul.f32 %v5153, 1.442695
    %v5196 = vpow.pop %v5195
    %v5197 = vmul.f32 %v5154, 1.442695
    %v5198 = vpow.pop %v5197
    %v5199 = vmul.f32 %v5155, 1.442695
    %v5200 = vpow.pop %v5199
    %v5201 = vmul.f32 %v5156, 1.442695
    %v5202 = vpow.pop %v5201
    %v5203 = vmul.f32 %v5157, 1.442695
    %v5204 = vpow.pop %v5203
    %v5205 = vmul.f32 %v5158, 1.442695
    %v5206 = vpow.pop %v5205
    %v5207 = vmul.f32 %v5159, 1.442695
    %v5208 = vpow.pop %v5207
    %v5209 = vmul.f32 %v5160, 1.442695
    %v5210 = vpow.pop %v5209
    %v5211 = vmul.f32 %v5161, 1.442695
    %v5212 = vpow.pop %v5211
    %v5213 = vmul.f32 %v5162, 1.442695
    %v5214 = vpow.pop %v5213
    %v5215 = vmul.f32 %v5163, 1.442695
    %v5216 = vpow.pop %v5215
    %v5217 = vmul.f32 %v5164, 1.442695
    %v5218 = vpow.pop %v5217
    %v5219 = vmul.f32 %v5165, 1.442695
    %v5220 = vpow.pop %v5219
    %v5221 = vmul.f32 %v5166, 1.442695
    %v5222 = vpow.pop %v5221
    %v5223 = vmul.f32 %v5167, 1.442695
    %v5224 = vpow.pop %v5223
    %v5225 = vmul.f32 %v5168, 1.442695
    %v5226 = vpow.pop %v5225
    %v5227 = vmul.f32 %v5169, 1.442695
    %v5228 = vpow.pop %v5227
    %v5229 = vmul.f32 %v5170, 1.442695
    %v5230 = vpow.pop %v5229
    %v5231 = vmul.f32 %v5171, 1.442695
    %v5232 = vpow.pop %v5231
    %v5233 = vmul.f32 %v5172, 1.442695
    %v5234 = vpow.pop %v5233
    %v5235 = vmul.f32 %v5173, 1.442695
    %v5236 = vpow.pop %v5235
    %v5237 = vmul.f32 %v5174, 1.442695
    %v5238 = vpow.pop %v5237
    %v5239 = vadd.f32 %v5176, 1.0
    %v5240 = vadd.f32 %v5178, 1.0
    %v5241 = vadd.f32 %v5180, 1.0
    %v5242 = vadd.f32 %v5182, 1.0
    %v5243 = vadd.f32 %v5184, 1.0
    %v5244 = vadd.f32 %v5186, 1.0
    %v5245 = vadd.f32 %v5188, 1.0
    %v5246 = vadd.f32 %v5190, 1.0
    %v5247 = vadd.f32 %v5192, 1.0
    %v5248 = vadd.f32 %v5194, 1.0
    %v5249 = vadd.f32 %v5196, 1.0
    %v5250 = vadd.f32 %v5198, 1.0
    %v5251 = vadd.f32 %v5200, 1.0
    %v5252 = vadd.f32 %v5202, 1.0
    %v5253 = vadd.f32 %v5204, 1.0
    %v5254 = vadd.f32 %v5206, 1.0
    %v5255 = vadd.f32 %v5208, 1.0
    %v5256 = vadd.f32 %v5210, 1.0
    %v5257 = vadd.f32 %v5212, 1.0
    %v5258 = vadd.f32 %v5214, 1.0
    %v5259 = vadd.f32 %v5216, 1.0
    %v5260 = vadd.f32 %v5218, 1.0
    %v5261 = vadd.f32 %v5220, 1.0
    %v5262 = vadd.f32 %v5222, 1.0
    %v5263 = vadd.f32 %v5224, 1.0
    %v5264 = vadd.f32 %v5226, 1.0
    %v5265 = vadd.f32 %v5228, 1.0
    %v5266 = vadd.f32 %v5230, 1.0
    %v5267 = vadd.f32 %v5232, 1.0
    %v5268 = vadd.f32 %v5234, 1.0
    %v5269 = vadd.f32 %v5236, 1.0
    %v5270 = vadd.f32 %v5238, 1.0
    %v5271 = vrcp.pop %v5239
    %v5272 = vrcp.pop %v5240
    %v5273 = vrcp.pop %v5241
    %v5274 = vrcp.pop %v5242
    %v5275 = vrcp.pop %v5243
    %v5276 = vrcp.pop %v5244
    %v5277 = vrcp.pop %v5245
    %v5278 = vrcp.pop %v5246
    %v5279 = vrcp.pop %v5247
    %v5280 = vrcp.pop %v5248
    %v5281 = vrcp.pop %v5249
    %v5282 = vrcp.pop %v5250
    %v5283 = vrcp.pop %v5251
    %v5284 = vrcp.pop %v5252
    %v5285 = vrcp.pop %v5253
    %v5286 = vrcp.pop %v5254
    %v5287 = vrcp.pop %v5255
    %v5288 = vrcp.pop %v5256
    %v5289 = vrcp.pop %v5257
    %v5290 = vrcp.pop %v5258
    %v5291 = vrcp.pop %v5259
    %v5292 = vrcp.pop %v5260
    %v5293 = vrcp.pop %v5261
    %v5294 = vrcp.pop %v5262
    %v5295 = vrcp.pop %v5263
    %v5296 = vrcp.pop %v5264
    %v5297 = vrcp.pop %v5265
    %v5298 = vrcp.pop %v5266
    %v5299 = vrcp.pop %v5267
    %v5300 = vrcp.pop %v5268
    %v5301 = vrcp.pop %v5269
    %v5302 = vrcp.pop %v5270
    %v5303 = vmul.f32 %v5111, %v5271
    %v5304 = vmul.f32 %v5112, %v5272
    %v5305 = vmul.f32 %v5113, %v5273
    %v5306 = vmul.f32 %v5114, %v5274
    %v5307 = vmul.f32 %v5115, %v5275
    %v5308 = vmul.f32 %v5116, %v5276
    %v5309 = vmul.f32 %v5117, %v5277
    %v5310 = vmul.f32 %v5118, %v5278
    %v5311 = vmul.f32 %v5119, %v5279
    %v5312 = vmul.f32 %v5120, %v5280
    %v5313 = vmul.f32 %v5121, %v5281
    %v5314 = vmul.f32 %v5122, %v5282
    %v5315 = vmul.f32 %v5123, %v5283
    %v5316 = vmul.f32 %v5124, %v5284
    %v5317 = vmul.f32 %v5125, %v5285
    %v5318 = vmul.f32 %v5126, %v5286
    %v5319 = vmul.f32 %v5127, %v5287
    %v5320 = vmul.f32 %v5128, %v5288
    %v5321 = vmul.f32 %v5129, %v5289
    %v5322 = vmul.f32 %v5130, %v5290
    %v5323 = vmul.f32 %v5131, %v5291
    %v5324 = vmul.f32 %v5132, %v5292
    %v5325 = vmul.f32 %v5133, %v5293
    %v5326 = vmul.f32 %v5134, %v5294
    %v5327 = vmul.f32 %v5135, %v5295
    %v5328 = vmul.f32 %v5136, %v5296
    %v5329 = vmul.f32 %v5137, %v5297
    %v5330 = vmul.f32 %v5138, %v5298
    %v5331 = vmul.f32 %v5139, %v5299
    %v5332 = vmul.f32 %v5140, %v5300
    %v5333 = vmul.f32 %v5141, %v5301
    %v5334 = vmul.f32 %v5142, %v5302
    %v5335 = vpack.c.bf16 %v5304, %v5303
    %v5336 = vpack.c.bf16 %v5306, %v5305
    %v5337 = vpack.c.bf16 %v5308, %v5307
    %v5338 = vpack.c.bf16 %v5310, %v5309
    %v5339 = vpack.c.bf16 %v5312, %v5311
    %v5340 = vpack.c.bf16 %v5314, %v5313
    %v5341 = vpack.c.bf16 %v5316, %v5315
    %v5342 = vpack.c.bf16 %v5318, %v5317
    %v5343 = vpack.c.bf16 %v5320, %v5319
    %v5344 = vpack.c.bf16 %v5322, %v5321
    %v5345 = vpack.c.bf16 %v5324, %v5323
    %v5346 = vpack.c.bf16 %v5326, %v5325
    %v5347 = vpack.c.bf16 %v5328, %v5327
    %v5348 = vpack.c.bf16 %v5330, %v5329
    %v5349 = vpack.c.bf16 %v5332, %v5331
    %v5350 = vpack.c.bf16 %v5334, %v5333
    %v5351 = vld [vmem:[#allocation21] sm:$0xf]
    %v5353 = vsel %vm558, %v5335, 0
    %v5356 = vsel %vm558, %v5336, 0
    %v5359 = vsel %vm558, %v5337, 0
    %v5362 = vsel %vm558, %v5338, 0
    %v5365 = vsel %vm558, %v5339, 0
    %v5368 = vsel %vm558, %v5340, 0
    %v5371 = vsel %vm558, %v5341, 0
    %v5374 = vsel %vm558, %v5342, 0
    %v5377 = vsel %vm558, %v5343, 0
    %v5380 = vsel %vm558, %v5344, 0
    %v5383 = vsel %vm558, %v5345, 0
    %v5386 = vsel %vm558, %v5346, 0
    %v5389 = vsel %vm558, %v5347, 0
    %v5392 = vsel %vm558, %v5348, 0
    %v5395 = vsel %vm558, %v5349, 0
    %v5398 = vsel %vm558, %v5350, 0
    %v5401 = vsel %vm2217, %v5351, 0
    %5403 = vmatprep.subr.bf16.mxu0 0
    %5404 = vmatpush1.bf16.msra.mxu0 %v5401
    %5405 = vmatprep.subr.bf16.mxu0 0
    %5406 = vmatpush1.bf16.msra.mxu0 0
    %5407 = vmatprep.subr.bf16.mxu0 0
    %5408 = vmatpush1.bf16.msra.mxu0 0
    %5409 = vmatprep.subr.bf16.mxu0 0
    %5410 = vmatpush1.bf16.msra.mxu0 0
    %5411 = vmatprep.subr.bf16.mxu0 0
    %5412 = vmatpush1.bf16.msra.mxu0 0
    %5413 = vmatprep.subr.bf16.mxu0 0
    %5414 = vmatpush1.bf16.msra.mxu0 0
    %5415 = vmatprep.subr.bf16.mxu0 0
    %5416 = vmatpush1.bf16.msra.mxu0 0
    %5417 = vmatprep.subr.bf16.mxu0 0
    %5418 = vmatpush1.bf16.msra.mxu0 0
    %5419 = vmatprep.subr.bf16.mxu0 0
    %5420 = vmatpush1.bf16.msra.mxu0 0
    %5421 = vmatprep.subr.bf16.mxu0 0
    %5422 = vmatpush1.bf16.msra.mxu0 0
    %5423 = vmatprep.subr.bf16.mxu0 0
    %5424 = vmatpush1.bf16.msra.mxu0 0
    %5425 = vmatprep.subr.bf16.mxu0 0
    %5426 = vmatpush1.bf16.msra.mxu0 0
    %5427 = vmatprep.subr.bf16.mxu0 0
    %5428 = vmatpush1.bf16.msra.mxu0 0
    %5429 = vmatprep.subr.bf16.mxu0 0
    %5430 = vmatpush1.bf16.msra.mxu0 0
    %5431 = vmatprep.subr.bf16.mxu0 0
    %5432 = vmatpush1.bf16.msra.mxu0 0
    %5433 = vmatprep.subr.bf16.mxu0 0
    %5434 = vmatpush1.bf16.msra.mxu0 0
    %5435 = vmatprep.mubr.bf16.mxu0 0
    %5436 = vmatmul.mubr.bf16.gmra.mrb[0].mxu0 %v5353
    %v5437 = vpop.f32.mrb[0].mxu0
    %v5438 = vadd.f32 0.0, %v5437
    %v5439 = vpop.f32.mrb[0].mxu0
    %v5440 = vpop.f32.mrb[0].mxu0
    %v5441 = vadd.f32 0.0, %v5440
    %v5442 = vpop.f32.mrb[0].mxu0
    %5443 = vmatprep.mubr.bf16.mxu0 0
    %5444 = vmatmul.mubr.bf16.gmra.mrb[0].mxu0 %v5356
    %v5445 = vpop.f32.mrb[0].mxu0
    %v5446 = vadd.f32 0.0, %v5445
    %v5447 = vpop.f32.mrb[0].mxu0
    %v5448 = vpop.f32.mrb[0].mxu0
    %v5449 = vadd.f32 0.0, %v5448
    %v5450 = vpop.f32.mrb[0].mxu0
    %5451 = vmatprep.mubr.bf16.mxu0 0
    %5452 = vmatmul.mubr.bf16.gmra.mrb[0].mxu0 %v5359
    %v5453 = vpop.f32.mrb[0].mxu0
    %v5454 = vadd.f32 0.0, %v5453
    %v5455 = vpop.f32.mrb[0].mxu0
    %v5456 = vpop.f32.mrb[0].mxu0
    %v5457 = vadd.f32 0.0, %v5456
    %v5458 = vpop.f32.mrb[0].mxu0
    %5459 = vmatprep.mubr.bf16.mxu0 0
    %5460 = vmatmul.mubr.bf16.gmra.mrb[0].mxu0 %v5362
    %v5461 = vpop.f32.mrb[0].mxu0
    %v5462 = vadd.f32 0.0, %v5461
    %v5463 = vpop.f32.mrb[0].mxu0
    %v5464 = vpop.f32.mrb[0].mxu0
    %v5465 = vadd.f32 0.0, %v5464
    %v5466 = vpop.f32.mrb[0].mxu0
    %5467 = vmatprep.mubr.bf16.mxu0 0
    %5468 = vmatmul.mubr.bf16.gmra.mrb[0].mxu0 %v5365
    %v5469 = vpop.f32.mrb[0].mxu0
    %v5470 = vadd.f32 0.0, %v5469
    %v5471 = vpop.f32.mrb[0].mxu0
    %v5472 = vpop.f32.mrb[0].mxu0
    %v5473 = vadd.f32 0.0, %v5472
    %v5474 = vpop.f32.mrb[0].mxu0
    %5475 = vmatprep.mubr.bf16.mxu0 0
    %5476 = vmatmul.mubr.bf16.gmra.mrb[0].mxu0 %v5368
    %v5477 = vpop.f32.mrb[0].mxu0
    %v5478 = vadd.f32 0.0, %v5477
    %v5479 = vpop.f32.mrb[0].mxu0
    %v5480 = vpop.f32.mrb[0].mxu0
    %v5481 = vadd.f32 0.0, %v5480
    %v5482 = vpop.f32.mrb[0].mxu0
    %5483 = vmatprep.mubr.bf16.mxu0 0
    %5484 = vmatmul.mubr.bf16.gmra.mrb[0].mxu0 %v5371
    %v5485 = vpop.f32.mrb[0].mxu0
    %v5486 = vadd.f32 0.0, %v5485
    %v5487 = vpop.f32.mrb[0].mxu0
    %v5488 = vpop.f32.mrb[0].mxu0
    %v5489 = vadd.f32 0.0, %v5488
    %v5490 = vpop.f32.mrb[0].mxu0
    %5491 = vmatprep.mubr.bf16.mxu0 0
    %5492 = vmatmul.mubr.bf16.gmra.mrb[0].mxu0 %v5374
    %v5493 = vpop.f32.mrb[0].mxu0
    %v5494 = vadd.f32 0.0, %v5493
    %v5495 = vpop.f32.mrb[0].mxu0
    %v5496 = vpop.f32.mrb[0].mxu0
    %v5497 = vadd.f32 0.0, %v5496
    %v5498 = vpop.f32.mrb[0].mxu0
    %5499 = vmatprep.mubr.bf16.mxu0 0
    %5500 = vmatmul.mubr.bf16.gmra.mrb[0].mxu0 %v5377
    %v5501 = vpop.f32.mrb[0].mxu0
    %v5502 = vadd.f32 0.0, %v5501
    %v5503 = vpop.f32.mrb[0].mxu0
    %v5504 = vpop.f32.mrb[0].mxu0
    %v5505 = vadd.f32 0.0, %v5504
    %v5506 = vpop.f32.mrb[0].mxu0
    %5507 = vmatprep.mubr.bf16.mxu0 0
    %5508 = vmatmul.mubr.bf16.gmra.mrb[0].mxu0 %v5380
    %v5509 = vpop.f32.mrb[0].mxu0
    %v5510 = vadd.f32 0.0, %v5509
    %v5511 = vpop.f32.mrb[0].mxu0
    %v5512 = vpop.f32.mrb[0].mxu0
    %v5513 = vadd.f32 0.0, %v5512
    %v5514 = vpop.f32.mrb[0].mxu0
    %5515 = vmatprep.mubr.bf16.mxu0 0
    %5516 = vmatmul.mubr.bf16.gmra.mrb[0].mxu0 %v5383
    %v5517 = vpop.f32.mrb[0].mxu0
    %v5518 = vadd.f32 0.0, %v5517
    %v5519 = vpop.f32.mrb[0].mxu0
    %v5520 = vpop.f32.mrb[0].mxu0
    %v5521 = vadd.f32 0.0, %v5520
    %v5522 = vpop.f32.mrb[0].mxu0
    %5523 = vmatprep.mubr.bf16.mxu0 0
    %5524 = vmatmul.mubr.bf16.gmra.mrb[0].mxu0 %v5386
    %v5525 = vpop.f32.mrb[0].mxu0
    %v5526 = vadd.f32 0.0, %v5525
    %v5527 = vpop.f32.mrb[0].mxu0
    %v5528 = vpop.f32.mrb[0].mxu0
    %v5529 = vadd.f32 0.0, %v5528
    %v5530 = vpop.f32.mrb[0].mxu0
    %5531 = vmatprep.mubr.bf16.mxu0 0
    %5532 = vmatmul.mubr.bf16.gmra.mrb[0].mxu0 %v5389
    %v5533 = vpop.f32.mrb[0].mxu0
    %v5534 = vadd.f32 0.0, %v5533
    %v5535 = vpop.f32.mrb[0].mxu0
    %v5536 = vpop.f32.mrb[0].mxu0
    %v5537 = vadd.f32 0.0, %v5536
    %v5538 = vpop.f32.mrb[0].mxu0
    %5539 = vmatprep.mubr.bf16.mxu0 0
    %5540 = vmatmul.mubr.bf16.gmra.mrb[0].mxu0 %v5392
    %v5541 = vpop.f32.mrb[0].mxu0
    %v5542 = vadd.f32 0.0, %v5541
    %v5543 = vpop.f32.mrb[0].mxu0
    %v5544 = vpop.f32.mrb[0].mxu0
    %v5545 = vadd.f32 0.0, %v5544
    %v5546 = vpop.f32.mrb[0].mxu0
    %5547 = vmatprep.mubr.bf16.mxu0 0
    %5548 = vmatmul.mubr.bf16.gmra.mrb[0].mxu0 %v5395
    %v5549 = vpop.f32.mrb[0].mxu0
    %v5550 = vadd.f32 0.0, %v5549
    %v5551 = vpop.f32.mrb[0].mxu0
    %v5552 = vpop.f32.mrb[0].mxu0
    %v5553 = vadd.f32 0.0, %v5552
    %v5554 = vpop.f32.mrb[0].mxu0
    %5555 = vmatprep.mubr.bf16.mxu0 0
    %5556 = vmatmul.mubr.bf16.gmra.mrb[0].mxu0 %v5398
    %v5557 = vpop.f32.mrb[0].mxu0
    %v5558 = vadd.f32 0.0, %v5557
    %v5559 = vpop.f32.mrb[0].mxu0
    %v5560 = vpop.f32.mrb[0].mxu0
    %v5561 = vadd.f32 0.0, %v5560
    %v5562 = vpop.f32.mrb[0].mxu0
    %5563 = vdwg.mxu0
    %v5564 = vld [vmem:[#allocation23] sm:$0x1]
    %v5566 = vlaneseq
    %v5567 = vshrl.u32 %v5566, 7
    %v5568 = vsub.s32 0, %v5567
    %v5569 = vrot.slane %v5564, %v5568
    %v5571 = vmul.f32 %v5438, %v5569
    %v5572 = vmul.f32 %v5441, %v5569
    %v5573 = vmul.f32 %v5446, %v5569
    %v5574 = vmul.f32 %v5449, %v5569
    %v5575 = vmul.f32 %v5454, %v5569
    %v5576 = vmul.f32 %v5457, %v5569
    %v5577 = vmul.f32 %v5462, %v5569
    %v5578 = vmul.f32 %v5465, %v5569
    %v5579 = vmul.f32 %v5470, %v5569
    %v5580 = vmul.f32 %v5473, %v5569
    %v5581 = vmul.f32 %v5478, %v5569
    %v5582 = vmul.f32 %v5481, %v5569
    %v5583 = vmul.f32 %v5486, %v5569
    %v5584 = vmul.f32 %v5489, %v5569
    %v5585 = vmul.f32 %v5494, %v5569
    %v5586 = vmul.f32 %v5497, %v5569
    %v5587 = vmul.f32 %v5502, %v5569
    %v5588 = vmul.f32 %v5505, %v5569
    %v5589 = vmul.f32 %v5510, %v5569
    %v5590 = vmul.f32 %v5513, %v5569
    %v5591 = vmul.f32 %v5518, %v5569
    %v5592 = vmul.f32 %v5521, %v5569
    %v5593 = vmul.f32 %v5526, %v5569
    %v5594 = vmul.f32 %v5529, %v5569
    %v5595 = vmul.f32 %v5534, %v5569
    %v5596 = vmul.f32 %v5537, %v5569
    %v5597 = vmul.f32 %v5542, %v5569
    %v5598 = vmul.f32 %v5545, %v5569
    %v5599 = vmul.f32 %v5550, %v5569
    %v5600 = vmul.f32 %v5553, %v5569
    %v5601 = vmul.f32 %v5558, %v5569
    %v5602 = vmul.f32 %v5561, %v5569
    %v5603 = vld [vmem:[#allocation24] sm:$0x1]
    %v5605 = vlaneseq
    %v5606 = vshrl.u32 %v5605, 7
    %v5607 = vsub.s32 0, %v5606
    %v5608 = vrot.slane %v5603, %v5607
    %v5610 = vadd.f32 %v5571, %v5608
    %v5611 = vadd.f32 %v5572, %v5608
    %v5612 = vadd.f32 %v5573, %v5608
    %v5613 = vadd.f32 %v5574, %v5608
    %v5614 = vadd.f32 %v5575, %v5608
    %v5615 = vadd.f32 %v5576, %v5608
    %v5616 = vadd.f32 %v5577, %v5608
    %v5617 = vadd.f32 %v5578, %v5608
    %v5618 = vadd.f32 %v5579, %v5608
    %v5619 = vadd.f32 %v5580, %v5608
    %v5620 = vadd.f32 %v5581, %v5608
    %v5621 = vadd.f32 %v5582, %v5608
    %v5622 = vadd.f32 %v5583, %v5608
    %v5623 = vadd.f32 %v5584, %v5608
    %v5624 = vadd.f32 %v5585, %v5608
    %v5625 = vadd.f32 %v5586, %v5608
    %v5626 = vadd.f32 %v5587, %v5608
    %v5627 = vadd.f32 %v5588, %v5608
    %v5628 = vadd.f32 %v5589, %v5608
    %v5629 = vadd.f32 %v5590, %v5608
    %v5630 = vadd.f32 %v5591, %v5608
    %v5631 = vadd.f32 %v5592, %v5608
    %v5632 = vadd.f32 %v5593, %v5608
    %v5633 = vadd.f32 %v5594, %v5608
    %v5634 = vadd.f32 %v5595, %v5608
    %v5635 = vadd.f32 %v5596, %v5608
    %v5636 = vadd.f32 %v5597, %v5608
    %v5637 = vadd.f32 %v5598, %v5608
    %v5638 = vadd.f32 %v5599, %v5608
    %v5639 = vadd.f32 %v5600, %v5608
    %v5640 = vadd.f32 %v5601, %v5608
    %v5641 = vadd.f32 %v5602, %v5608
    %v5642 = vmul.f32 %v5610, %v401
    %v5643 = vmul.f32 %v5611, %v406
    %v5644 = vmul.f32 %v5612, %v411
    %v5645 = vmul.f32 %v5613, %v416
    %v5646 = vmul.f32 %v5614, %v421
    %v5647 = vmul.f32 %v5615, %v426
    %v5648 = vmul.f32 %v5616, %v431
    %v5649 = vmul.f32 %v5617, %v436
    %v5650 = vmul.f32 %v5618, %v441
    %v5651 = vmul.f32 %v5619, %v446
    %v5652 = vmul.f32 %v5620, %v451
    %v5653 = vmul.f32 %v5621, %v456
    %v5654 = vmul.f32 %v5622, %v461
    %v5655 = vmul.f32 %v5623, %v466
    %v5656 = vmul.f32 %v5624, %v471
    %v5657 = vmul.f32 %v5625, %v476
    %v5658 = vmul.f32 %v5626, %v481
    %v5659 = vmul.f32 %v5627, %v486
    %v5660 = vmul.f32 %v5628, %v491
    %v5661 = vmul.f32 %v5629, %v496
    %v5662 = vmul.f32 %v5630, %v501
    %v5663 = vmul.f32 %v5631, %v506
    %v5664 = vmul.f32 %v5632, %v511
    %v5665 = vmul.f32 %v5633, %v516
    %v5666 = vmul.f32 %v5634, %v521
    %v5667 = vmul.f32 %v5635, %v526
    %v5668 = vmul.f32 %v5636, %v531
    %v5669 = vmul.f32 %v5637, %v536
    %v5670 = vmul.f32 %v5638, %v541
    %v5671 = vmul.f32 %v5639, %v546
    %v5672 = vmul.f32 %v5640, %v551
    %v5673 = vmul.f32 %v5641, %v556
    %v5674 = vsel %vm1960, %v5642, 0.0
    %v5675 = vsel %vm1960, %v5643, 0.0
    %v5676 = vadd.f32 %v5674, %v5675
    %v5677 = vsel %vm1960, %v5644, 0.0
    %v5678 = vadd.f32 %v5676, %v5677
    %v5679 = vsel %vm1960, %v5645, 0.0
    %v5680 = vadd.f32 %v5678, %v5679
    %v5681 = vsel %vm1960, %v5646, 0.0
    %v5682 = vadd.f32 %v5680, %v5681
    %v5683 = vsel %vm1960, %v5647, 0.0
    %v5684 = vadd.f32 %v5682, %v5683
    %v5685 = vsel %vm1960, %v5648, 0.0
    %v5686 = vadd.f32 %v5684, %v5685
    %v5687 = vsel %vm1960, %v5649, 0.0
    %v5688 = vadd.f32 %v5686, %v5687
    %v5689 = vsel %vm1960, %v5650, 0.0
    %v5690 = vadd.f32 %v5688, %v5689
    %v5691 = vsel %vm1960, %v5651, 0.0
    %v5692 = vadd.f32 %v5690, %v5691
    %v5693 = vsel %vm1960, %v5652, 0.0
    %v5694 = vadd.f32 %v5692, %v5693
    %v5695 = vsel %vm1960, %v5653, 0.0
    %v5696 = vadd.f32 %v5694, %v5695
    %v5697 = vsel %vm1960, %v5654, 0.0
    %v5698 = vadd.f32 %v5696, %v5697
    %v5699 = vsel %vm1960, %v5655, 0.0
    %v5700 = vadd.f32 %v5698, %v5699
    %v5701 = vsel %vm1960, %v5656, 0.0
    %v5702 = vadd.f32 %v5700, %v5701
    %v5703 = vsel %vm1960, %v5657, 0.0
    %v5704 = vadd.f32 %v5702, %v5703
    %v5705 = vrot.slane %v5704, 4
    %v5706 = vadd.f32 %v5704, %v5705
    %v5707 = vrot.slane %v5706, 2
    %v5708 = vadd.f32 %v5706, %v5707
    %v5709 = vrot.slane %v5708, 1
    %v5710 = vadd.f32 %v5708, %v5709
    %v5711 = vsel %vm1960, %v5658, 0.0
    %v5712 = vsel %vm1960, %v5659, 0.0
    %v5713 = vadd.f32 %v5711, %v5712
    %v5714 = vsel %vm1960, %v5660, 0.0
    %v5715 = vadd.f32 %v5713, %v5714
    %v5716 = vsel %vm1960, %v5661, 0.0
    %v5717 = vadd.f32 %v5715, %v5716
    %v5718 = vsel %vm1960, %v5662, 0.0
    %v5719 = vadd.f32 %v5717, %v5718
    %v5720 = vsel %vm1960, %v5663, 0.0
    %v5721 = vadd.f32 %v5719, %v5720
    %v5722 = vsel %vm1960, %v5664, 0.0
    %v5723 = vadd.f32 %v5721, %v5722
    %v5724 = vsel %vm1960, %v5665, 0.0
    %v5725 = vadd.f32 %v5723, %v5724
    %v5726 = vsel %vm1960, %v5666, 0.0
    %v5727 = vadd.f32 %v5725, %v5726
    %v5728 = vsel %vm1960, %v5667, 0.0
    %v5729 = vadd.f32 %v5727, %v5728
    %v5730 = vsel %vm1960, %v5668, 0.0
    %v5731 = vadd.f32 %v5729, %v5730
    %v5732 = vsel %vm1960, %v5669, 0.0
    %v5733 = vadd.f32 %v5731, %v5732
    %v5734 = vsel %vm1960, %v5670, 0.0
    %v5735 = vadd.f32 %v5733, %v5734
    %v5736 = vsel %vm1960, %v5671, 0.0
    %v5737 = vadd.f32 %v5735, %v5736
    %v5738 = vsel %vm1960, %v5672, 0.0
    %v5739 = vadd.f32 %v5737, %v5738
    %v5740 = vsel %vm1960, %v5673, 0.0
    %v5741 = vadd.f32 %v5739, %v5740
    %v5742 = vrot.slane %v5741, 4
    %v5743 = vadd.f32 %v5741, %v5742
    %v5744 = vrot.slane %v5743, 2
    %v5745 = vadd.f32 %v5743, %v5744
    %v5746 = vrot.slane %v5745, 1
    %v5747 = vadd.f32 %v5745, %v5746
    %v5748 = vmul.f32 %v5710, 0.012345679
    %v5749 = vmul.f32 %v5747, 0.012345679
    %v5750 = vpack.c.bf16 %v5748, %v5748
    %v5751 = vpack.c.bf16 %v5749, %v5749
    %v5752 = vld [vmem:[#allocation26] sm:$0xf]
    %v5753 = vld [vmem:[#allocation26 + $0x4] sm:$0xf]
    %v5754 = vld [vmem:[#allocation26 + $0x8] sm:$0xf]
    %v5755 = vld [vmem:[#allocation26 + $0xc] sm:$0xf]
    %v5756 = vld [vmem:[#allocation27] sm:$0x1]
    %v5758 = vlaneseq
    %v5759 = vshrl.u32 %v5758, 7
    %v5760 = vsub.s32 0, %v5759
    %v5761 = vrot.slane %v5756, %v5760
    %v5765 = vunpack.c.l.b16 %v5750
    %v5766 = vunpack.c.l.b16 %v5751
    %vm5767 = vcmask 1041409
    %v5768 = vsel %vm5767, %v5766, %v5765
    %v5769 = vpack.c.b16 %v5768, %v5768
    %v5774 = vunpack.c.l.b16 %v5752
    %v5775 = vunpack.c.l.b16 %v5753
    %v5776 = vunpack.c.l.b16 %v5754
    %v5777 = vunpack.c.l.b16 %v5755
    %v5778 = vpack.c.b16 %v5775, %v5774
    %v5779 = vpack.c.b16 %v5777, %v5776
    %v5783 = vsel %vm1960, %v5769, 0
    %5785 = vmatprep.subr.bf16.mxu0 0
    %5786 = vmatpush1.bf16.msra.mxu0 %v5778
    %5787 = vmatprep.subr.bf16.mxu0 0
    %5788 = vmatpush1.bf16.msra.mxu0 %v5779
    %5789 = vmatprep.subr.bf16.mxu0 0
    %5790 = vmatpush1.bf16.msra.mxu0 0
    %5791 = vmatprep.subr.bf16.mxu0 0
    %5792 = vmatpush1.bf16.msra.mxu0 0
    %5793 = vmatprep.subr.bf16.mxu0 0
    %5794 = vmatpush1.bf16.msra.mxu0 0
    %5795 = vmatprep.subr.bf16.mxu0 0
    %5796 = vmatpush1.bf16.msra.mxu0 0
    %5797 = vmatprep.subr.bf16.mxu0 0
    %5798 = vmatpush1.bf16.msra.mxu0 0
    %5799 = vmatprep.subr.bf16.mxu0 0
    %5800 = vmatpush1.bf16.msra.mxu0 0
    %5801 = vmatprep.subr.bf16.mxu0 0
    %5802 = vmatpush1.bf16.msra.mxu0 0
    %5803 = vmatprep.subr.bf16.mxu0 0
    %5804 = vmatpush1.bf16.msra.mxu0 0
    %5805 = vmatprep.subr.bf16.mxu0 0
    %5806 = vmatpush1.bf16.msra.mxu0 0
    %5807 = vmatprep.subr.bf16.mxu0 0
    %5808 = vmatpush1.bf16.msra.mxu0 0
    %5809 = vmatprep.subr.bf16.mxu0 0
    %5810 = vmatpush1.bf16.msra.mxu0 0
    %5811 = vmatprep.subr.bf16.mxu0 0
    %5812 = vmatpush1.bf16.msra.mxu0 0
    %5813 = vmatprep.subr.bf16.mxu0 0
    %5814 = vmatpush1.bf16.msra.mxu0 0
    %5815 = vmatprep.subr.bf16.mxu0 0
    %5816 = vmatpush1.bf16.msra.mxu0 0
    %5817 = vmatprep.mubr.bf16.mxu0 0
    %5818 = vmatmul.mubr.bf16.gmra.mrb[0].mxu0 %v5783
    %v5819 = vpop.f32.mrb[0].mxu0
    %v5820 = vadd.f32 %v5761, %v5819
    %v5821 = vpop.f32.mrb[0].mxu0
    %v5822 = vpop.f32.mrb[0].mxu0
    %v5823 = vpop.f32.mrb[0].mxu0
    %5824 = vdwg.mxu0
    %v5825 = vsub.f32 0.0, %v5820
    %v5826 = vmul.f32 %v5825, 1.442695
    %v5827 = vpow.pop %v5826
    %v5828 = vadd.f32 %v5827, 1.0
    %v5829 = vrcp.pop %v5828
    %v5830 = vmul.f32 %v5820, %v5829
    %v5831 = vpack.c.bf16 %v5830, %v5830
    %v5832 = vld [vmem:[#allocation29] sm:$0xf]
    %v5833 = vld [vmem:[#allocation30] sm:$0x1]
    %v5835 = vlaneseq
    %v5836 = vshrl.u32 %v5835, 7
    %v5837 = vsub.s32 0, %v5836
    %v5838 = vrot.slane %v5833, %v5837
    %v5841 = vsel %vm558, %v5831, 0
    %v5844 = vsel %vm2217, %v5832, 0
    %5846 = vmatprep.subr.bf16.mxu0 0
    %5847 = vmatpush1.bf16.msra.mxu0 %v5844
    %5848 = vmatprep.subr.bf16.mxu0 0
    %5849 = vmatpush1.bf16.msra.mxu0 0
    %5850 = vmatprep.subr.bf16.mxu0 0
    %5851 = vmatpush1.bf16.msra.mxu0 0
    %5852 = vmatprep.subr.bf16.mxu0 0
    %5853 = vmatpush1.bf16.msra.mxu0 0
    %5854 = vmatprep.subr.bf16.mxu0 0
    %5855 = vmatpush1.bf16.msra.mxu0 0
    %5856 = vmatprep.subr.bf16.mxu0 0
    %5857 = vmatpush1.bf16.msra.mxu0 0
    %5858 = vmatprep.subr.bf16.mxu0 0
    %5859 = vmatpush1.bf16.msra.mxu0 0
    %5860 = vmatprep.subr.bf16.mxu0 0
    %5861 = vmatpush1.bf16.msra.mxu0 0
    %5862 = vmatprep.subr.bf16.mxu0 0
    %5863 = vmatpush1.bf16.msra.mxu0 0
    %5864 = vmatprep.subr.bf16.mxu0 0
    %5865 = vmatpush1.bf16.msra.mxu0 0
    %5866 = vmatprep.subr.bf16.mxu0 0
    %5867 = vmatpush1.bf16.msra.mxu0 0
    %5868 = vmatprep.subr.bf16.mxu0 0
    %5869 = vmatpush1.bf16.msra.mxu0 0
    %5870 = vmatprep.subr.bf16.mxu0 0
    %5871 = vmatpush1.bf16.msra.mxu0 0
    %5872 = vmatprep.subr.bf16.mxu0 0
    %5873 = vmatpush1.bf16.msra.mxu0 0
    %5874 = vmatprep.subr.bf16.mxu0 0
    %5875 = vmatpush1.bf16.msra.mxu0 0
    %5876 = vmatprep.subr.bf16.mxu0 0
    %5877 = vmatpush1.bf16.msra.mxu0 0
    %5878 = vmatprep.mubr.bf16.mxu0 0
    %5879 = vmatmul.mubr.bf16.gmra.mrb[0].mxu0 %v5841
    %v5880 = vpop.f32.mrb[0].mxu0
    %v5881 = vadd.f32 %v5838, %v5880
    %v5882 = vpop.f32.mrb[0].mxu0
    %v5883 = vpop.f32.mrb[0].mxu0
    %v5884 = vpop.f32.mrb[0].mxu0
    %5885 = vdwg.mxu0
    %v5886 = vsub.f32 0.0, %v5881
    %v5887 = vmul.f32 %v5886, 1.442695
    %v5888 = vpow.pop %v5887
    %v5889 = vadd.f32 %v5888, 1.0
    %v5890 = vrcp.pop %v5889
    %v5893 = vunpack.c.l.s4 1966171168
    %v5894 = vunpack.c.0.s8 %v5893
    %v5895 = vlaneseq
    %v5896 = vshrl.u32 %v5895, 7
    %v5897 = vsub.s32 %v5894, %v5896
    %v5898 = vrot.slane %v5890, %v5897
    %v5899 = vcombine.high %v5898, %v5898
    %v5901 = vunpack.c.l.s4 1966171168
    %v5902 = vunpack.c.0.s8 %v5901
    %v5903 = vlaneseq
    %v5904 = vshrl.u32 %v5903, 7
    %v5905 = vsub.s32 %v5902, %v5904
    %v5906 = vrot.slane %v5898, %v5905
    %v5908 = vunpack.c.l.s4 1966171168
    %v5909 = vunpack.c.0.s8 %v5908
    %v5910 = vlaneseq
    %v5911 = vshrl.u32 %v5910, 7
    %v5912 = vsub.s32 %v5909, %v5911
    %v5913 = vrot.slane %v5899, %v5912
    %v5914 = vlaneseq
    %v5915 = vshrl.u32 %v5914, 7
    %v5916 = vsub.s32 0, %v5915
    %v5917 = vrot.slane %v5906, %v5916
    %v5918 = vlaneseq
    %v5919 = vshrl.u32 %v5918, 7
    %v5920 = vsub.s32 0, %v5919
    %v5921 = vrot.slane %v5913, %v5920
    %v5924 = vmul.f32 %v5610, %v5917
    %v5925 = vmul.f32 %v5611, %v5917
    %v5926 = vmul.f32 %v5612, %v5917
    %v5927 = vmul.f32 %v5613, %v5917
    %v5928 = vmul.f32 %v5614, %v5917
    %v5929 = vmul.f32 %v5615, %v5917
    %v5930 = vmul.f32 %v5616, %v5917
    %v5931 = vmul.f32 %v5617, %v5917
    %v5932 = vmul.f32 %v5618, %v5917
    %v5933 = vmul.f32 %v5619, %v5917
    %v5934 = vmul.f32 %v5620, %v5917
    %v5935 = vmul.f32 %v5621, %v5917
    %v5936 = vmul.f32 %v5622, %v5917
    %v5937 = vmul.f32 %v5623, %v5917
    %v5938 = vmul.f32 %v5624, %v5917
    %v5939 = vmul.f32 %v5625, %v5917
    %v5940 = vmul.f32 %v5626, %v5921
    %v5941 = vmul.f32 %v5627, %v5921
    %v5942 = vmul.f32 %v5628, %v5921
    %v5943 = vmul.f32 %v5629, %v5921
    %v5944 = vmul.f32 %v5630, %v5921
    %v5945 = vmul.f32 %v5631, %v5921
    %v5946 = vmul.f32 %v5632, %v5921
    %v5947 = vmul.f32 %v5633, %v5921
    %v5948 = vmul.f32 %v5634, %v5921
    %v5949 = vmul.f32 %v5635, %v5921
    %v5950 = vmul.f32 %v5636, %v5921
    %v5951 = vmul.f32 %v5637, %v5921
    %v5952 = vmul.f32 %v5638, %v5921
    %v5953 = vmul.f32 %v5639, %v5921
    %v5954 = vmul.f32 %v5640, %v5921
    %v5955 = vmul.f32 %v5641, %v5921
    %v5956 = vadd.f32 %v5924, %v2652
    %v5957 = vadd.f32 %v5925, %v2653
    %v5958 = vadd.f32 %v5926, %v2654
    %v5959 = vadd.f32 %v5927, %v2655
    %v5960 = vadd.f32 %v5928, %v2656
    %v5961 = vadd.f32 %v5929, %v2657
    %v5962 = vadd.f32 %v5930, %v2658
    %v5963 = vadd.f32 %v5931, %v2659
    %v5964 = vadd.f32 %v5932, %v2660
    %v5965 = vadd.f32 %v5933, %v2661
    %v5966 = vadd.f32 %v5934, %v2662
    %v5967 = vadd.f32 %v5935, %v2663
    %v5968 = vadd.f32 %v5936, %v2664
    %v5969 = vadd.f32 %v5937, %v2665
    %v5970 = vadd.f32 %v5938, %v2666
    %v5971 = vadd.f32 %v5939, %v2667
    %v5972 = vadd.f32 %v5940, %v2668
    %v5973 = vadd.f32 %v5941, %v2669
    %v5974 = vadd.f32 %v5942, %v2670
    %v5975 = vadd.f32 %v5943, %v2671
    %v5976 = vadd.f32 %v5944, %v2672
    %v5977 = vadd.f32 %v5945, %v2673
    %v5978 = vadd.f32 %v5946, %v2674
    %v5979 = vadd.f32 %v5947, %v2675
    %v5980 = vadd.f32 %v5948, %v2676
    %v5981 = vadd.f32 %v5949, %v2677
    %v5982 = vadd.f32 %v5950, %v2678
    %v5983 = vadd.f32 %v5951, %v2679
    %v5984 = vadd.f32 %v5952, %v2680
    %v5985 = vadd.f32 %v5953, %v2681
    %v5986 = vadd.f32 %v5954, %v2682
    %v5987 = vadd.f32 %v5955, %v2683
    %v5988 = vsub.f32 0.0, %v5956
    %v5989 = vsub.f32 0.0, %v5957
    %v5990 = vsub.f32 0.0, %v5958
    %v5991 = vsub.f32 0.0, %v5959
    %v5992 = vsub.f32 0.0, %v5960
    %v5993 = vsub.f32 0.0, %v5961
    %v5994 = vsub.f32 0.0, %v5962
    %v5995 = vsub.f32 0.0, %v5963
    %v5996 = vsub.f32 0.0, %v5964
    %v5997 = vsub.f32 0.0, %v5965
    %v5998 = vsub.f32 0.0, %v5966
    %v5999 = vsub.f32 0.0, %v5967
    %v6000 = vsub.f32 0.0, %v5968
    %v6001 = vsub.f32 0.0, %v5969
    %v6002 = vsub.f32 0.0, %v5970
    %v6003 = vsub.f32 0.0, %v5971
    %v6004 = vsub.f32 0.0, %v5972
    %v6005 = vsub.f32 0.0, %v5973
    %v6006 = vsub.f32 0.0, %v5974
    %v6007 = vsub.f32 0.0, %v5975
    %v6008 = vsub.f32 0.0, %v5976
    %v6009 = vsub.f32 0.0, %v5977
    %v6010 = vsub.f32 0.0, %v5978
    %v6011 = vsub.f32 0.0, %v5979
    %v6012 = vsub.f32 0.0, %v5980
    %v6013 = vsub.f32 0.0, %v5981
    %v6014 = vsub.f32 0.0, %v5982
    %v6015 = vsub.f32 0.0, %v5983
    %v6016 = vsub.f32 0.0, %v5984
    %v6017 = vsub.f32 0.0, %v5985
    %v6018 = vsub.f32 0.0, %v5986
    %v6019 = vsub.f32 0.0, %v5987
    %v6020 = vmul.f32 %v5988, 1.442695
    %v6021 = vpow.pop %v6020
    %v6022 = vmul.f32 %v5989, 1.442695
    %v6023 = vpow.pop %v6022
    %v6024 = vmul.f32 %v5990, 1.442695
    %v6025 = vpow.pop %v6024
    %v6026 = vmul.f32 %v5991, 1.442695
    %v6027 = vpow.pop %v6026
    %v6028 = vmul.f32 %v5992, 1.442695
    %v6029 = vpow.pop %v6028
    %v6030 = vmul.f32 %v5993, 1.442695
    %v6031 = vpow.pop %v6030
    %v6032 = vmul.f32 %v5994, 1.442695
    %v6033 = vpow.pop %v6032
    %v6034 = vmul.f32 %v5995, 1.442695
    %v6035 = vpow.pop %v6034
    %v6036 = vmul.f32 %v5996, 1.442695
    %v6037 = vpow.pop %v6036
    %v6038 = vmul.f32 %v5997, 1.442695
    %v6039 = vpow.pop %v6038
    %v6040 = vmul.f32 %v5998, 1.442695
    %v6041 = vpow.pop %v6040
    %v6042 = vmul.f32 %v5999, 1.442695
    %v6043 = vpow.pop %v6042
    %v6044 = vmul.f32 %v6000, 1.442695
    %v6045 = vpow.pop %v6044
    %v6046 = vmul.f32 %v6001, 1.442695
    %v6047 = vpow.pop %v6046
    %v6048 = vmul.f32 %v6002, 1.442695
    %v6049 = vpow.pop %v6048
    %v6050 = vmul.f32 %v6003, 1.442695
    %v6051 = vpow.pop %v6050
    %v6052 = vmul.f32 %v6004, 1.442695
    %v6053 = vpow.pop %v6052
    %v6054 = vmul.f32 %v6005, 1.442695
    %v6055 = vpow.pop %v6054
    %v6056 = vmul.f32 %v6006, 1.442695
    %v6057 = vpow.pop %v6056
    %v6058 = vmul.f32 %v6007, 1.442695
    %v6059 = vpow.pop %v6058
    %v6060 = vmul.f32 %v6008, 1.442695
    %v6061 = vpow.pop %v6060
    %v6062 = vmul.f32 %v6009, 1.442695
    %v6063 = vpow.pop %v6062
    %v6064 = vmul.f32 %v6010, 1.442695
    %v6065 = vpow.pop %v6064
    %v6066 = vmul.f32 %v6011, 1.442695
    %v6067 = vpow.pop %v6066
    %v6068 = vmul.f32 %v6012, 1.442695
    %v6069 = vpow.pop %v6068
    %v6070 = vmul.f32 %v6013, 1.442695
    %v6071 = vpow.pop %v6070
    %v6072 = vmul.f32 %v6014, 1.442695
    %v6073 = vpow.pop %v6072
    %v6074 = vmul.f32 %v6015, 1.442695
    %v6075 = vpow.pop %v6074
    %v6076 = vmul.f32 %v6016, 1.442695
    %v6077 = vpow.pop %v6076
    %v6078 = vmul.f32 %v6017, 1.442695
    %v6079 = vpow.pop %v6078
    %v6080 = vmul.f32 %v6018, 1.442695
    %v6081 = vpow.pop %v6080
    %v6082 = vmul.f32 %v6019, 1.442695
    %v6083 = vpow.pop %v6082
    %v6084 = vadd.f32 %v6021, 1.0
    %v6085 = vadd.f32 %v6023, 1.0
    %v6086 = vadd.f32 %v6025, 1.0
    %v6087 = vadd.f32 %v6027, 1.0
    %v6088 = vadd.f32 %v6029, 1.0
    %v6089 = vadd.f32 %v6031, 1.0
    %v6090 = vadd.f32 %v6033, 1.0
    %v6091 = vadd.f32 %v6035, 1.0
    %v6092 = vadd.f32 %v6037, 1.0
    %v6093 = vadd.f32 %v6039, 1.0
    %v6094 = vadd.f32 %v6041, 1.0
    %v6095 = vadd.f32 %v6043, 1.0
    %v6096 = vadd.f32 %v6045, 1.0
    %v6097 = vadd.f32 %v6047, 1.0
    %v6098 = vadd.f32 %v6049, 1.0
    %v6099 = vadd.f32 %v6051, 1.0
    %v6100 = vadd.f32 %v6053, 1.0
    %v6101 = vadd.f32 %v6055, 1.0
    %v6102 = vadd.f32 %v6057, 1.0
    %v6103 = vadd.f32 %v6059, 1.0
    %v6104 = vadd.f32 %v6061, 1.0
    %v6105 = vadd.f32 %v6063, 1.0
    %v6106 = vadd.f32 %v6065, 1.0
    %v6107 = vadd.f32 %v6067, 1.0
    %v6108 = vadd.f32 %v6069, 1.0
    %v6109 = vadd.f32 %v6071, 1.0
    %v6110 = vadd.f32 %v6073, 1.0
    %v6111 = vadd.f32 %v6075, 1.0
    %v6112 = vadd.f32 %v6077, 1.0
    %v6113 = vadd.f32 %v6079, 1.0
    %v6114 = vadd.f32 %v6081, 1.0
    %v6115 = vadd.f32 %v6083, 1.0
    %v6116 = vrcp.pop %v6084
    %v6117 = vrcp.pop %v6085
    %v6118 = vrcp.pop %v6086
    %v6119 = vrcp.pop %v6087
    %v6120 = vrcp.pop %v6088
    %v6121 = vrcp.pop %v6089
    %v6122 = vrcp.pop %v6090
    %v6123 = vrcp.pop %v6091
    %v6124 = vrcp.pop %v6092
    %v6125 = vrcp.pop %v6093
    %v6126 = vrcp.pop %v6094
    %v6127 = vrcp.pop %v6095
    %v6128 = vrcp.pop %v6096
    %v6129 = vrcp.pop %v6097
    %v6130 = vrcp.pop %v6098
    %v6131 = vrcp.pop %v6099
    %v6132 = vrcp.pop %v6100
    %v6133 = vrcp.pop %v6101
    %v6134 = vrcp.pop %v6102
    %v6135 = vrcp.pop %v6103
    %v6136 = vrcp.pop %v6104
    %v6137 = vrcp.pop %v6105
    %v6138 = vrcp.pop %v6106
    %v6139 = vrcp.pop %v6107
    %v6140 = vrcp.pop %v6108
    %v6141 = vrcp.pop %v6109
    %v6142 = vrcp.pop %v6110
    %v6143 = vrcp.pop %v6111
    %v6144 = vrcp.pop %v6112
    %v6145 = vrcp.pop %v6113
    %v6146 = vrcp.pop %v6114
    %v6147 = vrcp.pop %v6115
    %v6148 = vmul.f32 %v5956, %v6116
    %v6149 = vmul.f32 %v5957, %v6117
    %v6150 = vmul.f32 %v5958, %v6118
    %v6151 = vmul.f32 %v5959, %v6119
    %v6152 = vmul.f32 %v5960, %v6120
    %v6153 = vmul.f32 %v5961, %v6121
    %v6154 = vmul.f32 %v5962, %v6122
    %v6155 = vmul.f32 %v5963, %v6123
    %v6156 = vmul.f32 %v5964, %v6124
    %v6157 = vmul.f32 %v5965, %v6125
    %v6158 = vmul.f32 %v5966, %v6126
    %v6159 = vmul.f32 %v5967, %v6127
    %v6160 = vmul.f32 %v5968, %v6128
    %v6161 = vmul.f32 %v5969, %v6129
    %v6162 = vmul.f32 %v5970, %v6130
    %v6163 = vmul.f32 %v5971, %v6131
    %v6164 = vmul.f32 %v5972, %v6132
    %v6165 = vmul.f32 %v5973, %v6133
    %v6166 = vmul.f32 %v5974, %v6134
    %v6167 = vmul.f32 %v5975, %v6135
    %v6168 = vmul.f32 %v5976, %v6136
    %v6169 = vmul.f32 %v5977, %v6137
    %v6170 = vmul.f32 %v5978, %v6138
    %v6171 = vmul.f32 %v5979, %v6139
    %v6172 = vmul.f32 %v5980, %v6140
    %v6173 = vmul.f32 %v5981, %v6141
    %v6174 = vmul.f32 %v5982, %v6142
    %v6175 = vmul.f32 %v5983, %v6143
    %v6176 = vmul.f32 %v5984, %v6144
    %v6177 = vmul.f32 %v5985, %v6145
    %v6178 = vmul.f32 %v5986, %v6146
    %v6179 = vmul.f32 %v5987, %v6147
    %v6180 = vpack.c.bf16 %v6149, %v6148
    %v6181 = vpack.c.bf16 %v6151, %v6150
    %v6182 = vpack.c.bf16 %v6153, %v6152
    %v6183 = vpack.c.bf16 %v6155, %v6154
    %v6184 = vpack.c.bf16 %v6157, %v6156
    %v6185 = vpack.c.bf16 %v6159, %v6158
    %v6186 = vpack.c.bf16 %v6161, %v6160
    %v6187 = vpack.c.bf16 %v6163, %v6162
    %v6188 = vpack.c.bf16 %v6165, %v6164
    %v6189 = vpack.c.bf16 %v6167, %v6166
    %v6190 = vpack.c.bf16 %v6169, %v6168
    %v6191 = vpack.c.bf16 %v6171, %v6170
    %v6192 = vpack.c.bf16 %v6173, %v6172
    %v6193 = vpack.c.bf16 %v6175, %v6174
    %v6194 = vpack.c.bf16 %v6177, %v6176
    %v6195 = vpack.c.bf16 %v6179, %v6178
    %s6196 = scalar_lea.vmem [#allocation12], 16
    %v6197 = vld [vmem:[%s6196] sm:$0xf]
    %v6198 = vld [vmem:[%s6196 + $0x4] sm:$0xf]
    %v6199 = vld [vmem:[%s6196 + $0x8] sm:$0xf]
    %v6200 = vld [vmem:[%s6196 + $0xc] sm:$0xf]
    %v6205 = vunpack.c.l.b16 %v6197
    %v6206 = vunpack.c.l.b16 %v6198
    %v6207 = vunpack.c.l.b16 %v6199
    %v6208 = vunpack.c.l.b16 %v6200
    %v6209 = vpack.c.b16 %v6206, %v6205
    %v6210 = vpack.c.b16 %v6208, %v6207
    %v6214 = vsel %vm1960, %v6180, 0
    %v6217 = vsel %vm1960, %v6181, 0
    %v6220 = vsel %vm1960, %v6182, 0
    %v6223 = vsel %vm1960, %v6183, 0
    %v6226 = vsel %vm1960, %v6184, 0
    %v6229 = vsel %vm1960, %v6185, 0
    %v6232 = vsel %vm1960, %v6186, 0
    %v6235 = vsel %vm1960, %v6187, 0
    %v6238 = vsel %vm1960, %v6188, 0
    %v6241 = vsel %vm1960, %v6189, 0
    %v6244 = vsel %vm1960, %v6190, 0
    %v6247 = vsel %vm1960, %v6191, 0
    %v6250 = vsel %vm1960, %v6192, 0
    %v6253 = vsel %vm1960, %v6193, 0
    %v6256 = vsel %vm1960, %v6194, 0
    %v6259 = vsel %vm1960, %v6195, 0
    %6261 = vmatprep.subr.bf16.mxu0 0
    %6262 = vmatpush1.bf16.msra.mxu0 %v6209
    %6263 = vmatprep.subr.bf16.mxu0 0
    %6264 = vmatpush1.bf16.msra.mxu0 %v6210
    %6265 = vmatprep.subr.bf16.mxu0 0
    %6266 = vmatpush1.bf16.msra.mxu0 0
    %6267 = vmatprep.subr.bf16.mxu0 0
    %6268 = vmatpush1.bf16.msra.mxu0 0
    %6269 = vmatprep.subr.bf16.mxu0 0
    %6270 = vmatpush1.bf16.msra.mxu0 0
    %6271 = vmatprep.subr.bf16.mxu0 0
    %6272 = vmatpush1.bf16.msra.mxu0 0
    %6273 = vmatprep.subr.bf16.mxu0 0
    %6274 = vmatpush1.bf16.msra.mxu0 0
    %6275 = vmatprep.subr.bf16.mxu0 0
    %6276 = vmatpush1.bf16.msra.mxu0 0
    %6277 = vmatprep.subr.bf16.mxu0 0
    %6278 = vmatpush1.bf16.msra.mxu0 0
    %6279 = vmatprep.subr.bf16.mxu0 0
    %6280 = vmatpush1.bf16.msra.mxu0 0
    %6281 = vmatprep.subr.bf16.mxu0 0
    %6282 = vmatpush1.bf16.msra.mxu0 0
    %6283 = vmatprep.subr.bf16.mxu0 0
    %6284 = vmatpush1.bf16.msra.mxu0 0
    %6285 = vmatprep.subr.bf16.mxu0 0
    %6286 = vmatpush1.bf16.msra.mxu0 0
    %6287 = vmatprep.subr.bf16.mxu0 0
    %6288 = vmatpush1.bf16.msra.mxu0 0
    %6289 = vmatprep.subr.bf16.mxu0 0
    %6290 = vmatpush1.bf16.msra.mxu0 0
    %6291 = vmatprep.subr.bf16.mxu0 0
    %6292 = vmatpush1.bf16.msra.mxu0 0
    %6293 = vmatprep.mubr.bf16.mxu0 0
    %6294 = vmatmul.mubr.bf16.gmra.mrb[0].mxu0 %v6214
    %v6295 = vpop.f32.mrb[0].mxu0
    %v6296 = vadd.f32 0.0, %v6295
    %v6297 = vpop.f32.mrb[0].mxu0
    %v6298 = vpop.f32.mrb[0].mxu0
    %v6299 = vadd.f32 0.0, %v6298
    %v6300 = vpop.f32.mrb[0].mxu0
    %6301 = vmatprep.mubr.bf16.mxu0 0
    %6302 = vmatmul.mubr.bf16.gmra.mrb[0].mxu0 %v6217
    %v6303 = vpop.f32.mrb[0].mxu0
    %v6304 = vadd.f32 0.0, %v6303
    %v6305 = vpop.f32.mrb[0].mxu0
    %v6306 = vpop.f32.mrb[0].mxu0
    %v6307 = vadd.f32 0.0, %v6306
    %v6308 = vpop.f32.mrb[0].mxu0
    %6309 = vmatprep.mubr.bf16.mxu0 0
    %6310 = vmatmul.mubr.bf16.gmra.mrb[0].mxu0 %v6220
    %v6311 = vpop.f32.mrb[0].mxu0
    %v6312 = vadd.f32 0.0, %v6311
    %v6313 = vpop.f32.mrb[0].mxu0
    %v6314 = vpop.f32.mrb[0].mxu0
    %v6315 = vadd.f32 0.0, %v6314
    %v6316 = vpop.f32.mrb[0].mxu0
    %6317 = vmatprep.mubr.bf16.mxu0 0
    %6318 = vmatmul.mubr.bf16.gmra.mrb[0].mxu0 %v6223
    %v6319 = vpop.f32.mrb[0].mxu0
    %v6320 = vadd.f32 0.0, %v6319
    %v6321 = vpop.f32.mrb[0].mxu0
    %v6322 = vpop.f32.mrb[0].mxu0
    %v6323 = vadd.f32 0.0, %v6322
    %v6324 = vpop.f32.mrb[0].mxu0
    %6325 = vmatprep.mubr.bf16.mxu0 0
    %6326 = vmatmul.mubr.bf16.gmra.mrb[0].mxu0 %v6226
    %v6327 = vpop.f32.mrb[0].mxu0
    %v6328 = vadd.f32 0.0, %v6327
    %v6329 = vpop.f32.mrb[0].mxu0
    %v6330 = vpop.f32.mrb[0].mxu0
    %v6331 = vadd.f32 0.0, %v6330
    %v6332 = vpop.f32.mrb[0].mxu0
    %6333 = vmatprep.mubr.bf16.mxu0 0
    %6334 = vmatmul.mubr.bf16.gmra.mrb[0].mxu0 %v6229
    %v6335 = vpop.f32.mrb[0].mxu0
    %v6336 = vadd.f32 0.0, %v6335
    %v6337 = vpop.f32.mrb[0].mxu0
    %v6338 = vpop.f32.mrb[0].mxu0
    %v6339 = vadd.f32 0.0, %v6338
    %v6340 = vpop.f32.mrb[0].mxu0
    %6341 = vmatprep.mubr.bf16.mxu0 0
    %6342 = vmatmul.mubr.bf16.gmra.mrb[0].mxu0 %v6232
    %v6343 = vpop.f32.mrb[0].mxu0
    %v6344 = vadd.f32 0.0, %v6343
    %v6345 = vpop.f32.mrb[0].mxu0
    %v6346 = vpop.f32.mrb[0].mxu0
    %v6347 = vadd.f32 0.0, %v6346
    %v6348 = vpop.f32.mrb[0].mxu0
    %6349 = vmatprep.mubr.bf16.mxu0 0
    %6350 = vmatmul.mubr.bf16.gmra.mrb[0].mxu0 %v6235
    %v6351 = vpop.f32.mrb[0].mxu0
    %v6352 = vadd.f32 0.0, %v6351
    %v6353 = vpop.f32.mrb[0].mxu0
    %v6354 = vpop.f32.mrb[0].mxu0
    %v6355 = vadd.f32 0.0, %v6354
    %v6356 = vpop.f32.mrb[0].mxu0
    %6357 = vmatprep.mubr.bf16.mxu0 0
    %6358 = vmatmul.mubr.bf16.gmra.mrb[0].mxu0 %v6238
    %v6359 = vpop.f32.mrb[0].mxu0
    %v6360 = vadd.f32 0.0, %v6359
    %v6361 = vpop.f32.mrb[0].mxu0
    %v6362 = vpop.f32.mrb[0].mxu0
    %v6363 = vadd.f32 0.0, %v6362
    %v6364 = vpop.f32.mrb[0].mxu0
    %6365 = vmatprep.mubr.bf16.mxu0 0
    %6366 = vmatmul.mubr.bf16.gmra.mrb[0].mxu0 %v6241
    %v6367 = vpop.f32.mrb[0].mxu0
    %v6368 = vadd.f32 0.0, %v6367
    %v6369 = vpop.f32.mrb[0].mxu0
    %v6370 = vpop.f32.mrb[0].mxu0
    %v6371 = vadd.f32 0.0, %v6370
    %v6372 = vpop.f32.mrb[0].mxu0
    %6373 = vmatprep.mubr.bf16.mxu0 0
    %6374 = vmatmul.mubr.bf16.gmra.mrb[0].mxu0 %v6244
    %v6375 = vpop.f32.mrb[0].mxu0
    %v6376 = vadd.f32 0.0, %v6375
    %v6377 = vpop.f32.mrb[0].mxu0
    %v6378 = vpop.f32.mrb[0].mxu0
    %v6379 = vadd.f32 0.0, %v6378
    %v6380 = vpop.f32.mrb[0].mxu0
    %6381 = vmatprep.mubr.bf16.mxu0 0
    %6382 = vmatmul.mubr.bf16.gmra.mrb[0].mxu0 %v6247
    %v6383 = vpop.f32.mrb[0].mxu0
    %v6384 = vadd.f32 0.0, %v6383
    %v6385 = vpop.f32.mrb[0].mxu0
    %v6386 = vpop.f32.mrb[0].mxu0
    %v6387 = vadd.f32 0.0, %v6386
    %v6388 = vpop.f32.mrb[0].mxu0
    %6389 = vmatprep.mubr.bf16.mxu0 0
    %6390 = vmatmul.mubr.bf16.gmra.mrb[0].mxu0 %v6250
    %v6391 = vpop.f32.mrb[0].mxu0
    %v6392 = vadd.f32 0.0, %v6391
    %v6393 = vpop.f32.mrb[0].mxu0
    %v6394 = vpop.f32.mrb[0].mxu0
    %v6395 = vadd.f32 0.0, %v6394
    %v6396 = vpop.f32.mrb[0].mxu0
    %6397 = vmatprep.mubr.bf16.mxu0 0
    %6398 = vmatmul.mubr.bf16.gmra.mrb[0].mxu0 %v6253
    %v6399 = vpop.f32.mrb[0].mxu0
    %v6400 = vadd.f32 0.0, %v6399
    %v6401 = vpop.f32.mrb[0].mxu0
    %v6402 = vpop.f32.mrb[0].mxu0
    %v6403 = vadd.f32 0.0, %v6402
    %v6404 = vpop.f32.mrb[0].mxu0
    %6405 = vmatprep.mubr.bf16.mxu0 0
    %6406 = vmatmul.mubr.bf16.gmra.mrb[0].mxu0 %v6256
    %v6407 = vpop.f32.mrb[0].mxu0
    %v6408 = vadd.f32 0.0, %v6407
    %v6409 = vpop.f32.mrb[0].mxu0
    %v6410 = vpop.f32.mrb[0].mxu0
    %v6411 = vadd.f32 0.0, %v6410
    %v6412 = vpop.f32.mrb[0].mxu0
    %6413 = vmatprep.mubr.bf16.mxu0 0
    %6414 = vmatmul.mubr.bf16.gmra.mrb[0].mxu0 %v6259
    %v6415 = vpop.f32.mrb[0].mxu0
    %v6416 = vadd.f32 0.0, %v6415
    %v6417 = vpop.f32.mrb[0].mxu0
    %v6418 = vpop.f32.mrb[0].mxu0
    %v6419 = vadd.f32 0.0, %v6418
    %v6420 = vpop.f32.mrb[0].mxu0
    %6421 = vdwg.mxu0
    %s6422 = scalar_lea.vmem [#allocation14], 1
    %v6423 = vld [vmem:[%s6422] sm:$0x1]
    %v6425 = vlaneseq
    %v6426 = vshrl.u32 %v6425, 7
    %v6427 = vsub.s32 0, %v6426
    %v6428 = vrot.slane %v6423, %v6427
    %v6430 = vmul.f32 %v6296, %v6428
    %v6431 = vmul.f32 %v6299, %v6428
    %v6432 = vmul.f32 %v6304, %v6428
    %v6433 = vmul.f32 %v6307, %v6428
    %v6434 = vmul.f32 %v6312, %v6428
    %v6435 = vmul.f32 %v6315, %v6428
    %v6436 = vmul.f32 %v6320, %v6428
    %v6437 = vmul.f32 %v6323, %v6428
    %v6438 = vmul.f32 %v6328, %v6428
    %v6439 = vmul.f32 %v6331, %v6428
    %v6440 = vmul.f32 %v6336, %v6428
    %v6441 = vmul.f32 %v6339, %v6428
    %v6442 = vmul.f32 %v6344, %v6428
    %v6443 = vmul.f32 %v6347, %v6428
    %v6444 = vmul.f32 %v6352, %v6428
    %v6445 = vmul.f32 %v6355, %v6428
    %v6446 = vmul.f32 %v6360, %v6428
    %v6447 = vmul.f32 %v6363, %v6428
    %v6448 = vmul.f32 %v6368, %v6428
    %v6449 = vmul.f32 %v6371, %v6428
    %v6450 = vmul.f32 %v6376, %v6428
    %v6451 = vmul.f32 %v6379, %v6428
    %v6452 = vmul.f32 %v6384, %v6428
    %v6453 = vmul.f32 %v6387, %v6428
    %v6454 = vmul.f32 %v6392, %v6428
    %v6455 = vmul.f32 %v6395, %v6428
    %v6456 = vmul.f32 %v6400, %v6428
    %v6457 = vmul.f32 %v6403, %v6428
    %v6458 = vmul.f32 %v6408, %v6428
    %v6459 = vmul.f32 %v6411, %v6428
    %v6460 = vmul.f32 %v6416, %v6428
    %v6461 = vmul.f32 %v6419, %v6428
    %s6462 = scalar_lea.vmem [#allocation15], 1
    %v6463 = vld [vmem:[%s6462] sm:$0x1]
    %v6465 = vlaneseq
    %v6466 = vshrl.u32 %v6465, 7
    %v6467 = vsub.s32 0, %v6466
    %v6468 = vrot.slane %v6463, %v6467
    %v6470 = vadd.f32 %v6430, %v6468
    %v6471 = vadd.f32 %v6431, %v6468
    %v6472 = vadd.f32 %v6432, %v6468
    %v6473 = vadd.f32 %v6433, %v6468
    %v6474 = vadd.f32 %v6434, %v6468
    %v6475 = vadd.f32 %v6435, %v6468
    %v6476 = vadd.f32 %v6436, %v6468
    %v6477 = vadd.f32 %v6437, %v6468
    %v6478 = vadd.f32 %v6438, %v6468
    %v6479 = vadd.f32 %v6439, %v6468
    %v6480 = vadd.f32 %v6440, %v6468
    %v6481 = vadd.f32 %v6441, %v6468
    %v6482 = vadd.f32 %v6442, %v6468
    %v6483 = vadd.f32 %v6443, %v6468
    %v6484 = vadd.f32 %v6444, %v6468
    %v6485 = vadd.f32 %v6445, %v6468
    %v6486 = vadd.f32 %v6446, %v6468
    %v6487 = vadd.f32 %v6447, %v6468
    %v6488 = vadd.f32 %v6448, %v6468
    %v6489 = vadd.f32 %v6449, %v6468
    %v6490 = vadd.f32 %v6450, %v6468
    %v6491 = vadd.f32 %v6451, %v6468
    %v6492 = vadd.f32 %v6452, %v6468
    %v6493 = vadd.f32 %v6453, %v6468
    %v6494 = vadd.f32 %v6454, %v6468
    %v6495 = vadd.f32 %v6455, %v6468
    %v6496 = vadd.f32 %v6456, %v6468
    %v6497 = vadd.f32 %v6457, %v6468
    %v6498 = vadd.f32 %v6458, %v6468
    %v6499 = vadd.f32 %v6459, %v6468
    %v6500 = vadd.f32 %v6460, %v6468
    %v6501 = vadd.f32 %v6461, %v6468
    %v6502 = vsub.f32 0.0, %v6470
    %v6503 = vsub.f32 0.0, %v6471
    %v6504 = vsub.f32 0.0, %v6472
    %v6505 = vsub.f32 0.0, %v6473
    %v6506 = vsub.f32 0.0, %v6474
    %v6507 = vsub.f32 0.0, %v6475
    %v6508 = vsub.f32 0.0, %v6476
    %v6509 = vsub.f32 0.0, %v6477
    %v6510 = vsub.f32 0.0, %v6478
    %v6511 = vsub.f32 0.0, %v6479
    %v6512 = vsub.f32 0.0, %v6480
    %v6513 = vsub.f32 0.0, %v6481
    %v6514 = vsub.f32 0.0, %v6482
    %v6515 = vsub.f32 0.0, %v6483
    %v6516 = vsub.f32 0.0, %v6484
    %v6517 = vsub.f32 0.0, %v6485
    %v6518 = vsub.f32 0.0, %v6486
    %v6519 = vsub.f32 0.0, %v6487
    %v6520 = vsub.f32 0.0, %v6488
    %v6521 = vsub.f32 0.0, %v6489
    %v6522 = vsub.f32 0.0, %v6490
    %v6523 = vsub.f32 0.0, %v6491
    %v6524 = vsub.f32 0.0, %v6492
    %v6525 = vsub.f32 0.0, %v6493
    %v6526 = vsub.f32 0.0, %v6494
    %v6527 = vsub.f32 0.0, %v6495
    %v6528 = vsub.f32 0.0, %v6496
    %v6529 = vsub.f32 0.0, %v6497
    %v6530 = vsub.f32 0.0, %v6498
    %v6531 = vsub.f32 0.0, %v6499
    %v6532 = vsub.f32 0.0, %v6500
    %v6533 = vsub.f32 0.0, %v6501
    %v6534 = vmul.f32 %v6502, 1.442695
    %v6535 = vpow.pop %v6534
    %v6536 = vmul.f32 %v6503, 1.442695
    %v6537 = vpow.pop %v6536
    %v6538 = vmul.f32 %v6504, 1.442695
    %v6539 = vpow.pop %v6538
    %v6540 = vmul.f32 %v6505, 1.442695
    %v6541 = vpow.pop %v6540
    %v6542 = vmul.f32 %v6506, 1.442695
    %v6543 = vpow.pop %v6542
    %v6544 = vmul.f32 %v6507, 1.442695
    %v6545 = vpow.pop %v6544
    %v6546 = vmul.f32 %v6508, 1.442695
    %v6547 = vpow.pop %v6546
    %v6548 = vmul.f32 %v6509, 1.442695
    %v6549 = vpow.pop %v6548
    %v6550 = vmul.f32 %v6510, 1.442695
    %v6551 = vpow.pop %v6550
    %v6552 = vmul.f32 %v6511, 1.442695
    %v6553 = vpow.pop %v6552
    %v6554 = vmul.f32 %v6512, 1.442695
    %v6555 = vpow.pop %v6554
    %v6556 = vmul.f32 %v6513, 1.442695
    %v6557 = vpow.pop %v6556
    %v6558 = vmul.f32 %v6514, 1.442695
    %v6559 = vpow.pop %v6558
    %v6560 = vmul.f32 %v6515, 1.442695
    %v6561 = vpow.pop %v6560
    %v6562 = vmul.f32 %v6516, 1.442695
    %v6563 = vpow.pop %v6562
    %v6564 = vmul.f32 %v6517, 1.442695
    %v6565 = vpow.pop %v6564
    %v6566 = vmul.f32 %v6518, 1.442695
    %v6567 = vpow.pop %v6566
    %v6568 = vmul.f32 %v6519, 1.442695
    %v6569 = vpow.pop %v6568
    %v6570 = vmul.f32 %v6520, 1.442695
    %v6571 = vpow.pop %v6570
    %v6572 = vmul.f32 %v6521, 1.442695
    %v6573 = vpow.pop %v6572
    %v6574 = vmul.f32 %v6522, 1.442695
    %v6575 = vpow.pop %v6574
    %v6576 = vmul.f32 %v6523, 1.442695
    %v6577 = vpow.pop %v6576
    %v6578 = vmul.f32 %v6524, 1.442695
    %v6579 = vpow.pop %v6578
    %v6580 = vmul.f32 %v6525, 1.442695
    %v6581 = vpow.pop %v6580
    %v6582 = vmul.f32 %v6526, 1.442695
    %v6583 = vpow.pop %v6582
    %v6584 = vmul.f32 %v6527, 1.442695
    %v6585 = vpow.pop %v6584
    %v6586 = vmul.f32 %v6528, 1.442695
    %v6587 = vpow.pop %v6586
    %v6588 = vmul.f32 %v6529, 1.442695
    %v6589 = vpow.pop %v6588
    %v6590 = vmul.f32 %v6530, 1.442695
    %v6591 = vpow.pop %v6590
    %v6592 = vmul.f32 %v6531, 1.442695
    %v6593 = vpow.pop %v6592
    %v6594 = vmul.f32 %v6532, 1.442695
    %v6595 = vpow.pop %v6594
    %v6596 = vmul.f32 %v6533, 1.442695
    %v6597 = vpow.pop %v6596
    %v6598 = vadd.f32 %v6535, 1.0
    %v6599 = vadd.f32 %v6537, 1.0
    %v6600 = vadd.f32 %v6539, 1.0
    %v6601 = vadd.f32 %v6541, 1.0
    %v6602 = vadd.f32 %v6543, 1.0
    %v6603 = vadd.f32 %v6545, 1.0
    %v6604 = vadd.f32 %v6547, 1.0
    %v6605 = vadd.f32 %v6549, 1.0
    %v6606 = vadd.f32 %v6551, 1.0
    %v6607 = vadd.f32 %v6553, 1.0
    %v6608 = vadd.f32 %v6555, 1.0
    %v6609 = vadd.f32 %v6557, 1.0
    %v6610 = vadd.f32 %v6559, 1.0
    %v6611 = vadd.f32 %v6561, 1.0
    %v6612 = vadd.f32 %v6563, 1.0
    %v6613 = vadd.f32 %v6565, 1.0
    %v6614 = vadd.f32 %v6567, 1.0
    %v6615 = vadd.f32 %v6569, 1.0
    %v6616 = vadd.f32 %v6571, 1.0
    %v6617 = vadd.f32 %v6573, 1.0
    %v6618 = vadd.f32 %v6575, 1.0
    %v6619 = vadd.f32 %v6577, 1.0
    %v6620 = vadd.f32 %v6579, 1.0
    %v6621 = vadd.f32 %v6581, 1.0
    %v6622 = vadd.f32 %v6583, 1.0
    %v6623 = vadd.f32 %v6585, 1.0
    %v6624 = vadd.f32 %v6587, 1.0
    %v6625 = vadd.f32 %v6589, 1.0
    %v6626 = vadd.f32 %v6591, 1.0
    %v6627 = vadd.f32 %v6593, 1.0
    %v6628 = vadd.f32 %v6595, 1.0
    %v6629 = vadd.f32 %v6597, 1.0
    %v6630 = vrcp.pop %v6598
    %v6631 = vrcp.pop %v6599
    %v6632 = vrcp.pop %v6600
    %v6633 = vrcp.pop %v6601
    %v6634 = vrcp.pop %v6602
    %v6635 = vrcp.pop %v6603
    %v6636 = vrcp.pop %v6604
    %v6637 = vrcp.pop %v6605
    %v6638 = vrcp.pop %v6606
    %v6639 = vrcp.pop %v6607
    %v6640 = vrcp.pop %v6608
    %v6641 = vrcp.pop %v6609
    %v6642 = vrcp.pop %v6610
    %v6643 = vrcp.pop %v6611
    %v6644 = vrcp.pop %v6612
    %v6645 = vrcp.pop %v6613
    %v6646 = vrcp.pop %v6614
    %v6647 = vrcp.pop %v6615
    %v6648 = vrcp.pop %v6616
    %v6649 = vrcp.pop %v6617
    %v6650 = vrcp.pop %v6618
    %v6651 = vrcp.pop %v6619
    %v6652 = vrcp.pop %v6620
    %v6653 = vrcp.pop %v6621
    %v6654 = vrcp.pop %v6622
    %v6655 = vrcp.pop %v6623
    %v6656 = vrcp.pop %v6624
    %v6657 = vrcp.pop %v6625
    %v6658 = vrcp.pop %v6626
    %v6659 = vrcp.pop %v6627
    %v6660 = vrcp.pop %v6628
    %v6661 = vrcp.pop %v6629
    %v6662 = vmul.f32 %v6470, %v6630
    %v6663 = vmul.f32 %v6471, %v6631
    %v6664 = vmul.f32 %v6472, %v6632
    %v6665 = vmul.f32 %v6473, %v6633
    %v6666 = vmul.f32 %v6474, %v6634
    %v6667 = vmul.f32 %v6475, %v6635
    %v6668 = vmul.f32 %v6476, %v6636
    %v6669 = vmul.f32 %v6477, %v6637
    %v6670 = vmul.f32 %v6478, %v6638
    %v6671 = vmul.f32 %v6479, %v6639
    %v6672 = vmul.f32 %v6480, %v6640
    %v6673 = vmul.f32 %v6481, %v6641
    %v6674 = vmul.f32 %v6482, %v6642
    %v6675 = vmul.f32 %v6483, %v6643
    %v6676 = vmul.f32 %v6484, %v6644
    %v6677 = vmul.f32 %v6485, %v6645
    %v6678 = vmul.f32 %v6486, %v6646
    %v6679 = vmul.f32 %v6487, %v6647
    %v6680 = vmul.f32 %v6488, %v6648
    %v6681 = vmul.f32 %v6489, %v6649
    %v6682 = vmul.f32 %v6490, %v6650
    %v6683 = vmul.f32 %v6491, %v6651
    %v6684 = vmul.f32 %v6492, %v6652
    %v6685 = vmul.f32 %v6493, %v6653
    %v6686 = vmul.f32 %v6494, %v6654
    %v6687 = vmul.f32 %v6495, %v6655
    %v6688 = vmul.f32 %v6496, %v6656
    %v6689 = vmul.f32 %v6497, %v6657
    %v6690 = vmul.f32 %v6498, %v6658
    %v6691 = vmul.f32 %v6499, %v6659
    %v6692 = vmul.f32 %v6500, %v6660
    %v6693 = vmul.f32 %v6501, %v6661
    %v6694 = vmul.f32 %v6662, %v401
    %v6695 = vmul.f32 %v6663, %v406
    %v6696 = vmul.f32 %v6664, %v411
    %v6697 = vmul.f32 %v6665, %v416
    %v6698 = vmul.f32 %v6666, %v421
    %v6699 = vmul.f32 %v6667, %v426
    %v6700 = vmul.f32 %v6668, %v431
    %v6701 = vmul.f32 %v6669, %v436
    %v6702 = vmul.f32 %v6670, %v441
    %v6703 = vmul.f32 %v6671, %v446
    %v6704 = vmul.f32 %v6672, %v451
    %v6705 = vmul.f32 %v6673, %v456
    %v6706 = vmul.f32 %v6674, %v461
    %v6707 = vmul.f32 %v6675, %v466
    %v6708 = vmul.f32 %v6676, %v471
    %v6709 = vmul.f32 %v6677, %v476
    %v6710 = vmul.f32 %v6678, %v481
    %v6711 = vmul.f32 %v6679, %v486
    %v6712 = vmul.f32 %v6680, %v491
    %v6713 = vmul.f32 %v6681, %v496
    %v6714 = vmul.f32 %v6682, %v501
    %v6715 = vmul.f32 %v6683, %v506
    %v6716 = vmul.f32 %v6684, %v511
    %v6717 = vmul.f32 %v6685, %v516
    %v6718 = vmul.f32 %v6686, %v521
    %v6719 = vmul.f32 %v6687, %v526
    %v6720 = vmul.f32 %v6688, %v531
    %v6721 = vmul.f32 %v6689, %v536
    %v6722 = vmul.f32 %v6690, %v541
    %v6723 = vmul.f32 %v6691, %v546
    %v6724 = vmul.f32 %v6692, %v551
    %v6725 = vmul.f32 %v6693, %v556
    %6726 = vst.msk [vmem:[#allocation2 + $0x10] sm:$0xff] %vm558, %v6694
    %6727 = vst.msk [vmem:[#allocation2 + $0x18] sm:$0xff] %vm558, %v6695
    %6728 = vst.msk [vmem:[#allocation2 + $0x20] sm:$0xff] %vm558, %v6696
    %6729 = vst.msk [vmem:[#allocation2 + $0x28] sm:$0xff] %vm558, %v6697
    %6730 = vst.msk [vmem:[#allocation2 + $0x30] sm:$0xff] %vm558, %v6698
    %6731 = vst.msk [vmem:[#allocation2 + $0x38] sm:$0xff] %vm558, %v6699
    %6732 = vst.msk [vmem:[#allocation2 + $0x40] sm:$0xff] %vm558, %v6700
    %6733 = vst.msk [vmem:[#allocation2 + $0x48] sm:$0xff] %vm558, %v6701
    %6734 = vst.msk [vmem:[#allocation2 + $0x50] sm:$0xff] %vm558, %v6702
    %6735 = vst.msk [vmem:[#allocation2 + $0x58] sm:$0xff] %vm558, %v6703
    %6736 = vst.msk [vmem:[#allocation2 + $0x60] sm:$0xff] %vm558, %v6704
    %6737 = vst.msk [vmem:[#allocation2 + $0x68] sm:$0xff] %vm558, %v6705
    %6738 = vst.msk [vmem:[#allocation2 + $0x70] sm:$0xff] %vm558, %v6706
    %6739 = vst.msk [vmem:[#allocation2 + $0x78] sm:$0xff] %vm558, %v6707
    %6740 = vst.msk [vmem:[#allocation2 + $0x80] sm:$0xff] %vm558, %v6708
    %6741 = vst.msk [vmem:[#allocation2 + $0x88] sm:$0xff] %vm558, %v6709
    %6742 = vst.msk [vmem:[#allocation2 + $0xb0] sm:$0xff] %vm558, %v6710
    %6743 = vst.msk [vmem:[#allocation2 + $0xb8] sm:$0xff] %vm558, %v6711
    %6744 = vst.msk [vmem:[#allocation2 + $0xc0] sm:$0xff] %vm558, %v6712
    %6745 = vst.msk [vmem:[#allocation2 + $0xc8] sm:$0xff] %vm558, %v6713
    %6746 = vst.msk [vmem:[#allocation2 + $0xd0] sm:$0xff] %vm558, %v6714
    %6747 = vst.msk [vmem:[#allocation2 + $0xd8] sm:$0xff] %vm558, %v6715
    %6748 = vst.msk [vmem:[#allocation2 + $0xe0] sm:$0xff] %vm558, %v6716
    %6749 = vst.msk [vmem:[#allocation2 + $0xe8] sm:$0xff] %vm558, %v6717
    %6750 = vst.msk [vmem:[#allocation2 + $0xf0] sm:$0xff] %vm558, %v6718
    %6751 = vst.msk [vmem:[#allocation2 + $0xf8] sm:$0xff] %vm558, %v6719
    %6752 = vst.msk [vmem:[#allocation2 + $0x100] sm:$0xff] %vm558, %v6720
    %6753 = vst.msk [vmem:[#allocation2 + $0x108] sm:$0xff] %vm558, %v6721
    %6754 = vst.msk [vmem:[#allocation2 + $0x110] sm:$0xff] %vm558, %v6722
    %6755 = vst.msk [vmem:[#allocation2 + $0x118] sm:$0xff] %vm558, %v6723
    %6756 = vst.msk [vmem:[#allocation2 + $0x120] sm:$0xff] %vm558, %v6724
    %6757 = vst.msk [vmem:[#allocation2 + $0x128] sm:$0xff] %vm558, %v6725
    %s6758 = scalar_lea.vmem [#allocation17], 36
    %v6759 = vld [vmem:[%s6758] sm:$0xf]
    %v6760 = vld [vmem:[%s6758 + $0x4] sm:$0xf]
    %v6761 = vld [vmem:[%s6758 + $0x8] sm:$0xf]
    %v6762 = vld [vmem:[%s6758 + $0xc] sm:$0xf]
    %v6763 = vld [vmem:[%s6758 + $0x10] sm:$0xf]
    %v6764 = vld [vmem:[%s6758 + $0x14] sm:$0xf]
    %v6765 = vld [vmem:[%s6758 + $0x18] sm:$0xf]
    %v6766 = vld [vmem:[%s6758 + $0x1c] sm:$0xf]
    %v6767 = vld [vmem:[%s6758 + $0x20] sm:$0xf]
    %v6768 = vld [vmem:[#allocation2 + $0x4] sm:$0xff]
    %v6769 = vld [vmem:[#allocation2 + $0xc] sm:$0xff]
    %v6770 = vld [vmem:[#allocation2 + $0x14] sm:$0xff]
    %v6771 = vld [vmem:[#allocation2 + $0x1c] sm:$0xff]
    %v6772 = vld [vmem:[#allocation2 + $0x24] sm:$0xff]
    %v6773 = vld [vmem:[#allocation2 + $0x2c] sm:$0xff]
    %v6774 = vld [vmem:[#allocation2 + $0x34] sm:$0xff]
    %v6775 = vld [vmem:[#allocation2 + $0x3c] sm:$0xff]
    %v6776 = vld [vmem:[#allocation2 + $0x44] sm:$0xff]
    %v6777 = vld [vmem:[#allocation2 + $0x4c] sm:$0xff]
    %v6778 = vld [vmem:[#allocation2 + $0x54] sm:$0xff]
    %v6779 = vld [vmem:[#allocation2 + $0x5c] sm:$0xff]
    %v6780 = vld [vmem:[#allocation2 + $0x64] sm:$0xff]
    %v6781 = vld [vmem:[#allocation2 + $0x6c] sm:$0xff]
    %v6782 = vld [vmem:[#allocation2 + $0x74] sm:$0xff]
    %v6783 = vld [vmem:[#allocation2 + $0x7c] sm:$0xff]
    %v6784 = vld [vmem:[#allocation2 + $0xa4] sm:$0xff]
    %v6785 = vld [vmem:[#allocation2 + $0xac] sm:$0xff]
    %v6786 = vld [vmem:[#allocation2 + $0xb4] sm:$0xff]
    %v6787 = vld [vmem:[#allocation2 + $0xbc] sm:$0xff]
    %v6788 = vld [vmem:[#allocation2 + $0xc4] sm:$0xff]
    %v6789 = vld [vmem:[#allocation2 + $0xcc] sm:$0xff]
    %v6790 = vld [vmem:[#allocation2 + $0xd4] sm:$0xff]
    %v6791 = vld [vmem:[#allocation2 + $0xdc] sm:$0xff]
    %v6792 = vld [vmem:[#allocation2 + $0xe4] sm:$0xff]
    %v6793 = vld [vmem:[#allocation2 + $0xec] sm:$0xff]
    %v6794 = vld [vmem:[#allocation2 + $0xf4] sm:$0xff]
    %v6795 = vld [vmem:[#allocation2 + $0xfc] sm:$0xff]
    %v6796 = vld [vmem:[#allocation2 + $0x104] sm:$0xff]
    %v6797 = vld [vmem:[#allocation2 + $0x10c] sm:$0xff]
    %v6798 = vld [vmem:[#allocation2 + $0x114] sm:$0xff]
    %v6799 = vld [vmem:[#allocation2 + $0x11c] sm:$0xff]
    %v6800 = vld [vmem:[#allocation2 + $0x5] sm:$0xff]
    %v6801 = vld [vmem:[#allocation2 + $0xd] sm:$0xff]
    %v6802 = vld [vmem:[#allocation2 + $0x15] sm:$0xff]
    %v6803 = vld [vmem:[#allocation2 + $0x1d] sm:$0xff]
    %v6804 = vld [vmem:[#allocation2 + $0x25] sm:$0xff]
    %v6805 = vld [vmem:[#allocation2 + $0x2d] sm:$0xff]
    %v6806 = vld [vmem:[#allocation2 + $0x35] sm:$0xff]
    %v6807 = vld [vmem:[#allocation2 + $0x3d] sm:$0xff]
    %v6808 = vld [vmem:[#allocation2 + $0x45] sm:$0xff]
    %v6809 = vld [vmem:[#allocation2 + $0x4d] sm:$0xff]
    %v6810 = vld [vmem:[#allocation2 + $0x55] sm:$0xff]
    %v6811 = vld [vmem:[#allocation2 + $0x5d] sm:$0xff]
    %v6812 = vld [vmem:[#allocation2 + $0x65] sm:$0xff]
    %v6813 = vld [vmem:[#allocation2 + $0x6d] sm:$0xff]
    %v6814 = vld [vmem:[#allocation2 + $0x75] sm:$0xff]
    %v6815 = vld [vmem:[#allocation2 + $0x7d] sm:$0xff]
    %v6816 = vld [vmem:[#allocation2 + $0xa5] sm:$0xff]
    %v6817 = vld [vmem:[#allocation2 + $0xad] sm:$0xff]
    %v6818 = vld [vmem:[#allocation2 + $0xb5] sm:$0xff]
    %v6819 = vld [vmem:[#allocation2 + $0xbd] sm:$0xff]
    %v6820 = vld [vmem:[#allocation2 + $0xc5] sm:$0xff]
    %v6821 = vld [vmem:[#allocation2 + $0xcd] sm:$0xff]
    %v6822 = vld [vmem:[#allocation2 + $0xd5] sm:$0xff]
    %v6823 = vld [vmem:[#allocation2 + $0xdd] sm:$0xff]
    %v6824 = vld [vmem:[#allocation2 + $0xe5] sm:$0xff]
    %v6825 = vld [vmem:[#allocation2 + $0xed] sm:$0xff]
    %v6826 = vld [vmem:[#allocation2 + $0xf5] sm:$0xff]
    %v6827 = vld [vmem:[#allocation2 + $0xfd] sm:$0xff]
    %v6828 = vld [vmem:[#allocation2 + $0x105] sm:$0xff]
    %v6829 = vld [vmem:[#allocation2 + $0x10d] sm:$0xff]
    %v6830 = vld [vmem:[#allocation2 + $0x115] sm:$0xff]
    %v6831 = vld [vmem:[#allocation2 + $0x11d] sm:$0xff]
    %v6832 = vld [vmem:[#allocation2 + $0x6] sm:$0xff]
    %v6833 = vld [vmem:[#allocation2 + $0xe] sm:$0xff]
    %v6834 = vld [vmem:[#allocation2 + $0x16] sm:$0xff]
    %v6835 = vld [vmem:[#allocation2 + $0x1e] sm:$0xff]
    %v6836 = vld [vmem:[#allocation2 + $0x26] sm:$0xff]
    %v6837 = vld [vmem:[#allocation2 + $0x2e] sm:$0xff]
    %v6838 = vld [vmem:[#allocation2 + $0x36] sm:$0xff]
    %v6839 = vld [vmem:[#allocation2 + $0x3e] sm:$0xff]
    %v6840 = vld [vmem:[#allocation2 + $0x46] sm:$0xff]
    %v6841 = vld [vmem:[#allocation2 + $0x4e] sm:$0xff]
    %v6842 = vld [vmem:[#allocation2 + $0x56] sm:$0xff]
    %v6843 = vld [vmem:[#allocation2 + $0x5e] sm:$0xff]
    %v6844 = vld [vmem:[#allocation2 + $0x66] sm:$0xff]
    %v6845 = vld [vmem:[#allocation2 + $0x6e] sm:$0xff]
    %v6846 = vld [vmem:[#allocation2 + $0x76] sm:$0xff]
    %v6847 = vld [vmem:[#allocation2 + $0x7e] sm:$0xff]
    %v6848 = vld [vmem:[#allocation2 + $0xa6] sm:$0xff]
    %v6849 = vld [vmem:[#allocation2 + $0xae] sm:$0xff]
    %v6850 = vld [vmem:[#allocation2 + $0xb6] sm:$0xff]
    %v6851 = vld [vmem:[#allocation2 + $0xbe] sm:$0xff]
    %v6852 = vld [vmem:[#allocation2 + $0xc6] sm:$0xff]
    %v6853 = vld [vmem:[#allocation2 + $0xce] sm:$0xff]
    %v6854 = vld [vmem:[#allocation2 + $0xd6] sm:$0xff]
    %v6855 = vld [vmem:[#allocation2 + $0xde] sm:$0xff]
    %v6856 = vld [vmem:[#allocation2 + $0xe6] sm:$0xff]
    %v6857 = vld [vmem:[#allocation2 + $0xee] sm:$0xff]
    %v6858 = vld [vmem:[#allocation2 + $0xf6] sm:$0xff]
    %v6859 = vld [vmem:[#allocation2 + $0xfe] sm:$0xff]
    %v6860 = vld [vmem:[#allocation2 + $0x106] sm:$0xff]
    %v6861 = vld [vmem:[#allocation2 + $0x10e] sm:$0xff]
    %v6862 = vld [vmem:[#allocation2 + $0x116] sm:$0xff]
    %v6863 = vld [vmem:[#allocation2 + $0x11e] sm:$0xff]
    %v6864 = vld [vmem:[#allocation2 + $0xf] sm:$0xff]
    %v6865 = vld [vmem:[#allocation2 + $0x17] sm:$0xff]
    %v6866 = vld [vmem:[#allocation2 + $0x1f] sm:$0xff]
    %v6867 = vld [vmem:[#allocation2 + $0x27] sm:$0xff]
    %v6868 = vld [vmem:[#allocation2 + $0x2f] sm:$0xff]
    %v6869 = vld [vmem:[#allocation2 + $0x37] sm:$0xff]
    %v6870 = vld [vmem:[#allocation2 + $0x3f] sm:$0xff]
    %v6871 = vld [vmem:[#allocation2 + $0x47] sm:$0xff]
    %v6872 = vld [vmem:[#allocation2 + $0x4f] sm:$0xff]
    %v6873 = vld [vmem:[#allocation2 + $0x57] sm:$0xff]
    %v6874 = vld [vmem:[#allocation2 + $0x5f] sm:$0xff]
    %v6875 = vld [vmem:[#allocation2 + $0x67] sm:$0xff]
    %v6876 = vld [vmem:[#allocation2 + $0x6f] sm:$0xff]
    %v6877 = vld [vmem:[#allocation2 + $0x77] sm:$0xff]
    %v6878 = vld [vmem:[#allocation2 + $0x7f] sm:$0xff]
    %v6879 = vld [vmem:[#allocation2 + $0x87] sm:$0xff]
    %v6880 = vld [vmem:[#allocation2 + $0xaf] sm:$0xff]
    %v6881 = vld [vmem:[#allocation2 + $0xb7] sm:$0xff]
    %v6882 = vld [vmem:[#allocation2 + $0xbf] sm:$0xff]
    %v6883 = vld [vmem:[#allocation2 + $0xc7] sm:$0xff]
    %v6884 = vld [vmem:[#allocation2 + $0xcf] sm:$0xff]
    %v6885 = vld [vmem:[#allocation2 + $0xd7] sm:$0xff]
    %v6886 = vld [vmem:[#allocation2 + $0xdf] sm:$0xff]
    %v6887 = vld [vmem:[#allocation2 + $0xe7] sm:$0xff]
    %v6888 = vld [vmem:[#allocation2 + $0xef] sm:$0xff]
    %v6889 = vld [vmem:[#allocation2 + $0xf7] sm:$0xff]
    %v6890 = vld [vmem:[#allocation2 + $0xff] sm:$0xff]
    %v6891 = vld [vmem:[#allocation2 + $0x107] sm:$0xff]
    %v6892 = vld [vmem:[#allocation2 + $0x10f] sm:$0xff]
    %v6893 = vld [vmem:[#allocation2 + $0x117] sm:$0xff]
    %v6894 = vld [vmem:[#allocation2 + $0x11f] sm:$0xff]
    %v6895 = vld [vmem:[#allocation2 + $0x127] sm:$0xff]
    %v6896 = vld [vmem:[#allocation2 + $0x10] sm:$0xff]
    %v6897 = vld [vmem:[#allocation2 + $0x18] sm:$0xff]
    %v6898 = vld [vmem:[#allocation2 + $0x20] sm:$0xff]
    %v6899 = vld [vmem:[#allocation2 + $0x28] sm:$0xff]
    %v6900 = vld [vmem:[#allocation2 + $0x30] sm:$0xff]
    %v6901 = vld [vmem:[#allocation2 + $0x38] sm:$0xff]
    %v6902 = vld [vmem:[#allocation2 + $0x40] sm:$0xff]
    %v6903 = vld [vmem:[#allocation2 + $0x48] sm:$0xff]
    %v6904 = vld [vmem:[#allocation2 + $0x50] sm:$0xff]
    %v6905 = vld [vmem:[#allocation2 + $0x58] sm:$0xff]
    %v6906 = vld [vmem:[#allocation2 + $0x60] sm:$0xff]
    %v6907 = vld [vmem:[#allocation2 + $0x68] sm:$0xff]
    %v6908 = vld [vmem:[#allocation2 + $0x70] sm:$0xff]
    %v6909 = vld [vmem:[#allocation2 + $0x78] sm:$0xff]
    %v6910 = vld [vmem:[#allocation2 + $0x80] sm:$0xff]
    %v6911 = vld [vmem:[#allocation2 + $0x88] sm:$0xff]
    %v6912 = vld [vmem:[#allocation2 + $0xb0] sm:$0xff]
    %v6913 = vld [vmem:[#allocation2 + $0xb8] sm:$0xff]
    %v6914 = vld [vmem:[#allocation2 + $0xc0] sm:$0xff]
    %v6915 = vld [vmem:[#allocation2 + $0xc8] sm:$0xff]
    %v6916 = vld [vmem:[#allocation2 + $0xd0] sm:$0xff]
    %v6917 = vld [vmem:[#allocation2 + $0xd8] sm:$0xff]
    %v6918 = vld [vmem:[#allocation2 + $0xe0] sm:$0xff]
    %v6919 = vld [vmem:[#allocation2 + $0xe8] sm:$0xff]
    %v6920 = vld [vmem:[#allocation2 + $0xf0] sm:$0xff]
    %v6921 = vld [vmem:[#allocation2 + $0xf8] sm:$0xff]
    %v6922 = vld [vmem:[#allocation2 + $0x100] sm:$0xff]
    %v6923 = vld [vmem:[#allocation2 + $0x108] sm:$0xff]
    %v6924 = vld [vmem:[#allocation2 + $0x110] sm:$0xff]
    %v6925 = vld [vmem:[#allocation2 + $0x118] sm:$0xff]
    %v6926 = vld [vmem:[#allocation2 + $0x120] sm:$0xff]
    %v6927 = vld [vmem:[#allocation2 + $0x128] sm:$0xff]
    %v6928 = vld [vmem:[#allocation2 + $0x11] sm:$0xff]
    %v6929 = vld [vmem:[#allocation2 + $0x19] sm:$0xff]
    %v6930 = vld [vmem:[#allocation2 + $0x21] sm:$0xff]
    %v6931 = vld [vmem:[#allocation2 + $0x29] sm:$0xff]
    %v6932 = vld [vmem:[#allocation2 + $0x31] sm:$0xff]
    %v6933 = vld [vmem:[#allocation2 + $0x39] sm:$0xff]
    %v6934 = vld [vmem:[#allocation2 + $0x41] sm:$0xff]
    %v6935 = vld [vmem:[#allocation2 + $0x49] sm:$0xff]
    %v6936 = vld [vmem:[#allocation2 + $0x51] sm:$0xff]
    %v6937 = vld [vmem:[#allocation2 + $0x59] sm:$0xff]
    %v6938 = vld [vmem:[#allocation2 + $0x61] sm:$0xff]
    %v6939 = vld [vmem:[#allocation2 + $0x69] sm:$0xff]
    %v6940 = vld [vmem:[#allocation2 + $0x71] sm:$0xff]
    %v6941 = vld [vmem:[#allocation2 + $0x79] sm:$0xff]
    %v6942 = vld [vmem:[#allocation2 + $0x81] sm:$0xff]
    %v6943 = vld [vmem:[#allocation2 + $0x89] sm:$0xff]
    %v6944 = vld [vmem:[#allocation2 + $0xb1] sm:$0xff]
    %v6945 = vld [vmem:[#allocation2 + $0xb9] sm:$0xff]
    %v6946 = vld [vmem:[#allocation2 + $0xc1] sm:$0xff]
    %v6947 = vld [vmem:[#allocation2 + $0xc9] sm:$0xff]
    %v6948 = vld [vmem:[#allocation2 + $0xd1] sm:$0xff]
    %v6949 = vld [vmem:[#allocation2 + $0xd9] sm:$0xff]
    %v6950 = vld [vmem:[#allocation2 + $0xe1] sm:$0xff]
    %v6951 = vld [vmem:[#allocation2 + $0xe9] sm:$0xff]
    %v6952 = vld [vmem:[#allocation2 + $0xf1] sm:$0xff]
    %v6953 = vld [vmem:[#allocation2 + $0xf9] sm:$0xff]
    %v6954 = vld [vmem:[#allocation2 + $0x101] sm:$0xff]
    %v6955 = vld [vmem:[#allocation2 + $0x109] sm:$0xff]
    %v6956 = vld [vmem:[#allocation2 + $0x111] sm:$0xff]
    %v6957 = vld [vmem:[#allocation2 + $0x119] sm:$0xff]
    %v6958 = vld [vmem:[#allocation2 + $0x121] sm:$0xff]
    %v6959 = vld [vmem:[#allocation2 + $0x129] sm:$0xff]
    %v6960 = vld [vmem:[#allocation2 + $0x1a] sm:$0xff]
    %v6961 = vld [vmem:[#allocation2 + $0x22] sm:$0xff]
    %v6962 = vld [vmem:[#allocation2 + $0x2a] sm:$0xff]
    %v6963 = vld [vmem:[#allocation2 + $0x32] sm:$0xff]
    %v6964 = vld [vmem:[#allocation2 + $0x3a] sm:$0xff]
    %v6965 = vld [vmem:[#allocation2 + $0x42] sm:$0xff]
    %v6966 = vld [vmem:[#allocation2 + $0x4a] sm:$0xff]
    %v6967 = vld [vmem:[#allocation2 + $0x52] sm:$0xff]
    %v6968 = vld [vmem:[#allocation2 + $0x5a] sm:$0xff]
    %v6969 = vld [vmem:[#allocation2 + $0x62] sm:$0xff]
    %v6970 = vld [vmem:[#allocation2 + $0x6a] sm:$0xff]
    %v6971 = vld [vmem:[#allocation2 + $0x72] sm:$0xff]
    %v6972 = vld [vmem:[#allocation2 + $0x7a] sm:$0xff]
    %v6973 = vld [vmem:[#allocation2 + $0x82] sm:$0xff]
    %v6974 = vld [vmem:[#allocation2 + $0x8a] sm:$0xff]
    %v6975 = vld [vmem:[#allocation2 + $0x92] sm:$0xff]
    %v6976 = vld [vmem:[#allocation2 + $0xba] sm:$0xff]
    %v6977 = vld [vmem:[#allocation2 + $0xc2] sm:$0xff]
    %v6978 = vld [vmem:[#allocation2 + $0xca] sm:$0xff]
    %v6979 = vld [vmem:[#allocation2 + $0xd2] sm:$0xff]
    %v6980 = vld [vmem:[#allocation2 + $0xda] sm:$0xff]
    %v6981 = vld [vmem:[#allocation2 + $0xe2] sm:$0xff]
    %v6982 = vld [vmem:[#allocation2 + $0xea] sm:$0xff]
    %v6983 = vld [vmem:[#allocation2 + $0xf2] sm:$0xff]
    %v6984 = vld [vmem:[#allocation2 + $0xfa] sm:$0xff]
    %v6985 = vld [vmem:[#allocation2 + $0x102] sm:$0xff]
    %v6986 = vld [vmem:[#allocation2 + $0x10a] sm:$0xff]
    %v6987 = vld [vmem:[#allocation2 + $0x112] sm:$0xff]
    %v6988 = vld [vmem:[#allocation2 + $0x11a] sm:$0xff]
    %v6989 = vld [vmem:[#allocation2 + $0x122] sm:$0xff]
    %v6990 = vld [vmem:[#allocation2 + $0x12a] sm:$0xff]
    %v6991 = vld [vmem:[#allocation2 + $0x132] sm:$0xff]
    %v6992 = vld [vmem:[#allocation2 + $0x1b] sm:$0xff]
    %v6993 = vld [vmem:[#allocation2 + $0x23] sm:$0xff]
    %v6994 = vld [vmem:[#allocation2 + $0x2b] sm:$0xff]
    %v6995 = vld [vmem:[#allocation2 + $0x33] sm:$0xff]
    %v6996 = vld [vmem:[#allocation2 + $0x3b] sm:$0xff]
    %v6997 = vld [vmem:[#allocation2 + $0x43] sm:$0xff]
    %v6998 = vld [vmem:[#allocation2 + $0x4b] sm:$0xff]
    %v6999 = vld [vmem:[#allocation2 + $0x53] sm:$0xff]
    %v7000 = vld [vmem:[#allocation2 + $0x5b] sm:$0xff]
    %v7001 = vld [vmem:[#allocation2 + $0x63] sm:$0xff]
    %v7002 = vld [vmem:[#allocation2 + $0x6b] sm:$0xff]
    %v7003 = vld [vmem:[#allocation2 + $0x73] sm:$0xff]
    %v7004 = vld [vmem:[#allocation2 + $0x7b] sm:$0xff]
    %v7005 = vld [vmem:[#allocation2 + $0x83] sm:$0xff]
    %v7006 = vld [vmem:[#allocation2 + $0x8b] sm:$0xff]
    %v7007 = vld [vmem:[#allocation2 + $0x93] sm:$0xff]
    %v7008 = vld [vmem:[#allocation2 + $0xbb] sm:$0xff]
    %v7009 = vld [vmem:[#allocation2 + $0xc3] sm:$0xff]
    %v7010 = vld [vmem:[#allocation2 + $0xcb] sm:$0xff]
    %v7011 = vld [vmem:[#allocation2 + $0xd3] sm:$0xff]
    %v7012 = vld [vmem:[#allocation2 + $0xdb] sm:$0xff]
    %v7013 = vld [vmem:[#allocation2 + $0xe3] sm:$0xff]
    %v7014 = vld [vmem:[#allocation2 + $0xeb] sm:$0xff]
    %v7015 = vld [vmem:[#allocation2 + $0xf3] sm:$0xff]
    %v7016 = vld [vmem:[#allocation2 + $0xfb] sm:$0xff]
    %v7017 = vld [vmem:[#allocation2 + $0x103] sm:$0xff]
    %v7018 = vld [vmem:[#allocation2 + $0x10b] sm:$0xff]
    %v7019 = vld [vmem:[#allocation2 + $0x113] sm:$0xff]
    %v7020 = vld [vmem:[#allocation2 + $0x11b] sm:$0xff]
    %v7021 = vld [vmem:[#allocation2 + $0x123] sm:$0xff]
    %v7022 = vld [vmem:[#allocation2 + $0x12b] sm:$0xff]
    %v7023 = vld [vmem:[#allocation2 + $0x133] sm:$0xff]
    %v7024 = vld [vmem:[#allocation2 + $0x84] sm:$0xff]
    %v7025 = vld [vmem:[#allocation2 + $0x8c] sm:$0xff]
    %v7026 = vld [vmem:[#allocation2 + $0x94] sm:$0xff]
    %v7027 = vld [vmem:[#allocation2 + $0x124] sm:$0xff]
    %v7028 = vld [vmem:[#allocation2 + $0x12c] sm:$0xff]
    %v7029 = vld [vmem:[#allocation2 + $0x134] sm:$0xff]
    %7062 = vrot.lane.b32.xlu0 %v6800, 8
    %v7063 = vpop.permute.xlu0 %7062
    %7064 = vrot.lane.b32.xlu0 %v6801, 8
    %v7065 = vpop.permute.xlu0 %7064
    %7066 = vrot.lane.b32.xlu0 %v6802, 8
    %v7067 = vpop.permute.xlu0 %7066
    %7068 = vrot.lane.b32.xlu0 %v6803, 8
    %v7069 = vpop.permute.xlu0 %7068
    %7070 = vrot.lane.b32.xlu0 %v6804, 8
    %v7071 = vpop.permute.xlu0 %7070
    %7072 = vrot.lane.b32.xlu0 %v6805, 8
    %v7073 = vpop.permute.xlu0 %7072
    %7074 = vrot.lane.b32.xlu0 %v6806, 8
    %v7075 = vpop.permute.xlu0 %7074
    %7076 = vrot.lane.b32.xlu0 %v6807, 8
    %v7077 = vpop.permute.xlu0 %7076
    %7078 = vrot.lane.b32.xlu0 %v6808, 8
    %v7079 = vpop.permute.xlu0 %7078
    %7080 = vrot.lane.b32.xlu0 %v6809, 8
    %v7081 = vpop.permute.xlu0 %7080
    %7082 = vrot.lane.b32.xlu0 %v6810, 8
    %v7083 = vpop.permute.xlu0 %7082
    %7084 = vrot.lane.b32.xlu0 %v6811, 8
    %v7085 = vpop.permute.xlu0 %7084
    %7086 = vrot.lane.b32.xlu0 %v6812, 8
    %v7087 = vpop.permute.xlu0 %7086
    %7088 = vrot.lane.b32.xlu0 %v6813, 8
    %v7089 = vpop.permute.xlu0 %7088
    %7090 = vrot.lane.b32.xlu0 %v6814, 8
    %v7091 = vpop.permute.xlu0 %7090
    %7092 = vrot.lane.b32.xlu0 %v6815, 8
    %v7093 = vpop.permute.xlu0 %7092
    %7094 = vrot.lane.b32.xlu0 %v6816, 8
    %v7095 = vpop.permute.xlu0 %7094
    %7096 = vrot.lane.b32.xlu0 %v6817, 8
    %v7097 = vpop.permute.xlu0 %7096
    %7098 = vrot.lane.b32.xlu0 %v6818, 8
    %v7099 = vpop.permute.xlu0 %7098
    %7100 = vrot.lane.b32.xlu0 %v6819, 8
    %v7101 = vpop.permute.xlu0 %7100
    %7102 = vrot.lane.b32.xlu0 %v6820, 8
    %v7103 = vpop.permute.xlu0 %7102
    %7104 = vrot.lane.b32.xlu0 %v6821, 8
    %v7105 = vpop.permute.xlu0 %7104
    %7106 = vrot.lane.b32.xlu0 %v6822, 8
    %v7107 = vpop.permute.xlu0 %7106
    %7108 = vrot.lane.b32.xlu0 %v6823, 8
    %v7109 = vpop.permute.xlu0 %7108
    %7110 = vrot.lane.b32.xlu0 %v6824, 8
    %v7111 = vpop.permute.xlu0 %7110
    %7112 = vrot.lane.b32.xlu0 %v6825, 8
    %v7113 = vpop.permute.xlu0 %7112
    %7114 = vrot.lane.b32.xlu0 %v6826, 8
    %v7115 = vpop.permute.xlu0 %7114
    %7116 = vrot.lane.b32.xlu0 %v6827, 8
    %v7117 = vpop.permute.xlu0 %7116
    %7118 = vrot.lane.b32.xlu0 %v6828, 8
    %v7119 = vpop.permute.xlu0 %7118
    %7120 = vrot.lane.b32.xlu0 %v6829, 8
    %v7121 = vpop.permute.xlu0 %7120
    %7122 = vrot.lane.b32.xlu0 %v6830, 8
    %v7123 = vpop.permute.xlu0 %7122
    %7124 = vrot.lane.b32.xlu0 %v6831, 8
    %v7125 = vpop.permute.xlu0 %7124
    %7190 = vrot.lane.b32.xlu0 %v6832, 16
    %v7191 = vpop.permute.xlu0 %7190
    %7192 = vrot.lane.b32.xlu0 %v6833, 16
    %v7193 = vpop.permute.xlu0 %7192
    %7194 = vrot.lane.b32.xlu0 %v6834, 16
    %v7195 = vpop.permute.xlu0 %7194
    %7196 = vrot.lane.b32.xlu0 %v6835, 16
    %v7197 = vpop.permute.xlu0 %7196
    %7198 = vrot.lane.b32.xlu0 %v6836, 16
    %v7199 = vpop.permute.xlu0 %7198
    %7200 = vrot.lane.b32.xlu0 %v6837, 16
    %v7201 = vpop.permute.xlu0 %7200
    %7202 = vrot.lane.b32.xlu0 %v6838, 16
    %v7203 = vpop.permute.xlu0 %7202
    %7204 = vrot.lane.b32.xlu0 %v6839, 16
    %v7205 = vpop.permute.xlu0 %7204
    %7206 = vrot.lane.b32.xlu0 %v6840, 16
    %v7207 = vpop.permute.xlu0 %7206
    %7208 = vrot.lane.b32.xlu0 %v6841, 16
    %v7209 = vpop.permute.xlu0 %7208
    %7210 = vrot.lane.b32.xlu0 %v6842, 16
    %v7211 = vpop.permute.xlu0 %7210
    %7212 = vrot.lane.b32.xlu0 %v6843, 16
    %v7213 = vpop.permute.xlu0 %7212
    %7214 = vrot.lane.b32.xlu0 %v6844, 16
    %v7215 = vpop.permute.xlu0 %7214
    %7216 = vrot.lane.b32.xlu0 %v6845, 16
    %v7217 = vpop.permute.xlu0 %7216
    %7218 = vrot.lane.b32.xlu0 %v6846, 16
    %v7219 = vpop.permute.xlu0 %7218
    %7220 = vrot.lane.b32.xlu0 %v6847, 16
    %v7221 = vpop.permute.xlu0 %7220
    %7222 = vrot.lane.b32.xlu0 %v6848, 16
    %v7223 = vpop.permute.xlu0 %7222
    %7224 = vrot.lane.b32.xlu0 %v6849, 16
    %v7225 = vpop.permute.xlu0 %7224
    %7226 = vrot.lane.b32.xlu0 %v6850, 16
    %v7227 = vpop.permute.xlu0 %7226
    %7228 = vrot.lane.b32.xlu0 %v6851, 16
    %v7229 = vpop.permute.xlu0 %7228
    %7230 = vrot.lane.b32.xlu0 %v6852, 16
    %v7231 = vpop.permute.xlu0 %7230
    %7232 = vrot.lane.b32.xlu0 %v6853, 16
    %v7233 = vpop.permute.xlu0 %7232
    %7234 = vrot.lane.b32.xlu0 %v6854, 16
    %v7235 = vpop.permute.xlu0 %7234
    %7236 = vrot.lane.b32.xlu0 %v6855, 16
    %v7237 = vpop.permute.xlu0 %7236
    %7238 = vrot.lane.b32.xlu0 %v6856, 16
    %v7239 = vpop.permute.xlu0 %7238
    %7240 = vrot.lane.b32.xlu0 %v6857, 16
    %v7241 = vpop.permute.xlu0 %7240
    %7242 = vrot.lane.b32.xlu0 %v6858, 16
    %v7243 = vpop.permute.xlu0 %7242
    %7244 = vrot.lane.b32.xlu0 %v6859, 16
    %v7245 = vpop.permute.xlu0 %7244
    %7246 = vrot.lane.b32.xlu0 %v6860, 16
    %v7247 = vpop.permute.xlu0 %7246
    %7248 = vrot.lane.b32.xlu0 %v6861, 16
    %v7249 = vpop.permute.xlu0 %7248
    %7250 = vrot.lane.b32.xlu0 %v6862, 16
    %v7251 = vpop.permute.xlu0 %7250
    %7252 = vrot.lane.b32.xlu0 %v6863, 16
    %v7253 = vpop.permute.xlu0 %7252
    %7318 = vrot.lane.b32.xlu0 %v6864, 24
    %v7319 = vpop.permute.xlu0 %7318
    %7320 = vrot.lane.b32.xlu0 %v6865, 24
    %v7321 = vpop.permute.xlu0 %7320
    %7322 = vrot.lane.b32.xlu0 %v6866, 24
    %v7323 = vpop.permute.xlu0 %7322
    %7324 = vrot.lane.b32.xlu0 %v6867, 24
    %v7325 = vpop.permute.xlu0 %7324
    %7326 = vrot.lane.b32.xlu0 %v6868, 24
    %v7327 = vpop.permute.xlu0 %7326
    %7328 = vrot.lane.b32.xlu0 %v6869, 24
    %v7329 = vpop.permute.xlu0 %7328
    %7330 = vrot.lane.b32.xlu0 %v6870, 24
    %v7331 = vpop.permute.xlu0 %7330
    %7332 = vrot.lane.b32.xlu0 %v6871, 24
    %v7333 = vpop.permute.xlu0 %7332
    %7334 = vrot.lane.b32.xlu0 %v6872, 24
    %v7335 = vpop.permute.xlu0 %7334
    %7336 = vrot.lane.b32.xlu0 %v6873, 24
    %v7337 = vpop.permute.xlu0 %7336
    %7338 = vrot.lane.b32.xlu0 %v6874, 24
    %v7339 = vpop.permute.xlu0 %7338
    %7340 = vrot.lane.b32.xlu0 %v6875, 24
    %v7341 = vpop.permute.xlu0 %7340
    %7342 = vrot.lane.b32.xlu0 %v6876, 24
    %v7343 = vpop.permute.xlu0 %7342
    %7344 = vrot.lane.b32.xlu0 %v6877, 24
    %v7345 = vpop.permute.xlu0 %7344
    %7346 = vrot.lane.b32.xlu0 %v6878, 24
    %v7347 = vpop.permute.xlu0 %7346
    %7348 = vrot.lane.b32.xlu0 %v6879, 24
    %v7349 = vpop.permute.xlu0 %7348
    %7350 = vrot.lane.b32.xlu0 %v6880, 24
    %v7351 = vpop.permute.xlu0 %7350
    %7352 = vrot.lane.b32.xlu0 %v6881, 24
    %v7353 = vpop.permute.xlu0 %7352
    %7354 = vrot.lane.b32.xlu0 %v6882, 24
    %v7355 = vpop.permute.xlu0 %7354
    %7356 = vrot.lane.b32.xlu0 %v6883, 24
    %v7357 = vpop.permute.xlu0 %7356
    %7358 = vrot.lane.b32.xlu0 %v6884, 24
    %v7359 = vpop.permute.xlu0 %7358
    %7360 = vrot.lane.b32.xlu0 %v6885, 24
    %v7361 = vpop.permute.xlu0 %7360
    %7362 = vrot.lane.b32.xlu0 %v6886, 24
    %v7363 = vpop.permute.xlu0 %7362
    %7364 = vrot.lane.b32.xlu0 %v6887, 24
    %v7365 = vpop.permute.xlu0 %7364
    %7366 = vrot.lane.b32.xlu0 %v6888, 24
    %v7367 = vpop.permute.xlu0 %7366
    %7368 = vrot.lane.b32.xlu0 %v6889, 24
    %v7369 = vpop.permute.xlu0 %7368
    %7370 = vrot.lane.b32.xlu0 %v6890, 24
    %v7371 = vpop.permute.xlu0 %7370
    %7372 = vrot.lane.b32.xlu0 %v6891, 24
    %v7373 = vpop.permute.xlu0 %7372
    %7374 = vrot.lane.b32.xlu0 %v6892, 24
    %v7375 = vpop.permute.xlu0 %7374
    %7376 = vrot.lane.b32.xlu0 %v6893, 24
    %v7377 = vpop.permute.xlu0 %7376
    %7378 = vrot.lane.b32.xlu0 %v6894, 24
    %v7379 = vpop.permute.xlu0 %7378
    %7380 = vrot.lane.b32.xlu0 %v6895, 24
    %v7381 = vpop.permute.xlu0 %7380
    %7446 = vrot.lane.b32.xlu0 %v6896, 32
    %v7447 = vpop.permute.xlu0 %7446
    %7448 = vrot.lane.b32.xlu0 %v6897, 32
    %v7449 = vpop.permute.xlu0 %7448
    %7450 = vrot.lane.b32.xlu0 %v6898, 32
    %v7451 = vpop.permute.xlu0 %7450
    %7452 = vrot.lane.b32.xlu0 %v6899, 32
    %v7453 = vpop.permute.xlu0 %7452
    %7454 = vrot.lane.b32.xlu0 %v6900, 32
    %v7455 = vpop.permute.xlu0 %7454
    %7456 = vrot.lane.b32.xlu0 %v6901, 32
    %v7457 = vpop.permute.xlu0 %7456
    %7458 = vrot.lane.b32.xlu0 %v6902, 32
    %v7459 = vpop.permute.xlu0 %7458
    %7460 = vrot.lane.b32.xlu0 %v6903, 32
    %v7461 = vpop.permute.xlu0 %7460
    %7462 = vrot.lane.b32.xlu0 %v6904, 32
    %v7463 = vpop.permute.xlu0 %7462
    %7464 = vrot.lane.b32.xlu0 %v6905, 32
    %v7465 = vpop.permute.xlu0 %7464
    %7466 = vrot.lane.b32.xlu0 %v6906, 32
    %v7467 = vpop.permute.xlu0 %7466
    %7468 = vrot.lane.b32.xlu0 %v6907, 32
    %v7469 = vpop.permute.xlu0 %7468
    %7470 = vrot.lane.b32.xlu0 %v6908, 32
    %v7471 = vpop.permute.xlu0 %7470
    %7472 = vrot.lane.b32.xlu0 %v6909, 32
    %v7473 = vpop.permute.xlu0 %7472
    %7474 = vrot.lane.b32.xlu0 %v6910, 32
    %v7475 = vpop.permute.xlu0 %7474
    %7476 = vrot.lane.b32.xlu0 %v6911, 32
    %v7477 = vpop.permute.xlu0 %7476
    %7478 = vrot.lane.b32.xlu0 %v6912, 32
    %v7479 = vpop.permute.xlu0 %7478
    %7480 = vrot.lane.b32.xlu0 %v6913, 32
    %v7481 = vpop.permute.xlu0 %7480
    %7482 = vrot.lane.b32.xlu0 %v6914, 32
    %v7483 = vpop.permute.xlu0 %7482
    %7484 = vrot.lane.b32.xlu0 %v6915, 32
    %v7485 = vpop.permute.xlu0 %7484
    %7486 = vrot.lane.b32.xlu0 %v6916, 32
    %v7487 = vpop.permute.xlu0 %7486
    %7488 = vrot.lane.b32.xlu0 %v6917, 32
    %v7489 = vpop.permute.xlu0 %7488
    %7490 = vrot.lane.b32.xlu0 %v6918, 32
    %v7491 = vpop.permute.xlu0 %7490
    %7492 = vrot.lane.b32.xlu0 %v6919, 32
    %v7493 = vpop.permute.xlu0 %7492
    %7494 = vrot.lane.b32.xlu0 %v6920, 32
    %v7495 = vpop.permute.xlu0 %7494
    %7496 = vrot.lane.b32.xlu0 %v6921, 32
    %v7497 = vpop.permute.xlu0 %7496
    %7498 = vrot.lane.b32.xlu0 %v6922, 32
    %v7499 = vpop.permute.xlu0 %7498
    %7500 = vrot.lane.b32.xlu0 %v6923, 32
    %v7501 = vpop.permute.xlu0 %7500
    %7502 = vrot.lane.b32.xlu0 %v6924, 32
    %v7503 = vpop.permute.xlu0 %7502
    %7504 = vrot.lane.b32.xlu0 %v6925, 32
    %v7505 = vpop.permute.xlu0 %7504
    %7506 = vrot.lane.b32.xlu0 %v6926, 32
    %v7507 = vpop.permute.xlu0 %7506
    %7508 = vrot.lane.b32.xlu0 %v6927, 32
    %v7509 = vpop.permute.xlu0 %7508
    %7574 = vrot.lane.b32.xlu0 %v6928, 40
    %v7575 = vpop.permute.xlu0 %7574
    %7576 = vrot.lane.b32.xlu0 %v6929, 40
    %v7577 = vpop.permute.xlu0 %7576
    %7578 = vrot.lane.b32.xlu0 %v6930, 40
    %v7579 = vpop.permute.xlu0 %7578
    %7580 = vrot.lane.b32.xlu0 %v6931, 40
    %v7581 = vpop.permute.xlu0 %7580
    %7582 = vrot.lane.b32.xlu0 %v6932, 40
    %v7583 = vpop.permute.xlu0 %7582
    %7584 = vrot.lane.b32.xlu0 %v6933, 40
    %v7585 = vpop.permute.xlu0 %7584
    %7586 = vrot.lane.b32.xlu0 %v6934, 40
    %v7587 = vpop.permute.xlu0 %7586
    %7588 = vrot.lane.b32.xlu0 %v6935, 40
    %v7589 = vpop.permute.xlu0 %7588
    %7590 = vrot.lane.b32.xlu0 %v6936, 40
    %v7591 = vpop.permute.xlu0 %7590
    %7592 = vrot.lane.b32.xlu0 %v6937, 40
    %v7593 = vpop.permute.xlu0 %7592
    %7594 = vrot.lane.b32.xlu0 %v6938, 40
    %v7595 = vpop.permute.xlu0 %7594
    %7596 = vrot.lane.b32.xlu0 %v6939, 40
    %v7597 = vpop.permute.xlu0 %7596
    %7598 = vrot.lane.b32.xlu0 %v6940, 40
    %v7599 = vpop.permute.xlu0 %7598
    %7600 = vrot.lane.b32.xlu0 %v6941, 40
    %v7601 = vpop.permute.xlu0 %7600
    %7602 = vrot.lane.b32.xlu0 %v6942, 40
    %v7603 = vpop.permute.xlu0 %7602
    %7604 = vrot.lane.b32.xlu0 %v6943, 40
    %v7605 = vpop.permute.xlu0 %7604
    %7606 = vrot.lane.b32.xlu0 %v6944, 40
    %v7607 = vpop.permute.xlu0 %7606
    %7608 = vrot.lane.b32.xlu0 %v6945, 40
    %v7609 = vpop.permute.xlu0 %7608
    %7610 = vrot.lane.b32.xlu0 %v6946, 40
    %v7611 = vpop.permute.xlu0 %7610
    %7612 = vrot.lane.b32.xlu0 %v6947, 40
    %v7613 = vpop.permute.xlu0 %7612
    %7614 = vrot.lane.b32.xlu0 %v6948, 40
    %v7615 = vpop.permute.xlu0 %7614
    %7616 = vrot.lane.b32.xlu0 %v6949, 40
    %v7617 = vpop.permute.xlu0 %7616
    %7618 = vrot.lane.b32.xlu0 %v6950, 40
    %v7619 = vpop.permute.xlu0 %7618
    %7620 = vrot.lane.b32.xlu0 %v6951, 40
    %v7621 = vpop.permute.xlu0 %7620
    %7622 = vrot.lane.b32.xlu0 %v6952, 40
    %v7623 = vpop.permute.xlu0 %7622
    %7624 = vrot.lane.b32.xlu0 %v6953, 40
    %v7625 = vpop.permute.xlu0 %7624
    %7626 = vrot.lane.b32.xlu0 %v6954, 40
    %v7627 = vpop.permute.xlu0 %7626
    %7628 = vrot.lane.b32.xlu0 %v6955, 40
    %v7629 = vpop.permute.xlu0 %7628
    %7630 = vrot.lane.b32.xlu0 %v6956, 40
    %v7631 = vpop.permute.xlu0 %7630
    %7632 = vrot.lane.b32.xlu0 %v6957, 40
    %v7633 = vpop.permute.xlu0 %7632
    %7634 = vrot.lane.b32.xlu0 %v6958, 40
    %v7635 = vpop.permute.xlu0 %7634
    %7636 = vrot.lane.b32.xlu0 %v6959, 40
    %v7637 = vpop.permute.xlu0 %7636
    %7702 = vrot.lane.b32.xlu0 %v6960, 48
    %v7703 = vpop.permute.xlu0 %7702
    %7704 = vrot.lane.b32.xlu0 %v6961, 48
    %v7705 = vpop.permute.xlu0 %7704
    %7706 = vrot.lane.b32.xlu0 %v6962, 48
    %v7707 = vpop.permute.xlu0 %7706
    %7708 = vrot.lane.b32.xlu0 %v6963, 48
    %v7709 = vpop.permute.xlu0 %7708
    %7710 = vrot.lane.b32.xlu0 %v6964, 48
    %v7711 = vpop.permute.xlu0 %7710
    %7712 = vrot.lane.b32.xlu0 %v6965, 48
    %v7713 = vpop.permute.xlu0 %7712
    %7714 = vrot.lane.b32.xlu0 %v6966, 48
    %v7715 = vpop.permute.xlu0 %7714
    %7716 = vrot.lane.b32.xlu0 %v6967, 48
    %v7717 = vpop.permute.xlu0 %7716
    %7718 = vrot.lane.b32.xlu0 %v6968, 48
    %v7719 = vpop.permute.xlu0 %7718
    %7720 = vrot.lane.b32.xlu0 %v6969, 48
    %v7721 = vpop.permute.xlu0 %7720
    %7722 = vrot.lane.b32.xlu0 %v6970, 48
    %v7723 = vpop.permute.xlu0 %7722
    %7724 = vrot.lane.b32.xlu0 %v6971, 48
    %v7725 = vpop.permute.xlu0 %7724
    %7726 = vrot.lane.b32.xlu0 %v6972, 48
    %v7727 = vpop.permute.xlu0 %7726
    %7728 = vrot.lane.b32.xlu0 %v6973, 48
    %v7729 = vpop.permute.xlu0 %7728
    %7730 = vrot.lane.b32.xlu0 %v6974, 48
    %v7731 = vpop.permute.xlu0 %7730
    %7732 = vrot.lane.b32.xlu0 %v6975, 48
    %v7733 = vpop.permute.xlu0 %7732
    %7734 = vrot.lane.b32.xlu0 %v6976, 48
    %v7735 = vpop.permute.xlu0 %7734
    %7736 = vrot.lane.b32.xlu0 %v6977, 48
    %v7737 = vpop.permute.xlu0 %7736
    %7738 = vrot.lane.b32.xlu0 %v6978, 48
    %v7739 = vpop.permute.xlu0 %7738
    %7740 = vrot.lane.b32.xlu0 %v6979, 48
    %v7741 = vpop.permute.xlu0 %7740
    %7742 = vrot.lane.b32.xlu0 %v6980, 48
    %v7743 = vpop.permute.xlu0 %7742
    %7744 = vrot.lane.b32.xlu0 %v6981, 48
    %v7745 = vpop.permute.xlu0 %7744
    %7746 = vrot.lane.b32.xlu0 %v6982, 48
    %v7747 = vpop.permute.xlu0 %7746
    %7748 = vrot.lane.b32.xlu0 %v6983, 48
    %v7749 = vpop.permute.xlu0 %7748
    %7750 = vrot.lane.b32.xlu0 %v6984, 48
    %v7751 = vpop.permute.xlu0 %7750
    %7752 = vrot.lane.b32.xlu0 %v6985, 48
    %v7753 = vpop.permute.xlu0 %7752
    %7754 = vrot.lane.b32.xlu0 %v6986, 48
    %v7755 = vpop.permute.xlu0 %7754
    %7756 = vrot.lane.b32.xlu0 %v6987, 48
    %v7757 = vpop.permute.xlu0 %7756
    %7758 = vrot.lane.b32.xlu0 %v6988, 48
    %v7759 = vpop.permute.xlu0 %7758
    %7760 = vrot.lane.b32.xlu0 %v6989, 48
    %v7761 = vpop.permute.xlu0 %7760
    %7762 = vrot.lane.b32.xlu0 %v6990, 48
    %v7763 = vpop.permute.xlu0 %7762
    %7764 = vrot.lane.b32.xlu0 %v6991, 48
    %v7765 = vpop.permute.xlu0 %7764
    %7830 = vrot.lane.b32.xlu0 %v6992, 56
    %v7831 = vpop.permute.xlu0 %7830
    %7832 = vrot.lane.b32.xlu0 %v6993, 56
    %v7833 = vpop.permute.xlu0 %7832
    %7834 = vrot.lane.b32.xlu0 %v6994, 56
    %v7835 = vpop.permute.xlu0 %7834
    %7836 = vrot.lane.b32.xlu0 %v6995, 56
    %v7837 = vpop.permute.xlu0 %7836
    %7838 = vrot.lane.b32.xlu0 %v6996, 56
    %v7839 = vpop.permute.xlu0 %7838
    %7840 = vrot.lane.b32.xlu0 %v6997, 56
    %v7841 = vpop.permute.xlu0 %7840
    %7842 = vrot.lane.b32.xlu0 %v6998, 56
    %v7843 = vpop.permute.xlu0 %7842
    %7844 = vrot.lane.b32.xlu0 %v6999, 56
    %v7845 = vpop.permute.xlu0 %7844
    %7846 = vrot.lane.b32.xlu0 %v7000, 56
    %v7847 = vpop.permute.xlu0 %7846
    %7848 = vrot.lane.b32.xlu0 %v7001, 56
    %v7849 = vpop.permute.xlu0 %7848
    %7850 = vrot.lane.b32.xlu0 %v7002, 56
    %v7851 = vpop.permute.xlu0 %7850
    %7852 = vrot.lane.b32.xlu0 %v7003, 56
    %v7853 = vpop.permute.xlu0 %7852
    %7854 = vrot.lane.b32.xlu0 %v7004, 56
    %v7855 = vpop.permute.xlu0 %7854
    %7856 = vrot.lane.b32.xlu0 %v7005, 56
    %v7857 = vpop.permute.xlu0 %7856
    %7858 = vrot.lane.b32.xlu0 %v7006, 56
    %v7859 = vpop.permute.xlu0 %7858
    %7860 = vrot.lane.b32.xlu0 %v7007, 56
    %v7861 = vpop.permute.xlu0 %7860
    %7862 = vrot.lane.b32.xlu0 %v7008, 56
    %v7863 = vpop.permute.xlu0 %7862
    %7864 = vrot.lane.b32.xlu0 %v7009, 56
    %v7865 = vpop.permute.xlu0 %7864
    %7866 = vrot.lane.b32.xlu0 %v7010, 56
    %v7867 = vpop.permute.xlu0 %7866
    %7868 = vrot.lane.b32.xlu0 %v7011, 56
    %v7869 = vpop.permute.xlu0 %7868
    %7870 = vrot.lane.b32.xlu0 %v7012, 56
    %v7871 = vpop.permute.xlu0 %7870
    %7872 = vrot.lane.b32.xlu0 %v7013, 56
    %v7873 = vpop.permute.xlu0 %7872
    %7874 = vrot.lane.b32.xlu0 %v7014, 56
    %v7875 = vpop.permute.xlu0 %7874
    %7876 = vrot.lane.b32.xlu0 %v7015, 56
    %v7877 = vpop.permute.xlu0 %7876
    %7878 = vrot.lane.b32.xlu0 %v7016, 56
    %v7879 = vpop.permute.xlu0 %7878
    %7880 = vrot.lane.b32.xlu0 %v7017, 56
    %v7881 = vpop.permute.xlu0 %7880
    %7882 = vrot.lane.b32.xlu0 %v7018, 56
    %v7883 = vpop.permute.xlu0 %7882
    %7884 = vrot.lane.b32.xlu0 %v7019, 56
    %v7885 = vpop.permute.xlu0 %7884
    %7886 = vrot.lane.b32.xlu0 %v7020, 56
    %v7887 = vpop.permute.xlu0 %7886
    %7888 = vrot.lane.b32.xlu0 %v7021, 56
    %v7889 = vpop.permute.xlu0 %7888
    %7890 = vrot.lane.b32.xlu0 %v7022, 56
    %v7891 = vpop.permute.xlu0 %7890
    %7892 = vrot.lane.b32.xlu0 %v7023, 56
    %v7893 = vpop.permute.xlu0 %7892
    %7958 = vrot.lane.b32.xlu0 %v6771, 64
    %v7959 = vpop.permute.xlu0 %7958
    %7960 = vrot.lane.b32.xlu0 %v6772, 64
    %v7961 = vpop.permute.xlu0 %7960
    %7962 = vrot.lane.b32.xlu0 %v6773, 64
    %v7963 = vpop.permute.xlu0 %7962
    %7964 = vrot.lane.b32.xlu0 %v6774, 64
    %v7965 = vpop.permute.xlu0 %7964
    %7966 = vrot.lane.b32.xlu0 %v6775, 64
    %v7967 = vpop.permute.xlu0 %7966
    %7968 = vrot.lane.b32.xlu0 %v6776, 64
    %v7969 = vpop.permute.xlu0 %7968
    %7970 = vrot.lane.b32.xlu0 %v6777, 64
    %v7971 = vpop.permute.xlu0 %7970
    %7972 = vrot.lane.b32.xlu0 %v6778, 64
    %v7973 = vpop.permute.xlu0 %7972
    %7974 = vrot.lane.b32.xlu0 %v6779, 64
    %v7975 = vpop.permute.xlu0 %7974
    %7976 = vrot.lane.b32.xlu0 %v6780, 64
    %v7977 = vpop.permute.xlu0 %7976
    %7978 = vrot.lane.b32.xlu0 %v6781, 64
    %v7979 = vpop.permute.xlu0 %7978
    %7980 = vrot.lane.b32.xlu0 %v6782, 64
    %v7981 = vpop.permute.xlu0 %7980
    %7982 = vrot.lane.b32.xlu0 %v6783, 64
    %v7983 = vpop.permute.xlu0 %7982
    %7984 = vrot.lane.b32.xlu0 %v7024, 64
    %v7985 = vpop.permute.xlu0 %7984
    %7986 = vrot.lane.b32.xlu0 %v7025, 64
    %v7987 = vpop.permute.xlu0 %7986
    %7988 = vrot.lane.b32.xlu0 %v7026, 64
    %v7989 = vpop.permute.xlu0 %7988
    %7990 = vrot.lane.b32.xlu0 %v6787, 64
    %v7991 = vpop.permute.xlu0 %7990
    %7992 = vrot.lane.b32.xlu0 %v6788, 64
    %v7993 = vpop.permute.xlu0 %7992
    %7994 = vrot.lane.b32.xlu0 %v6789, 64
    %v7995 = vpop.permute.xlu0 %7994
    %7996 = vrot.lane.b32.xlu0 %v6790, 64
    %v7997 = vpop.permute.xlu0 %7996
    %7998 = vrot.lane.b32.xlu0 %v6791, 64
    %v7999 = vpop.permute.xlu0 %7998
    %8000 = vrot.lane.b32.xlu0 %v6792, 64
    %v8001 = vpop.permute.xlu0 %8000
    %8002 = vrot.lane.b32.xlu0 %v6793, 64
    %v8003 = vpop.permute.xlu0 %8002
    %8004 = vrot.lane.b32.xlu0 %v6794, 64
    %v8005 = vpop.permute.xlu0 %8004
    %8006 = vrot.lane.b32.xlu0 %v6795, 64
    %v8007 = vpop.permute.xlu0 %8006
    %8008 = vrot.lane.b32.xlu0 %v6796, 64
    %v8009 = vpop.permute.xlu0 %8008
    %8010 = vrot.lane.b32.xlu0 %v6797, 64
    %v8011 = vpop.permute.xlu0 %8010
    %8012 = vrot.lane.b32.xlu0 %v6798, 64
    %v8013 = vpop.permute.xlu0 %8012
    %8014 = vrot.lane.b32.xlu0 %v6799, 64
    %v8015 = vpop.permute.xlu0 %8014
    %8016 = vrot.lane.b32.xlu0 %v7027, 64
    %v8017 = vpop.permute.xlu0 %8016
    %8018 = vrot.lane.b32.xlu0 %v7028, 64
    %v8019 = vpop.permute.xlu0 %8018
    %8020 = vrot.lane.b32.xlu0 %v7029, 64
    %v8021 = vpop.permute.xlu0 %8020
    %v8054 = vsel %vm558, %v6768, %v7063
    %v8055 = vsel %vm558, %v6769, %v7065
    %v8056 = vsel %vm558, %v6770, %v7067
    %v8057 = vsel %vm558, %v6771, %v7069
    %v8058 = vsel %vm558, %v6772, %v7071
    %v8059 = vsel %vm558, %v6773, %v7073
    %v8060 = vsel %vm558, %v6774, %v7075
    %v8061 = vsel %vm558, %v6775, %v7077
    %v8062 = vsel %vm558, %v6776, %v7079
    %v8063 = vsel %vm558, %v6777, %v7081
    %v8064 = vsel %vm558, %v6778, %v7083
    %v8065 = vsel %vm558, %v6779, %v7085
    %v8066 = vsel %vm558, %v6780, %v7087
    %v8067 = vsel %vm558, %v6781, %v7089
    %v8068 = vsel %vm558, %v6782, %v7091
    %v8069 = vsel %vm558, %v6783, %v7093
    %v8070 = vsel %vm558, %v6784, %v7095
    %v8071 = vsel %vm558, %v6785, %v7097
    %v8072 = vsel %vm558, %v6786, %v7099
    %v8073 = vsel %vm558, %v6787, %v7101
    %v8074 = vsel %vm558, %v6788, %v7103
    %v8075 = vsel %vm558, %v6789, %v7105
    %v8076 = vsel %vm558, %v6790, %v7107
    %v8077 = vsel %vm558, %v6791, %v7109
    %v8078 = vsel %vm558, %v6792, %v7111
    %v8079 = vsel %vm558, %v6793, %v7113
    %v8080 = vsel %vm558, %v6794, %v7115
    %v8081 = vsel %vm558, %v6795, %v7117
    %v8082 = vsel %vm558, %v6796, %v7119
    %v8083 = vsel %vm558, %v6797, %v7121
    %v8084 = vsel %vm558, %v6798, %v7123
    %v8085 = vsel %vm558, %v6799, %v7125
    %v8086 = vsel %vm1894, %v8054, %v7191
    %v8087 = vsel %vm1894, %v8055, %v7193
    %v8088 = vsel %vm1894, %v8056, %v7195
    %v8089 = vsel %vm1894, %v8057, %v7197
    %v8090 = vsel %vm1894, %v8058, %v7199
    %v8091 = vsel %vm1894, %v8059, %v7201
    %v8092 = vsel %vm1894, %v8060, %v7203
    %v8093 = vsel %vm1894, %v8061, %v7205
    %v8094 = vsel %vm1894, %v8062, %v7207
    %v8095 = vsel %vm1894, %v8063, %v7209
    %v8096 = vsel %vm1894, %v8064, %v7211
    %v8097 = vsel %vm1894, %v8065, %v7213
    %v8098 = vsel %vm1894, %v8066, %v7215
    %v8099 = vsel %vm1894, %v8067, %v7217
    %v8100 = vsel %vm1894, %v8068, %v7219
    %v8101 = vsel %vm1894, %v8069, %v7221
    %v8102 = vsel %vm1894, %v8070, %v7223
    %v8103 = vsel %vm1894, %v8071, %v7225
    %v8104 = vsel %vm1894, %v8072, %v7227
    %v8105 = vsel %vm1894, %v8073, %v7229
    %v8106 = vsel %vm1894, %v8074, %v7231
    %v8107 = vsel %vm1894, %v8075, %v7233
    %v8108 = vsel %vm1894, %v8076, %v7235
    %v8109 = vsel %vm1894, %v8077, %v7237
    %v8110 = vsel %vm1894, %v8078, %v7239
    %v8111 = vsel %vm1894, %v8079, %v7241
    %v8112 = vsel %vm1894, %v8080, %v7243
    %v8113 = vsel %vm1894, %v8081, %v7245
    %v8114 = vsel %vm1894, %v8082, %v7247
    %v8115 = vsel %vm1894, %v8083, %v7249
    %v8116 = vsel %vm1894, %v8084, %v7251
    %v8117 = vsel %vm1894, %v8085, %v7253
    %v8118 = vsel %vm1927, %v8086, %v7319
    %v8119 = vsel %vm1927, %v8087, %v7321
    %v8120 = vsel %vm1927, %v8088, %v7323
    %v8121 = vsel %vm1927, %v8089, %v7325
    %v8122 = vsel %vm1927, %v8090, %v7327
    %v8123 = vsel %vm1927, %v8091, %v7329
    %v8124 = vsel %vm1927, %v8092, %v7331
    %v8125 = vsel %vm1927, %v8093, %v7333
    %v8126 = vsel %vm1927, %v8094, %v7335
    %v8127 = vsel %vm1927, %v8095, %v7337
    %v8128 = vsel %vm1927, %v8096, %v7339
    %v8129 = vsel %vm1927, %v8097, %v7341
    %v8130 = vsel %vm1927, %v8098, %v7343
    %v8131 = vsel %vm1927, %v8099, %v7345
    %v8132 = vsel %vm1927, %v8100, %v7347
    %v8133 = vsel %vm1927, %v8101, %v7349
    %v8134 = vsel %vm1927, %v8102, %v7351
    %v8135 = vsel %vm1927, %v8103, %v7353
    %v8136 = vsel %vm1927, %v8104, %v7355
    %v8137 = vsel %vm1927, %v8105, %v7357
    %v8138 = vsel %vm1927, %v8106, %v7359
    %v8139 = vsel %vm1927, %v8107, %v7361
    %v8140 = vsel %vm1927, %v8108, %v7363
    %v8141 = vsel %vm1927, %v8109, %v7365
    %v8142 = vsel %vm1927, %v8110, %v7367
    %v8143 = vsel %vm1927, %v8111, %v7369
    %v8144 = vsel %vm1927, %v8112, %v7371
    %v8145 = vsel %vm1927, %v8113, %v7373
    %v8146 = vsel %vm1927, %v8114, %v7375
    %v8147 = vsel %vm1927, %v8115, %v7377
    %v8148 = vsel %vm1927, %v8116, %v7379
    %v8149 = vsel %vm1927, %v8117, %v7381
    %v8150 = vsel %vm1960, %v8118, %v7447
    %v8151 = vsel %vm1960, %v8119, %v7449
    %v8152 = vsel %vm1960, %v8120, %v7451
    %v8153 = vsel %vm1960, %v8121, %v7453
    %v8154 = vsel %vm1960, %v8122, %v7455
    %v8155 = vsel %vm1960, %v8123, %v7457
    %v8156 = vsel %vm1960, %v8124, %v7459
    %v8157 = vsel %vm1960, %v8125, %v7461
    %v8158 = vsel %vm1960, %v8126, %v7463
    %v8159 = vsel %vm1960, %v8127, %v7465
    %v8160 = vsel %vm1960, %v8128, %v7467
    %v8161 = vsel %vm1960, %v8129, %v7469
    %v8162 = vsel %vm1960, %v8130, %v7471
    %v8163 = vsel %vm1960, %v8131, %v7473
    %v8164 = vsel %vm1960, %v8132, %v7475
    %v8165 = vsel %vm1960, %v8133, %v7477
    %v8166 = vsel %vm1960, %v8134, %v7479
    %v8167 = vsel %vm1960, %v8135, %v7481
    %v8168 = vsel %vm1960, %v8136, %v7483
    %v8169 = vsel %vm1960, %v8137, %v7485
    %v8170 = vsel %vm1960, %v8138, %v7487
    %v8171 = vsel %vm1960, %v8139, %v7489
    %v8172 = vsel %vm1960, %v8140, %v7491
    %v8173 = vsel %vm1960, %v8141, %v7493
    %v8174 = vsel %vm1960, %v8142, %v7495
    %v8175 = vsel %vm1960, %v8143, %v7497
    %v8176 = vsel %vm1960, %v8144, %v7499
    %v8177 = vsel %vm1960, %v8145, %v7501
    %v8178 = vsel %vm1960, %v8146, %v7503
    %v8179 = vsel %vm1960, %v8147, %v7505
    %v8180 = vsel %vm1960, %v8148, %v7507
    %v8181 = vsel %vm1960, %v8149, %v7509
    %v8182 = vsel %vm1993, %v8150, %v7575
    %v8183 = vsel %vm1993, %v8151, %v7577
    %v8184 = vsel %vm1993, %v8152, %v7579
    %v8185 = vsel %vm1993, %v8153, %v7581
    %v8186 = vsel %vm1993, %v8154, %v7583
    %v8187 = vsel %vm1993, %v8155, %v7585
    %v8188 = vsel %vm1993, %v8156, %v7587
    %v8189 = vsel %vm1993, %v8157, %v7589
    %v8190 = vsel %vm1993, %v8158, %v7591
    %v8191 = vsel %vm1993, %v8159, %v7593
    %v8192 = vsel %vm1993, %v8160, %v7595
    %v8193 = vsel %vm1993, %v8161, %v7597
    %v8194 = vsel %vm1993, %v8162, %v7599
    %v8195 = vsel %vm1993, %v8163, %v7601
    %v8196 = vsel %vm1993, %v8164, %v7603
    %v8197 = vsel %vm1993, %v8165, %v7605
    %v8198 = vsel %vm1993, %v8166, %v7607
    %v8199 = vsel %vm1993, %v8167, %v7609
    %v8200 = vsel %vm1993, %v8168, %v7611
    %v8201 = vsel %vm1993, %v8169, %v7613
    %v8202 = vsel %vm1993, %v8170, %v7615
    %v8203 = vsel %vm1993, %v8171, %v7617
    %v8204 = vsel %vm1993, %v8172, %v7619
    %v8205 = vsel %vm1993, %v8173, %v7621
    %v8206 = vsel %vm1993, %v8174, %v7623
    %v8207 = vsel %vm1993, %v8175, %v7625
    %v8208 = vsel %vm1993, %v8176, %v7627
    %v8209 = vsel %vm1993, %v8177, %v7629
    %v8210 = vsel %vm1993, %v8178, %v7631
    %v8211 = vsel %vm1993, %v8179, %v7633
    %v8212 = vsel %vm1993, %v8180, %v7635
    %v8213 = vsel %vm1993, %v8181, %v7637
    %v8214 = vsel %vm2026, %v8182, %v7703
    %v8215 = vsel %vm2026, %v8183, %v7705
    %v8216 = vsel %vm2026, %v8184, %v7707
    %v8217 = vsel %vm2026, %v8185, %v7709
    %v8218 = vsel %vm2026, %v8186, %v7711
    %v8219 = vsel %vm2026, %v8187, %v7713
    %v8220 = vsel %vm2026, %v8188, %v7715
    %v8221 = vsel %vm2026, %v8189, %v7717
    %v8222 = vsel %vm2026, %v8190, %v7719
    %v8223 = vsel %vm2026, %v8191, %v7721
    %v8224 = vsel %vm2026, %v8192, %v7723
    %v8225 = vsel %vm2026, %v8193, %v7725
    %v8226 = vsel %vm2026, %v8194, %v7727
    %v8227 = vsel %vm2026, %v8195, %v7729
    %v8228 = vsel %vm2026, %v8196, %v7731
    %v8229 = vsel %vm2026, %v8197, %v7733
    %v8230 = vsel %vm2026, %v8198, %v7735
    %v8231 = vsel %vm2026, %v8199, %v7737
    %v8232 = vsel %vm2026, %v8200, %v7739
    %v8233 = vsel %vm2026, %v8201, %v7741
    %v8234 = vsel %vm2026, %v8202, %v7743
    %v8235 = vsel %vm2026, %v8203, %v7745
    %v8236 = vsel %vm2026, %v8204, %v7747
    %v8237 = vsel %vm2026, %v8205, %v7749
    %v8238 = vsel %vm2026, %v8206, %v7751
    %v8239 = vsel %vm2026, %v8207, %v7753
    %v8240 = vsel %vm2026, %v8208, %v7755
    %v8241 = vsel %vm2026, %v8209, %v7757
    %v8242 = vsel %vm2026, %v8210, %v7759
    %v8243 = vsel %vm2026, %v8211, %v7761
    %v8244 = vsel %vm2026, %v8212, %v7763
    %v8245 = vsel %vm2026, %v8213, %v7765
    %v8246 = vsel %vm2059, %v8214, %v7831
    %v8247 = vsel %vm2059, %v8215, %v7833
    %v8248 = vsel %vm2059, %v8216, %v7835
    %v8249 = vsel %vm2059, %v8217, %v7837
    %v8250 = vsel %vm2059, %v8218, %v7839
    %v8251 = vsel %vm2059, %v8219, %v7841
    %v8252 = vsel %vm2059, %v8220, %v7843
    %v8253 = vsel %vm2059, %v8221, %v7845
    %v8254 = vsel %vm2059, %v8222, %v7847
    %v8255 = vsel %vm2059, %v8223, %v7849
    %v8256 = vsel %vm2059, %v8224, %v7851
    %v8257 = vsel %vm2059, %v8225, %v7853
    %v8258 = vsel %vm2059, %v8226, %v7855
    %v8259 = vsel %vm2059, %v8227, %v7857
    %v8260 = vsel %vm2059, %v8228, %v7859
    %v8261 = vsel %vm2059, %v8229, %v7861
    %v8262 = vsel %vm2059, %v8230, %v7863
    %v8263 = vsel %vm2059, %v8231, %v7865
    %v8264 = vsel %vm2059, %v8232, %v7867
    %v8265 = vsel %vm2059, %v8233, %v7869
    %v8266 = vsel %vm2059, %v8234, %v7871
    %v8267 = vsel %vm2059, %v8235, %v7873
    %v8268 = vsel %vm2059, %v8236, %v7875
    %v8269 = vsel %vm2059, %v8237, %v7877
    %v8270 = vsel %vm2059, %v8238, %v7879
    %v8271 = vsel %vm2059, %v8239, %v7881
    %v8272 = vsel %vm2059, %v8240, %v7883
    %v8273 = vsel %vm2059, %v8241, %v7885
    %v8274 = vsel %vm2059, %v8242, %v7887
    %v8275 = vsel %vm2059, %v8243, %v7889
    %v8276 = vsel %vm2059, %v8244, %v7891
    %v8277 = vsel %vm2059, %v8245, %v7893
    %v8278 = vsel %vm2092, %v8246, %v7959
    %v8279 = vsel %vm2092, %v8247, %v7961
    %v8280 = vsel %vm2092, %v8248, %v7963
    %v8281 = vsel %vm2092, %v8249, %v7965
    %v8282 = vsel %vm2092, %v8250, %v7967
    %v8283 = vsel %vm2092, %v8251, %v7969
    %v8284 = vsel %vm2092, %v8252, %v7971
    %v8285 = vsel %vm2092, %v8253, %v7973
    %v8286 = vsel %vm2092, %v8254, %v7975
    %v8287 = vsel %vm2092, %v8255, %v7977
    %v8288 = vsel %vm2092, %v8256, %v7979
    %v8289 = vsel %vm2092, %v8257, %v7981
    %v8290 = vsel %vm2092, %v8258, %v7983
    %v8291 = vsel %vm2092, %v8259, %v7985
    %v8292 = vsel %vm2092, %v8260, %v7987
    %v8293 = vsel %vm2092, %v8261, %v7989
    %v8294 = vsel %vm2092, %v8262, %v7991
    %v8295 = vsel %vm2092, %v8263, %v7993
    %v8296 = vsel %vm2092, %v8264, %v7995
    %v8297 = vsel %vm2092, %v8265, %v7997
    %v8298 = vsel %vm2092, %v8266, %v7999
    %v8299 = vsel %vm2092, %v8267, %v8001
    %v8300 = vsel %vm2092, %v8268, %v8003
    %v8301 = vsel %vm2092, %v8269, %v8005
    %v8302 = vsel %vm2092, %v8270, %v8007
    %v8303 = vsel %vm2092, %v8271, %v8009
    %v8304 = vsel %vm2092, %v8272, %v8011
    %v8305 = vsel %vm2092, %v8273, %v8013
    %v8306 = vsel %vm2092, %v8274, %v8015
    %v8307 = vsel %vm2092, %v8275, %v8017
    %v8308 = vsel %vm2092, %v8276, %v8019
    %v8309 = vsel %vm2092, %v8277, %v8021
    %v8310 = vpack.c.bf16 %v8279, %v8278
    %v8311 = vpack.c.bf16 %v8281, %v8280
    %v8312 = vpack.c.bf16 %v8283, %v8282
    %v8313 = vpack.c.bf16 %v8285, %v8284
    %v8314 = vpack.c.bf16 %v8287, %v8286
    %v8315 = vpack.c.bf16 %v8289, %v8288
    %v8316 = vpack.c.bf16 %v8291, %v8290
    %v8317 = vpack.c.bf16 %v8293, %v8292
    %v8318 = vpack.c.bf16 %v8295, %v8294
    %v8319 = vpack.c.bf16 %v8297, %v8296
    %v8320 = vpack.c.bf16 %v8299, %v8298
    %v8321 = vpack.c.bf16 %v8301, %v8300
    %v8322 = vpack.c.bf16 %v8303, %v8302
    %v8323 = vpack.c.bf16 %v8305, %v8304
    %v8324 = vpack.c.bf16 %v8307, %v8306
    %v8325 = vpack.c.bf16 %v8309, %v8308
    %v8335 = vunpack.c.l.b16 %v6759
    %v8336 = vunpack.c.l.b16 %v6760
    %v8337 = vunpack.c.l.b16 %v6761
    %v8338 = vunpack.c.l.b16 %v6762
    %v8339 = vunpack.c.l.b16 %v6763
    %v8340 = vunpack.c.l.b16 %v6764
    %v8341 = vunpack.c.l.b16 %v6765
    %v8342 = vunpack.c.l.b16 %v6766
    %v8343 = vunpack.c.l.b16 %v6767
    %v8344 = vpack.c.b16 %v8336, %v8335
    %v8345 = vpack.c.b16 %v8338, %v8337
    %v8346 = vpack.c.b16 %v8340, %v8339
    %v8347 = vpack.c.b16 %v8342, %v8341
    %v8348 = vpack.c.b16 %v8343, %v8343
    %v8354 = vsel %vm2168, %v8310, 0
    %v8357 = vsel %vm2168, %v8311, 0
    %v8360 = vsel %vm2168, %v8312, 0
    %v8363 = vsel %vm2168, %v8313, 0
    %v8366 = vsel %vm2168, %v8314, 0
    %v8369 = vsel %vm2168, %v8315, 0
    %v8372 = vsel %vm2168, %v8316, 0
    %v8375 = vsel %vm2168, %v8317, 0
    %v8378 = vsel %vm2168, %v8318, 0
    %v8381 = vsel %vm2168, %v8319, 0
    %v8384 = vsel %vm2168, %v8320, 0
    %v8387 = vsel %vm2168, %v8321, 0
    %v8390 = vsel %vm2168, %v8322, 0
    %v8393 = vsel %vm2168, %v8323, 0
    %v8396 = vsel %vm2168, %v8324, 0
    %v8399 = vsel %vm2168, %v8325, 0
    %v8402 = vsel %vm2217, %v8348, 0
    %8404 = vmatprep.subr.bf16.mxu0 0
    %8405 = vmatpush1.bf16.msra.mxu0 %v8344
    %8406 = vmatprep.subr.bf16.mxu0 0
    %8407 = vmatpush1.bf16.msra.mxu0 %v8345
    %8408 = vmatprep.subr.bf16.mxu0 0
    %8409 = vmatpush1.bf16.msra.mxu0 %v8346
    %8410 = vmatprep.subr.bf16.mxu0 0
    %8411 = vmatpush1.bf16.msra.mxu0 %v8347
    %8412 = vmatprep.subr.bf16.mxu0 0
    %8413 = vmatpush1.bf16.msra.mxu0 %v8402
    %8414 = vmatprep.subr.bf16.mxu0 0
    %8415 = vmatpush1.bf16.msra.mxu0 0
    %8416 = vmatprep.subr.bf16.mxu0 0
    %8417 = vmatpush1.bf16.msra.mxu0 0
    %8418 = vmatprep.subr.bf16.mxu0 0
    %8419 = vmatpush1.bf16.msra.mxu0 0
    %8420 = vmatprep.subr.bf16.mxu0 0
    %8421 = vmatpush1.bf16.msra.mxu0 0
    %8422 = vmatprep.subr.bf16.mxu0 0
    %8423 = vmatpush1.bf16.msra.mxu0 0
    %8424 = vmatprep.subr.bf16.mxu0 0
    %8425 = vmatpush1.bf16.msra.mxu0 0
    %8426 = vmatprep.subr.bf16.mxu0 0
    %8427 = vmatpush1.bf16.msra.mxu0 0
    %8428 = vmatprep.subr.bf16.mxu0 0
    %8429 = vmatpush1.bf16.msra.mxu0 0
    %8430 = vmatprep.subr.bf16.mxu0 0
    %8431 = vmatpush1.bf16.msra.mxu0 0
    %8432 = vmatprep.subr.bf16.mxu0 0
    %8433 = vmatpush1.bf16.msra.mxu0 0
    %8434 = vmatprep.subr.bf16.mxu0 0
    %8435 = vmatpush1.bf16.msra.mxu0 0
    %8436 = vmatprep.mubr.bf16.mxu0 0
    %8437 = vmatmul.mubr.bf16.gmra.mrb[0].mxu0 %v8354
    %v8438 = vpop.f32.mrb[0].mxu0
    %v8439 = vadd.f32 0.0, %v8438
    %v8440 = vpop.f32.mrb[0].mxu0
    %v8441 = vpop.f32.mrb[0].mxu0
    %v8442 = vadd.f32 0.0, %v8441
    %v8443 = vpop.f32.mrb[0].mxu0
    %8444 = vmatprep.mubr.bf16.mxu0 0
    %8445 = vmatmul.mubr.bf16.gmra.mrb[0].mxu0 %v8357
    %v8446 = vpop.f32.mrb[0].mxu0
    %v8447 = vadd.f32 0.0, %v8446
    %v8448 = vpop.f32.mrb[0].mxu0
    %v8449 = vpop.f32.mrb[0].mxu0
    %v8450 = vadd.f32 0.0, %v8449
    %v8451 = vpop.f32.mrb[0].mxu0
    %8452 = vmatprep.mubr.bf16.mxu0 0
    %8453 = vmatmul.mubr.bf16.gmra.mrb[0].mxu0 %v8360
    %v8454 = vpop.f32.mrb[0].mxu0
    %v8455 = vadd.f32 0.0, %v8454
    %v8456 = vpop.f32.mrb[0].mxu0
    %v8457 = vpop.f32.mrb[0].mxu0
    %v8458 = vadd.f32 0.0, %v8457
    %v8459 = vpop.f32.mrb[0].mxu0
    %8460 = vmatprep.mubr.bf16.mxu0 0
    %8461 = vmatmul.mubr.bf16.gmra.mrb[0].mxu0 %v8363
    %v8462 = vpop.f32.mrb[0].mxu0
    %v8463 = vadd.f32 0.0, %v8462
    %v8464 = vpop.f32.mrb[0].mxu0
    %v8465 = vpop.f32.mrb[0].mxu0
    %v8466 = vadd.f32 0.0, %v8465
    %v8467 = vpop.f32.mrb[0].mxu0
    %8468 = vmatprep.mubr.bf16.mxu0 0
    %8469 = vmatmul.mubr.bf16.gmra.mrb[0].mxu0 %v8366
    %v8470 = vpop.f32.mrb[0].mxu0
    %v8471 = vadd.f32 0.0, %v8470
    %v8472 = vpop.f32.mrb[0].mxu0
    %v8473 = vpop.f32.mrb[0].mxu0
    %v8474 = vadd.f32 0.0, %v8473
    %v8475 = vpop.f32.mrb[0].mxu0
    %8476 = vmatprep.mubr.bf16.mxu0 0
    %8477 = vmatmul.mubr.bf16.gmra.mrb[0].mxu0 %v8369
    %v8478 = vpop.f32.mrb[0].mxu0
    %v8479 = vadd.f32 0.0, %v8478
    %v8480 = vpop.f32.mrb[0].mxu0
    %v8481 = vpop.f32.mrb[0].mxu0
    %v8482 = vadd.f32 0.0, %v8481
    %v8483 = vpop.f32.mrb[0].mxu0
    %8484 = vmatprep.mubr.bf16.mxu0 0
    %8485 = vmatmul.mubr.bf16.gmra.mrb[0].mxu0 %v8372
    %v8486 = vpop.f32.mrb[0].mxu0
    %v8487 = vadd.f32 0.0, %v8486
    %v8488 = vpop.f32.mrb[0].mxu0
    %v8489 = vpop.f32.mrb[0].mxu0
    %v8490 = vadd.f32 0.0, %v8489
    %v8491 = vpop.f32.mrb[0].mxu0
    %8492 = vmatprep.mubr.bf16.mxu0 0
    %8493 = vmatmul.mubr.bf16.gmra.mrb[0].mxu0 %v8375
    %v8494 = vpop.f32.mrb[0].mxu0
    %v8495 = vadd.f32 0.0, %v8494
    %v8496 = vpop.f32.mrb[0].mxu0
    %v8497 = vpop.f32.mrb[0].mxu0
    %v8498 = vadd.f32 0.0, %v8497
    %v8499 = vpop.f32.mrb[0].mxu0
    %8500 = vmatprep.mubr.bf16.mxu0 0
    %8501 = vmatmul.mubr.bf16.gmra.mrb[0].mxu0 %v8378
    %v8502 = vpop.f32.mrb[0].mxu0
    %v8503 = vadd.f32 0.0, %v8502
    %v8504 = vpop.f32.mrb[0].mxu0
    %v8505 = vpop.f32.mrb[0].mxu0
    %v8506 = vadd.f32 0.0, %v8505
    %v8507 = vpop.f32.mrb[0].mxu0
    %8508 = vmatprep.mubr.bf16.mxu0 0
    %8509 = vmatmul.mubr.bf16.gmra.mrb[0].mxu0 %v8381
    %v8510 = vpop.f32.mrb[0].mxu0
    %v8511 = vadd.f32 0.0, %v8510
    %v8512 = vpop.f32.mrb[0].mxu0
    %v8513 = vpop.f32.mrb[0].mxu0
    %v8514 = vadd.f32 0.0, %v8513
    %v8515 = vpop.f32.mrb[0].mxu0
    %8516 = vmatprep.mubr.bf16.mxu0 0
    %8517 = vmatmul.mubr.bf16.gmra.mrb[0].mxu0 %v8384
    %v8518 = vpop.f32.mrb[0].mxu0
    %v8519 = vadd.f32 0.0, %v8518
    %v8520 = vpop.f32.mrb[0].mxu0
    %v8521 = vpop.f32.mrb[0].mxu0
    %v8522 = vadd.f32 0.0, %v8521
    %v8523 = vpop.f32.mrb[0].mxu0
    %8524 = vmatprep.mubr.bf16.mxu0 0
    %8525 = vmatmul.mubr.bf16.gmra.mrb[0].mxu0 %v8387
    %v8526 = vpop.f32.mrb[0].mxu0
    %v8527 = vadd.f32 0.0, %v8526
    %v8528 = vpop.f32.mrb[0].mxu0
    %v8529 = vpop.f32.mrb[0].mxu0
    %v8530 = vadd.f32 0.0, %v8529
    %v8531 = vpop.f32.mrb[0].mxu0
    %8532 = vmatprep.mubr.bf16.mxu0 0
    %8533 = vmatmul.mubr.bf16.gmra.mrb[0].mxu0 %v8390
    %v8534 = vpop.f32.mrb[0].mxu0
    %v8535 = vadd.f32 0.0, %v8534
    %v8536 = vpop.f32.mrb[0].mxu0
    %v8537 = vpop.f32.mrb[0].mxu0
    %v8538 = vadd.f32 0.0, %v8537
    %v8539 = vpop.f32.mrb[0].mxu0
    %8540 = vmatprep.mubr.bf16.mxu0 0
    %8541 = vmatmul.mubr.bf16.gmra.mrb[0].mxu0 %v8393
    %v8542 = vpop.f32.mrb[0].mxu0
    %v8543 = vadd.f32 0.0, %v8542
    %v8544 = vpop.f32.mrb[0].mxu0
    %v8545 = vpop.f32.mrb[0].mxu0
    %v8546 = vadd.f32 0.0, %v8545
    %v8547 = vpop.f32.mrb[0].mxu0
    %8548 = vmatprep.mubr.bf16.mxu0 0
    %8549 = vmatmul.mubr.bf16.gmra.mrb[0].mxu0 %v8396
    %v8550 = vpop.f32.mrb[0].mxu0
    %v8551 = vadd.f32 0.0, %v8550
    %v8552 = vpop.f32.mrb[0].mxu0
    %v8553 = vpop.f32.mrb[0].mxu0
    %v8554 = vadd.f32 0.0, %v8553
    %v8555 = vpop.f32.mrb[0].mxu0
    %8556 = vmatprep.mubr.bf16.mxu0 0
    %8557 = vmatmul.mubr.bf16.gmra.mrb[0].mxu0 %v8399
    %v8558 = vpop.f32.mrb[0].mxu0
    %v8559 = vadd.f32 0.0, %v8558
    %v8560 = vpop.f32.mrb[0].mxu0
    %v8561 = vpop.f32.mrb[0].mxu0
    %v8562 = vadd.f32 0.0, %v8561
    %v8563 = vpop.f32.mrb[0].mxu0
    %8564 = vdwg.mxu0
    %s8565 = scalar_lea.vmem [#allocation18], 1
    %v8566 = vld [vmem:[%s8565] sm:$0x1]
    %v8568 = vlaneseq
    %v8569 = vshrl.u32 %v8568, 7
    %v8570 = vsub.s32 0, %v8569
    %v8571 = vrot.slane %v8566, %v8570
    %v8573 = vmul.f32 %v8439, %v8571
    %v8574 = vmul.f32 %v8442, %v8571
    %v8575 = vmul.f32 %v8447, %v8571
    %v8576 = vmul.f32 %v8450, %v8571
    %v8577 = vmul.f32 %v8455, %v8571
    %v8578 = vmul.f32 %v8458, %v8571
    %v8579 = vmul.f32 %v8463, %v8571
    %v8580 = vmul.f32 %v8466, %v8571
    %v8581 = vmul.f32 %v8471, %v8571
    %v8582 = vmul.f32 %v8474, %v8571
    %v8583 = vmul.f32 %v8479, %v8571
    %v8584 = vmul.f32 %v8482, %v8571
    %v8585 = vmul.f32 %v8487, %v8571
    %v8586 = vmul.f32 %v8490, %v8571
    %v8587 = vmul.f32 %v8495, %v8571
    %v8588 = vmul.f32 %v8498, %v8571
    %v8589 = vmul.f32 %v8503, %v8571
    %v8590 = vmul.f32 %v8506, %v8571
    %v8591 = vmul.f32 %v8511, %v8571
    %v8592 = vmul.f32 %v8514, %v8571
    %v8593 = vmul.f32 %v8519, %v8571
    %v8594 = vmul.f32 %v8522, %v8571
    %v8595 = vmul.f32 %v8527, %v8571
    %v8596 = vmul.f32 %v8530, %v8571
    %v8597 = vmul.f32 %v8535, %v8571
    %v8598 = vmul.f32 %v8538, %v8571
    %v8599 = vmul.f32 %v8543, %v8571
    %v8600 = vmul.f32 %v8546, %v8571
    %v8601 = vmul.f32 %v8551, %v8571
    %v8602 = vmul.f32 %v8554, %v8571
    %v8603 = vmul.f32 %v8559, %v8571
    %v8604 = vmul.f32 %v8562, %v8571
    %s8605 = scalar_lea.vmem [#allocation20], 1
    %v8606 = vld [vmem:[%s8605] sm:$0x1]
    %v8608 = vlaneseq
    %v8609 = vshrl.u32 %v8608, 7
    %v8610 = vsub.s32 0, %v8609
    %v8611 = vrot.slane %v8606, %v8610
    %v8613 = vadd.f32 %v8573, %v8611
    %v8614 = vadd.f32 %v8574, %v8611
    %v8615 = vadd.f32 %v8575, %v8611
    %v8616 = vadd.f32 %v8576, %v8611
    %v8617 = vadd.f32 %v8577, %v8611
    %v8618 = vadd.f32 %v8578, %v8611
    %v8619 = vadd.f32 %v8579, %v8611
    %v8620 = vadd.f32 %v8580, %v8611
    %v8621 = vadd.f32 %v8581, %v8611
    %v8622 = vadd.f32 %v8582, %v8611
    %v8623 = vadd.f32 %v8583, %v8611
    %v8624 = vadd.f32 %v8584, %v8611
    %v8625 = vadd.f32 %v8585, %v8611
    %v8626 = vadd.f32 %v8586, %v8611
    %v8627 = vadd.f32 %v8587, %v8611
    %v8628 = vadd.f32 %v8588, %v8611
    %v8629 = vadd.f32 %v8589, %v8611
    %v8630 = vadd.f32 %v8590, %v8611
    %v8631 = vadd.f32 %v8591, %v8611
    %v8632 = vadd.f32 %v8592, %v8611
    %v8633 = vadd.f32 %v8593, %v8611
    %v8634 = vadd.f32 %v8594, %v8611
    %v8635 = vadd.f32 %v8595, %v8611
    %v8636 = vadd.f32 %v8596, %v8611
    %v8637 = vadd.f32 %v8597, %v8611
    %v8638 = vadd.f32 %v8598, %v8611
    %v8639 = vadd.f32 %v8599, %v8611
    %v8640 = vadd.f32 %v8600, %v8611
    %v8641 = vadd.f32 %v8601, %v8611
    %v8642 = vadd.f32 %v8602, %v8611
    %v8643 = vadd.f32 %v8603, %v8611
    %v8644 = vadd.f32 %v8604, %v8611
    %v8645 = vsub.f32 0.0, %v8613
    %v8646 = vsub.f32 0.0, %v8614
    %v8647 = vsub.f32 0.0, %v8615
    %v8648 = vsub.f32 0.0, %v8616
    %v8649 = vsub.f32 0.0, %v8617
    %v8650 = vsub.f32 0.0, %v8618
    %v8651 = vsub.f32 0.0, %v8619
    %v8652 = vsub.f32 0.0, %v8620
    %v8653 = vsub.f32 0.0, %v8621
    %v8654 = vsub.f32 0.0, %v8622
    %v8655 = vsub.f32 0.0, %v8623
    %v8656 = vsub.f32 0.0, %v8624
    %v8657 = vsub.f32 0.0, %v8625
    %v8658 = vsub.f32 0.0, %v8626
    %v8659 = vsub.f32 0.0, %v8627
    %v8660 = vsub.f32 0.0, %v8628
    %v8661 = vsub.f32 0.0, %v8629
    %v8662 = vsub.f32 0.0, %v8630
    %v8663 = vsub.f32 0.0, %v8631
    %v8664 = vsub.f32 0.0, %v8632
    %v8665 = vsub.f32 0.0, %v8633
    %v8666 = vsub.f32 0.0, %v8634
    %v8667 = vsub.f32 0.0, %v8635
    %v8668 = vsub.f32 0.0, %v8636
    %v8669 = vsub.f32 0.0, %v8637
    %v8670 = vsub.f32 0.0, %v8638
    %v8671 = vsub.f32 0.0, %v8639
    %v8672 = vsub.f32 0.0, %v8640
    %v8673 = vsub.f32 0.0, %v8641
    %v8674 = vsub.f32 0.0, %v8642
    %v8675 = vsub.f32 0.0, %v8643
    %v8676 = vsub.f32 0.0, %v8644
    %v8677 = vmul.f32 %v8645, 1.442695
    %v8678 = vpow.pop %v8677
    %v8679 = vmul.f32 %v8646, 1.442695
    %v8680 = vpow.pop %v8679
    %v8681 = vmul.f32 %v8647, 1.442695
    %v8682 = vpow.pop %v8681
    %v8683 = vmul.f32 %v8648, 1.442695
    %v8684 = vpow.pop %v8683
    %v8685 = vmul.f32 %v8649, 1.442695
    %v8686 = vpow.pop %v8685
    %v8687 = vmul.f32 %v8650, 1.442695
    %v8688 = vpow.pop %v8687
    %v8689 = vmul.f32 %v8651, 1.442695
    %v8690 = vpow.pop %v8689
    %v8691 = vmul.f32 %v8652, 1.442695
    %v8692 = vpow.pop %v8691
    %v8693 = vmul.f32 %v8653, 1.442695
    %v8694 = vpow.pop %v8693
    %v8695 = vmul.f32 %v8654, 1.442695
    %v8696 = vpow.pop %v8695
    %v8697 = vmul.f32 %v8655, 1.442695
    %v8698 = vpow.pop %v8697
    %v8699 = vmul.f32 %v8656, 1.442695
    %v8700 = vpow.pop %v8699
    %v8701 = vmul.f32 %v8657, 1.442695
    %v8702 = vpow.pop %v8701
    %v8703 = vmul.f32 %v8658, 1.442695
    %v8704 = vpow.pop %v8703
    %v8705 = vmul.f32 %v8659, 1.442695
    %v8706 = vpow.pop %v8705
    %v8707 = vmul.f32 %v8660, 1.442695
    %v8708 = vpow.pop %v8707
    %v8709 = vmul.f32 %v8661, 1.442695
    %v8710 = vpow.pop %v8709
    %v8711 = vmul.f32 %v8662, 1.442695
    %v8712 = vpow.pop %v8711
    %v8713 = vmul.f32 %v8663, 1.442695
    %v8714 = vpow.pop %v8713
    %v8715 = vmul.f32 %v8664, 1.442695
    %v8716 = vpow.pop %v8715
    %v8717 = vmul.f32 %v8665, 1.442695
    %v8718 = vpow.pop %v8717
    %v8719 = vmul.f32 %v8666, 1.442695
    %v8720 = vpow.pop %v8719
    %v8721 = vmul.f32 %v8667, 1.442695
    %v8722 = vpow.pop %v8721
    %v8723 = vmul.f32 %v8668, 1.442695
    %v8724 = vpow.pop %v8723
    %v8725 = vmul.f32 %v8669, 1.442695
    %v8726 = vpow.pop %v8725
    %v8727 = vmul.f32 %v8670, 1.442695
    %v8728 = vpow.pop %v8727
    %v8729 = vmul.f32 %v8671, 1.442695
    %v8730 = vpow.pop %v8729
    %v8731 = vmul.f32 %v8672, 1.442695
    %v8732 = vpow.pop %v8731
    %v8733 = vmul.f32 %v8673, 1.442695
    %v8734 = vpow.pop %v8733
    %v8735 = vmul.f32 %v8674, 1.442695
    %v8736 = vpow.pop %v8735
    %v8737 = vmul.f32 %v8675, 1.442695
    %v8738 = vpow.pop %v8737
    %v8739 = vmul.f32 %v8676, 1.442695
    %v8740 = vpow.pop %v8739
    %v8741 = vadd.f32 %v8678, 1.0
    %v8742 = vadd.f32 %v8680, 1.0
    %v8743 = vadd.f32 %v8682, 1.0
    %v8744 = vadd.f32 %v8684, 1.0
    %v8745 = vadd.f32 %v8686, 1.0
    %v8746 = vadd.f32 %v8688, 1.0
    %v8747 = vadd.f32 %v8690, 1.0
    %v8748 = vadd.f32 %v8692, 1.0
    %v8749 = vadd.f32 %v8694, 1.0
    %v8750 = vadd.f32 %v8696, 1.0
    %v8751 = vadd.f32 %v8698, 1.0
    %v8752 = vadd.f32 %v8700, 1.0
    %v8753 = vadd.f32 %v8702, 1.0
    %v8754 = vadd.f32 %v8704, 1.0
    %v8755 = vadd.f32 %v8706, 1.0
    %v8756 = vadd.f32 %v8708, 1.0
    %v8757 = vadd.f32 %v8710, 1.0
    %v8758 = vadd.f32 %v8712, 1.0
    %v8759 = vadd.f32 %v8714, 1.0
    %v8760 = vadd.f32 %v8716, 1.0
    %v8761 = vadd.f32 %v8718, 1.0
    %v8762 = vadd.f32 %v8720, 1.0
    %v8763 = vadd.f32 %v8722, 1.0
    %v8764 = vadd.f32 %v8724, 1.0
    %v8765 = vadd.f32 %v8726, 1.0
    %v8766 = vadd.f32 %v8728, 1.0
    %v8767 = vadd.f32 %v8730, 1.0
    %v8768 = vadd.f32 %v8732, 1.0
    %v8769 = vadd.f32 %v8734, 1.0
    %v8770 = vadd.f32 %v8736, 1.0
    %v8771 = vadd.f32 %v8738, 1.0
    %v8772 = vadd.f32 %v8740, 1.0
    %v8773 = vrcp.pop %v8741
    %v8774 = vrcp.pop %v8742
    %v8775 = vrcp.pop %v8743
    %v8776 = vrcp.pop %v8744
    %v8777 = vrcp.pop %v8745
    %v8778 = vrcp.pop %v8746
    %v8779 = vrcp.pop %v8747
    %v8780 = vrcp.pop %v8748
    %v8781 = vrcp.pop %v8749
    %v8782 = vrcp.pop %v8750
    %v8783 = vrcp.pop %v8751
    %v8784 = vrcp.pop %v8752
    %v8785 = vrcp.pop %v8753
    %v8786 = vrcp.pop %v8754
    %v8787 = vrcp.pop %v8755
    %v8788 = vrcp.pop %v8756
    %v8789 = vrcp.pop %v8757
    %v8790 = vrcp.pop %v8758
    %v8791 = vrcp.pop %v8759
    %v8792 = vrcp.pop %v8760
    %v8793 = vrcp.pop %v8761
    %v8794 = vrcp.pop %v8762
    %v8795 = vrcp.pop %v8763
    %v8796 = vrcp.pop %v8764
    %v8797 = vrcp.pop %v8765
    %v8798 = vrcp.pop %v8766
    %v8799 = vrcp.pop %v8767
    %v8800 = vrcp.pop %v8768
    %v8801 = vrcp.pop %v8769
    %v8802 = vrcp.pop %v8770
    %v8803 = vrcp.pop %v8771
    %v8804 = vrcp.pop %v8772
    %v8805 = vmul.f32 %v8613, %v8773
    %v8806 = vmul.f32 %v8614, %v8774
    %v8807 = vmul.f32 %v8615, %v8775
    %v8808 = vmul.f32 %v8616, %v8776
    %v8809 = vmul.f32 %v8617, %v8777
    %v8810 = vmul.f32 %v8618, %v8778
    %v8811 = vmul.f32 %v8619, %v8779
    %v8812 = vmul.f32 %v8620, %v8780
    %v8813 = vmul.f32 %v8621, %v8781
    %v8814 = vmul.f32 %v8622, %v8782
    %v8815 = vmul.f32 %v8623, %v8783
    %v8816 = vmul.f32 %v8624, %v8784
    %v8817 = vmul.f32 %v8625, %v8785
    %v8818 = vmul.f32 %v8626, %v8786
    %v8819 = vmul.f32 %v8627, %v8787
    %v8820 = vmul.f32 %v8628, %v8788
    %v8821 = vmul.f32 %v8629, %v8789
    %v8822 = vmul.f32 %v8630, %v8790
    %v8823 = vmul.f32 %v8631, %v8791
    %v8824 = vmul.f32 %v8632, %v8792
    %v8825 = vmul.f32 %v8633, %v8793
    %v8826 = vmul.f32 %v8634, %v8794
    %v8827 = vmul.f32 %v8635, %v8795
    %v8828 = vmul.f32 %v8636, %v8796
    %v8829 = vmul.f32 %v8637, %v8797
    %v8830 = vmul.f32 %v8638, %v8798
    %v8831 = vmul.f32 %v8639, %v8799
    %v8832 = vmul.f32 %v8640, %v8800
    %v8833 = vmul.f32 %v8641, %v8801
    %v8834 = vmul.f32 %v8642, %v8802
    %v8835 = vmul.f32 %v8643, %v8803
    %v8836 = vmul.f32 %v8644, %v8804
    %v8837 = vpack.c.bf16 %v8806, %v8805
    %v8838 = vpack.c.bf16 %v8808, %v8807
    %v8839 = vpack.c.bf16 %v8810, %v8809
    %v8840 = vpack.c.bf16 %v8812, %v8811
    %v8841 = vpack.c.bf16 %v8814, %v8813
    %v8842 = vpack.c.bf16 %v8816, %v8815
    %v8843 = vpack.c.bf16 %v8818, %v8817
    %v8844 = vpack.c.bf16 %v8820, %v8819
    %v8845 = vpack.c.bf16 %v8822, %v8821
    %v8846 = vpack.c.bf16 %v8824, %v8823
    %v8847 = vpack.c.bf16 %v8826, %v8825
    %v8848 = vpack.c.bf16 %v8828, %v8827
    %v8849 = vpack.c.bf16 %v8830, %v8829
    %v8850 = vpack.c.bf16 %v8832, %v8831
    %v8851 = vpack.c.bf16 %v8834, %v8833
    %v8852 = vpack.c.bf16 %v8836, %v8835
    %s8853 = scalar_lea.vmem [#allocation21], 4
    %v8854 = vld [vmem:[%s8853] sm:$0xf]
    %v8856 = vsel %vm558, %v8837, 0
    %v8859 = vsel %vm558, %v8838, 0
    %v8862 = vsel %vm558, %v8839, 0
    %v8865 = vsel %vm558, %v8840, 0
    %v8868 = vsel %vm558, %v8841, 0
    %v8871 = vsel %vm558, %v8842, 0
    %v8874 = vsel %vm558, %v8843, 0
    %v8877 = vsel %vm558, %v8844, 0
    %v8880 = vsel %vm558, %v8845, 0
    %v8883 = vsel %vm558, %v8846, 0
    %v8886 = vsel %vm558, %v8847, 0
    %v8889 = vsel %vm558, %v8848, 0
    %v8892 = vsel %vm558, %v8849, 0
    %v8895 = vsel %vm558, %v8850, 0
    %v8898 = vsel %vm558, %v8851, 0
    %v8901 = vsel %vm558, %v8852, 0
    %v8904 = vsel %vm2217, %v8854, 0
    %8906 = vmatprep.subr.bf16.mxu0 0
    %8907 = vmatpush1.bf16.msra.mxu0 %v8904
    %8908 = vmatprep.subr.bf16.mxu0 0
    %8909 = vmatpush1.bf16.msra.mxu0 0
    %8910 = vmatprep.subr.bf16.mxu0 0
    %8911 = vmatpush1.bf16.msra.mxu0 0
    %8912 = vmatprep.subr.bf16.mxu0 0
    %8913 = vmatpush1.bf16.msra.mxu0 0
    %8914 = vmatprep.subr.bf16.mxu0 0
    %8915 = vmatpush1.bf16.msra.mxu0 0
    %8916 = vmatprep.subr.bf16.mxu0 0
    %8917 = vmatpush1.bf16.msra.mxu0 0
    %8918 = vmatprep.subr.bf16.mxu0 0
    %8919 = vmatpush1.bf16.msra.mxu0 0
    %8920 = vmatprep.subr.bf16.mxu0 0
    %8921 = vmatpush1.bf16.msra.mxu0 0
    %8922 = vmatprep.subr.bf16.mxu0 0
    %8923 = vmatpush1.bf16.msra.mxu0 0
    %8924 = vmatprep.subr.bf16.mxu0 0
    %8925 = vmatpush1.bf16.msra.mxu0 0
    %8926 = vmatprep.subr.bf16.mxu0 0
    %8927 = vmatpush1.bf16.msra.mxu0 0
    %8928 = vmatprep.subr.bf16.mxu0 0
    %8929 = vmatpush1.bf16.msra.mxu0 0
    %8930 = vmatprep.subr.bf16.mxu0 0
    %8931 = vmatpush1.bf16.msra.mxu0 0
    %8932 = vmatprep.subr.bf16.mxu0 0
    %8933 = vmatpush1.bf16.msra.mxu0 0
    %8934 = vmatprep.subr.bf16.mxu0 0
    %8935 = vmatpush1.bf16.msra.mxu0 0
    %8936 = vmatprep.subr.bf16.mxu0 0
    %8937 = vmatpush1.bf16.msra.mxu0 0
    %8938 = vmatprep.mubr.bf16.mxu0 0
    %8939 = vmatmul.mubr.bf16.gmra.mrb[0].mxu0 %v8856
    %v8940 = vpop.f32.mrb[0].mxu0
    %v8941 = vadd.f32 0.0, %v8940
    %v8942 = vpop.f32.mrb[0].mxu0
    %v8943 = vpop.f32.mrb[0].mxu0
    %v8944 = vadd.f32 0.0, %v8943
    %v8945 = vpop.f32.mrb[0].mxu0
    %8946 = vmatprep.mubr.bf16.mxu0 0
    %8947 = vmatmul.mubr.bf16.gmra.mrb[0].mxu0 %v8859
    %v8948 = vpop.f32.mrb[0].mxu0
    %v8949 = vadd.f32 0.0, %v8948
    %v8950 = vpop.f32.mrb[0].mxu0
    %v8951 = vpop.f32.mrb[0].mxu0
    %v8952 = vadd.f32 0.0, %v8951
    %v8953 = vpop.f32.mrb[0].mxu0
    %8954 = vmatprep.mubr.bf16.mxu0 0
    %8955 = vmatmul.mubr.bf16.gmra.mrb[0].mxu0 %v8862
    %v8956 = vpop.f32.mrb[0].mxu0
    %v8957 = vadd.f32 0.0, %v8956
    %v8958 = vpop.f32.mrb[0].mxu0
    %v8959 = vpop.f32.mrb[0].mxu0
    %v8960 = vadd.f32 0.0, %v8959
    %v8961 = vpop.f32.mrb[0].mxu0
    %8962 = vmatprep.mubr.bf16.mxu0 0
    %8963 = vmatmul.mubr.bf16.gmra.mrb[0].mxu0 %v8865
    %v8964 = vpop.f32.mrb[0].mxu0
    %v8965 = vadd.f32 0.0, %v8964
    %v8966 = vpop.f32.mrb[0].mxu0
    %v8967 = vpop.f32.mrb[0].mxu0
    %v8968 = vadd.f32 0.0, %v8967
    %v8969 = vpop.f32.mrb[0].mxu0
    %8970 = vmatprep.mubr.bf16.mxu0 0
    %8971 = vmatmul.mubr.bf16.gmra.mrb[0].mxu0 %v8868
    %v8972 = vpop.f32.mrb[0].mxu0
    %v8973 = vadd.f32 0.0, %v8972
    %v8974 = vpop.f32.mrb[0].mxu0
    %v8975 = vpop.f32.mrb[0].mxu0
    %v8976 = vadd.f32 0.0, %v8975
    %v8977 = vpop.f32.mrb[0].mxu0
    %8978 = vmatprep.mubr.bf16.mxu0 0
    %8979 = vmatmul.mubr.bf16.gmra.mrb[0].mxu0 %v8871
    %v8980 = vpop.f32.mrb[0].mxu0
    %v8981 = vadd.f32 0.0, %v8980
    %v8982 = vpop.f32.mrb[0].mxu0
    %v8983 = vpop.f32.mrb[0].mxu0
    %v8984 = vadd.f32 0.0, %v8983
    %v8985 = vpop.f32.mrb[0].mxu0
    %8986 = vmatprep.mubr.bf16.mxu0 0
    %8987 = vmatmul.mubr.bf16.gmra.mrb[0].mxu0 %v8874
    %v8988 = vpop.f32.mrb[0].mxu0
    %v8989 = vadd.f32 0.0, %v8988
    %v8990 = vpop.f32.mrb[0].mxu0
    %v8991 = vpop.f32.mrb[0].mxu0
    %v8992 = vadd.f32 0.0, %v8991
    %v8993 = vpop.f32.mrb[0].mxu0
    %8994 = vmatprep.mubr.bf16.mxu0 0
    %8995 = vmatmul.mubr.bf16.gmra.mrb[0].mxu0 %v8877
    %v8996 = vpop.f32.mrb[0].mxu0
    %v8997 = vadd.f32 0.0, %v8996
    %v8998 = vpop.f32.mrb[0].mxu0
    %v8999 = vpop.f32.mrb[0].mxu0
    %v9000 = vadd.f32 0.0, %v8999
    %v9001 = vpop.f32.mrb[0].mxu0
    %9002 = vmatprep.mubr.bf16.mxu0 0
    %9003 = vmatmul.mubr.bf16.gmra.mrb[0].mxu0 %v8880
    %v9004 = vpop.f32.mrb[0].mxu0
    %v9005 = vadd.f32 0.0, %v9004
    %v9006 = vpop.f32.mrb[0].mxu0
    %v9007 = vpop.f32.mrb[0].mxu0
    %v9008 = vadd.f32 0.0, %v9007
    %v9009 = vpop.f32.mrb[0].mxu0
    %9010 = vmatprep.mubr.bf16.mxu0 0
    %9011 = vmatmul.mubr.bf16.gmra.mrb[0].mxu0 %v8883
    %v9012 = vpop.f32.mrb[0].mxu0
    %v9013 = vadd.f32 0.0, %v9012
    %v9014 = vpop.f32.mrb[0].mxu0
    %v9015 = vpop.f32.mrb[0].mxu0
    %v9016 = vadd.f32 0.0, %v9015
    %v9017 = vpop.f32.mrb[0].mxu0
    %9018 = vmatprep.mubr.bf16.mxu0 0
    %9019 = vmatmul.mubr.bf16.gmra.mrb[0].mxu0 %v8886
    %v9020 = vpop.f32.mrb[0].mxu0
    %v9021 = vadd.f32 0.0, %v9020
    %v9022 = vpop.f32.mrb[0].mxu0
    %v9023 = vpop.f32.mrb[0].mxu0
    %v9024 = vadd.f32 0.0, %v9023
    %v9025 = vpop.f32.mrb[0].mxu0
    %9026 = vmatprep.mubr.bf16.mxu0 0
    %9027 = vmatmul.mubr.bf16.gmra.mrb[0].mxu0 %v8889
    %v9028 = vpop.f32.mrb[0].mxu0
    %v9029 = vadd.f32 0.0, %v9028
    %v9030 = vpop.f32.mrb[0].mxu0
    %v9031 = vpop.f32.mrb[0].mxu0
    %v9032 = vadd.f32 0.0, %v9031
    %v9033 = vpop.f32.mrb[0].mxu0
    %9034 = vmatprep.mubr.bf16.mxu0 0
    %9035 = vmatmul.mubr.bf16.gmra.mrb[0].mxu0 %v8892
    %v9036 = vpop.f32.mrb[0].mxu0
    %v9037 = vadd.f32 0.0, %v9036
    %v9038 = vpop.f32.mrb[0].mxu0
    %v9039 = vpop.f32.mrb[0].mxu0
    %v9040 = vadd.f32 0.0, %v9039
    %v9041 = vpop.f32.mrb[0].mxu0
    %9042 = vmatprep.mubr.bf16.mxu0 0
    %9043 = vmatmul.mubr.bf16.gmra.mrb[0].mxu0 %v8895
    %v9044 = vpop.f32.mrb[0].mxu0
    %v9045 = vadd.f32 0.0, %v9044
    %v9046 = vpop.f32.mrb[0].mxu0
    %v9047 = vpop.f32.mrb[0].mxu0
    %v9048 = vadd.f32 0.0, %v9047
    %v9049 = vpop.f32.mrb[0].mxu0
    %9050 = vmatprep.mubr.bf16.mxu0 0
    %9051 = vmatmul.mubr.bf16.gmra.mrb[0].mxu0 %v8898
    %v9052 = vpop.f32.mrb[0].mxu0
    %v9053 = vadd.f32 0.0, %v9052
    %v9054 = vpop.f32.mrb[0].mxu0
    %v9055 = vpop.f32.mrb[0].mxu0
    %v9056 = vadd.f32 0.0, %v9055
    %v9057 = vpop.f32.mrb[0].mxu0
    %9058 = vmatprep.mubr.bf16.mxu0 0
    %9059 = vmatmul.mubr.bf16.gmra.mrb[0].mxu0 %v8901
    %v9060 = vpop.f32.mrb[0].mxu0
    %v9061 = vadd.f32 0.0, %v9060
    %v9062 = vpop.f32.mrb[0].mxu0
    %v9063 = vpop.f32.mrb[0].mxu0
    %v9064 = vadd.f32 0.0, %v9063
    %v9065 = vpop.f32.mrb[0].mxu0
    %9066 = vdwg.mxu0
    %s9067 = scalar_lea.vmem [#allocation23], 1
    %v9068 = vld [vmem:[%s9067] sm:$0x1]
    %v9070 = vlaneseq
    %v9071 = vshrl.u32 %v9070, 7
    %v9072 = vsub.s32 0, %v9071
    %v9073 = vrot.slane %v9068, %v9072
    %v9075 = vmul.f32 %v8941, %v9073
    %v9076 = vmul.f32 %v8944, %v9073
    %v9077 = vmul.f32 %v8949, %v9073
    %v9078 = vmul.f32 %v8952, %v9073
    %v9079 = vmul.f32 %v8957, %v9073
    %v9080 = vmul.f32 %v8960, %v9073
    %v9081 = vmul.f32 %v8965, %v9073
    %v9082 = vmul.f32 %v8968, %v9073
    %v9083 = vmul.f32 %v8973, %v9073
    %v9084 = vmul.f32 %v8976, %v9073
    %v9085 = vmul.f32 %v8981, %v9073
    %v9086 = vmul.f32 %v8984, %v9073
    %v9087 = vmul.f32 %v8989, %v9073
    %v9088 = vmul.f32 %v8992, %v9073
    %v9089 = vmul.f32 %v8997, %v9073
    %v9090 = vmul.f32 %v9000, %v9073
    %v9091 = vmul.f32 %v9005, %v9073
    %v9092 = vmul.f32 %v9008, %v9073
    %v9093 = vmul.f32 %v9013, %v9073
    %v9094 = vmul.f32 %v9016, %v9073
    %v9095 = vmul.f32 %v9021, %v9073
    %v9096 = vmul.f32 %v9024, %v9073
    %v9097 = vmul.f32 %v9029, %v9073
    %v9098 = vmul.f32 %v9032, %v9073
    %v9099 = vmul.f32 %v9037, %v9073
    %v9100 = vmul.f32 %v9040, %v9073
    %v9101 = vmul.f32 %v9045, %v9073
    %v9102 = vmul.f32 %v9048, %v9073
    %v9103 = vmul.f32 %v9053, %v9073
    %v9104 = vmul.f32 %v9056, %v9073
    %v9105 = vmul.f32 %v9061, %v9073
    %v9106 = vmul.f32 %v9064, %v9073
    %s9107 = scalar_lea.vmem [#allocation24], 1
    %v9108 = vld [vmem:[%s9107] sm:$0x1]
    %v9110 = vlaneseq
    %v9111 = vshrl.u32 %v9110, 7
    %v9112 = vsub.s32 0, %v9111
    %v9113 = vrot.slane %v9108, %v9112
    %v9115 = vadd.f32 %v9075, %v9113
    %v9116 = vadd.f32 %v9076, %v9113
    %v9117 = vadd.f32 %v9077, %v9113
    %v9118 = vadd.f32 %v9078, %v9113
    %v9119 = vadd.f32 %v9079, %v9113
    %v9120 = vadd.f32 %v9080, %v9113
    %v9121 = vadd.f32 %v9081, %v9113
    %v9122 = vadd.f32 %v9082, %v9113
    %v9123 = vadd.f32 %v9083, %v9113
    %v9124 = vadd.f32 %v9084, %v9113
    %v9125 = vadd.f32 %v9085, %v9113
    %v9126 = vadd.f32 %v9086, %v9113
    %v9127 = vadd.f32 %v9087, %v9113
    %v9128 = vadd.f32 %v9088, %v9113
    %v9129 = vadd.f32 %v9089, %v9113
    %v9130 = vadd.f32 %v9090, %v9113
    %v9131 = vadd.f32 %v9091, %v9113
    %v9132 = vadd.f32 %v9092, %v9113
    %v9133 = vadd.f32 %v9093, %v9113
    %v9134 = vadd.f32 %v9094, %v9113
    %v9135 = vadd.f32 %v9095, %v9113
    %v9136 = vadd.f32 %v9096, %v9113
    %v9137 = vadd.f32 %v9097, %v9113
    %v9138 = vadd.f32 %v9098, %v9113
    %v9139 = vadd.f32 %v9099, %v9113
    %v9140 = vadd.f32 %v9100, %v9113
    %v9141 = vadd.f32 %v9101, %v9113
    %v9142 = vadd.f32 %v9102, %v9113
    %v9143 = vadd.f32 %v9103, %v9113
    %v9144 = vadd.f32 %v9104, %v9113
    %v9145 = vadd.f32 %v9105, %v9113
    %v9146 = vadd.f32 %v9106, %v9113
    %v9147 = vmul.f32 %v9115, %v401
    %v9148 = vmul.f32 %v9116, %v406
    %v9149 = vmul.f32 %v9117, %v411
    %v9150 = vmul.f32 %v9118, %v416
    %v9151 = vmul.f32 %v9119, %v421
    %v9152 = vmul.f32 %v9120, %v426
    %v9153 = vmul.f32 %v9121, %v431
    %v9154 = vmul.f32 %v9122, %v436
    %v9155 = vmul.f32 %v9123, %v441
    %v9156 = vmul.f32 %v9124, %v446
    %v9157 = vmul.f32 %v9125, %v451
    %v9158 = vmul.f32 %v9126, %v456
    %v9159 = vmul.f32 %v9127, %v461
    %v9160 = vmul.f32 %v9128, %v466
    %v9161 = vmul.f32 %v9129, %v471
    %v9162 = vmul.f32 %v9130, %v476
    %v9163 = vmul.f32 %v9131, %v481
    %v9164 = vmul.f32 %v9132, %v486
    %v9165 = vmul.f32 %v9133, %v491
    %v9166 = vmul.f32 %v9134, %v496
    %v9167 = vmul.f32 %v9135, %v501
    %v9168 = vmul.f32 %v9136, %v506
    %v9169 = vmul.f32 %v9137, %v511
    %v9170 = vmul.f32 %v9138, %v516
    %v9171 = vmul.f32 %v9139, %v521
    %v9172 = vmul.f32 %v9140, %v526
    %v9173 = vmul.f32 %v9141, %v531
    %v9174 = vmul.f32 %v9142, %v536
    %v9175 = vmul.f32 %v9143, %v541
    %v9176 = vmul.f32 %v9144, %v546
    %v9177 = vmul.f32 %v9145, %v551
    %v9178 = vmul.f32 %v9146, %v556
    %v9179 = vsel %vm1960, %v9147, 0.0
    %v9180 = vsel %vm1960, %v9148, 0.0
    %v9181 = vadd.f32 %v9179, %v9180
    %v9182 = vsel %vm1960, %v9149, 0.0
    %v9183 = vadd.f32 %v9181, %v9182
    %v9184 = vsel %vm1960, %v9150, 0.0
    %v9185 = vadd.f32 %v9183, %v9184
    %v9186 = vsel %vm1960, %v9151, 0.0
    %v9187 = vadd.f32 %v9185, %v9186
    %v9188 = vsel %vm1960, %v9152, 0.0
    %v9189 = vadd.f32 %v9187, %v9188
    %v9190 = vsel %vm1960, %v9153, 0.0
    %v9191 = vadd.f32 %v9189, %v9190
    %v9192 = vsel %vm1960, %v9154, 0.0
    %v9193 = vadd.f32 %v9191, %v9192
    %v9194 = vsel %vm1960, %v9155, 0.0
    %v9195 = vadd.f32 %v9193, %v9194
    %v9196 = vsel %vm1960, %v9156, 0.0
    %v9197 = vadd.f32 %v9195, %v9196
    %v9198 = vsel %vm1960, %v9157, 0.0
    %v9199 = vadd.f32 %v9197, %v9198
    %v9200 = vsel %vm1960, %v9158, 0.0
    %v9201 = vadd.f32 %v9199, %v9200
    %v9202 = vsel %vm1960, %v9159, 0.0
    %v9203 = vadd.f32 %v9201, %v9202
    %v9204 = vsel %vm1960, %v9160, 0.0
    %v9205 = vadd.f32 %v9203, %v9204
    %v9206 = vsel %vm1960, %v9161, 0.0
    %v9207 = vadd.f32 %v9205, %v9206
    %v9208 = vsel %vm1960, %v9162, 0.0
    %v9209 = vadd.f32 %v9207, %v9208
    %v9210 = vrot.slane %v9209, 4
    %v9211 = vadd.f32 %v9209, %v9210
    %v9212 = vrot.slane %v9211, 2
    %v9213 = vadd.f32 %v9211, %v9212
    %v9214 = vrot.slane %v9213, 1
    %v9215 = vadd.f32 %v9213, %v9214
    %v9216 = vsel %vm1960, %v9163, 0.0
    %v9217 = vsel %vm1960, %v9164, 0.0
    %v9218 = vadd.f32 %v9216, %v9217
    %v9219 = vsel %vm1960, %v9165, 0.0
    %v9220 = vadd.f32 %v9218, %v9219
    %v9221 = vsel %vm1960, %v9166, 0.0
    %v9222 = vadd.f32 %v9220, %v9221
    %v9223 = vsel %vm1960, %v9167, 0.0
    %v9224 = vadd.f32 %v9222, %v9223
    %v9225 = vsel %vm1960, %v9168, 0.0
    %v9226 = vadd.f32 %v9224, %v9225
    %v9227 = vsel %vm1960, %v9169, 0.0
    %v9228 = vadd.f32 %v9226, %v9227
    %v9229 = vsel %vm1960, %v9170, 0.0
    %v9230 = vadd.f32 %v9228, %v9229
    %v9231 = vsel %vm1960, %v9171, 0.0
    %v9232 = vadd.f32 %v9230, %v9231
    %v9233 = vsel %vm1960, %v9172, 0.0
    %v9234 = vadd.f32 %v9232, %v9233
    %v9235 = vsel %vm1960, %v9173, 0.0
    %v9236 = vadd.f32 %v9234, %v9235
    %v9237 = vsel %vm1960, %v9174, 0.0
    %v9238 = vadd.f32 %v9236, %v9237
    %v9239 = vsel %vm1960, %v9175, 0.0
    %v9240 = vadd.f32 %v9238, %v9239
    %v9241 = vsel %vm1960, %v9176, 0.0
    %v9242 = vadd.f32 %v9240, %v9241
    %v9243 = vsel %vm1960, %v9177, 0.0
    %v9244 = vadd.f32 %v9242, %v9243
    %v9245 = vsel %vm1960, %v9178, 0.0
    %v9246 = vadd.f32 %v9244, %v9245
    %v9247 = vrot.slane %v9246, 4
    %v9248 = vadd.f32 %v9246, %v9247
    %v9249 = vrot.slane %v9248, 2
    %v9250 = vadd.f32 %v9248, %v9249
    %v9251 = vrot.slane %v9250, 1
    %v9252 = vadd.f32 %v9250, %v9251
    %v9253 = vmul.f32 %v9215, 0.012345679
    %v9254 = vmul.f32 %v9252, 0.012345679
    %v9255 = vpack.c.bf16 %v9253, %v9253
    %v9256 = vpack.c.bf16 %v9254, %v9254
    %s9257 = scalar_lea.vmem [#allocation26], 16
    %v9258 = vld [vmem:[%s9257] sm:$0xf]
    %v9259 = vld [vmem:[%s9257 + $0x4] sm:$0xf]
    %v9260 = vld [vmem:[%s9257 + $0x8] sm:$0xf]
    %v9261 = vld [vmem:[%s9257 + $0xc] sm:$0xf]
    %s9262 = scalar_lea.vmem [#allocation27], 1
    %v9263 = vld [vmem:[%s9262] sm:$0x1]
    %v9265 = vlaneseq
    %v9266 = vshrl.u32 %v9265, 7
    %v9267 = vsub.s32 0, %v9266
    %v9268 = vrot.slane %v9263, %v9267
    %v9272 = vunpack.c.l.b16 %v9255
    %v9273 = vunpack.c.l.b16 %v9256
    %v9274 = vsel %vm5767, %v9273, %v9272
    %v9275 = vpack.c.b16 %v9274, %v9274
    %v9280 = vunpack.c.l.b16 %v9258
    %v9281 = vunpack.c.l.b16 %v9259
    %v9282 = vunpack.c.l.b16 %v9260
    %v9283 = vunpack.c.l.b16 %v9261
    %v9284 = vpack.c.b16 %v9281, %v9280
    %v9285 = vpack.c.b16 %v9283, %v9282
    %v9289 = vsel %vm1960, %v9275, 0
    %9291 = vmatprep.subr.bf16.mxu0 0
    %9292 = vmatpush1.bf16.msra.mxu0 %v9284
    %9293 = vmatprep.subr.bf16.mxu0 0
    %9294 = vmatpush1.bf16.msra.mxu0 %v9285
    %9295 = vmatprep.subr.bf16.mxu0 0
    %9296 = vmatpush1.bf16.msra.mxu0 0
    %9297 = vmatprep.subr.bf16.mxu0 0
    %9298 = vmatpush1.bf16.msra.mxu0 0
    %9299 = vmatprep.subr.bf16.mxu0 0
    %9300 = vmatpush1.bf16.msra.mxu0 0
    %9301 = vmatprep.subr.bf16.mxu0 0
    %9302 = vmatpush1.bf16.msra.mxu0 0
    %9303 = vmatprep.subr.bf16.mxu0 0
    %9304 = vmatpush1.bf16.msra.mxu0 0
    %9305 = vmatprep.subr.bf16.mxu0 0
    %9306 = vmatpush1.bf16.msra.mxu0 0
    %9307 = vmatprep.subr.bf16.mxu0 0
    %9308 = vmatpush1.bf16.msra.mxu0 0
    %9309 = vmatprep.subr.bf16.mxu0 0
    %9310 = vmatpush1.bf16.msra.mxu0 0
    %9311 = vmatprep.subr.bf16.mxu0 0
    %9312 = vmatpush1.bf16.msra.mxu0 0
    %9313 = vmatprep.subr.bf16.mxu0 0
    %9314 = vmatpush1.bf16.msra.mxu0 0
    %9315 = vmatprep.subr.bf16.mxu0 0
    %9316 = vmatpush1.bf16.msra.mxu0 0
    %9317 = vmatprep.subr.bf16.mxu0 0
    %9318 = vmatpush1.bf16.msra.mxu0 0
    %9319 = vmatprep.subr.bf16.mxu0 0
    %9320 = vmatpush1.bf16.msra.mxu0 0
    %9321 = vmatprep.subr.bf16.mxu0 0
    %9322 = vmatpush1.bf16.msra.mxu0 0
    %9323 = vmatprep.mubr.bf16.mxu0 0
    %9324 = vmatmul.mubr.bf16.gmra.mrb[0].mxu0 %v9289
    %v9325 = vpop.f32.mrb[0].mxu0
    %v9326 = vadd.f32 %v9268, %v9325
    %v9327 = vpop.f32.mrb[0].mxu0
    %v9328 = vpop.f32.mrb[0].mxu0
    %v9329 = vpop.f32.mrb[0].mxu0
    %9330 = vdwg.mxu0
    %v9331 = vsub.f32 0.0, %v9326
    %v9332 = vmul.f32 %v9331, 1.442695
    %v9333 = vpow.pop %v9332
    %v9334 = vadd.f32 %v9333, 1.0
    %v9335 = vrcp.pop %v9334
    %v9336 = vmul.f32 %v9326, %v9335
    %v9337 = vpack.c.bf16 %v9336, %v9336
    %s9338 = scalar_lea.vmem [#allocation29], 4
    %v9339 = vld [vmem:[%s9338] sm:$0xf]
    %s9340 = scalar_lea.vmem [#allocation30], 1
    %v9341 = vld [vmem:[%s9340] sm:$0x1]
    %v9343 = vlaneseq
    %v9344 = vshrl.u32 %v9343, 7
    %v9345 = vsub.s32 0, %v9344
    %v9346 = vrot.slane %v9341, %v9345
    %v9349 = vsel %vm558, %v9337, 0
    %v9352 = vsel %vm2217, %v9339, 0
    %9354 = vmatprep.subr.bf16.mxu0 0
    %9355 = vmatpush1.bf16.msra.mxu0 %v9352
    %9356 = vmatprep.subr.bf16.mxu0 0
    %9357 = vmatpush1.bf16.msra.mxu0 0
    %9358 = vmatprep.subr.bf16.mxu0 0
    %9359 = vmatpush1.bf16.msra.mxu0 0
    %9360 = vmatprep.subr.bf16.mxu0 0
    %9361 = vmatpush1.bf16.msra.mxu0 0
    %9362 = vmatprep.subr.bf16.mxu0 0
    %9363 = vmatpush1.bf16.msra.mxu0 0
    %9364 = vmatprep.subr.bf16.mxu0 0
    %9365 = vmatpush1.bf16.msra.mxu0 0
    %9366 = vmatprep.subr.bf16.mxu0 0
    %9367 = vmatpush1.bf16.msra.mxu0 0
    %9368 = vmatprep.subr.bf16.mxu0 0
    %9369 = vmatpush1.bf16.msra.mxu0 0
    %9370 = vmatprep.subr.bf16.mxu0 0
    %9371 = vmatpush1.bf16.msra.mxu0 0
    %9372 = vmatprep.subr.bf16.mxu0 0
    %9373 = vmatpush1.bf16.msra.mxu0 0
    %9374 = vmatprep.subr.bf16.mxu0 0
    %9375 = vmatpush1.bf16.msra.mxu0 0
    %9376 = vmatprep.subr.bf16.mxu0 0
    %9377 = vmatpush1.bf16.msra.mxu0 0
    %9378 = vmatprep.subr.bf16.mxu0 0
    %9379 = vmatpush1.bf16.msra.mxu0 0
    %9380 = vmatprep.subr.bf16.mxu0 0
    %9381 = vmatpush1.bf16.msra.mxu0 0
    %9382 = vmatprep.subr.bf16.mxu0 0
    %9383 = vmatpush1.bf16.msra.mxu0 0
    %9384 = vmatprep.subr.bf16.mxu0 0
    %9385 = vmatpush1.bf16.msra.mxu0 0
    %9386 = vmatprep.mubr.bf16.mxu0 0
    %9387 = vmatmul.mubr.bf16.gmra.mrb[0].mxu0 %v9349
    %v9388 = vpop.f32.mrb[0].mxu0
    %v9389 = vadd.f32 %v9346, %v9388
    %v9390 = vpop.f32.mrb[0].mxu0
    %v9391 = vpop.f32.mrb[0].mxu0
    %v9392 = vpop.f32.mrb[0].mxu0
    %9393 = vdwg.mxu0
    %v9394 = vsub.f32 0.0, %v9389
    %v9395 = vmul.f32 %v9394, 1.442695
    %v9396 = vpow.pop %v9395
    %v9397 = vadd.f32 %v9396, 1.0
    %v9398 = vrcp.pop %v9397
    %v9401 = vunpack.c.l.s4 1966171168
    %v9402 = vunpack.c.0.s8 %v9401
    %v9403 = vlaneseq
    %v9404 = vshrl.u32 %v9403, 7
    %v9405 = vsub.s32 %v9402, %v9404
    %v9406 = vrot.slane %v9398, %v9405
    %v9407 = vcombine.high %v9406, %v9406
    %v9409 = vunpack.c.l.s4 1966171168
    %v9410 = vunpack.c.0.s8 %v9409
    %v9411 = vlaneseq
    %v9412 = vshrl.u32 %v9411, 7
    %v9413 = vsub.s32 %v9410, %v9412
    %v9414 = vrot.slane %v9406, %v9413
    %v9416 = vunpack.c.l.s4 1966171168
    %v9417 = vunpack.c.0.s8 %v9416
    %v9418 = vlaneseq
    %v9419 = vshrl.u32 %v9418, 7
    %v9420 = vsub.s32 %v9417, %v9419
    %v9421 = vrot.slane %v9407, %v9420
    %v9422 = vlaneseq
    %v9423 = vshrl.u32 %v9422, 7
    %v9424 = vsub.s32 0, %v9423
    %v9425 = vrot.slane %v9414, %v9424
    %v9426 = vlaneseq
    %v9427 = vshrl.u32 %v9426, 7
    %v9428 = vsub.s32 0, %v9427
    %v9429 = vrot.slane %v9421, %v9428
    %v9432 = vmul.f32 %v9115, %v9425
    %v9433 = vmul.f32 %v9116, %v9425
    %v9434 = vmul.f32 %v9117, %v9425
    %v9435 = vmul.f32 %v9118, %v9425
    %v9436 = vmul.f32 %v9119, %v9425
    %v9437 = vmul.f32 %v9120, %v9425
    %v9438 = vmul.f32 %v9121, %v9425
    %v9439 = vmul.f32 %v9122, %v9425
    %v9440 = vmul.f32 %v9123, %v9425
    %v9441 = vmul.f32 %v9124, %v9425
    %v9442 = vmul.f32 %v9125, %v9425
    %v9443 = vmul.f32 %v9126, %v9425
    %v9444 = vmul.f32 %v9127, %v9425
    %v9445 = vmul.f32 %v9128, %v9425
    %v9446 = vmul.f32 %v9129, %v9425
    %v9447 = vmul.f32 %v9130, %v9425
    %v9448 = vmul.f32 %v9131, %v9429
    %v9449 = vmul.f32 %v9132, %v9429
    %v9450 = vmul.f32 %v9133, %v9429
    %v9451 = vmul.f32 %v9134, %v9429
    %v9452 = vmul.f32 %v9135, %v9429
    %v9453 = vmul.f32 %v9136, %v9429
    %v9454 = vmul.f32 %v9137, %v9429
    %v9455 = vmul.f32 %v9138, %v9429
    %v9456 = vmul.f32 %v9139, %v9429
    %v9457 = vmul.f32 %v9140, %v9429
    %v9458 = vmul.f32 %v9141, %v9429
    %v9459 = vmul.f32 %v9142, %v9429
    %v9460 = vmul.f32 %v9143, %v9429
    %v9461 = vmul.f32 %v9144, %v9429
    %v9462 = vmul.f32 %v9145, %v9429
    %v9463 = vmul.f32 %v9146, %v9429
    %v9464 = vadd.f32 %v9432, %v6148
    %v9465 = vadd.f32 %v9433, %v6149
    %v9466 = vadd.f32 %v9434, %v6150
    %v9467 = vadd.f32 %v9435, %v6151
    %v9468 = vadd.f32 %v9436, %v6152
    %v9469 = vadd.f32 %v9437, %v6153
    %v9470 = vadd.f32 %v9438, %v6154
    %v9471 = vadd.f32 %v9439, %v6155
    %v9472 = vadd.f32 %v9440, %v6156
    %v9473 = vadd.f32 %v9441, %v6157
    %v9474 = vadd.f32 %v9442, %v6158
    %v9475 = vadd.f32 %v9443, %v6159
    %v9476 = vadd.f32 %v9444, %v6160
    %v9477 = vadd.f32 %v9445, %v6161
    %v9478 = vadd.f32 %v9446, %v6162
    %v9479 = vadd.f32 %v9447, %v6163
    %v9480 = vadd.f32 %v9448, %v6164
    %v9481 = vadd.f32 %v9449, %v6165
    %v9482 = vadd.f32 %v9450, %v6166
    %v9483 = vadd.f32 %v9451, %v6167
    %v9484 = vadd.f32 %v9452, %v6168
    %v9485 = vadd.f32 %v9453, %v6169
    %v9486 = vadd.f32 %v9454, %v6170
    %v9487 = vadd.f32 %v9455, %v6171
    %v9488 = vadd.f32 %v9456, %v6172
    %v9489 = vadd.f32 %v9457, %v6173
    %v9490 = vadd.f32 %v9458, %v6174
    %v9491 = vadd.f32 %v9459, %v6175
    %v9492 = vadd.f32 %v9460, %v6176
    %v9493 = vadd.f32 %v9461, %v6177
    %v9494 = vadd.f32 %v9462, %v6178
    %v9495 = vadd.f32 %v9463, %v6179
    %v9496 = vsub.f32 0.0, %v9464
    %v9497 = vsub.f32 0.0, %v9465
    %v9498 = vsub.f32 0.0, %v9466
    %v9499 = vsub.f32 0.0, %v9467
    %v9500 = vsub.f32 0.0, %v9468
    %v9501 = vsub.f32 0.0, %v9469
    %v9502 = vsub.f32 0.0, %v9470
    %v9503 = vsub.f32 0.0, %v9471
    %v9504 = vsub.f32 0.0, %v9472
    %v9505 = vsub.f32 0.0, %v9473
    %v9506 = vsub.f32 0.0, %v9474
    %v9507 = vsub.f32 0.0, %v9475
    %v9508 = vsub.f32 0.0, %v9476
    %v9509 = vsub.f32 0.0, %v9477
    %v9510 = vsub.f32 0.0, %v9478
    %v9511 = vsub.f32 0.0, %v9479
    %v9512 = vsub.f32 0.0, %v9480
    %v9513 = vsub.f32 0.0, %v9481
    %v9514 = vsub.f32 0.0, %v9482
    %v9515 = vsub.f32 0.0, %v9483
    %v9516 = vsub.f32 0.0, %v9484
    %v9517 = vsub.f32 0.0, %v9485
    %v9518 = vsub.f32 0.0, %v9486
    %v9519 = vsub.f32 0.0, %v9487
    %v9520 = vsub.f32 0.0, %v9488
    %v9521 = vsub.f32 0.0, %v9489
    %v9522 = vsub.f32 0.0, %v9490
    %v9523 = vsub.f32 0.0, %v9491
    %v9524 = vsub.f32 0.0, %v9492
    %v9525 = vsub.f32 0.0, %v9493
    %v9526 = vsub.f32 0.0, %v9494
    %v9527 = vsub.f32 0.0, %v9495
    %v9528 = vmul.f32 %v9496, 1.442695
    %v9529 = vpow.pop %v9528
    %v9530 = vmul.f32 %v9497, 1.442695
    %v9531 = vpow.pop %v9530
    %v9532 = vmul.f32 %v9498, 1.442695
    %v9533 = vpow.pop %v9532
    %v9534 = vmul.f32 %v9499, 1.442695
    %v9535 = vpow.pop %v9534
    %v9536 = vmul.f32 %v9500, 1.442695
    %v9537 = vpow.pop %v9536
    %v9538 = vmul.f32 %v9501, 1.442695
    %v9539 = vpow.pop %v9538
    %v9540 = vmul.f32 %v9502, 1.442695
    %v9541 = vpow.pop %v9540
    %v9542 = vmul.f32 %v9503, 1.442695
    %v9543 = vpow.pop %v9542
    %v9544 = vmul.f32 %v9504, 1.442695
    %v9545 = vpow.pop %v9544
    %v9546 = vmul.f32 %v9505, 1.442695
    %v9547 = vpow.pop %v9546
    %v9548 = vmul.f32 %v9506, 1.442695
    %v9549 = vpow.pop %v9548
    %v9550 = vmul.f32 %v9507, 1.442695
    %v9551 = vpow.pop %v9550
    %v9552 = vmul.f32 %v9508, 1.442695
    %v9553 = vpow.pop %v9552
    %v9554 = vmul.f32 %v9509, 1.442695
    %v9555 = vpow.pop %v9554
    %v9556 = vmul.f32 %v9510, 1.442695
    %v9557 = vpow.pop %v9556
    %v9558 = vmul.f32 %v9511, 1.442695
    %v9559 = vpow.pop %v9558
    %v9560 = vmul.f32 %v9512, 1.442695
    %v9561 = vpow.pop %v9560
    %v9562 = vmul.f32 %v9513, 1.442695
    %v9563 = vpow.pop %v9562
    %v9564 = vmul.f32 %v9514, 1.442695
    %v9565 = vpow.pop %v9564
    %v9566 = vmul.f32 %v9515, 1.442695
    %v9567 = vpow.pop %v9566
    %v9568 = vmul.f32 %v9516, 1.442695
    %v9569 = vpow.pop %v9568
    %v9570 = vmul.f32 %v9517, 1.442695
    %v9571 = vpow.pop %v9570
    %v9572 = vmul.f32 %v9518, 1.442695
    %v9573 = vpow.pop %v9572
    %v9574 = vmul.f32 %v9519, 1.442695
    %v9575 = vpow.pop %v9574
    %v9576 = vmul.f32 %v9520, 1.442695
    %v9577 = vpow.pop %v9576
    %v9578 = vmul.f32 %v9521, 1.442695
    %v9579 = vpow.pop %v9578
    %v9580 = vmul.f32 %v9522, 1.442695
    %v9581 = vpow.pop %v9580
    %v9582 = vmul.f32 %v9523, 1.442695
    %v9583 = vpow.pop %v9582
    %v9584 = vmul.f32 %v9524, 1.442695
    %v9585 = vpow.pop %v9584
    %v9586 = vmul.f32 %v9525, 1.442695
    %v9587 = vpow.pop %v9586
    %v9588 = vmul.f32 %v9526, 1.442695
    %v9589 = vpow.pop %v9588
    %v9590 = vmul.f32 %v9527, 1.442695
    %v9591 = vpow.pop %v9590
    %v9592 = vadd.f32 %v9529, 1.0
    %v9593 = vadd.f32 %v9531, 1.0
    %v9594 = vadd.f32 %v9533, 1.0
    %v9595 = vadd.f32 %v9535, 1.0
    %v9596 = vadd.f32 %v9537, 1.0
    %v9597 = vadd.f32 %v9539, 1.0
    %v9598 = vadd.f32 %v9541, 1.0
    %v9599 = vadd.f32 %v9543, 1.0
    %v9600 = vadd.f32 %v9545, 1.0
    %v9601 = vadd.f32 %v9547, 1.0
    %v9602 = vadd.f32 %v9549, 1.0
    %v9603 = vadd.f32 %v9551, 1.0
    %v9604 = vadd.f32 %v9553, 1.0
    %v9605 = vadd.f32 %v9555, 1.0
    %v9606 = vadd.f32 %v9557, 1.0
    %v9607 = vadd.f32 %v9559, 1.0
    %v9608 = vadd.f32 %v9561, 1.0
    %v9609 = vadd.f32 %v9563, 1.0
    %v9610 = vadd.f32 %v9565, 1.0
    %v9611 = vadd.f32 %v9567, 1.0
    %v9612 = vadd.f32 %v9569, 1.0
    %v9613 = vadd.f32 %v9571, 1.0
    %v9614 = vadd.f32 %v9573, 1.0
    %v9615 = vadd.f32 %v9575, 1.0
    %v9616 = vadd.f32 %v9577, 1.0
    %v9617 = vadd.f32 %v9579, 1.0
    %v9618 = vadd.f32 %v9581, 1.0
    %v9619 = vadd.f32 %v9583, 1.0
    %v9620 = vadd.f32 %v9585, 1.0
    %v9621 = vadd.f32 %v9587, 1.0
    %v9622 = vadd.f32 %v9589, 1.0
    %v9623 = vadd.f32 %v9591, 1.0
    %v9624 = vrcp.pop %v9592
    %v9625 = vrcp.pop %v9593
    %v9626 = vrcp.pop %v9594
    %v9627 = vrcp.pop %v9595
    %v9628 = vrcp.pop %v9596
    %v9629 = vrcp.pop %v9597
    %v9630 = vrcp.pop %v9598
    %v9631 = vrcp.pop %v9599
    %v9632 = vrcp.pop %v9600
    %v9633 = vrcp.pop %v9601
    %v9634 = vrcp.pop %v9602
    %v9635 = vrcp.pop %v9603
    %v9636 = vrcp.pop %v9604
    %v9637 = vrcp.pop %v9605
    %v9638 = vrcp.pop %v9606
    %v9639 = vrcp.pop %v9607
    %v9640 = vrcp.pop %v9608
    %v9641 = vrcp.pop %v9609
    %v9642 = vrcp.pop %v9610
    %v9643 = vrcp.pop %v9611
    %v9644 = vrcp.pop %v9612
    %v9645 = vrcp.pop %v9613
    %v9646 = vrcp.pop %v9614
    %v9647 = vrcp.pop %v9615
    %v9648 = vrcp.pop %v9616
    %v9649 = vrcp.pop %v9617
    %v9650 = vrcp.pop %v9618
    %v9651 = vrcp.pop %v9619
    %v9652 = vrcp.pop %v9620
    %v9653 = vrcp.pop %v9621
    %v9654 = vrcp.pop %v9622
    %v9655 = vrcp.pop %v9623
    %v9656 = vmul.f32 %v9464, %v9624
    %v9657 = vmul.f32 %v9465, %v9625
    %v9658 = vmul.f32 %v9466, %v9626
    %v9659 = vmul.f32 %v9467, %v9627
    %v9660 = vmul.f32 %v9468, %v9628
    %v9661 = vmul.f32 %v9469, %v9629
    %v9662 = vmul.f32 %v9470, %v9630
    %v9663 = vmul.f32 %v9471, %v9631
    %v9664 = vmul.f32 %v9472, %v9632
    %v9665 = vmul.f32 %v9473, %v9633
    %v9666 = vmul.f32 %v9474, %v9634
    %v9667 = vmul.f32 %v9475, %v9635
    %v9668 = vmul.f32 %v9476, %v9636
    %v9669 = vmul.f32 %v9477, %v9637
    %v9670 = vmul.f32 %v9478, %v9638
    %v9671 = vmul.f32 %v9479, %v9639
    %v9672 = vmul.f32 %v9480, %v9640
    %v9673 = vmul.f32 %v9481, %v9641
    %v9674 = vmul.f32 %v9482, %v9642
    %v9675 = vmul.f32 %v9483, %v9643
    %v9676 = vmul.f32 %v9484, %v9644
    %v9677 = vmul.f32 %v9485, %v9645
    %v9678 = vmul.f32 %v9486, %v9646
    %v9679 = vmul.f32 %v9487, %v9647
    %v9680 = vmul.f32 %v9488, %v9648
    %v9681 = vmul.f32 %v9489, %v9649
    %v9682 = vmul.f32 %v9490, %v9650
    %v9683 = vmul.f32 %v9491, %v9651
    %v9684 = vmul.f32 %v9492, %v9652
    %v9685 = vmul.f32 %v9493, %v9653
    %v9686 = vmul.f32 %v9494, %v9654
    %v9687 = vmul.f32 %v9495, %v9655
    %v9688 = vpack.c.bf16 %v9657, %v9656
    %v9689 = vpack.c.bf16 %v9659, %v9658
    %v9690 = vpack.c.bf16 %v9661, %v9660
    %v9691 = vpack.c.bf16 %v9663, %v9662
    %v9692 = vpack.c.bf16 %v9665, %v9664
    %v9693 = vpack.c.bf16 %v9667, %v9666
    %v9694 = vpack.c.bf16 %v9669, %v9668
    %v9695 = vpack.c.bf16 %v9671, %v9670
    %v9696 = vpack.c.bf16 %v9673, %v9672
    %v9697 = vpack.c.bf16 %v9675, %v9674
    %v9698 = vpack.c.bf16 %v9677, %v9676
    %v9699 = vpack.c.bf16 %v9679, %v9678
    %v9700 = vpack.c.bf16 %v9681, %v9680
    %v9701 = vpack.c.bf16 %v9683, %v9682
    %v9702 = vpack.c.bf16 %v9685, %v9684
    %v9703 = vpack.c.bf16 %v9687, %v9686
    %v9704 = vld [vmem:[#allocation32] sm:$0xf]
    %v9705 = vld [vmem:[#allocation32 + $0x4] sm:$0xf]
    %v9706 = vld [vmem:[#allocation32 + $0x8] sm:$0xf]
    %v9707 = vld [vmem:[#allocation32 + $0xc] sm:$0xf]
    %v9712 = vunpack.c.l.b16 %v9704
    %v9713 = vunpack.c.l.b16 %v9705
    %v9714 = vunpack.c.l.b16 %v9706
    %v9715 = vunpack.c.l.b16 %v9707
    %v9716 = vpack.c.b16 %v9713, %v9712
    %v9717 = vpack.c.b16 %v9715, %v9714
    %v9721 = vsel %vm1960, %v9688, 0
    %v9724 = vsel %vm1960, %v9689, 0
    %v9727 = vsel %vm1960, %v9690, 0
    %v9730 = vsel %vm1960, %v9691, 0
    %v9733 = vsel %vm1960, %v9692, 0
    %v9736 = vsel %vm1960, %v9693, 0
    %v9739 = vsel %vm1960, %v9694, 0
    %v9742 = vsel %vm1960, %v9695, 0
    %v9745 = vsel %vm1960, %v9696, 0
    %v9748 = vsel %vm1960, %v9697, 0
    %v9751 = vsel %vm1960, %v9698, 0
    %v9754 = vsel %vm1960, %v9699, 0
    %v9757 = vsel %vm1960, %v9700, 0
    %v9760 = vsel %vm1960, %v9701, 0
    %v9763 = vsel %vm1960, %v9702, 0
    %v9766 = vsel %vm1960, %v9703, 0
    %9768 = vmatprep.subr.bf16.mxu0 0
    %9769 = vmatpush1.bf16.msra.mxu0 %v9716
    %9770 = vmatprep.subr.bf16.mxu0 0
    %9771 = vmatpush1.bf16.msra.mxu0 %v9717
    %9772 = vmatprep.subr.bf16.mxu0 0
    %9773 = vmatpush1.bf16.msra.mxu0 0
    %9774 = vmatprep.subr.bf16.mxu0 0
    %9775 = vmatpush1.bf16.msra.mxu0 0
    %9776 = vmatprep.subr.bf16.mxu0 0
    %9777 = vmatpush1.bf16.msra.mxu0 0
    %9778 = vmatprep.subr.bf16.mxu0 0
    %9779 = vmatpush1.bf16.msra.mxu0 0
    %9780 = vmatprep.subr.bf16.mxu0 0
    %9781 = vmatpush1.bf16.msra.mxu0 0
    %9782 = vmatprep.subr.bf16.mxu0 0
    %9783 = vmatpush1.bf16.msra.mxu0 0
    %9784 = vmatprep.subr.bf16.mxu0 0
    %9785 = vmatpush1.bf16.msra.mxu0 0
    %9786 = vmatprep.subr.bf16.mxu0 0
    %9787 = vmatpush1.bf16.msra.mxu0 0
    %9788 = vmatprep.subr.bf16.mxu0 0
    %9789 = vmatpush1.bf16.msra.mxu0 0
    %9790 = vmatprep.subr.bf16.mxu0 0
    %9791 = vmatpush1.bf16.msra.mxu0 0
    %9792 = vmatprep.subr.bf16.mxu0 0
    %9793 = vmatpush1.bf16.msra.mxu0 0
    %9794 = vmatprep.subr.bf16.mxu0 0
    %9795 = vmatpush1.bf16.msra.mxu0 0
    %9796 = vmatprep.subr.bf16.mxu0 0
    %9797 = vmatpush1.bf16.msra.mxu0 0
    %9798 = vmatprep.subr.bf16.mxu0 0
    %9799 = vmatpush1.bf16.msra.mxu0 0
    %9800 = vmatprep.mubr.bf16.mxu0 0
    %9801 = vmatmul.mubr.bf16.gmra.mrb[0].mxu0 %v9721
    %v9802 = vpop.f32.mrb[0].mxu0
    %v9803 = vadd.f32 0.0, %v9802
    %v9804 = vpop.f32.mrb[0].mxu0
    %v9805 = vpop.f32.mrb[0].mxu0
    %v9806 = vadd.f32 0.0, %v9805
    %v9807 = vpop.f32.mrb[0].mxu0
    %9808 = vmatprep.mubr.bf16.mxu0 0
    %9809 = vmatmul.mubr.bf16.gmra.mrb[0].mxu0 %v9724
    %v9810 = vpop.f32.mrb[0].mxu0
    %v9811 = vadd.f32 0.0, %v9810
    %v9812 = vpop.f32.mrb[0].mxu0
    %v9813 = vpop.f32.mrb[0].mxu0
    %v9814 = vadd.f32 0.0, %v9813
    %v9815 = vpop.f32.mrb[0].mxu0
    %9816 = vmatprep.mubr.bf16.mxu0 0
    %9817 = vmatmul.mubr.bf16.gmra.mrb[0].mxu0 %v9727
    %v9818 = vpop.f32.mrb[0].mxu0
    %v9819 = vadd.f32 0.0, %v9818
    %v9820 = vpop.f32.mrb[0].mxu0
    %v9821 = vpop.f32.mrb[0].mxu0
    %v9822 = vadd.f32 0.0, %v9821
    %v9823 = vpop.f32.mrb[0].mxu0
    %9824 = vmatprep.mubr.bf16.mxu0 0
    %9825 = vmatmul.mubr.bf16.gmra.mrb[0].mxu0 %v9730
    %v9826 = vpop.f32.mrb[0].mxu0
    %v9827 = vadd.f32 0.0, %v9826
    %v9828 = vpop.f32.mrb[0].mxu0
    %v9829 = vpop.f32.mrb[0].mxu0
    %v9830 = vadd.f32 0.0, %v9829
    %v9831 = vpop.f32.mrb[0].mxu0
    %9832 = vmatprep.mubr.bf16.mxu0 0
    %9833 = vmatmul.mubr.bf16.gmra.mrb[0].mxu0 %v9733
    %v9834 = vpop.f32.mrb[0].mxu0
    %v9835 = vadd.f32 0.0, %v9834
    %v9836 = vpop.f32.mrb[0].mxu0
    %v9837 = vpop.f32.mrb[0].mxu0
    %v9838 = vadd.f32 0.0, %v9837
    %v9839 = vpop.f32.mrb[0].mxu0
    %9840 = vmatprep.mubr.bf16.mxu0 0
    %9841 = vmatmul.mubr.bf16.gmra.mrb[0].mxu0 %v9736
    %v9842 = vpop.f32.mrb[0].mxu0
    %v9843 = vadd.f32 0.0, %v9842
    %v9844 = vpop.f32.mrb[0].mxu0
    %v9845 = vpop.f32.mrb[0].mxu0
    %v9846 = vadd.f32 0.0, %v9845
    %v9847 = vpop.f32.mrb[0].mxu0
    %9848 = vmatprep.mubr.bf16.mxu0 0
    %9849 = vmatmul.mubr.bf16.gmra.mrb[0].mxu0 %v9739
    %v9850 = vpop.f32.mrb[0].mxu0
    %v9851 = vadd.f32 0.0, %v9850
    %v9852 = vpop.f32.mrb[0].mxu0
    %v9853 = vpop.f32.mrb[0].mxu0
    %v9854 = vadd.f32 0.0, %v9853
    %v9855 = vpop.f32.mrb[0].mxu0
    %9856 = vmatprep.mubr.bf16.mxu0 0
    %9857 = vmatmul.mubr.bf16.gmra.mrb[0].mxu0 %v9742
    %v9858 = vpop.f32.mrb[0].mxu0
    %v9859 = vadd.f32 0.0, %v9858
    %v9860 = vpop.f32.mrb[0].mxu0
    %v9861 = vpop.f32.mrb[0].mxu0
    %v9862 = vadd.f32 0.0, %v9861
    %v9863 = vpop.f32.mrb[0].mxu0
    %9864 = vmatprep.mubr.bf16.mxu0 0
    %9865 = vmatmul.mubr.bf16.gmra.mrb[0].mxu0 %v9745
    %v9866 = vpop.f32.mrb[0].mxu0
    %v9867 = vadd.f32 0.0, %v9866
    %v9868 = vpop.f32.mrb[0].mxu0
    %v9869 = vpop.f32.mrb[0].mxu0
    %v9870 = vadd.f32 0.0, %v9869
    %v9871 = vpop.f32.mrb[0].mxu0
    %9872 = vmatprep.mubr.bf16.mxu0 0
    %9873 = vmatmul.mubr.bf16.gmra.mrb[0].mxu0 %v9748
    %v9874 = vpop.f32.mrb[0].mxu0
    %v9875 = vadd.f32 0.0, %v9874
    %v9876 = vpop.f32.mrb[0].mxu0
    %v9877 = vpop.f32.mrb[0].mxu0
    %v9878 = vadd.f32 0.0, %v9877
    %v9879 = vpop.f32.mrb[0].mxu0
    %9880 = vmatprep.mubr.bf16.mxu0 0
    %9881 = vmatmul.mubr.bf16.gmra.mrb[0].mxu0 %v9751
    %v9882 = vpop.f32.mrb[0].mxu0
    %v9883 = vadd.f32 0.0, %v9882
    %v9884 = vpop.f32.mrb[0].mxu0
    %v9885 = vpop.f32.mrb[0].mxu0
    %v9886 = vadd.f32 0.0, %v9885
    %v9887 = vpop.f32.mrb[0].mxu0
    %9888 = vmatprep.mubr.bf16.mxu0 0
    %9889 = vmatmul.mubr.bf16.gmra.mrb[0].mxu0 %v9754
    %v9890 = vpop.f32.mrb[0].mxu0
    %v9891 = vadd.f32 0.0, %v9890
    %v9892 = vpop.f32.mrb[0].mxu0
    %v9893 = vpop.f32.mrb[0].mxu0
    %v9894 = vadd.f32 0.0, %v9893
    %v9895 = vpop.f32.mrb[0].mxu0
    %9896 = vmatprep.mubr.bf16.mxu0 0
    %9897 = vmatmul.mubr.bf16.gmra.mrb[0].mxu0 %v9757
    %v9898 = vpop.f32.mrb[0].mxu0
    %v9899 = vadd.f32 0.0, %v9898
    %v9900 = vpop.f32.mrb[0].mxu0
    %v9901 = vpop.f32.mrb[0].mxu0
    %v9902 = vadd.f32 0.0, %v9901
    %v9903 = vpop.f32.mrb[0].mxu0
    %9904 = vmatprep.mubr.bf16.mxu0 0
    %9905 = vmatmul.mubr.bf16.gmra.mrb[0].mxu0 %v9760
    %v9906 = vpop.f32.mrb[0].mxu0
    %v9907 = vadd.f32 0.0, %v9906
    %v9908 = vpop.f32.mrb[0].mxu0
    %v9909 = vpop.f32.mrb[0].mxu0
    %v9910 = vadd.f32 0.0, %v9909
    %v9911 = vpop.f32.mrb[0].mxu0
    %9912 = vmatprep.mubr.bf16.mxu0 0
    %9913 = vmatmul.mubr.bf16.gmra.mrb[0].mxu0 %v9763
    %v9914 = vpop.f32.mrb[0].mxu0
    %v9915 = vadd.f32 0.0, %v9914
    %v9916 = vpop.f32.mrb[0].mxu0
    %v9917 = vpop.f32.mrb[0].mxu0
    %v9918 = vadd.f32 0.0, %v9917
    %v9919 = vpop.f32.mrb[0].mxu0
    %9920 = vmatprep.mubr.bf16.mxu0 0
    %9921 = vmatmul.mubr.bf16.gmra.mrb[0].mxu0 %v9766
    %v9922 = vpop.f32.mrb[0].mxu0
    %v9923 = vadd.f32 0.0, %v9922
    %v9924 = vpop.f32.mrb[0].mxu0
    %v9925 = vpop.f32.mrb[0].mxu0
    %v9926 = vadd.f32 0.0, %v9925
    %v9927 = vpop.f32.mrb[0].mxu0
    %9928 = vdwg.mxu0
    %v9929 = vld [vmem:[#allocation33] sm:$0xff]
    %v9930 = vld [vmem:[#allocation33 + $0x8] sm:$0xff]
    %v9931 = vld [vmem:[#allocation33 + $0x10] sm:$0xff]
    %v9932 = vld [vmem:[#allocation33 + $0x18] sm:$0xff]
    %v9933 = vld [vmem:[#allocation33 + $0x20] sm:$0xff]
    %v9934 = vld [vmem:[#allocation33 + $0x28] sm:$0xff]
    %v9935 = vld [vmem:[#allocation33 + $0x30] sm:$0xff]
    %v9936 = vld [vmem:[#allocation33 + $0x38] sm:$0xff]
    %v9937 = vld [vmem:[#allocation33 + $0x40] sm:$0xff]
    %v9938 = vld [vmem:[#allocation33 + $0x48] sm:$0xff]
    %v9939 = vld [vmem:[#allocation33 + $0x50] sm:$0xff]
    %v9940 = vld [vmem:[#allocation33 + $0x58] sm:$0xff]
    %v9941 = vld [vmem:[#allocation33 + $0x60] sm:$0xff]
    %v9942 = vld [vmem:[#allocation33 + $0x68] sm:$0xff]
    %v9943 = vld [vmem:[#allocation33 + $0x70] sm:$0xff]
    %v9944 = vld [vmem:[#allocation33 + $0x78] sm:$0xff]
    %v9945 = vld [vmem:[#allocation33 + $0x80] sm:$0xff]
    %v9946 = vld [vmem:[#allocation33 + $0x88] sm:$0xff]
    %v9947 = vld [vmem:[#allocation33 + $0x90] sm:$0xff]
    %v9948 = vld [vmem:[#allocation33 + $0x98] sm:$0xff]
    %v9949 = vld [vmem:[#allocation33 + $0xa0] sm:$0xff]
    %v9950 = vld [vmem:[#allocation33 + $0xa8] sm:$0xff]
    %v9951 = vld [vmem:[#allocation33 + $0xb0] sm:$0xff]
    %v9952 = vld [vmem:[#allocation33 + $0xb8] sm:$0xff]
    %v9953 = vld [vmem:[#allocation33 + $0xc0] sm:$0xff]
    %v9954 = vld [vmem:[#allocation33 + $0xc8] sm:$0xff]
    %v9955 = vld [vmem:[#allocation33 + $0xd0] sm:$0xff]
    %v9956 = vld [vmem:[#allocation33 + $0xd8] sm:$0xff]
    %v9957 = vld [vmem:[#allocation33 + $0xe0] sm:$0xff]
    %v9958 = vld [vmem:[#allocation33 + $0xe8] sm:$0xff]
    %v9959 = vld [vmem:[#allocation33 + $0xf0] sm:$0xff]
    %v9960 = vld [vmem:[#allocation33 + $0xf8] sm:$0xff]
    %v9961 = vadd.f32 %v9803, %v9929
    %v9962 = vadd.f32 %v9806, %v9930
    %v9963 = vadd.f32 %v9811, %v9931
    %v9964 = vadd.f32 %v9814, %v9932
    %v9965 = vadd.f32 %v9819, %v9933
    %v9966 = vadd.f32 %v9822, %v9934
    %v9967 = vadd.f32 %v9827, %v9935
    %v9968 = vadd.f32 %v9830, %v9936
    %v9969 = vadd.f32 %v9835, %v9937
    %v9970 = vadd.f32 %v9838, %v9938
    %v9971 = vadd.f32 %v9843, %v9939
    %v9972 = vadd.f32 %v9846, %v9940
    %v9973 = vadd.f32 %v9851, %v9941
    %v9974 = vadd.f32 %v9854, %v9942
    %v9975 = vadd.f32 %v9859, %v9943
    %v9976 = vadd.f32 %v9862, %v9944
    %v9977 = vadd.f32 %v9867, %v9945
    %v9978 = vadd.f32 %v9870, %v9946
    %v9979 = vadd.f32 %v9875, %v9947
    %v9980 = vadd.f32 %v9878, %v9948
    %v9981 = vadd.f32 %v9883, %v9949
    %v9982 = vadd.f32 %v9886, %v9950
    %v9983 = vadd.f32 %v9891, %v9951
    %v9984 = vadd.f32 %v9894, %v9952
    %v9985 = vadd.f32 %v9899, %v9953
    %v9986 = vadd.f32 %v9902, %v9954
    %v9987 = vadd.f32 %v9907, %v9955
    %v9988 = vadd.f32 %v9910, %v9956
    %v9989 = vadd.f32 %v9915, %v9957
    %v9990 = vadd.f32 %v9918, %v9958
    %v9991 = vadd.f32 %v9923, %v9959
    %v9992 = vadd.f32 %v9926, %v9960
    %9993 = vst.msk [vmem:[#allocation38] sm:$0xff] %vm558, %v9961
    %9994 = vst.msk [vmem:[#allocation38 + $0x8] sm:$0xff] %vm558, %v9962
    %9995 = vst.msk [vmem:[#allocation38 + $0x10] sm:$0xff] %vm558, %v9963
    %9996 = vst.msk [vmem:[#allocation38 + $0x18] sm:$0xff] %vm558, %v9964
    %9997 = vst.msk [vmem:[#allocation38 + $0x20] sm:$0xff] %vm558, %v9965
    %9998 = vst.msk [vmem:[#allocation38 + $0x28] sm:$0xff] %vm558, %v9966
    %9999 = vst.msk [vmem:[#allocation38 + $0x30] sm:$0xff] %vm558, %v9967
    %10000 = vst.msk [vmem:[#allocation38 + $0x38] sm:$0xff] %vm558, %v9968
    %10001 = vst.msk [vmem:[#allocation38 + $0x40] sm:$0xff] %vm558, %v9969
    %10002 = vst.msk [vmem:[#allocation38 + $0x48] sm:$0xff] %vm558, %v9970
    %10003 = vst.msk [vmem:[#allocation38 + $0x50] sm:$0xff] %vm558, %v9971
    %10004 = vst.msk [vmem:[#allocation38 + $0x58] sm:$0xff] %vm558, %v9972
    %10005 = vst.msk [vmem:[#allocation38 + $0x60] sm:$0xff] %vm558, %v9973
    %10006 = vst.msk [vmem:[#allocation38 + $0x68] sm:$0xff] %vm558, %v9974
    %10007 = vst.msk [vmem:[#allocation38 + $0x70] sm:$0xff] %vm558, %v9975
    %10008 = vst.msk [vmem:[#allocation38 + $0x78] sm:$0xff] %vm558, %v9976
    %10009 = vst.msk [vmem:[#allocation38 + $0x80] sm:$0xff] %vm558, %v9977
    %10010 = vst.msk [vmem:[#allocation38 + $0x88] sm:$0xff] %vm558, %v9978
    %10011 = vst.msk [vmem:[#allocation38 + $0x90] sm:$0xff] %vm558, %v9979
    %10012 = vst.msk [vmem:[#allocation38 + $0x98] sm:$0xff] %vm558, %v9980
    %10013 = vst.msk [vmem:[#allocation38 + $0xa0] sm:$0xff] %vm558, %v9981
    %10014 = vst.msk [vmem:[#allocation38 + $0xa8] sm:$0xff] %vm558, %v9982
    %10015 = vst.msk [vmem:[#allocation38 + $0xb0] sm:$0xff] %vm558, %v9983
    %10016 = vst.msk [vmem:[#allocation38 + $0xb8] sm:$0xff] %vm558, %v9984
    %10017 = vst.msk [vmem:[#allocation38 + $0xc0] sm:$0xff] %vm558, %v9985
    %10018 = vst.msk [vmem:[#allocation38 + $0xc8] sm:$0xff] %vm558, %v9986
    %10019 = vst.msk [vmem:[#allocation38 + $0xd0] sm:$0xff] %vm558, %v9987
    %10020 = vst.msk [vmem:[#allocation38 + $0xd8] sm:$0xff] %vm558, %v9988
    %10021 = vst.msk [vmem:[#allocation38 + $0xe0] sm:$0xff] %vm558, %v9989
    %10022 = vst.msk [vmem:[#allocation38 + $0xe8] sm:$0xff] %vm558, %v9990
    %10023 = vst.msk [vmem:[#allocation38 + $0xf0] sm:$0xff] %vm558, %v9991
    %10024 = vst.msk [vmem:[#allocation38 + $0xf8] sm:$0xff] %vm558, %v9992
    %v10025 = vld [vmem:[#allocation35] sm:$0x1]
    %v10027 = vlaneseq
    %v10028 = vshrl.u32 %v10027, 7
    %v10029 = vsub.s32 0, %v10028
    %v10030 = vrot.slane %v10025, %v10029
    %10031 = vrot.lane.b32.xlu0 %v10030, 8
    %v10032 = vpop.permute.xlu0 %10031
    %v10034 = vmul.f32 %v9803, %v10032
    %v10035 = vmul.f32 %v9806, %v10032
    %v10036 = vmul.f32 %v9811, %v10032
    %v10037 = vmul.f32 %v9814, %v10032
    %v10038 = vmul.f32 %v9819, %v10032
    %v10039 = vmul.f32 %v9822, %v10032
    %v10040 = vmul.f32 %v9827, %v10032
    %v10041 = vmul.f32 %v9830, %v10032
    %v10042 = vmul.f32 %v9835, %v10032
    %v10043 = vmul.f32 %v9838, %v10032
    %v10044 = vmul.f32 %v9843, %v10032
    %v10045 = vmul.f32 %v9846, %v10032
    %v10046 = vmul.f32 %v9851, %v10032
    %v10047 = vmul.f32 %v9854, %v10032
    %v10048 = vmul.f32 %v9859, %v10032
    %v10049 = vmul.f32 %v9862, %v10032
    %v10050 = vmul.f32 %v9867, %v10032
    %v10051 = vmul.f32 %v9870, %v10032
    %v10052 = vmul.f32 %v9875, %v10032
    %v10053 = vmul.f32 %v9878, %v10032
    %v10054 = vmul.f32 %v9883, %v10032
    %v10055 = vmul.f32 %v9886, %v10032
    %v10056 = vmul.f32 %v9891, %v10032
    %v10057 = vmul.f32 %v9894, %v10032
    %v10058 = vmul.f32 %v9899, %v10032
    %v10059 = vmul.f32 %v9902, %v10032
    %v10060 = vmul.f32 %v9907, %v10032
    %v10061 = vmul.f32 %v9910, %v10032
    %v10062 = vmul.f32 %v9915, %v10032
    %v10063 = vmul.f32 %v9918, %v10032
    %v10064 = vmul.f32 %v9923, %v10032
    %v10065 = vmul.f32 %v9926, %v10032
    %v10066 = vld [vmem:[#allocation36] sm:$0x1]
    %v10068 = vlaneseq
    %v10069 = vshrl.u32 %v10068, 7
    %v10070 = vsub.s32 0, %v10069
    %v10071 = vrot.slane %v10066, %v10070
    %10072 = vrot.lane.b32.xlu0 %v10071, 8
    %v10073 = vpop.permute.xlu0 %10072
    %v10075 = vadd.f32 %v10034, %v10073
    %v10076 = vadd.f32 %v10035, %v10073
    %v10077 = vadd.f32 %v10036, %v10073
    %v10078 = vadd.f32 %v10037, %v10073
    %v10079 = vadd.f32 %v10038, %v10073
    %v10080 = vadd.f32 %v10039, %v10073
    %v10081 = vadd.f32 %v10040, %v10073
    %v10082 = vadd.f32 %v10041, %v10073
    %v10083 = vadd.f32 %v10042, %v10073
    %v10084 = vadd.f32 %v10043, %v10073
    %v10085 = vadd.f32 %v10044, %v10073
    %v10086 = vadd.f32 %v10045, %v10073
    %v10087 = vadd.f32 %v10046, %v10073
    %v10088 = vadd.f32 %v10047, %v10073
    %v10089 = vadd.f32 %v10048, %v10073
    %v10090 = vadd.f32 %v10049, %v10073
    %v10091 = vadd.f32 %v10050, %v10073
    %v10092 = vadd.f32 %v10051, %v10073
    %v10093 = vadd.f32 %v10052, %v10073
    %v10094 = vadd.f32 %v10053, %v10073
    %v10095 = vadd.f32 %v10054, %v10073
    %v10096 = vadd.f32 %v10055, %v10073
    %v10097 = vadd.f32 %v10056, %v10073
    %v10098 = vadd.f32 %v10057, %v10073
    %v10099 = vadd.f32 %v10058, %v10073
    %v10100 = vadd.f32 %v10059, %v10073
    %v10101 = vadd.f32 %v10060, %v10073
    %v10102 = vadd.f32 %v10061, %v10073
    %v10103 = vadd.f32 %v10062, %v10073
    %v10104 = vadd.f32 %v10063, %v10073
    %v10105 = vadd.f32 %v10064, %v10073
    %v10106 = vadd.f32 %v10065, %v10073
    %v10107 = vsub.f32 0.0, %v10075
    %v10108 = vsub.f32 0.0, %v10076
    %v10109 = vsub.f32 0.0, %v10077
    %v10110 = vsub.f32 0.0, %v10078
    %v10111 = vsub.f32 0.0, %v10079
    %v10112 = vsub.f32 0.0, %v10080
    %v10113 = vsub.f32 0.0, %v10081
    %v10114 = vsub.f32 0.0, %v10082
    %v10115 = vsub.f32 0.0, %v10083
    %v10116 = vsub.f32 0.0, %v10084
    %v10117 = vsub.f32 0.0, %v10085
    %v10118 = vsub.f32 0.0, %v10086
    %v10119 = vsub.f32 0.0, %v10087
    %v10120 = vsub.f32 0.0, %v10088
    %v10121 = vsub.f32 0.0, %v10089
    %v10122 = vsub.f32 0.0, %v10090
    %v10123 = vsub.f32 0.0, %v10091
    %v10124 = vsub.f32 0.0, %v10092
    %v10125 = vsub.f32 0.0, %v10093
    %v10126 = vsub.f32 0.0, %v10094
    %v10127 = vsub.f32 0.0, %v10095
    %v10128 = vsub.f32 0.0, %v10096
    %v10129 = vsub.f32 0.0, %v10097
    %v10130 = vsub.f32 0.0, %v10098
    %v10131 = vsub.f32 0.0, %v10099
    %v10132 = vsub.f32 0.0, %v10100
    %v10133 = vsub.f32 0.0, %v10101
    %v10134 = vsub.f32 0.0, %v10102
    %v10135 = vsub.f32 0.0, %v10103
    %v10136 = vsub.f32 0.0, %v10104
    %v10137 = vsub.f32 0.0, %v10105
    %v10138 = vsub.f32 0.0, %v10106
    %v10139 = vmul.f32 %v10107, 1.442695
    %v10140 = vpow.pop %v10139
    %v10141 = vmul.f32 %v10108, 1.442695
    %v10142 = vpow.pop %v10141
    %v10143 = vmul.f32 %v10109, 1.442695
    %v10144 = vpow.pop %v10143
    %v10145 = vmul.f32 %v10110, 1.442695
    %v10146 = vpow.pop %v10145
    %v10147 = vmul.f32 %v10111, 1.442695
    %v10148 = vpow.pop %v10147
    %v10149 = vmul.f32 %v10112, 1.442695
    %v10150 = vpow.pop %v10149
    %v10151 = vmul.f32 %v10113, 1.442695
    %v10152 = vpow.pop %v10151
    %v10153 = vmul.f32 %v10114, 1.442695
    %v10154 = vpow.pop %v10153
    %v10155 = vmul.f32 %v10115, 1.442695
    %v10156 = vpow.pop %v10155
    %v10157 = vmul.f32 %v10116, 1.442695
    %v10158 = vpow.pop %v10157
    %v10159 = vmul.f32 %v10117, 1.442695
    %v10160 = vpow.pop %v10159
    %v10161 = vmul.f32 %v10118, 1.442695
    %v10162 = vpow.pop %v10161
    %v10163 = vmul.f32 %v10119, 1.442695
    %v10164 = vpow.pop %v10163
    %v10165 = vmul.f32 %v10120, 1.442695
    %v10166 = vpow.pop %v10165
    %v10167 = vmul.f32 %v10121, 1.442695
    %v10168 = vpow.pop %v10167
    %v10169 = vmul.f32 %v10122, 1.442695
    %v10170 = vpow.pop %v10169
    %v10171 = vmul.f32 %v10123, 1.442695
    %v10172 = vpow.pop %v10171
    %v10173 = vmul.f32 %v10124, 1.442695
    %v10174 = vpow.pop %v10173
    %v10175 = vmul.f32 %v10125, 1.442695
    %v10176 = vpow.pop %v10175
    %v10177 = vmul.f32 %v10126, 1.442695
    %v10178 = vpow.pop %v10177
    %v10179 = vmul.f32 %v10127, 1.442695
    %v10180 = vpow.pop %v10179
    %v10181 = vmul.f32 %v10128, 1.442695
    %v10182 = vpow.pop %v10181
    %v10183 = vmul.f32 %v10129, 1.442695
    %v10184 = vpow.pop %v10183
    %v10185 = vmul.f32 %v10130, 1.442695
    %v10186 = vpow.pop %v10185
    %v10187 = vmul.f32 %v10131, 1.442695
    %v10188 = vpow.pop %v10187
    %v10189 = vmul.f32 %v10132, 1.442695
    %v10190 = vpow.pop %v10189
    %v10191 = vmul.f32 %v10133, 1.442695
    %v10192 = vpow.pop %v10191
    %v10193 = vmul.f32 %v10134, 1.442695
    %v10194 = vpow.pop %v10193
    %v10195 = vmul.f32 %v10135, 1.442695
    %v10196 = vpow.pop %v10195
    %v10197 = vmul.f32 %v10136, 1.442695
    %v10198 = vpow.pop %v10197
    %v10199 = vmul.f32 %v10137, 1.442695
    %v10200 = vpow.pop %v10199
    %v10201 = vmul.f32 %v10138, 1.442695
    %v10202 = vpow.pop %v10201
    %v10203 = vadd.f32 %v10140, 1.0
    %v10204 = vadd.f32 %v10142, 1.0
    %v10205 = vadd.f32 %v10144, 1.0
    %v10206 = vadd.f32 %v10146, 1.0
    %v10207 = vadd.f32 %v10148, 1.0
    %v10208 = vadd.f32 %v10150, 1.0
    %v10209 = vadd.f32 %v10152, 1.0
    %v10210 = vadd.f32 %v10154, 1.0
    %v10211 = vadd.f32 %v10156, 1.0
    %v10212 = vadd.f32 %v10158, 1.0
    %v10213 = vadd.f32 %v10160, 1.0
    %v10214 = vadd.f32 %v10162, 1.0
    %v10215 = vadd.f32 %v10164, 1.0
    %v10216 = vadd.f32 %v10166, 1.0
    %v10217 = vadd.f32 %v10168, 1.0
    %v10218 = vadd.f32 %v10170, 1.0
    %v10219 = vadd.f32 %v10172, 1.0
    %v10220 = vadd.f32 %v10174, 1.0
    %v10221 = vadd.f32 %v10176, 1.0
    %v10222 = vadd.f32 %v10178, 1.0
    %v10223 = vadd.f32 %v10180, 1.0
    %v10224 = vadd.f32 %v10182, 1.0
    %v10225 = vadd.f32 %v10184, 1.0
    %v10226 = vadd.f32 %v10186, 1.0
    %v10227 = vadd.f32 %v10188, 1.0
    %v10228 = vadd.f32 %v10190, 1.0
    %v10229 = vadd.f32 %v10192, 1.0
    %v10230 = vadd.f32 %v10194, 1.0
    %v10231 = vadd.f32 %v10196, 1.0
    %v10232 = vadd.f32 %v10198, 1.0
    %v10233 = vadd.f32 %v10200, 1.0
    %v10234 = vadd.f32 %v10202, 1.0
    %v10235 = vrcp.pop %v10203
    %v10236 = vrcp.pop %v10204
    %v10237 = vrcp.pop %v10205
    %v10238 = vrcp.pop %v10206
    %v10239 = vrcp.pop %v10207
    %v10240 = vrcp.pop %v10208
    %v10241 = vrcp.pop %v10209
    %v10242 = vrcp.pop %v10210
    %v10243 = vrcp.pop %v10211
    %v10244 = vrcp.pop %v10212
    %v10245 = vrcp.pop %v10213
    %v10246 = vrcp.pop %v10214
    %v10247 = vrcp.pop %v10215
    %v10248 = vrcp.pop %v10216
    %v10249 = vrcp.pop %v10217
    %v10250 = vrcp.pop %v10218
    %v10251 = vrcp.pop %v10219
    %v10252 = vrcp.pop %v10220
    %v10253 = vrcp.pop %v10221
    %v10254 = vrcp.pop %v10222
    %v10255 = vrcp.pop %v10223
    %v10256 = vrcp.pop %v10224
    %v10257 = vrcp.pop %v10225
    %v10258 = vrcp.pop %v10226
    %v10259 = vrcp.pop %v10227
    %v10260 = vrcp.pop %v10228
    %v10261 = vrcp.pop %v10229
    %v10262 = vrcp.pop %v10230
    %v10263 = vrcp.pop %v10231
    %v10264 = vrcp.pop %v10232
    %v10265 = vrcp.pop %v10233
    %v10266 = vrcp.pop %v10234
    %v10267 = vmul.f32 %v10075, %v10235
    %v10268 = vmul.f32 %v10076, %v10236
    %v10269 = vmul.f32 %v10077, %v10237
    %v10270 = vmul.f32 %v10078, %v10238
    %v10271 = vmul.f32 %v10079, %v10239
    %v10272 = vmul.f32 %v10080, %v10240
    %v10273 = vmul.f32 %v10081, %v10241
    %v10274 = vmul.f32 %v10082, %v10242
    %v10275 = vmul.f32 %v10083, %v10243
    %v10276 = vmul.f32 %v10084, %v10244
    %v10277 = vmul.f32 %v10085, %v10245
    %v10278 = vmul.f32 %v10086, %v10246
    %v10279 = vmul.f32 %v10087, %v10247
    %v10280 = vmul.f32 %v10088, %v10248
    %v10281 = vmul.f32 %v10089, %v10249
    %v10282 = vmul.f32 %v10090, %v10250
    %v10283 = vmul.f32 %v10091, %v10251
    %v10284 = vmul.f32 %v10092, %v10252
    %v10285 = vmul.f32 %v10093, %v10253
    %v10286 = vmul.f32 %v10094, %v10254
    %v10287 = vmul.f32 %v10095, %v10255
    %v10288 = vmul.f32 %v10096, %v10256
    %v10289 = vmul.f32 %v10097, %v10257
    %v10290 = vmul.f32 %v10098, %v10258
    %v10291 = vmul.f32 %v10099, %v10259
    %v10292 = vmul.f32 %v10100, %v10260
    %v10293 = vmul.f32 %v10101, %v10261
    %v10294 = vmul.f32 %v10102, %v10262
    %v10295 = vmul.f32 %v10103, %v10263
    %v10296 = vmul.f32 %v10104, %v10264
    %v10297 = vmul.f32 %v10105, %v10265
    %v10298 = vmul.f32 %v10106, %v10266
    %10331 = vrot.lane.b32.xlu0 %v10267, 120
    %v10332 = vpop.permute.xlu0 %10331
    %10333 = vrot.lane.b32.xlu0 %v10268, 120
    %v10334 = vpop.permute.xlu0 %10333
    %10335 = vrot.lane.b32.xlu0 %v10269, 120
    %v10336 = vpop.permute.xlu0 %10335
    %10337 = vrot.lane.b32.xlu0 %v10270, 120
    %v10338 = vpop.permute.xlu0 %10337
    %10339 = vrot.lane.b32.xlu0 %v10271, 120
    %v10340 = vpop.permute.xlu0 %10339
    %10341 = vrot.lane.b32.xlu0 %v10272, 120
    %v10342 = vpop.permute.xlu0 %10341
    %10343 = vrot.lane.b32.xlu0 %v10273, 120
    %v10344 = vpop.permute.xlu0 %10343
    %10345 = vrot.lane.b32.xlu0 %v10274, 120
    %v10346 = vpop.permute.xlu0 %10345
    %10347 = vrot.lane.b32.xlu0 %v10275, 120
    %v10348 = vpop.permute.xlu0 %10347
    %10349 = vrot.lane.b32.xlu0 %v10276, 120
    %v10350 = vpop.permute.xlu0 %10349
    %10351 = vrot.lane.b32.xlu0 %v10277, 120
    %v10352 = vpop.permute.xlu0 %10351
    %10353 = vrot.lane.b32.xlu0 %v10278, 120
    %v10354 = vpop.permute.xlu0 %10353
    %10355 = vrot.lane.b32.xlu0 %v10279, 120
    %v10356 = vpop.permute.xlu0 %10355
    %10357 = vrot.lane.b32.xlu0 %v10280, 120
    %v10358 = vpop.permute.xlu0 %10357
    %10359 = vrot.lane.b32.xlu0 %v10281, 120
    %v10360 = vpop.permute.xlu0 %10359
    %10361 = vrot.lane.b32.xlu0 %v10282, 120
    %v10362 = vpop.permute.xlu0 %10361
    %10363 = vrot.lane.b32.xlu0 %v10283, 120
    %v10364 = vpop.permute.xlu0 %10363
    %10365 = vrot.lane.b32.xlu0 %v10284, 120
    %v10366 = vpop.permute.xlu0 %10365
    %10367 = vrot.lane.b32.xlu0 %v10285, 120
    %v10368 = vpop.permute.xlu0 %10367
    %10369 = vrot.lane.b32.xlu0 %v10286, 120
    %v10370 = vpop.permute.xlu0 %10369
    %10371 = vrot.lane.b32.xlu0 %v10287, 120
    %v10372 = vpop.permute.xlu0 %10371
    %10373 = vrot.lane.b32.xlu0 %v10288, 120
    %v10374 = vpop.permute.xlu0 %10373
    %10375 = vrot.lane.b32.xlu0 %v10289, 120
    %v10376 = vpop.permute.xlu0 %10375
    %10377 = vrot.lane.b32.xlu0 %v10290, 120
    %v10378 = vpop.permute.xlu0 %10377
    %10379 = vrot.lane.b32.xlu0 %v10291, 120
    %v10380 = vpop.permute.xlu0 %10379
    %10381 = vrot.lane.b32.xlu0 %v10292, 120
    %v10382 = vpop.permute.xlu0 %10381
    %10383 = vrot.lane.b32.xlu0 %v10293, 120
    %v10384 = vpop.permute.xlu0 %10383
    %10385 = vrot.lane.b32.xlu0 %v10294, 120
    %v10386 = vpop.permute.xlu0 %10385
    %10387 = vrot.lane.b32.xlu0 %v10295, 120
    %v10388 = vpop.permute.xlu0 %10387
    %10389 = vrot.lane.b32.xlu0 %v10296, 120
    %v10390 = vpop.permute.xlu0 %10389
    %10391 = vrot.lane.b32.xlu0 %v10297, 120
    %v10392 = vpop.permute.xlu0 %10391
    %10393 = vrot.lane.b32.xlu0 %v10298, 120
    %v10394 = vpop.permute.xlu0 %10393
    %10427 = vst.msk [vmem:[#allocation39] sm:$0xff] %vm558, %v10332
    %10428 = vst.msk [vmem:[#allocation39 + $0x8] sm:$0xff] %vm558, %v10334
    %10429 = vst.msk [vmem:[#allocation39 + $0x10] sm:$0xff] %vm558, %v10336
    %10430 = vst.msk [vmem:[#allocation39 + $0x18] sm:$0xff] %vm558, %v10338
    %10431 = vst.msk [vmem:[#allocation39 + $0x20] sm:$0xff] %vm558, %v10340
    %10432 = vst.msk [vmem:[#allocation39 + $0x28] sm:$0xff] %vm558, %v10342
    %10433 = vst.msk [vmem:[#allocation39 + $0x30] sm:$0xff] %vm558, %v10344
    %10434 = vst.msk [vmem:[#allocation39 + $0x38] sm:$0xff] %vm558, %v10346
    %10435 = vst.msk [vmem:[#allocation39 + $0x40] sm:$0xff] %vm558, %v10348
    %10436 = vst.msk [vmem:[#allocation39 + $0x48] sm:$0xff] %vm558, %v10350
    %10437 = vst.msk [vmem:[#allocation39 + $0x50] sm:$0xff] %vm558, %v10352
    %10438 = vst.msk [vmem:[#allocation39 + $0x58] sm:$0xff] %vm558, %v10354
    %10439 = vst.msk [vmem:[#allocation39 + $0x60] sm:$0xff] %vm558, %v10356
    %10440 = vst.msk [vmem:[#allocation39 + $0x68] sm:$0xff] %vm558, %v10358
    %10441 = vst.msk [vmem:[#allocation39 + $0x70] sm:$0xff] %vm558, %v10360
    %10442 = vst.msk [vmem:[#allocation39 + $0x78] sm:$0xff] %vm558, %v10362
    %10443 = vst.msk [vmem:[#allocation39 + $0x80] sm:$0xff] %vm558, %v10364
    %10444 = vst.msk [vmem:[#allocation39 + $0x88] sm:$0xff] %vm558, %v10366
    %10445 = vst.msk [vmem:[#allocation39 + $0x90] sm:$0xff] %vm558, %v10368
    %10446 = vst.msk [vmem:[#allocation39 + $0x98] sm:$0xff] %vm558, %v10370
    %10447 = vst.msk [vmem:[#allocation39 + $0xa0] sm:$0xff] %vm558, %v10372
    %10448 = vst.msk [vmem:[#allocation39 + $0xa8] sm:$0xff] %vm558, %v10374
    %10449 = vst.msk [vmem:[#allocation39 + $0xb0] sm:$0xff] %vm558, %v10376
    %10450 = vst.msk [vmem:[#allocation39 + $0xb8] sm:$0xff] %vm558, %v10378
    %10451 = vst.msk [vmem:[#allocation39 + $0xc0] sm:$0xff] %vm558, %v10380
    %10452 = vst.msk [vmem:[#allocation39 + $0xc8] sm:$0xff] %vm558, %v10382
    %10453 = vst.msk [vmem:[#allocation39 + $0xd0] sm:$0xff] %vm558, %v10384
    %10454 = vst.msk [vmem:[#allocation39 + $0xd8] sm:$0xff] %vm558, %v10386
    %10455 = vst.msk [vmem:[#allocation39 + $0xe0] sm:$0xff] %vm558, %v10388
    %10456 = vst.msk [vmem:[#allocation39 + $0xe8] sm:$0xff] %vm558, %v10390
    %10457 = vst.msk [vmem:[#allocation39 + $0xf0] sm:$0xff] %vm558, %v10392
    %10458 = vst.msk [vmem:[#allocation39 + $0xf8] sm:$0xff] %vm558, %v10394
    // Predicated region
    $region178: #{policy_value_forward.2} parent=1 // pred_check
      _
    $region179: #{policy_value_forward.2} parent=1 // pred_check_branch
      %10460 = sbr.rel (0) target = $region181
    $region180: #{policy_value_forward.2} parent=1 // pred_region
      %s10462 = ssub.s32 4096, 4096
      %10463 = vsyncadd [#allocation5], %s10462
      %s10464 = sshll.u32 [#allocation38], 4
      %s10465 = int_to_ptr.vmem [resolvable:$true] %s10464
      %10470 = dma.vmem_to_hbm [thread:$0]  %s10465, 4096, %s22, [#allocation5], 128, 128, 8
    $region181: #{policy_value_forward.2} parent=1 // pred_fallthru
      _
    // Predicated region
    $region182: #{policy_value_forward.2} parent=1 // pred_check
      _
    $region183: #{policy_value_forward.2} parent=1 // pred_check_branch
      %10472 = sbr.rel (0) target = $region185
    $region184: #{policy_value_forward.2} parent=1 // pred_region
      %s10474 = ssub.s32 4096, 4096
      %10475 = vsyncadd [#allocation40], %s10474
      %s10476 = sshll.u32 [#allocation39], 4
      %s10477 = int_to_ptr.vmem [resolvable:$true] %s10476
      %10482 = dma.vmem_to_hbm [thread:$0]  %s10477, 4096, %s23, [#allocation40], 128, 128, 8
    $region185: #{policy_value_forward.2} parent=1 // pred_fallthru
      _
    // Predicated region
    $region186: #{policy_value_forward.2} parent=1 // pred_check
      _
    $region187: #{policy_value_forward.2} parent=1 // pred_check_branch
      %10484 = sbr.rel (0) target = $region189
    $region188: #{policy_value_forward.2} parent=1 // pred_region
      %10485 = dma.done [#allocation5], 4096
    $region189: #{policy_value_forward.2} parent=1 // pred_fallthru
      _
    // Predicated region
    $region190: #{policy_value_forward.2} parent=1 // pred_check
      _
    $region191: #{policy_value_forward.2} parent=1 // pred_check_branch
      %10487 = sbr.rel (0) target = $region193
    $region192: #{policy_value_forward.2} parent=1 // pred_region
      %10488 = dma.done [#allocation40], 4096
    $region193: #{policy_value_forward.2} parent=1 // pred_fallthru
      _
    %10489 = vsyncpa [#allocation4], 1
    %10490 = vsyncpa [#allocation7], 1
    %10491 = vsyncpa [#allocation10], 1
    %10492 = vsyncpa [#allocation13], 1
    %10493 = vsyncpa [#allocation16], 1
    %10494 = vsyncpa [#allocation19], 1
    %10495 = vsyncpa [#allocation22], 1
    %10496 = vsyncpa [#allocation25], 1
    %10497 = vsyncpa [#allocation28], 1
    %10498 = vsyncpa [#allocation31], 1
    %10499 = vsyncpa [#allocation34], 1
    %10500 = vsyncpa [#allocation37], 1
    %10501 = vsyncpa [#allocation5], 1
    %10502 = vsyncpa [#allocation40], 1

</llo_original>
